<compile_context>
chip_gen: v6e
topology: v6e:2x2x1
jax: 0.10.0
libtpu: 0.0.40
codegen_flags: <defaults>
</compile_context>

<pallas_src>
import functools

import jax
import jax.numpy as jnp
from jax.experimental import pallas as pl
from jax.experimental.pallas import tpu as pltpu

_EPS = 1e-5   # nn.BatchNorm2d default eps
_K = 4        # all ConvTranspose2d layers use 4x4 kernels
_VMEM_LIMIT = 32 * 1024 * 1024


def _round_up(x, m):
    return (x + m - 1) // m * m


def _fit_tile(dim_padded, pref, step):
    """Largest tile <= pref (multiple of `step`) that divides dim_padded."""
    t = min(pref, dim_padded)
    while dim_padded % t:
        t -= step
    return t


# ---------------------------------------------------------------------------
# Pallas kernels
# ---------------------------------------------------------------------------
def _mm_kernel(c_ref, w_ref, o_ref, acc_ref, *, activation):
    """Batched tiled matmul: grid = (parity, row_tile, col_tile, k_tile)."""
    @pl.when(pl.program_id(3) == 0)
    def _():
        acc_ref[...] = jnp.zeros_like(acc_ref)

    acc_ref[...] += jnp.dot(c_ref[0], w_ref[0],
                            preferred_element_type=jnp.float32)

    @pl.when(pl.program_id(3) == pl.num_programs(3) - 1)
    def _():
        y = acc_ref[...]
        if activation == "tanh":
            y = jnp.tanh(y)
        o_ref[0] = y


def _stats_kernel(y_ref, sum_ref, sq_ref):
    """Accumulate per-channel sum and sum-of-squares over row tiles."""
    @pl.when(pl.program_id(0) == 0)
    def _():
        sum_ref[...] = jnp.zeros_like(sum_ref)
        sq_ref[...] = jnp.zeros_like(sq_ref)
    y = y_ref[...]
    sum_ref[...] += jnp.sum(y, axis=0, keepdims=True)
    sq_ref[...] += jnp.sum(y * y, axis=0, keepdims=True)


def _scale_shift_relu_kernel(y_ref, scale_ref, shift_ref, o_ref):
    o_ref[...] = jnp.maximum(y_ref[...] * scale_ref[...] + shift_ref[...], 0.0)


# ---------------------------------------------------------------------------
# pallas_call wrappers
# ---------------------------------------------------------------------------
def _batched_matmul(cols, wmat, *, activation="none"):
    """cols: (P, R, K) f32, wmat: (P, K, C) f32 -> raw output (P, Rp, Cp) f32."""
    P, R, K = cols.shape
    C = wmat.shape[-1]

    tm = min(512, _round_up(R, 8))
    Rp = _round_up(R, tm)
    Kp = _round_up(K, 128)
    tk = _fit_tile(Kp, 512, 128)
    Cp = _round_up(C, 128)
    tn = _fit_tile(Cp, 256, 128)

    cols_p = jnp.pad(cols, ((0, 0), (0, Rp - R), (0, Kp - K))).astype(jnp.bfloat16)
    wmat_p = jnp.pad(wmat, ((0, 0), (0, Kp - K), (0, Cp - C))).astype(jnp.bfloat16)

    y = pl.pallas_call(
        functools.partial(_mm_kernel, activation=activation),
        out_shape=jax.ShapeDtypeStruct((P, Rp, Cp), jnp.float32),
        grid=(P, Rp // tm, Cp // tn, Kp // tk),
        in_specs=[
            pl.BlockSpec((1, tm, tk), lambda p, i, j, k: (p, i, k)),
            pl.BlockSpec((1, tk, tn), lambda p, i, j, k: (p, k, j)),
        ],
        out_specs=pl.BlockSpec((1, tm, tn), lambda p, i, j, k: (p, i, j)),
        scratch_shapes=[pltpu.VMEM((tm, tn), jnp.float32)],
        compiler_params=pltpu.CompilerParams(
            dimension_semantics=("parallel", "parallel", "parallel", "arbitrary"),
            vmem_limit_bytes=_VMEM_LIMIT),
    )(cols_p, wmat_p)
    return y


def _batch_norm_relu(y, n_valid_rows, cout, gamma, beta):
    """Training-mode BN + ReLU on raw matmul output y: (P, Rp, Cp) f32.

    Padded rows/channels of y are exact zeros, so the sums below are exact
    when divided by the true element count n_valid_rows.
    """
    P, Rp, Cp = y.shape
    rows = P * Rp
    y2d = y.reshape(rows, Cp)
    tm = _fit_tile(rows, 512, 8)
    grid = (rows // tm,)

    s, sq = pl.pallas_call(
        _stats_kernel,
        out_shape=(jax.ShapeDtypeStruct((1, Cp), jnp.float32),
                   jax.ShapeDtypeStruct((1, Cp), jnp.float32)),
        grid=grid,
        in_specs=[pl.BlockSpec((tm, Cp), lambda i: (i, 0))],
        out_specs=(pl.BlockSpec((1, Cp), lambda i: (0, 0)),
                   pl.BlockSpec((1, Cp), lambda i: (0, 0))),
        compiler_params=pltpu.CompilerParams(
            dimension_semantics=("arbitrary",),
            vmem_limit_bytes=_VMEM_LIMIT),
    )(y2d)

    cnt = jnp.float32(n_valid_rows)
    mean = s / cnt
    var = jnp.maximum(sq / cnt - mean * mean, 0.0)   # biased (training-mode) variance
    g = jnp.pad(gamma.reshape(1, -1).astype(jnp.float32), ((0, 0), (0, Cp - cout)))
    b = jnp.pad(beta.reshape(1, -1).astype(jnp.float32), ((0, 0), (0, Cp - cout)))
    scale = g * jax.lax.rsqrt(var + _EPS)
    shift = b - mean * scale

    out = pl.pallas_call(
        _scale_shift_relu_kernel,
        out_shape=jax.ShapeDtypeStruct((rows, Cp), jnp.float32),
        grid=grid,
        in_specs=[pl.BlockSpec((tm, Cp), lambda i: (i, 0)),
                  pl.BlockSpec((1, Cp), lambda i: (0, 0)),
                  pl.BlockSpec((1, Cp), lambda i: (0, 0))],
        out_specs=pl.BlockSpec((tm, Cp), lambda i: (i, 0)),
        compiler_params=pltpu.CompilerParams(
            dimension_semantics=("parallel",),
            vmem_limit_bytes=_VMEM_LIMIT),
    )(y2d, scale, shift)
    return out.reshape(P, Rp, Cp)


# ---------------------------------------------------------------------------
# JAX glue: im2col views and matmul-ready weights
# ---------------------------------------------------------------------------
def _cols_stride1(x, pad):
    """General conv-transpose (stride=1) via conv on a padded input."""
    n, h, w, cin = x.shape
    p = _K - 1 - pad
    ho = h - 1 + _K - 2 * pad
    wo = w - 1 + _K - 2 * pad
    xd = jnp.pad(x, ((0, 0), (p, p), (p, p), (0, 0)))
    taps = [xd[:, kh:kh + ho, kw:kw + wo, :]
            for kh in range(_K) for kw in range(_K)]
    cols = jnp.concatenate(taps, axis=-1).reshape(1, n * ho * wo, _K * _K * cin)
    return cols, ho, wo


def _wmat_stride1(W):
    # W: (Cin, Cout, K, K) PyTorch ConvTranspose2d layout -> conv-view matrix
    wc = jnp.transpose(W[:, :, ::-1, ::-1], (2, 3, 0, 1))      # (K, K, Cin, Cout)
    return wc.reshape(1, _K * _K * W.shape[0], W.shape[1])


def _cols_stride2(x):
    """Sub-pixel decomposition for stride=2, pad=1, K=4: 4 parity classes,
    each needing only a 2x2 tap window (the other taps hit dilation zeros)."""
    n, h, w, cin = x.shape
    xp = jnp.pad(x, ((0, 0), (1, 1), (1, 1), (0, 0)))
    cols = []
    for ph in range(2):
        for pw in range(2):
            taps = [xp[:, ph + dh:ph + dh + h, pw + dw:pw + dw + w, :]
                    for dh in range(2) for dw in range(2)]
            cols.append(jnp.concatenate(taps, axis=-1).reshape(n * h * w, 4 * cin))
    return jnp.stack(cols), 2 * h, 2 * w            # (4, N*H*W, 4*Cin)


def _wmat_stride2(W):
    cin, cout = W.shape[0], W.shape[1]
    wc = jnp.transpose(W[:, :, ::-1, ::-1], (2, 3, 0, 1))       # (4, 4, Cin, Cout)
    mats = []
    for ph in range(2):
        for pw in range(2):
            sub = [wc[ph + 2 * dh, pw + 2 * dw]                  # (Cin, Cout)
                   for dh in range(2) for dw in range(2)]
            mats.append(jnp.concatenate(sub, axis=0))            # (4*Cin, Cout)
    return jnp.stack(mats)                                       # (4, 4*Cin, Cout)


def _interleave(y, n, h, w, c):
    """y: (4, n*h*w, c) in (ph, pw) order -> (n, 2h, 2w, c)."""
    y = y.reshape(2, 2, n, h, w, c)
    y = jnp.transpose(y, (2, 3, 0, 4, 1, 5))
    return y.reshape(n, 2 * h, 2 * w, c)


# ---------------------------------------------------------------------------
# Generator (deterministic synthetic parameters, DCGAN-style init)
# ---------------------------------------------------------------------------
class Generator:
    def __init__(self, NZ, NGF, key):
        # (cin, cout, stride, pad) per ConvTranspose2d layer
        self.specs = [
            (NZ,       NGF * 16, 1, 0),
            (NGF * 16, NGF * 8,  2, 1),
            (NGF * 8,  NGF * 4,  2, 1),
            (NGF * 4,  NGF * 2,  2, 1),
            (NGF * 2,  3,        2, 1),
        ]
        keys = jax.random.split(key, len(self.specs))
        self.wmats, self.gammas, self.betas = [], [], []
        for k, (cin, cout, stride, _pad) in zip(keys, self.specs):
            W = 0.02 * jax.random.normal(k, (cin, cout, _K, _K), jnp.float32)
            # precompute matmul-ready weights once (hoisted out of the forward)
            self.wmats.append(_wmat_stride1(W) if stride == 1 else _wmat_stride2(W))
            # BatchNorm2d default init: weight=1, bias=0
            self.gammas.append(jnp.ones((cout,), jnp.float32))
            self.betas.append(jnp.zeros((cout,), jnp.float32))

    def __call__(self, x_nchw):
        x = jnp.transpose(x_nchw, (0, 2, 3, 1)).astype(jnp.float32)   # NCHW -> NHWC
        last = len(self.specs) - 1
        for li, (_cin, cout, stride, pad) in enumerate(self.specs):
            n = x.shape[0]
            if stride == 1:
                cols, ho, wo = _cols_stride1(x, pad)
            else:
                cols, ho, wo = _cols_stride2(x)
            P, R = cols.shape[0], cols.shape[1]

            act = "tanh" if li == last else "none"
            y = _batched_matmul(cols, self.wmats[li], activation=act)

            if li != last:
                y = _batch_norm_relu(y, n_valid_rows=P * R, cout=cout,
                                     gamma=self.gammas[li], beta=self.betas[li])

            y = y[:, :R, :cout]            # drop row/channel padding
            if stride == 1:
                x = y.reshape(n, ho, wo, cout)
            else:
                x = _interleave(y, n, ho // 2, wo // 2, cout)
        return jnp.transpose(x, (0, 3, 1, 2))                         # NHWC -> NCHW


if __name__ == "__main__":
    key = jax.random.PRNGKey(0)
    kparams, kz = jax.random.split(key)

    N, NZ, NGF = 2, 8, 4
    gen = Generator(NZ, NGF, kparams)

    # DCGAN latent input: (N, NZ, 1, 1), NCHW like the PyTorch module
    z = jax.random.normal(kz, (N, NZ, 1, 1), jnp.float32)

    out = jax.jit(gen.__call__)(z)
    out = jax.block_until_ready(out)

    assert out.shape == (N, 3, 64, 64), out.shape
    assert bool(jnp.all(jnp.isfinite(out)))
    assert bool(jnp.all(jnp.abs(out) <= 1.0 + 1e-6))   # tanh range
    print("KERNEL_OK")
</pallas_src>

<mosaic_0001>
module attributes {stable_mosaic.version = 11 : i64} {
  func.func @_stats_kernel(%arg0: i32, %arg1: memref<32x128xf32, #tpu.memory_space<vmem>>, %arg2: memref<1x128xf32, #tpu.memory_space<vmem>>, %arg3: memref<1x128xf32, #tpu.memory_space<vmem>>) attributes {dimension_semantics = [#tpu.dimension_semantics<arbitrary>], iteration_bounds = array<i64: 1>, scalar_prefetch = 0 : i64, scratch_operands = 0 : i64, tpu.core_type = #tpu.core_type<tc>, window_params = [{transform_indices = @transform_0, window_bounds = array<i64: 32, 128>}, {pipeline_mode = #tpu.pipeline_mode<synchronous>, transform_indices = @transform_1, window_bounds = array<i64: 1, 128>}, {pipeline_mode = #tpu.pipeline_mode<synchronous>, transform_indices = @transform_2, window_bounds = array<i64: 1, 128>}]} {
    %c0_i32 = arith.constant 0 : i32
    %0 = arith.cmpi eq, %arg0, %c0_i32 : i32
    %1 = arith.extui %0 : i1 to i32
    %c0_i32_0 = arith.constant 0 : i32
    %2 = arith.cmpi ne, %1, %c0_i32_0 : i32
    scf.if %2 {
      %cst_11 = arith.constant 0.000000e+00 : f32
      %15 = vector.broadcast %cst_11 : f32 to vector<1x128xf32>
      %c0_12 = arith.constant 0 : index
      %c0_13 = arith.constant 0 : index
      %16 = vector.load %arg2[%c0_12, %c0_13] : memref<1x128xf32, #tpu.memory_space<vmem>>, vector<1x128xf32>
      tpu.vector_store %arg2[%c0_12, %c0_13], %15 {strides = array<i32>} : memref<1x128xf32, #tpu.memory_space<vmem>>, vector<1x128xf32>,
      %cst_14 = arith.constant 0.000000e+00 : f32
      %17 = vector.broadcast %cst_14 : f32 to vector<1x128xf32>
      %c0_15 = arith.constant 0 : index
      %c0_16 = arith.constant 0 : index
      %18 = vector.load %arg3[%c0_15, %c0_16] : memref<1x128xf32, #tpu.memory_space<vmem>>, vector<1x128xf32>
      tpu.vector_store %arg3[%c0_15, %c0_16], %17 {strides = array<i32>} : memref<1x128xf32, #tpu.memory_space<vmem>>, vector<1x128xf32>,
    } else {
    }
    %c0 = arith.constant 0 : index
    %c0_1 = arith.constant 0 : index
    %3 = vector.load %arg1[%c0, %c0_1] : memref<32x128xf32, #tpu.memory_space<vmem>>, vector<32x128xf32>
    %c0_2 = arith.constant 0 : index
    %c0_3 = arith.constant 0 : index
    %4 = vector.load %arg2[%c0_2, %c0_3] : memref<1x128xf32, #tpu.memory_space<vmem>>, vector<1x128xf32>
    %cst = arith.constant dense<0.000000e+00> : vector<128xf32>
    %5 = vector.multi_reduction <add>, %3, %cst [0] : vector<32x128xf32> to vector<128xf32>
    %6 = vector.shape_cast %5 : vector<128xf32> to vector<1x128xf32>
    %7 = arith.addf %4, %6 : vector<1x128xf32>
    %c0_4 = arith.constant 0 : index
    %c0_5 = arith.constant 0 : index
    %8 = vector.load %arg2[%c0_4, %c0_5] : memref<1x128xf32, #tpu.memory_space<vmem>>, vector<1x128xf32>
    tpu.vector_store %arg2[%c0_4, %c0_5], %7 {strides = array<i32>} : memref<1x128xf32, #tpu.memory_space<vmem>>, vector<1x128xf32>,
    %c0_6 = arith.constant 0 : index
    %c0_7 = arith.constant 0 : index
    %9 = vector.load %arg3[%c0_6, %c0_7] : memref<1x128xf32, #tpu.memory_space<vmem>>, vector<1x128xf32>
    %10 = arith.mulf %3, %3 : vector<32x128xf32>
    %cst_8 = arith.constant dense<0.000000e+00> : vector<128xf32>
    %11 = vector.multi_reduction <add>, %10, %cst_8 [0] : vector<32x128xf32> to vector<128xf32>
    %12 = vector.shape_cast %11 : vector<128xf32> to vector<1x128xf32>
    %13 = arith.addf %9, %12 : vector<1x128xf32>
    %c0_9 = arith.constant 0 : index
    %c0_10 = arith.constant 0 : index
    %14 = vector.load %arg3[%c0_9, %c0_10] : memref<1x128xf32, #tpu.memory_space<vmem>>, vector<1x128xf32>
    tpu.vector_store %arg3[%c0_9, %c0_10], %13 {strides = array<i32>} : memref<1x128xf32, #tpu.memory_space<vmem>>, vector<1x128xf32>,
    return
  }
  func.func @transform_0(%arg0: i32) -> (i32, i32) {
    %c0_i32 = arith.constant 0 : i32
    %c0_i32_0 = arith.constant 0 : i32
    return %arg0, %c0_i32 : i32, i32
  }
  func.func @transform_1(%arg0: i32) -> (i32, i32) {
    %c0_i32 = arith.constant 0 : i32
    %c0_i32_0 = arith.constant 0 : i32
    %c0_i32_1 = arith.constant 0 : i32
    return %c0_i32, %c0_i32_0 : i32, i32
  }
  func.func @transform_2(%arg0: i32) -> (i32, i32) {
    %c0_i32 = arith.constant 0 : i32
    %c0_i32_0 = arith.constant 0 : i32
    %c0_i32_1 = arith.constant 0 : i32
    return %c0_i32, %c0_i32_0 : i32, i32
  }
}

module attributes {stable_mosaic.version = 11 : i64} {
  func.func @_mm_kernel(%arg0: i32, %arg1: i32, %arg2: i32, %arg3: i32, %arg4: memref<1x32x128xbf16, #tpu.memory_space<vmem>>, %arg5: memref<1x128x128xbf16, #tpu.memory_space<vmem>>, %arg6: memref<1x32x128xf32, #tpu.memory_space<vmem>>, %arg7: memref<32x128xf32, #tpu.memory_space<vmem>>) attributes {dimension_semantics = [#tpu.dimension_semantics<parallel>, #tpu.dimension_semantics<parallel>, #tpu.dimension_semantics<parallel>, #tpu.dimension_semantics<arbitrary>], iteration_bounds = array<i64: 1, 1, 1, 1>, scalar_prefetch = 0 : i64, scratch_operands = 1 : i64, tpu.core_type = #tpu.core_type<tc>, window_params = [{transform_indices = @transform_0, window_bounds = array<i64: 1, 32, 128>}, {transform_indices = @transform_1, window_bounds = array<i64: 1, 128, 128>}, {transform_indices = @transform_2, window_bounds = array<i64: 1, 32, 128>}]} {
    %c0_i32 = arith.constant 0 : i32
    %0 = arith.cmpi eq, %arg3, %c0_i32 : i32
    %1 = arith.extui %0 : i1 to i32
    %c0_i32_0 = arith.constant 0 : i32
    %2 = arith.cmpi ne, %1, %c0_i32_0 : i32
    scf.if %2 {
      %cst_12 = arith.constant 0.000000e+00 : f32
      %14 = vector.broadcast %cst_12 : f32 to vector<32x128xf32>
      %c0_13 = arith.constant 0 : index
      %c0_14 = arith.constant 0 : index
      %15 = vector.load %arg7[%c0_13, %c0_14] : memref<32x128xf32, #tpu.memory_space<vmem>>, vector<32x128xf32>
      tpu.vector_store %arg7[%c0_13, %c0_14], %14 {strides = array<i32>} : memref<32x128xf32, #tpu.memory_space<vmem>>, vector<32x128xf32>,
    } else {
    }
    %c0 = arith.constant 0 : index
    %c0_1 = arith.constant 0 : index
    %3 = vector.load %arg7[%c0, %c0_1] : memref<32x128xf32, #tpu.memory_space<vmem>>, vector<32x128xf32>
    %c0_2 = arith.constant 0 : index
    %c0_3 = arith.constant 0 : index
    %c0_4 = arith.constant 0 : index
    %4 = vector.load %arg4[%c0_2, %c0_3, %c0_4] : memref<1x32x128xbf16, #tpu.memory_space<vmem>>, vector<1x32x128xbf16>
    %5 = vector.shape_cast %4 : vector<1x32x128xbf16> to vector<32x128xbf16>
    %c0_5 = arith.constant 0 : index
    %c0_6 = arith.constant 0 : index
    %c0_7 = arith.constant 0 : index
    %6 = vector.load %arg5[%c0_5, %c0_6, %c0_7] : memref<1x128x128xbf16, #tpu.memory_space<vmem>>, vector<1x128x128xbf16>
    %7 = vector.shape_cast %6 : vector<1x128x128xbf16> to vector<128x128xbf16>
    %cst = arith.constant dense<0.000000e+00> : vector<32x128xf32>
    %8 = tpu.matmul %5, %7, %cst {dimension_numbers = #tpu.dot_dimension_numbers<[1], [0], [0], [1], [0, 0, 1, 1], [], []>} : vector<32x128xbf16>, vector<128x128xbf16>, vector<32x128xf32> -> vector<32x128xf32>
    %9 = arith.addf %3, %8 : vector<32x128xf32>
    %c0_8 = arith.constant 0 : index
    %c0_9 = arith.constant 0 : index
    %10 = vector.load %arg7[%c0_8, %c0_9] : memref<32x128xf32, #tpu.memory_space<vmem>>, vector<32x128xf32>
    tpu.vector_store %arg7[%c0_8, %c0_9], %9 {strides = array<i32>} : memref<32x128xf32, #tpu.memory_space<vmem>>, vector<32x128xf32>,
    %c0_i32_10 = arith.constant 0 : i32
    %11 = arith.cmpi eq, %arg3, %c0_i32_10 : i32
    %12 = arith.extui %11 : i1 to i32
    %c0_i32_11 = arith.constant 0 : i32
    %13 = arith.cmpi ne, %12, %c0_i32_11 : i32
    scf.if %13 {
      %c0_12 = arith.constant 0 : index
      %c0_13 = arith.constant 0 : index
      %14 = vector.load %arg7[%c0_12, %c0_13] : memref<32x128xf32, #tpu.memory_space<vmem>>, vector<32x128xf32>
      %c0_14 = arith.constant 0 : index
      %c0_15 = arith.constant 0 : index
      %c0_16 = arith.constant 0 : index
      %15 = vector.load %arg6[%c0_14, %c0_15, %c0_16] : memref<1x32x128xf32, #tpu.memory_space<vmem>>, vector<1x32x128xf32>
      %16 = vector.shape_cast %15 : vector<1x32x128xf32> to vector<32x128xf32>
      %17 = vector.shape_cast %14 : vector<32x128xf32> to vector<1x32x128xf32>
      tpu.vector_store %arg6[%c0_14, %c0_15, %c0_16], %17 {strides = array<i32>} : memref<1x32x128xf32, #tpu.memory_space<vmem>>, vector<1x32x128xf32>,
    } else {
    }
    return
  }
  func.func @transform_0(%arg0: i32, %arg1: i32, %arg2: i32, %arg3: i32) -> (i32, i32, i32) {
    %c0_i32 = arith.constant 0 : i32
    return %arg0, %arg1, %arg3 : i32, i32, i32
  }
  func.func @transform_1(%arg0: i32, %arg1: i32, %arg2: i32, %arg3: i32) -> (i32, i32, i32) {
    %c0_i32 = arith.constant 0 : i32
    return %arg0, %arg3, %arg2 : i32, i32, i32
  }
  func.func @transform_2(%arg0: i32, %arg1: i32, %arg2: i32, %arg3: i32) -> (i32, i32, i32) {
    %c0_i32 = arith.constant 0 : i32
    return %arg0, %arg1, %arg2 : i32, i32, i32
  }
}

module attributes {stable_mosaic.version = 11 : i64} {
  func.func @_scale_shift_relu_kernel(%arg0: i32, %arg1: memref<32x128xf32, #tpu.memory_space<vmem>>, %arg2: memref<1x128xf32, #tpu.memory_space<vmem>>, %arg3: memref<1x128xf32, #tpu.memory_space<vmem>>, %arg4: memref<32x128xf32, #tpu.memory_space<vmem>>) attributes {dimension_semantics = [#tpu.dimension_semantics<parallel>], iteration_bounds = array<i64: 1>, scalar_prefetch = 0 : i64, scratch_operands = 0 : i64, tpu.core_type = #tpu.core_type<tc>, window_params = [{transform_indices = @transform_0, window_bounds = array<i64: 32, 128>}, {pipeline_mode = #tpu.pipeline_mode<synchronous>, transform_indices = @transform_1, window_bounds = array<i64: 1, 128>}, {pipeline_mode = #tpu.pipeline_mode<synchronous>, transform_indices = @transform_2, window_bounds = array<i64: 1, 128>}, {transform_indices = @transform_3, window_bounds = array<i64: 32, 128>}]} {
    %c0 = arith.constant 0 : index
    %c0_0 = arith.constant 0 : index
    %0 = vector.load %arg1[%c0, %c0_0] : memref<32x128xf32, #tpu.memory_space<vmem>>, vector<32x128xf32>
    %c0_1 = arith.constant 0 : index
    %c0_2 = arith.constant 0 : index
    %1 = vector.load %arg2[%c0_1, %c0_2] : memref<1x128xf32, #tpu.memory_space<vmem>>, vector<1x128xf32>
    %2 = vector.broadcast %1 : vector<1x128xf32> to vector<32x128xf32>
    %3 = arith.mulf %0, %2 : vector<32x128xf32>
    %c0_3 = arith.constant 0 : index
    %c0_4 = arith.constant 0 : index
    %4 = vector.load %arg3[%c0_3, %c0_4] : memref<1x128xf32, #tpu.memory_space<vmem>>, vector<1x128xf32>
    %5 = vector.broadcast %4 : vector<1x128xf32> to vector<32x128xf32>
    %6 = arith.addf %3, %5 : vector<32x128xf32>
    %cst = arith.constant 0.000000e+00 : f32
    %7 = vector.broadcast %cst : f32 to vector<32x128xf32>
    %8 = arith.maximumf %6, %7 : vector<32x128xf32>
    %c0_5 = arith.constant 0 : index
    %c0_6 = arith.constant 0 : index
    %9 = vector.load %arg4[%c0_5, %c0_6] : memref<32x128xf32, #tpu.memory_space<vmem>>, vector<32x128xf32>
    tpu.vector_store %arg4[%c0_5, %c0_6], %8 {strides = array<i32>} : memref<32x128xf32, #tpu.memory_space<vmem>>, vector<32x128xf32>,
    return
  }
  func.func @transform_0(%arg0: i32) -> (i32, i32) {
    %c0_i32 = arith.constant 0 : i32
    %c0_i32_0 = arith.constant 0 : i32
    return %arg0, %c0_i32 : i32, i32
  }
  func.func @transform_1(%arg0: i32) -> (i32, i32) {
    %c0_i32 = arith.constant 0 : i32
    %c0_i32_0 = arith.constant 0 : i32
    %c0_i32_1 = arith.constant 0 : i32
    return %c0_i32, %c0_i32_0 : i32, i32
  }
  func.func @transform_2(%arg0: i32) -> (i32, i32) {
    %c0_i32 = arith.constant 0 : i32
    %c0_i32_0 = arith.constant 0 : i32
    %c0_i32_1 = arith.constant 0 : i32
    return %c0_i32, %c0_i32_0 : i32, i32
  }
  func.func @transform_3(%arg0: i32) -> (i32, i32) {
    %c0_i32 = arith.constant 0 : i32
    %c0_i32_0 = arith.constant 0 : i32
    return %arg0, %c0_i32 : i32, i32
  }
}

module attributes {stable_mosaic.version = 11 : i64} {
  func.func @_mm_kernel(%arg0: i32, %arg1: i32, %arg2: i32, %arg3: i32, %arg4: memref<1x32x256xbf16, #tpu.memory_space<vmem>>, %arg5: memref<1x256x128xbf16, #tpu.memory_space<vmem>>, %arg6: memref<1x32x128xf32, #tpu.memory_space<vmem>>, %arg7: memref<32x128xf32, #tpu.memory_space<vmem>>) attributes {dimension_semantics = [#tpu.dimension_semantics<parallel>, #tpu.dimension_semantics<parallel>, #tpu.dimension_semantics<parallel>, #tpu.dimension_semantics<arbitrary>], iteration_bounds = array<i64: 4, 1, 1, 1>, scalar_prefetch = 0 : i64, scratch_operands = 1 : i64, tpu.core_type = #tpu.core_type<tc>, window_params = [{transform_indices = @transform_0, window_bounds = array<i64: 1, 32, 256>}, {transform_indices = @transform_1, window_bounds = array<i64: 1, 256, 128>}, {transform_indices = @transform_2, window_bounds = array<i64: 1, 32, 128>}]} {
    %c0_i32 = arith.constant 0 : i32
    %0 = arith.cmpi eq, %arg3, %c0_i32 : i32
    %1 = arith.extui %0 : i1 to i32
    %c0_i32_0 = arith.constant 0 : i32
    %2 = arith.cmpi ne, %1, %c0_i32_0 : i32
    scf.if %2 {
      %cst_12 = arith.constant 0.000000e+00 : f32
      %14 = vector.broadcast %cst_12 : f32 to vector<32x128xf32>
      %c0_13 = arith.constant 0 : index
      %c0_14 = arith.constant 0 : index
      %15 = vector.load %arg7[%c0_13, %c0_14] : memref<32x128xf32, #tpu.memory_space<vmem>>, vector<32x128xf32>
      tpu.vector_store %arg7[%c0_13, %c0_14], %14 {strides = array<i32>} : memref<32x128xf32, #tpu.memory_space<vmem>>, vector<32x128xf32>,
    } else {
    }
    %c0 = arith.constant 0 : index
    %c0_1 = arith.constant 0 : index
    %3 = vector.load %arg7[%c0, %c0_1] : memref<32x128xf32, #tpu.memory_space<vmem>>, vector<32x128xf32>
    %c0_2 = arith.constant 0 : index
    %c0_3 = arith.constant 0 : index
    %c0_4 = arith.constant 0 : index
    %4 = vector.load %arg4[%c0_2, %c0_3, %c0_4] : memref<1x32x256xbf16, #tpu.memory_space<vmem>>, vector<1x32x256xbf16>
    %5 = vector.shape_cast %4 : vector<1x32x256xbf16> to vector<32x256xbf16>
    %c0_5 = arith.constant 0 : index
    %c0_6 = arith.constant 0 : index
    %c0_7 = arith.constant 0 : index
    %6 = vector.load %arg5[%c0_5, %c0_6, %c0_7] : memref<1x256x128xbf16, #tpu.memory_space<vmem>>, vector<1x256x128xbf16>
    %7 = vector.shape_cast %6 : vector<1x256x128xbf16> to vector<256x128xbf16>
    %cst = arith.constant dense<0.000000e+00> : vector<32x128xf32>
    %8 = tpu.matmul %5, %7, %cst {dimension_numbers = #tpu.dot_dimension_numbers<[1], [0], [0], [1], [0, 0, 1, 1], [], []>} : vector<32x256xbf16>, vector<256x128xbf16>, vector<32x128xf32> -> vector<32x128xf32>
    %9 = arith.addf %3, %8 : vector<32x128xf32>
    %c0_8 = arith.constant 0 : index
    %c0_9 = arith.constant 0 : index
    %10 = vector.load %arg7[%c0_8, %c0_9] : memref<32x128xf32, #tpu.memory_space<vmem>>, vector<32x128xf32>
    tpu.vector_store %arg7[%c0_8, %c0_9], %9 {strides = array<i32>} : memref<32x128xf32, #tpu.memory_space<vmem>>, vector<32x128xf32>,
    %c0_i32_10 = arith.constant 0 : i32
    %11 = arith.cmpi eq, %arg3, %c0_i32_10 : i32
    %12 = arith.extui %11 : i1 to i32
    %c0_i32_11 = arith.constant 0 : i32
    %13 = arith.cmpi ne, %12, %c0_i32_11 : i32
    scf.if %13 {
      %c0_12 = arith.constant 0 : index
      %c0_13 = arith.constant 0 : index
      %14 = vector.load %arg7[%c0_12, %c0_13] : memref<32x128xf32, #tpu.memory_space<vmem>>, vector<32x128xf32>
      %c0_14 = arith.constant 0 : index
      %c0_15 = arith.constant 0 : index
      %c0_16 = arith.constant 0 : index
      %15 = vector.load %arg6[%c0_14, %c0_15, %c0_16] : memref<1x32x128xf32, #tpu.memory_space<vmem>>, vector<1x32x128xf32>
      %16 = vector.shape_cast %15 : vector<1x32x128xf32> to vector<32x128xf32>
      %17 = vector.shape_cast %14 : vector<32x128xf32> to vector<1x32x128xf32>
      tpu.vector_store %arg6[%c0_14, %c0_15, %c0_16], %17 {strides = array<i32>} : memref<1x32x128xf32, #tpu.memory_space<vmem>>, vector<1x32x128xf32>,
    } else {
    }
    return
  }
  func.func @transform_0(%arg0: i32, %arg1: i32, %arg2: i32, %arg3: i32) -> (i32, i32, i32) {
    %c0_i32 = arith.constant 0 : i32
    return %arg0, %arg1, %arg3 : i32, i32, i32
  }
  func.func @transform_1(%arg0: i32, %arg1: i32, %arg2: i32, %arg3: i32) -> (i32, i32, i32) {
    %c0_i32 = arith.constant 0 : i32
    return %arg0, %arg3, %arg2 : i32, i32, i32
  }
  func.func @transform_2(%arg0: i32, %arg1: i32, %arg2: i32, %arg3: i32) -> (i32, i32, i32) {
    %c0_i32 = arith.constant 0 : i32
    return %arg0, %arg1, %arg2 : i32, i32, i32
  }
}

module attributes {stable_mosaic.version = 11 : i64} {
  func.func @_stats_kernel(%arg0: i32, %arg1: memref<128x128xf32, #tpu.memory_space<vmem>>, %arg2: memref<1x128xf32, #tpu.memory_space<vmem>>, %arg3: memref<1x128xf32, #tpu.memory_space<vmem>>) attributes {dimension_semantics = [#tpu.dimension_semantics<arbitrary>], iteration_bounds = array<i64: 1>, scalar_prefetch = 0 : i64, scratch_operands = 0 : i64, tpu.core_type = #tpu.core_type<tc>, window_params = [{transform_indices = @transform_0, window_bounds = array<i64: 128, 128>}, {pipeline_mode = #tpu.pipeline_mode<synchronous>, transform_indices = @transform_1, window_bounds = array<i64: 1, 128>}, {pipeline_mode = #tpu.pipeline_mode<synchronous>, transform_indices = @transform_2, window_bounds = array<i64: 1, 128>}]} {
    %c0_i32 = arith.constant 0 : i32
    %0 = arith.cmpi eq, %arg0, %c0_i32 : i32
    %1 = arith.extui %0 : i1 to i32
    %c0_i32_0 = arith.constant 0 : i32
    %2 = arith.cmpi ne, %1, %c0_i32_0 : i32
    scf.if %2 {
      %cst_11 = arith.constant 0.000000e+00 : f32
      %15 = vector.broadcast %cst_11 : f32 to vector<1x128xf32>
      %c0_12 = arith.constant 0 : index
      %c0_13 = arith.constant 0 : index
      %16 = vector.load %arg2[%c0_12, %c0_13] : memref<1x128xf32, #tpu.memory_space<vmem>>, vector<1x128xf32>
      tpu.vector_store %arg2[%c0_12, %c0_13], %15 {strides = array<i32>} : memref<1x128xf32, #tpu.memory_space<vmem>>, vector<1x128xf32>,
      %cst_14 = arith.constant 0.000000e+00 : f32
      %17 = vector.broadcast %cst_14 : f32 to vector<1x128xf32>
      %c0_15 = arith.constant 0 : index
      %c0_16 = arith.constant 0 : index
      %18 = vector.load %arg3[%c0_15, %c0_16] : memref<1x128xf32, #tpu.memory_space<vmem>>, vector<1x128xf32>
      tpu.vector_store %arg3[%c0_15, %c0_16], %17 {strides = array<i32>} : memref<1x128xf32, #tpu.memory_space<vmem>>, vector<1x128xf32>,
    } else {
    }
    %c0 = arith.constant 0 : index
    %c0_1 = arith.constant 0 : index
    %3 = vector.load %arg1[%c0, %c0_1] : memref<128x128xf32, #tpu.memory_space<vmem>>, vector<128x128xf32>
    %c0_2 = arith.constant 0 : index
    %c0_3 = arith.constant 0 : index
    %4 = vector.load %arg2[%c0_2, %c0_3] : memref<1x128xf32, #tpu.memory_space<vmem>>, vector<1x128xf32>
    %cst = arith.constant dense<0.000000e+00> : vector<128xf32>
    %5 = vector.multi_reduction <add>, %3, %cst [0] : vector<128x128xf32> to vector<128xf32>
    %6 = vector.shape_cast %5 : vector<128xf32> to vector<1x128xf32>
    %7 = arith.addf %4, %6 : vector<1x128xf32>
    %c0_4 = arith.constant 0 : index
    %c0_5 = arith.constant 0 : index
    %8 = vector.load %arg2[%c0_4, %c0_5] : memref<1x128xf32, #tpu.memory_space<vmem>>, vector<1x128xf32>
    tpu.vector_store %arg2[%c0_4, %c0_5], %7 {strides = array<i32>} : memref<1x128xf32, #tpu.memory_space<vmem>>, vector<1x128xf32>,
    %c0_6 = arith.constant 0 : index
    %c0_7 = arith.constant 0 : index
    %9 = vector.load %arg3[%c0_6, %c0_7] : memref<1x128xf32, #tpu.memory_space<vmem>>, vector<1x128xf32>
    %10 = arith.mulf %3, %3 : vector<128x128xf32>
    %cst_8 = arith.constant dense<0.000000e+00> : vector<128xf32>
    %11 = vector.multi_reduction <add>, %10, %cst_8 [0] : vector<128x128xf32> to vector<128xf32>
    %12 = vector.shape_cast %11 : vector<128xf32> to vector<1x128xf32>
    %13 = arith.addf %9, %12 : vector<1x128xf32>
    %c0_9 = arith.constant 0 : index
    %c0_10 = arith.constant 0 : index
    %14 = vector.load %arg3[%c0_9, %c0_10] : memref<1x128xf32, #tpu.memory_space<vmem>>, vector<1x128xf32>
    tpu.vector_store %arg3[%c0_9, %c0_10], %13 {strides = array<i32>} : memref<1x128xf32, #tpu.memory_space<vmem>>, vector<1x128xf32>,
    return
  }
  func.func @transform_0(%arg0: i32) -> (i32, i32) {
    %c0_i32 = arith.constant 0 : i32
    %c0_i32_0 = arith.constant 0 : i32
    return %arg0, %c0_i32 : i32, i32
  }
  func.func @transform_1(%arg0: i32) -> (i32, i32) {
    %c0_i32 = arith.constant 0 : i32
    %c0_i32_0 = arith.constant 0 : i32
    %c0_i32_1 = arith.constant 0 : i32
    return %c0_i32, %c0_i32_0 : i32, i32
  }
  func.func @transform_2(%arg0: i32) -> (i32, i32) {
    %c0_i32 = arith.constant 0 : i32
    %c0_i32_0 = arith.constant 0 : i32
    %c0_i32_1 = arith.constant 0 : i32
    return %c0_i32, %c0_i32_0 : i32, i32
  }
}

module attributes {stable_mosaic.version = 11 : i64} {
  func.func @_scale_shift_relu_kernel(%arg0: i32, %arg1: memref<128x128xf32, #tpu.memory_space<vmem>>, %arg2: memref<1x128xf32, #tpu.memory_space<vmem>>, %arg3: memref<1x128xf32, #tpu.memory_space<vmem>>, %arg4: memref<128x128xf32, #tpu.memory_space<vmem>>) attributes {dimension_semantics = [#tpu.dimension_semantics<parallel>], iteration_bounds = array<i64: 1>, scalar_prefetch = 0 : i64, scratch_operands = 0 : i64, tpu.core_type = #tpu.core_type<tc>, window_params = [{transform_indices = @transform_0, window_bounds = array<i64: 128, 128>}, {pipeline_mode = #tpu.pipeline_mode<synchronous>, transform_indices = @transform_1, window_bounds = array<i64: 1, 128>}, {pipeline_mode = #tpu.pipeline_mode<synchronous>, transform_indices = @transform_2, window_bounds = array<i64: 1, 128>}, {transform_indices = @transform_3, window_bounds = array<i64: 128, 128>}]} {
    %c0 = arith.constant 0 : index
    %c0_0 = arith.constant 0 : index
    %0 = vector.load %arg1[%c0, %c0_0] : memref<128x128xf32, #tpu.memory_space<vmem>>, vector<128x128xf32>
    %c0_1 = arith.constant 0 : index
    %c0_2 = arith.constant 0 : index
    %1 = vector.load %arg2[%c0_1, %c0_2] : memref<1x128xf32, #tpu.memory_space<vmem>>, vector<1x128xf32>
    %2 = vector.broadcast %1 : vector<1x128xf32> to vector<128x128xf32>
    %3 = arith.mulf %0, %2 : vector<128x128xf32>
    %c0_3 = arith.constant 0 : index
    %c0_4 = arith.constant 0 : index
    %4 = vector.load %arg3[%c0_3, %c0_4] : memref<1x128xf32, #tpu.memory_space<vmem>>, vector<1x128xf32>
    %5 = vector.broadcast %4 : vector<1x128xf32> to vector<128x128xf32>
    %6 = arith.addf %3, %5 : vector<128x128xf32>
    %cst = arith.constant 0.000000e+00 : f32
    %7 = vector.broadcast %cst : f32 to vector<128x128xf32>
    %8 = arith.maximumf %6, %7 : vector<128x128xf32>
    %c0_5 = arith.constant 0 : index
    %c0_6 = arith.constant 0 : index
    %9 = vector.load %arg4[%c0_5, %c0_6] : memref<128x128xf32, #tpu.memory_space<vmem>>, vector<128x128xf32>
    tpu.vector_store %arg4[%c0_5, %c0_6], %8 {strides = array<i32>} : memref<128x128xf32, #tpu.memory_space<vmem>>, vector<128x128xf32>,
    return
  }
  func.func @transform_0(%arg0: i32) -> (i32, i32) {
    %c0_i32 = arith.constant 0 : i32
    %c0_i32_0 = arith.constant 0 : i32
    return %arg0, %c0_i32 : i32, i32
  }
  func.func @transform_1(%arg0: i32) -> (i32, i32) {
    %c0_i32 = arith.constant 0 : i32
    %c0_i32_0 = arith.constant 0 : i32
    %c0_i32_1 = arith.constant 0 : i32
    return %c0_i32, %c0_i32_0 : i32, i32
  }
  func.func @transform_2(%arg0: i32) -> (i32, i32) {
    %c0_i32 = arith.constant 0 : i32
    %c0_i32_0 = arith.constant 0 : i32
    %c0_i32_1 = arith.constant 0 : i32
    return %c0_i32, %c0_i32_0 : i32, i32
  }
  func.func @transform_3(%arg0: i32) -> (i32, i32) {
    %c0_i32 = arith.constant 0 : i32
    %c0_i32_0 = arith.constant 0 : i32
    return %arg0, %c0_i32 : i32, i32
  }
}

module attributes {stable_mosaic.version = 11 : i64} {
  func.func @_mm_kernel(%arg0: i32, %arg1: i32, %arg2: i32, %arg3: i32, %arg4: memref<1x128x128xbf16, #tpu.memory_space<vmem>>, %arg5: memref<1x128x128xbf16, #tpu.memory_space<vmem>>, %arg6: memref<1x128x128xf32, #tpu.memory_space<vmem>>, %arg7: memref<128x128xf32, #tpu.memory_space<vmem>>) attributes {dimension_semantics = [#tpu.dimension_semantics<parallel>, #tpu.dimension_semantics<parallel>, #tpu.dimension_semantics<parallel>, #tpu.dimension_semantics<arbitrary>], iteration_bounds = array<i64: 4, 1, 1, 1>, scalar_prefetch = 0 : i64, scratch_operands = 1 : i64, tpu.core_type = #tpu.core_type<tc>, window_params = [{transform_indices = @transform_0, window_bounds = array<i64: 1, 128, 128>}, {transform_indices = @transform_1, window_bounds = array<i64: 1, 128, 128>}, {transform_indices = @transform_2, window_bounds = array<i64: 1, 128, 128>}]} {
    %c0_i32 = arith.constant 0 : i32
    %0 = arith.cmpi eq, %arg3, %c0_i32 : i32
    %1 = arith.extui %0 : i1 to i32
    %c0_i32_0 = arith.constant 0 : i32
    %2 = arith.cmpi ne, %1, %c0_i32_0 : i32
    scf.if %2 {
      %cst_12 = arith.constant 0.000000e+00 : f32
      %14 = vector.broadcast %cst_12 : f32 to vector<128x128xf32>
      %c0_13 = arith.constant 0 : index
      %c0_14 = arith.constant 0 : index
      %15 = vector.load %arg7[%c0_13, %c0_14] : memref<128x128xf32, #tpu.memory_space<vmem>>, vector<128x128xf32>
      tpu.vector_store %arg7[%c0_13, %c0_14], %14 {strides = array<i32>} : memref<128x128xf32, #tpu.memory_space<vmem>>, vector<128x128xf32>,
    } else {
    }
    %c0 = arith.constant 0 : index
    %c0_1 = arith.constant 0 : index
    %3 = vector.load %arg7[%c0, %c0_1] : memref<128x128xf32, #tpu.memory_space<vmem>>, vector<128x128xf32>
    %c0_2 = arith.constant 0 : index
    %c0_3 = arith.constant 0 : index
    %c0_4 = arith.constant 0 : index
    %4 = vector.load %arg4[%c0_2, %c0_3, %c0_4] : memref<1x128x128xbf16, #tpu.memory_space<vmem>>, vector<1x128x128xbf16>
    %5 = vector.shape_cast %4 : vector<1x128x128xbf16> to vector<128x128xbf16>
    %c0_5 = arith.constant 0 : index
    %c0_6 = arith.constant 0 : index
    %c0_7 = arith.constant 0 : index
    %6 = vector.load %arg5[%c0_5, %c0_6, %c0_7] : memref<1x128x128xbf16, #tpu.memory_space<vmem>>, vector<1x128x128xbf16>
    %7 = vector.shape_cast %6 : vector<1x128x128xbf16> to vector<128x128xbf16>
    %cst = arith.constant dense<0.000000e+00> : vector<128x128xf32>
    %8 = tpu.matmul %5, %7, %cst {dimension_numbers = #tpu.dot_dimension_numbers<[1], [0], [0], [1], [0, 0, 1, 1], [], []>} : vector<128x128xbf16>, vector<128x128xbf16>, vector<128x128xf32> -> vector<128x128xf32>
    %9 = arith.addf %3, %8 : vector<128x128xf32>
    %c0_8 = arith.constant 0 : index
    %c0_9 = arith.constant 0 : index
    %10 = vector.load %arg7[%c0_8, %c0_9] : memref<128x128xf32, #tpu.memory_space<vmem>>, vector<128x128xf32>
    tpu.vector_store %arg7[%c0_8, %c0_9], %9 {strides = array<i32>} : memref<128x128xf32, #tpu.memory_space<vmem>>, vector<128x128xf32>,
    %c0_i32_10 = arith.constant 0 : i32
    %11 = arith.cmpi eq, %arg3, %c0_i32_10 : i32
    %12 = arith.extui %11 : i1 to i32
    %c0_i32_11 = arith.constant 0 : i32
    %13 = arith.cmpi ne, %12, %c0_i32_11 : i32
    scf.if %13 {
      %c0_12 = arith.constant 0 : index
      %c0_13 = arith.constant 0 : index
      %14 = vector.load %arg7[%c0_12, %c0_13] : memref<128x128xf32, #tpu.memory_space<vmem>>, vector<128x128xf32>
      %c0_14 = arith.constant 0 : index
      %c0_15 = arith.constant 0 : index
      %c0_16 = arith.constant 0 : index
      %15 = vector.load %arg6[%c0_14, %c0_15, %c0_16] : memref<1x128x128xf32, #tpu.memory_space<vmem>>, vector<1x128x128xf32>
      %16 = vector.shape_cast %15 : vector<1x128x128xf32> to vector<128x128xf32>
      %17 = vector.shape_cast %14 : vector<128x128xf32> to vector<1x128x128xf32>
      tpu.vector_store %arg6[%c0_14, %c0_15, %c0_16], %17 {strides = array<i32>} : memref<1x128x128xf32, #tpu.memory_space<vmem>>, vector<1x128x128xf32>,
    } else {
    }
    return
  }
  func.func @transform_0(%arg0: i32, %arg1: i32, %arg2: i32, %arg3: i32) -> (i32, i32, i32) {
    %c0_i32 = arith.constant 0 : i32
    return %arg0, %arg1, %arg3 : i32, i32, i32
  }
  func.func @transform_1(%arg0: i32, %arg1: i32, %arg2: i32, %arg3: i32) -> (i32, i32, i32) {
    %c0_i32 = arith.constant 0 : i32
    return %arg0, %arg3, %arg2 : i32, i32, i32
  }
  func.func @transform_2(%arg0: i32, %arg1: i32, %arg2: i32, %arg3: i32) -> (i32, i32, i32) {
    %c0_i32 = arith.constant 0 : i32
    return %arg0, %arg1, %arg2 : i32, i32, i32
  }
}

module attributes {stable_mosaic.version = 11 : i64} {
  func.func @_stats_kernel(%arg0: i32, %arg1: memref<512x128xf32, #tpu.memory_space<vmem>>, %arg2: memref<1x128xf32, #tpu.memory_space<vmem>>, %arg3: memref<1x128xf32, #tpu.memory_space<vmem>>) attributes {dimension_semantics = [#tpu.dimension_semantics<arbitrary>], iteration_bounds = array<i64: 1>, scalar_prefetch = 0 : i64, scratch_operands = 0 : i64, tpu.core_type = #tpu.core_type<tc>, window_params = [{transform_indices = @transform_0, window_bounds = array<i64: 512, 128>}, {pipeline_mode = #tpu.pipeline_mode<synchronous>, transform_indices = @transform_1, window_bounds = array<i64: 1, 128>}, {pipeline_mode = #tpu.pipeline_mode<synchronous>, transform_indices = @transform_2, window_bounds = array<i64: 1, 128>}]} {
    %c0_i32 = arith.constant 0 : i32
    %0 = arith.cmpi eq, %arg0, %c0_i32 : i32
    %1 = arith.extui %0 : i1 to i32
    %c0_i32_0 = arith.constant 0 : i32
    %2 = arith.cmpi ne, %1, %c0_i32_0 : i32
    scf.if %2 {
      %cst_11 = arith.constant 0.000000e+00 : f32
      %15 = vector.broadcast %cst_11 : f32 to vector<1x128xf32>
      %c0_12 = arith.constant 0 : index
      %c0_13 = arith.constant 0 : index
      %16 = vector.load %arg2[%c0_12, %c0_13] : memref<1x128xf32, #tpu.memory_space<vmem>>, vector<1x128xf32>
      tpu.vector_store %arg2[%c0_12, %c0_13], %15 {strides = array<i32>} : memref<1x128xf32, #tpu.memory_space<vmem>>, vector<1x128xf32>,
      %cst_14 = arith.constant 0.000000e+00 : f32
      %17 = vector.broadcast %cst_14 : f32 to vector<1x128xf32>
      %c0_15 = arith.constant 0 : index
      %c0_16 = arith.constant 0 : index
      %18 = vector.load %arg3[%c0_15, %c0_16] : memref<1x128xf32, #tpu.memory_space<vmem>>, vector<1x128xf32>
      tpu.vector_store %arg3[%c0_15, %c0_16], %17 {strides = array<i32>} : memref<1x128xf32, #tpu.memory_space<vmem>>, vector<1x128xf32>,
    } else {
    }
    %c0 = arith.constant 0 : index
    %c0_1 = arith.constant 0 : index
    %3 = vector.load %arg1[%c0, %c0_1] : memref<512x128xf32, #tpu.memory_space<vmem>>, vector<512x128xf32>
    %c0_2 = arith.constant 0 : index
    %c0_3 = arith.constant 0 : index
    %4 = vector.load %arg2[%c0_2, %c0_3] : memref<1x128xf32, #tpu.memory_space<vmem>>, vector<1x128xf32>
    %cst = arith.constant dense<0.000000e+00> : vector<128xf32>
    %5 = vector.multi_reduction <add>, %3, %cst [0] : vector<512x128xf32> to vector<128xf32>
    %6 = vector.shape_cast %5 : vector<128xf32> to vector<1x128xf32>
    %7 = arith.addf %4, %6 : vector<1x128xf32>
    %c0_4 = arith.constant 0 : index
    %c0_5 = arith.constant 0 : index
    %8 = vector.load %arg2[%c0_4, %c0_5] : memref<1x128xf32, #tpu.memory_space<vmem>>, vector<1x128xf32>
    tpu.vector_store %arg2[%c0_4, %c0_5], %7 {strides = array<i32>} : memref<1x128xf32, #tpu.memory_space<vmem>>, vector<1x128xf32>,
    %c0_6 = arith.constant 0 : index
    %c0_7 = arith.constant 0 : index
    %9 = vector.load %arg3[%c0_6, %c0_7] : memref<1x128xf32, #tpu.memory_space<vmem>>, vector<1x128xf32>
    %10 = arith.mulf %3, %3 : vector<512x128xf32>
    %cst_8 = arith.constant dense<0.000000e+00> : vector<128xf32>
    %11 = vector.multi_reduction <add>, %10, %cst_8 [0] : vector<512x128xf32> to vector<128xf32>
    %12 = vector.shape_cast %11 : vector<128xf32> to vector<1x128xf32>
    %13 = arith.addf %9, %12 : vector<1x128xf32>
    %c0_9 = arith.constant 0 : index
    %c0_10 = arith.constant 0 : index
    %14 = vector.load %arg3[%c0_9, %c0_10] : memref<1x128xf32, #tpu.memory_space<vmem>>, vector<1x128xf32>
    tpu.vector_store %arg3[%c0_9, %c0_10], %13 {strides = array<i32>} : memref<1x128xf32, #tpu.memory_space<vmem>>, vector<1x128xf32>,
    return
  }
  func.func @transform_0(%arg0: i32) -> (i32, i32) {
    %c0_i32 = arith.constant 0 : i32
    %c0_i32_0 = arith.constant 0 : i32
    return %arg0, %c0_i32 : i32, i32
  }
  func.func @transform_1(%arg0: i32) -> (i32, i32) {
    %c0_i32 = arith.constant 0 : i32
    %c0_i32_0 = arith.constant 0 : i32
    %c0_i32_1 = arith.constant 0 : i32
    return %c0_i32, %c0_i32_0 : i32, i32
  }
  func.func @transform_2(%arg0: i32) -> (i32, i32) {
    %c0_i32 = arith.constant 0 : i32
    %c0_i32_0 = arith.constant 0 : i32
    %c0_i32_1 = arith.constant 0 : i32
    return %c0_i32, %c0_i32_0 : i32, i32
  }
}

module attributes {stable_mosaic.version = 11 : i64} {
  func.func @_scale_shift_relu_kernel(%arg0: i32, %arg1: memref<512x128xf32, #tpu.memory_space<vmem>>, %arg2: memref<1x128xf32, #tpu.memory_space<vmem>>, %arg3: memref<1x128xf32, #tpu.memory_space<vmem>>, %arg4: memref<512x128xf32, #tpu.memory_space<vmem>>) attributes {dimension_semantics = [#tpu.dimension_semantics<parallel>], iteration_bounds = array<i64: 1>, scalar_prefetch = 0 : i64, scratch_operands = 0 : i64, tpu.core_type = #tpu.core_type<tc>, window_params = [{transform_indices = @transform_0, window_bounds = array<i64: 512, 128>}, {pipeline_mode = #tpu.pipeline_mode<synchronous>, transform_indices = @transform_1, window_bounds = array<i64: 1, 128>}, {pipeline_mode = #tpu.pipeline_mode<synchronous>, transform_indices = @transform_2, window_bounds = array<i64: 1, 128>}, {transform_indices = @transform_3, window_bounds = array<i64: 512, 128>}]} {
    %c0 = arith.constant 0 : index
    %c0_0 = arith.constant 0 : index
    %0 = vector.load %arg1[%c0, %c0_0] : memref<512x128xf32, #tpu.memory_space<vmem>>, vector<512x128xf32>
    %c0_1 = arith.constant 0 : index
    %c0_2 = arith.constant 0 : index
    %1 = vector.load %arg2[%c0_1, %c0_2] : memref<1x128xf32, #tpu.memory_space<vmem>>, vector<1x128xf32>
    %2 = vector.broadcast %1 : vector<1x128xf32> to vector<512x128xf32>
    %3 = arith.mulf %0, %2 : vector<512x128xf32>
    %c0_3 = arith.constant 0 : index
    %c0_4 = arith.constant 0 : index
    %4 = vector.load %arg3[%c0_3, %c0_4] : memref<1x128xf32, #tpu.memory_space<vmem>>, vector<1x128xf32>
    %5 = vector.broadcast %4 : vector<1x128xf32> to vector<512x128xf32>
    %6 = arith.addf %3, %5 : vector<512x128xf32>
    %cst = arith.constant 0.000000e+00 : f32
    %7 = vector.broadcast %cst : f32 to vector<512x128xf32>
    %8 = arith.maximumf %6, %7 : vector<512x128xf32>
    %c0_5 = arith.constant 0 : index
    %c0_6 = arith.constant 0 : index
    %9 = vector.load %arg4[%c0_5, %c0_6] : memref<512x128xf32, #tpu.memory_space<vmem>>, vector<512x128xf32>
    tpu.vector_store %arg4[%c0_5, %c0_6], %8 {strides = array<i32>} : memref<512x128xf32, #tpu.memory_space<vmem>>, vector<512x128xf32>,
    return
  }
  func.func @transform_0(%arg0: i32) -> (i32, i32) {
    %c0_i32 = arith.constant 0 : i32
    %c0_i32_0 = arith.constant 0 : i32
    return %arg0, %c0_i32 : i32, i32
  }
  func.func @transform_1(%arg0: i32) -> (i32, i32) {
    %c0_i32 = arith.constant 0 : i32
    %c0_i32_0 = arith.constant 0 : i32
    %c0_i32_1 = arith.constant 0 : i32
    return %c0_i32, %c0_i32_0 : i32, i32
  }
  func.func @transform_2(%arg0: i32) -> (i32, i32) {
    %c0_i32 = arith.constant 0 : i32
    %c0_i32_0 = arith.constant 0 : i32
    %c0_i32_1 = arith.constant 0 : i32
    return %c0_i32, %c0_i32_0 : i32, i32
  }
  func.func @transform_3(%arg0: i32) -> (i32, i32) {
    %c0_i32 = arith.constant 0 : i32
    %c0_i32_0 = arith.constant 0 : i32
    return %arg0, %c0_i32 : i32, i32
  }
}

module attributes {stable_mosaic.version = 11 : i64} {
  func.func @_stats_kernel(%arg0: i32, %arg1: memref<512x128xf32, #tpu.memory_space<vmem>>, %arg2: memref<1x128xf32, #tpu.memory_space<vmem>>, %arg3: memref<1x128xf32, #tpu.memory_space<vmem>>) attributes {dimension_semantics = [#tpu.dimension_semantics<arbitrary>], iteration_bounds = array<i64: 4>, scalar_prefetch = 0 : i64, scratch_operands = 0 : i64, tpu.core_type = #tpu.core_type<tc>, window_params = [{transform_indices = @transform_0, window_bounds = array<i64: 512, 128>}, {pipeline_mode = #tpu.pipeline_mode<synchronous>, transform_indices = @transform_1, window_bounds = array<i64: 1, 128>}, {pipeline_mode = #tpu.pipeline_mode<synchronous>, transform_indices = @transform_2, window_bounds = array<i64: 1, 128>}]} {
    %c0_i32 = arith.constant 0 : i32
    %0 = arith.cmpi eq, %arg0, %c0_i32 : i32
    %1 = arith.extui %0 : i1 to i32
    %c0_i32_0 = arith.constant 0 : i32
    %2 = arith.cmpi ne, %1, %c0_i32_0 : i32
    scf.if %2 {
      %cst_11 = arith.constant 0.000000e+00 : f32
      %15 = vector.broadcast %cst_11 : f32 to vector<1x128xf32>
      %c0_12 = arith.constant 0 : index
      %c0_13 = arith.constant 0 : index
      %16 = vector.load %arg2[%c0_12, %c0_13] : memref<1x128xf32, #tpu.memory_space<vmem>>, vector<1x128xf32>
      tpu.vector_store %arg2[%c0_12, %c0_13], %15 {strides = array<i32>} : memref<1x128xf32, #tpu.memory_space<vmem>>, vector<1x128xf32>,
      %cst_14 = arith.constant 0.000000e+00 : f32
      %17 = vector.broadcast %cst_14 : f32 to vector<1x128xf32>
      %c0_15 = arith.constant 0 : index
      %c0_16 = arith.constant 0 : index
      %18 = vector.load %arg3[%c0_15, %c0_16] : memref<1x128xf32, #tpu.memory_space<vmem>>, vector<1x128xf32>
      tpu.vector_store %arg3[%c0_15, %c0_16], %17 {strides = array<i32>} : memref<1x128xf32, #tpu.memory_space<vmem>>, vector<1x128xf32>,
    } else {
    }
    %c0 = arith.constant 0 : index
    %c0_1 = arith.constant 0 : index
    %3 = vector.load %arg1[%c0, %c0_1] : memref<512x128xf32, #tpu.memory_space<vmem>>, vector<512x128xf32>
    %c0_2 = arith.constant 0 : index
    %c0_3 = arith.constant 0 : index
    %4 = vector.load %arg2[%c0_2, %c0_3] : memref<1x128xf32, #tpu.memory_space<vmem>>, vector<1x128xf32>
    %cst = arith.constant dense<0.000000e+00> : vector<128xf32>
    %5 = vector.multi_reduction <add>, %3, %cst [0] : vector<512x128xf32> to vector<128xf32>
    %6 = vector.shape_cast %5 : vector<128xf32> to vector<1x128xf32>
    %7 = arith.addf %4, %6 : vector<1x128xf32>
    %c0_4 = arith.constant 0 : index
    %c0_5 = arith.constant 0 : index
    %8 = vector.load %arg2[%c0_4, %c0_5] : memref<1x128xf32, #tpu.memory_space<vmem>>, vector<1x128xf32>
    tpu.vector_store %arg2[%c0_4, %c0_5], %7 {strides = array<i32>} : memref<1x128xf32, #tpu.memory_space<vmem>>, vector<1x128xf32>,
    %c0_6 = arith.constant 0 : index
    %c0_7 = arith.constant 0 : index
    %9 = vector.load %arg3[%c0_6, %c0_7] : memref<1x128xf32, #tpu.memory_space<vmem>>, vector<1x128xf32>
    %10 = arith.mulf %3, %3 : vector<512x128xf32>
    %cst_8 = arith.constant dense<0.000000e+00> : vector<128xf32>
    %11 = vector.multi_reduction <add>, %10, %cst_8 [0] : vector<512x128xf32> to vector<128xf32>
    %12 = vector.shape_cast %11 : vector<128xf32> to vector<1x128xf32>
    %13 = arith.addf %9, %12 : vector<1x128xf32>
    %c0_9 = arith.constant 0 : index
    %c0_10 = arith.constant 0 : index
    %14 = vector.load %arg3[%c0_9, %c0_10] : memref<1x128xf32, #tpu.memory_space<vmem>>, vector<1x128xf32>
    tpu.vector_store %arg3[%c0_9, %c0_10], %13 {strides = array<i32>} : memref<1x128xf32, #tpu.memory_space<vmem>>, vector<1x128xf32>,
    return
  }
  func.func @transform_0(%arg0: i32) -> (i32, i32) {
    %c0_i32 = arith.constant 0 : i32
    %c0_i32_0 = arith.constant 0 : i32
    return %arg0, %c0_i32 : i32, i32
  }
  func.func @transform_1(%arg0: i32) -> (i32, i32) {
    %c0_i32 = arith.constant 0 : i32
    %c0_i32_0 = arith.constant 0 : i32
    %c0_i32_1 = arith.constant 0 : i32
    return %c0_i32, %c0_i32_0 : i32, i32
  }
  func.func @transform_2(%arg0: i32) -> (i32, i32) {
    %c0_i32 = arith.constant 0 : i32
    %c0_i32_0 = arith.constant 0 : i32
    %c0_i32_1 = arith.constant 0 : i32
    return %c0_i32, %c0_i32_0 : i32, i32
  }
}

module attributes {stable_mosaic.version = 11 : i64} {
  func.func @_mm_kernel(%arg0: i32, %arg1: i32, %arg2: i32, %arg3: i32, %arg4: memref<1x512x128xbf16, #tpu.memory_space<vmem>>, %arg5: memref<1x128x128xbf16, #tpu.memory_space<vmem>>, %arg6: memref<1x512x128xf32, #tpu.memory_space<vmem>>, %arg7: memref<512x128xf32, #tpu.memory_space<vmem>>) attributes {dimension_semantics = [#tpu.dimension_semantics<parallel>, #tpu.dimension_semantics<parallel>, #tpu.dimension_semantics<parallel>, #tpu.dimension_semantics<arbitrary>], iteration_bounds = array<i64: 4, 1, 1, 1>, scalar_prefetch = 0 : i64, scratch_operands = 1 : i64, tpu.core_type = #tpu.core_type<tc>, window_params = [{transform_indices = @transform_0, window_bounds = array<i64: 1, 512, 128>}, {transform_indices = @transform_1, window_bounds = array<i64: 1, 128, 128>}, {transform_indices = @transform_2, window_bounds = array<i64: 1, 512, 128>}]} {
    %c0_i32 = arith.constant 0 : i32
    %0 = arith.cmpi eq, %arg3, %c0_i32 : i32
    %1 = arith.extui %0 : i1 to i32
    %c0_i32_0 = arith.constant 0 : i32
    %2 = arith.cmpi ne, %1, %c0_i32_0 : i32
    scf.if %2 {
      %cst_12 = arith.constant 0.000000e+00 : f32
      %14 = vector.broadcast %cst_12 : f32 to vector<512x128xf32>
      %c0_13 = arith.constant 0 : index
      %c0_14 = arith.constant 0 : index
      %15 = vector.load %arg7[%c0_13, %c0_14] : memref<512x128xf32, #tpu.memory_space<vmem>>, vector<512x128xf32>
      tpu.vector_store %arg7[%c0_13, %c0_14], %14 {strides = array<i32>} : memref<512x128xf32, #tpu.memory_space<vmem>>, vector<512x128xf32>,
    } else {
    }
    %c0 = arith.constant 0 : index
    %c0_1 = arith.constant 0 : index
    %3 = vector.load %arg7[%c0, %c0_1] : memref<512x128xf32, #tpu.memory_space<vmem>>, vector<512x128xf32>
    %c0_2 = arith.constant 0 : index
    %c0_3 = arith.constant 0 : index
    %c0_4 = arith.constant 0 : index
    %4 = vector.load %arg4[%c0_2, %c0_3, %c0_4] : memref<1x512x128xbf16, #tpu.memory_space<vmem>>, vector<1x512x128xbf16>
    %5 = vector.shape_cast %4 : vector<1x512x128xbf16> to vector<512x128xbf16>
    %c0_5 = arith.constant 0 : index
    %c0_6 = arith.constant 0 : index
    %c0_7 = arith.constant 0 : index
    %6 = vector.load %arg5[%c0_5, %c0_6, %c0_7] : memref<1x128x128xbf16, #tpu.memory_space<vmem>>, vector<1x128x128xbf16>
    %7 = vector.shape_cast %6 : vector<1x128x128xbf16> to vector<128x128xbf16>
    %cst = arith.constant dense<0.000000e+00> : vector<512x128xf32>
    %8 = tpu.matmul %5, %7, %cst {dimension_numbers = #tpu.dot_dimension_numbers<[1], [0], [0], [1], [0, 0, 1, 1], [], []>} : vector<512x128xbf16>, vector<128x128xbf16>, vector<512x128xf32> -> vector<512x128xf32>
    %9 = arith.addf %3, %8 : vector<512x128xf32>
    %c0_8 = arith.constant 0 : index
    %c0_9 = arith.constant 0 : index
    %10 = vector.load %arg7[%c0_8, %c0_9] : memref<512x128xf32, #tpu.memory_space<vmem>>, vector<512x128xf32>
    tpu.vector_store %arg7[%c0_8, %c0_9], %9 {strides = array<i32>} : memref<512x128xf32, #tpu.memory_space<vmem>>, vector<512x128xf32>,
    %c0_i32_10 = arith.constant 0 : i32
    %11 = arith.cmpi eq, %arg3, %c0_i32_10 : i32
    %12 = arith.extui %11 : i1 to i32
    %c0_i32_11 = arith.constant 0 : i32
    %13 = arith.cmpi ne, %12, %c0_i32_11 : i32
    scf.if %13 {
      %c0_12 = arith.constant 0 : index
      %c0_13 = arith.constant 0 : index
      %14 = vector.load %arg7[%c0_12, %c0_13] : memref<512x128xf32, #tpu.memory_space<vmem>>, vector<512x128xf32>
      %c0_14 = arith.constant 0 : index
      %c0_15 = arith.constant 0 : index
      %c0_16 = arith.constant 0 : index
      %15 = vector.load %arg6[%c0_14, %c0_15, %c0_16] : memref<1x512x128xf32, #tpu.memory_space<vmem>>, vector<1x512x128xf32>
      %16 = vector.shape_cast %15 : vector<1x512x128xf32> to vector<512x128xf32>
      %17 = vector.shape_cast %14 : vector<512x128xf32> to vector<1x512x128xf32>
      tpu.vector_store %arg6[%c0_14, %c0_15, %c0_16], %17 {strides = array<i32>} : memref<1x512x128xf32, #tpu.memory_space<vmem>>, vector<1x512x128xf32>,
    } else {
    }
    return
  }
  func.func @transform_0(%arg0: i32, %arg1: i32, %arg2: i32, %arg3: i32) -> (i32, i32, i32) {
    %c0_i32 = arith.constant 0 : i32
    return %arg0, %arg1, %arg3 : i32, i32, i32
  }
  func.func @transform_1(%arg0: i32, %arg1: i32, %arg2: i32, %arg3: i32) -> (i32, i32, i32) {
    %c0_i32 = arith.constant 0 : i32
    return %arg0, %arg3, %arg2 : i32, i32, i32
  }
  func.func @transform_2(%arg0: i32, %arg1: i32, %arg2: i32, %arg3: i32) -> (i32, i32, i32) {
    %c0_i32 = arith.constant 0 : i32
    return %arg0, %arg1, %arg2 : i32, i32, i32
  }
}

module attributes {stable_mosaic.version = 11 : i64} {
  func.func @_scale_shift_relu_kernel(%arg0: i32, %arg1: memref<512x128xf32, #tpu.memory_space<vmem>>, %arg2: memref<1x128xf32, #tpu.memory_space<vmem>>, %arg3: memref<1x128xf32, #tpu.memory_space<vmem>>, %arg4: memref<512x128xf32, #tpu.memory_space<vmem>>) attributes {dimension_semantics = [#tpu.dimension_semantics<parallel>], iteration_bounds = array<i64: 4>, scalar_prefetch = 0 : i64, scratch_operands = 0 : i64, tpu.core_type = #tpu.core_type<tc>, window_params = [{transform_indices = @transform_0, window_bounds = array<i64: 512, 128>}, {pipeline_mode = #tpu.pipeline_mode<synchronous>, transform_indices = @transform_1, window_bounds = array<i64: 1, 128>}, {pipeline_mode = #tpu.pipeline_mode<synchronous>, transform_indices = @transform_2, window_bounds = array<i64: 1, 128>}, {transform_indices = @transform_3, window_bounds = array<i64: 512, 128>}]} {
    %c0 = arith.constant 0 : index
    %c0_0 = arith.constant 0 : index
    %0 = vector.load %arg1[%c0, %c0_0] : memref<512x128xf32, #tpu.memory_space<vmem>>, vector<512x128xf32>
    %c0_1 = arith.constant 0 : index
    %c0_2 = arith.constant 0 : index
    %1 = vector.load %arg2[%c0_1, %c0_2] : memref<1x128xf32, #tpu.memory_space<vmem>>, vector<1x128xf32>
    %2 = vector.broadcast %1 : vector<1x128xf32> to vector<512x128xf32>
    %3 = arith.mulf %0, %2 : vector<512x128xf32>
    %c0_3 = arith.constant 0 : index
    %c0_4 = arith.constant 0 : index
    %4 = vector.load %arg3[%c0_3, %c0_4] : memref<1x128xf32, #tpu.memory_space<vmem>>, vector<1x128xf32>
    %5 = vector.broadcast %4 : vector<1x128xf32> to vector<512x128xf32>
    %6 = arith.addf %3, %5 : vector<512x128xf32>
    %cst = arith.constant 0.000000e+00 : f32
    %7 = vector.broadcast %cst : f32 to vector<512x128xf32>
    %8 = arith.maximumf %6, %7 : vector<512x128xf32>
    %c0_5 = arith.constant 0 : index
    %c0_6 = arith.constant 0 : index
    %9 = vector.load %arg4[%c0_5, %c0_6] : memref<512x128xf32, #tpu.memory_space<vmem>>, vector<512x128xf32>
    tpu.vector_store %arg4[%c0_5, %c0_6], %8 {strides = array<i32>} : memref<512x128xf32, #tpu.memory_space<vmem>>, vector<512x128xf32>,
    return
  }
  func.func @transform_0(%arg0: i32) -> (i32, i32) {
    %c0_i32 = arith.constant 0 : i32
    %c0_i32_0 = arith.constant 0 : i32
    return %arg0, %c0_i32 : i32, i32
  }
  func.func @transform_1(%arg0: i32) -> (i32, i32) {
    %c0_i32 = arith.constant 0 : i32
    %c0_i32_0 = arith.constant 0 : i32
    %c0_i32_1 = arith.constant 0 : i32
    return %c0_i32, %c0_i32_0 : i32, i32
  }
  func.func @transform_2(%arg0: i32) -> (i32, i32) {
    %c0_i32 = arith.constant 0 : i32
    %c0_i32_0 = arith.constant 0 : i32
    %c0_i32_1 = arith.constant 0 : i32
    return %c0_i32, %c0_i32_0 : i32, i32
  }
  func.func @transform_3(%arg0: i32) -> (i32, i32) {
    %c0_i32 = arith.constant 0 : i32
    %c0_i32_0 = arith.constant 0 : i32
    return %arg0, %c0_i32 : i32, i32
  }
}

module attributes {stable_mosaic.version = 11 : i64} {
  func.func @_mm_kernel(%arg0: i32, %arg1: i32, %arg2: i32, %arg3: i32, %arg4: memref<1x512x128xbf16, #tpu.memory_space<vmem>>, %arg5: memref<1x128x128xbf16, #tpu.memory_space<vmem>>, %arg6: memref<1x512x128xf32, #tpu.memory_space<vmem>>, %arg7: memref<512x128xf32, #tpu.memory_space<vmem>>) attributes {dimension_semantics = [#tpu.dimension_semantics<parallel>, #tpu.dimension_semantics<parallel>, #tpu.dimension_semantics<parallel>, #tpu.dimension_semantics<arbitrary>], iteration_bounds = array<i64: 4, 4, 1, 1>, scalar_prefetch = 0 : i64, scratch_operands = 1 : i64, tpu.core_type = #tpu.core_type<tc>, window_params = [{transform_indices = @transform_0, window_bounds = array<i64: 1, 512, 128>}, {transform_indices = @transform_1, window_bounds = array<i64: 1, 128, 128>}, {transform_indices = @transform_2, window_bounds = array<i64: 1, 512, 128>}]} {
    %c0_i32 = arith.constant 0 : i32
    %0 = arith.cmpi eq, %arg3, %c0_i32 : i32
    %1 = arith.extui %0 : i1 to i32
    %c0_i32_0 = arith.constant 0 : i32
    %2 = arith.cmpi ne, %1, %c0_i32_0 : i32
    scf.if %2 {
      %cst_12 = arith.constant 0.000000e+00 : f32
      %14 = vector.broadcast %cst_12 : f32 to vector<512x128xf32>
      %c0_13 = arith.constant 0 : index
      %c0_14 = arith.constant 0 : index
      %15 = vector.load %arg7[%c0_13, %c0_14] : memref<512x128xf32, #tpu.memory_space<vmem>>, vector<512x128xf32>
      tpu.vector_store %arg7[%c0_13, %c0_14], %14 {strides = array<i32>} : memref<512x128xf32, #tpu.memory_space<vmem>>, vector<512x128xf32>,
    } else {
    }
    %c0 = arith.constant 0 : index
    %c0_1 = arith.constant 0 : index
    %3 = vector.load %arg7[%c0, %c0_1] : memref<512x128xf32, #tpu.memory_space<vmem>>, vector<512x128xf32>
    %c0_2 = arith.constant 0 : index
    %c0_3 = arith.constant 0 : index
    %c0_4 = arith.constant 0 : index
    %4 = vector.load %arg4[%c0_2, %c0_3, %c0_4] : memref<1x512x128xbf16, #tpu.memory_space<vmem>>, vector<1x512x128xbf16>
    %5 = vector.shape_cast %4 : vector<1x512x128xbf16> to vector<512x128xbf16>
    %c0_5 = arith.constant 0 : index
    %c0_6 = arith.constant 0 : index
    %c0_7 = arith.constant 0 : index
    %6 = vector.load %arg5[%c0_5, %c0_6, %c0_7] : memref<1x128x128xbf16, #tpu.memory_space<vmem>>, vector<1x128x128xbf16>
    %7 = vector.shape_cast %6 : vector<1x128x128xbf16> to vector<128x128xbf16>
    %cst = arith.constant dense<0.000000e+00> : vector<512x128xf32>
    %8 = tpu.matmul %5, %7, %cst {dimension_numbers = #tpu.dot_dimension_numbers<[1], [0], [0], [1], [0, 0, 1, 1], [], []>} : vector<512x128xbf16>, vector<128x128xbf16>, vector<512x128xf32> -> vector<512x128xf32>
    %9 = arith.addf %3, %8 : vector<512x128xf32>
    %c0_8 = arith.constant 0 : index
    %c0_9 = arith.constant 0 : index
    %10 = vector.load %arg7[%c0_8, %c0_9] : memref<512x128xf32, #tpu.memory_space<vmem>>, vector<512x128xf32>
    tpu.vector_store %arg7[%c0_8, %c0_9], %9 {strides = array<i32>} : memref<512x128xf32, #tpu.memory_space<vmem>>, vector<512x128xf32>,
    %c0_i32_10 = arith.constant 0 : i32
    %11 = arith.cmpi eq, %arg3, %c0_i32_10 : i32
    %12 = arith.extui %11 : i1 to i32
    %c0_i32_11 = arith.constant 0 : i32
    %13 = arith.cmpi ne, %12, %c0_i32_11 : i32
    scf.if %13 {
      %c0_12 = arith.constant 0 : index
      %c0_13 = arith.constant 0 : index
      %14 = vector.load %arg7[%c0_12, %c0_13] : memref<512x128xf32, #tpu.memory_space<vmem>>, vector<512x128xf32>
      %15 = math.tanh %14 : vector<512x128xf32>
      %c0_14 = arith.constant 0 : index
      %c0_15 = arith.constant 0 : index
      %c0_16 = arith.constant 0 : index
      %16 = vector.load %arg6[%c0_14, %c0_15, %c0_16] : memref<1x512x128xf32, #tpu.memory_space<vmem>>, vector<1x512x128xf32>
      %17 = vector.shape_cast %16 : vector<1x512x128xf32> to vector<512x128xf32>
      %18 = vector.shape_cast %15 : vector<512x128xf32> to vector<1x512x128xf32>
      tpu.vector_store %arg6[%c0_14, %c0_15, %c0_16], %18 {strides = array<i32>} : memref<1x512x128xf32, #tpu.memory_space<vmem>>, vector<1x512x128xf32>,
    } else {
    }
    return
  }
  func.func @transform_0(%arg0: i32, %arg1: i32, %arg2: i32, %arg3: i32) -> (i32, i32, i32) {
    %c0_i32 = arith.constant 0 : i32
    return %arg0, %arg1, %arg3 : i32, i32, i32
  }
  func.func @transform_1(%arg0: i32, %arg1: i32, %arg2: i32, %arg3: i32) -> (i32, i32, i32) {
    %c0_i32 = arith.constant 0 : i32
    return %arg0, %arg3, %arg2 : i32, i32, i32
  }
  func.func @transform_2(%arg0: i32, %arg1: i32, %arg2: i32, %arg3: i32) -> (i32, i32, i32) {
    %c0_i32 = arith.constant 0 : i32
    return %arg0, %arg1, %arg2 : i32, i32, i32
  }
}

</mosaic_0001>

<llo_original>
// kernel: a_call__.14
$region0: #{a_call__.14}
  #allocation0 [shape = 'u32[]', space=smem, size = 0x4, offset = 0x4, fixed_abs, tag = 'smem constant byte address 0x4 - core index']
  #allocation1 [shape = 'u32[144,128]{1,0:T(1,128)}', space=vmem, size = 0x12000, scoped, tag = 'internal scratch']
  %s0 = inlined_call_operand.vmem [shape: f32[32,128], index: 0, kind: input, shape index: {}]
  %s1 = inlined_call_operand.vmem [shape: f32[1,128], index: 1, kind: output, shape index: {0}]
  %s2 = inlined_call_operand.vmem [shape: f32[1,128], index: 2, kind: output, shape index: {1}]
  %3 = xla_tuple %s1, %s2
  %s4 = sld [smem:[#allocation0]]
  $region26: #{a_call__.14} parent=0
    _
  %s6 = ssub.s32 1, %s4
  %s7 = scalar_select 0, %s6, %s4
  // Predicated region
  $region2: #{a_call__.14} parent=0 // pred_check
    _
  $region3: #{a_call__.14} parent=0 // pred_check_branch
    %9 = sbr.rel (0) target = $region5
  $region4: #{a_call__.14} parent=0 // pred_region
    _
  $region5: #{a_call__.14} parent=0 // pred_fallthru
    _
  %p10 = scmp.eq.s32.totalorder 0, 0
  // Predicated region
  $region6: #{a_call__.14} parent=0 // pred_check
    %p11 = pneg %p10
  $region7: #{a_call__.14} parent=0 // pred_check_branch
    %13 = sbr.rel (%p11) target = $region9
  $region8: #{a_call__.14} parent=0 // pred_region
    %14 = vst [vmem:[%s1] sm:$0x1] 0.0
    %15 = vst [vmem:[%s2] sm:$0x1] 0.0
  $region9: #{a_call__.14} parent=0 // pred_fallthru
    _
  %v16 = vld [vmem:[%s0] sm:$0xff]
  %v17 = vld [vmem:[%s0 + $0x8] sm:$0xff]
  %v18 = vld [vmem:[%s0 + $0x10] sm:$0xff]
  %v19 = vld [vmem:[%s0 + $0x18] sm:$0xff]
  %v20 = vld [vmem:[%s1] sm:$0x1]
  %v21 = vadd.f32 %v16, %v17
  %v22 = vadd.f32 %v21, %v18
  %v23 = vadd.f32 %v22, %v19
  %v24 = vrot.slane %v23, 4
  %v25 = vadd.f32 %v23, %v24
  %v26 = vrot.slane %v25, 2
  %v27 = vadd.f32 %v25, %v26
  %v28 = vrot.slane %v27, 1
  %v29 = vadd.f32 %v27, %v28
  %v30 = vadd.f32 %v20, %v29
  %31 = vst [vmem:[%s1] sm:$0x1] %v30
  %v32 = vld [vmem:[%s2] sm:$0x1]
  %v33 = vmul.f32 %v16, %v16
  %v34 = vmul.f32 %v17, %v17
  %v35 = vmul.f32 %v18, %v18
  %v36 = vmul.f32 %v19, %v19
  %v37 = vadd.f32 %v33, %v34
  %v38 = vadd.f32 %v37, %v35
  %v39 = vadd.f32 %v38, %v36
  %v40 = vrot.slane %v39, 4
  %v41 = vadd.f32 %v39, %v40
  %v42 = vrot.slane %v41, 2
  %v43 = vadd.f32 %v41, %v42
  %v44 = vrot.slane %v43, 1
  %v45 = vadd.f32 %v43, %v44
  %v46 = vadd.f32 %v32, %v45
  %47 = vst [vmem:[%s2] sm:$0x1] %v46
  // Predicated region
  $region10: #{a_call__.14} parent=0 // pred_check
    _
  $region11: #{a_call__.14} parent=0 // pred_check_branch
    %49 = sbr.rel (0) target = $region13
  $region12: #{a_call__.14} parent=0 // pred_region
    _
  $region13: #{a_call__.14} parent=0 // pred_fallthru
    _
  // Predicated region
  $region14: #{a_call__.14} parent=0 // pred_check
    _
  $region15: #{a_call__.14} parent=0 // pred_check_branch
    %51 = sbr.rel (0) target = $region17
  $region16: #{a_call__.14} parent=0 // pred_region
    _
  $region17: #{a_call__.14} parent=0 // pred_fallthru
    _
  // Predicated region
  $region18: #{a_call__.14} parent=0 // pred_check
    _
  $region19: #{a_call__.14} parent=0 // pred_check_branch
    %53 = sbr.rel (0) target = $region21
  $region20: #{a_call__.14} parent=0 // pred_region
    _
  $region21: #{a_call__.14} parent=0 // pred_fallthru
    _
  // Predicated region
  $region22: #{a_call__.14} parent=0 // pred_check
    _
  $region23: #{a_call__.14} parent=0 // pred_check_branch
    %55 = sbr.rel (0) target = $region25
  $region24: #{a_call__.14} parent=0 // pred_region
    _
  $region25: #{a_call__.14} parent=0 // pred_fallthru
    _

// kernel: a_call__.13
$region0: #{a_call__.13}
  #allocation0 [shape = 'u32[]', space=smem, size = 0x4, offset = 0x4, fixed_abs, tag = 'smem constant byte address 0x4 - core index']
  #allocation1 [shape = 'u32[144,128]{1,0:T(1,128)}', space=vmem, size = 0x12000, scoped, tag = 'internal scratch']
  #allocation2 [shape = 'f32[32,128]{1,0:T(8,128)}', space=vmem, size = 0x4000, scoped, tag = 'scratch operand']
  %s0 = inlined_call_operand.vmem [shape: bf16[1,32,128], index: 0, kind: input, shape index: {}]
  %s1 = inlined_call_operand.hbm [shape: bf16[1,128,128], index: 1, kind: input, shape index: {}]
  %s2 = inlined_call_operand.vmem [shape: f32[1,32,128], index: 2, kind: output, shape index: {}]
  %s3 = sld [smem:[#allocation0]]
  $region30: #{a_call__.13} parent=0
    _
  %s5 = ssub.s32 1, %s3
  %s6 = scalar_select 0, %s5, %s3
  $region1: #{a_call__.13} parent=0
    #allocation3 [shape = 'u8[32768]{0}', space=vmem, size = 0x8000, scoped, tag = 'input window, operand 1, single buffered']
    #allocation4 [shape = 's32[1]{0}', space=sflag, size = 0x4, scoped, tag = 'scoped memory for a_call__.13']
    %7 = vsyncpa [#allocation4], 0
    // Predicated region
    $region2: #{a_call__.13} parent=1 // pred_check
      _
    $region3: #{a_call__.13} parent=1 // pred_check_branch
      %9 = sbr.rel (0) target = $region5
    $region4: #{a_call__.13} parent=1 // pred_region
      _
    $region5: #{a_call__.13} parent=1 // pred_fallthru
      _
    // Predicated region
    $region6: #{a_call__.13} parent=1 // pred_check
      _
    $region7: #{a_call__.13} parent=1 // pred_check_branch
      %11 = sbr.rel (0) target = $region9
    $region8: #{a_call__.13} parent=1 // pred_region
      %s13 = ssub.s32 1024, 1024
      %14 = vsyncadd [#allocation4], %s13
      %s15 = sshll.u32 [#allocation3], 4
      %s16 = int_to_ptr.vmem [resolvable:$true] %s15
      %21 = dma.hbm_to_vmem [thread:$0]  %s1, 1024, %s16, [#allocation4], 64, 64, 4
    $region9: #{a_call__.13} parent=1 // pred_fallthru
      _
    // Predicated region
    $region10: #{a_call__.13} parent=1 // pred_check
      _
    $region11: #{a_call__.13} parent=1 // pred_check_branch
      %23 = sbr.rel (0) target = $region13
    $region12: #{a_call__.13} parent=1 // pred_region
      %24 = dma.done [#allocation4], 1024
    $region13: #{a_call__.13} parent=1 // pred_fallthru
      _
    %p26 = scmp.eq.s32.totalorder 0, 0
    // Predicated region
    $region14: #{a_call__.13} parent=1 // pred_check
      %p27 = pneg %p26
    $region15: #{a_call__.13} parent=1 // pred_check_branch
      %29 = sbr.rel (%p27) target = $region17
    $region16: #{a_call__.13} parent=1 // pred_region
      %30 = vst [vmem:[#allocation2] sm:$0xff] 0.0
      %31 = vst [vmem:[#allocation2 + $0x8] sm:$0xff] 0.0
      %32 = vst [vmem:[#allocation2 + $0x10] sm:$0xff] 0.0
      %33 = vst [vmem:[#allocation2 + $0x18] sm:$0xff] 0.0
    $region17: #{a_call__.13} parent=1 // pred_fallthru
      _
    %v34 = vld [vmem:[#allocation2] sm:$0xff]
    %v35 = vld [vmem:[#allocation2 + $0x8] sm:$0xff]
    %v36 = vld [vmem:[#allocation2 + $0x10] sm:$0xff]
    %v37 = vld [vmem:[#allocation2 + $0x18] sm:$0xff]
    %v38 = vld [vmem:[%s0] sm:$0xf]
    %v39 = vld [vmem:[%s0 + $0x4] sm:$0xf]
    %v40 = vld [vmem:[%s0 + $0x8] sm:$0xf]
    %v41 = vld [vmem:[%s0 + $0xc] sm:$0xf]
    %v42 = vld [vmem:[#allocation3] sm:$0xf]
    %v43 = vld [vmem:[#allocation3 + $0x4] sm:$0xf]
    %v44 = vld [vmem:[#allocation3 + $0x8] sm:$0xf]
    %v45 = vld [vmem:[#allocation3 + $0xc] sm:$0xf]
    %v46 = vld [vmem:[#allocation3 + $0x10] sm:$0xf]
    %v47 = vld [vmem:[#allocation3 + $0x14] sm:$0xf]
    %v48 = vld [vmem:[#allocation3 + $0x18] sm:$0xf]
    %v49 = vld [vmem:[#allocation3 + $0x1c] sm:$0xf]
    %v50 = vld [vmem:[#allocation3 + $0x20] sm:$0xf]
    %v51 = vld [vmem:[#allocation3 + $0x24] sm:$0xf]
    %v52 = vld [vmem:[#allocation3 + $0x28] sm:$0xf]
    %v53 = vld [vmem:[#allocation3 + $0x2c] sm:$0xf]
    %v54 = vld [vmem:[#allocation3 + $0x30] sm:$0xf]
    %v55 = vld [vmem:[#allocation3 + $0x34] sm:$0xf]
    %v56 = vld [vmem:[#allocation3 + $0x38] sm:$0xf]
    %v57 = vld [vmem:[#allocation3 + $0x3c] sm:$0xf]
    %v62 = vunpack.c.l.b16 %v38
    %v63 = vunpack.c.l.b16 %v39
    %v64 = vunpack.c.l.b16 %v40
    %v65 = vunpack.c.l.b16 %v41
    %v66 = vpack.c.b16 %v63, %v62
    %v67 = vpack.c.b16 %v65, %v64
    %v86 = vunpack.c.l.b16 %v42
    %v87 = vunpack.c.l.b16 %v43
    %v88 = vunpack.c.l.b16 %v44
    %v89 = vunpack.c.l.b16 %v45
    %v90 = vunpack.c.l.b16 %v46
    %v91 = vunpack.c.l.b16 %v47
    %v92 = vunpack.c.l.b16 %v48
    %v93 = vunpack.c.l.b16 %v49
    %v94 = vunpack.c.l.b16 %v50
    %v95 = vunpack.c.l.b16 %v51
    %v96 = vunpack.c.l.b16 %v52
    %v97 = vunpack.c.l.b16 %v53
    %v98 = vunpack.c.l.b16 %v54
    %v99 = vunpack.c.l.b16 %v55
    %v100 = vunpack.c.l.b16 %v56
    %v101 = vunpack.c.l.b16 %v57
    %v102 = vpack.c.b16 %v87, %v86
    %v103 = vpack.c.b16 %v89, %v88
    %v104 = vpack.c.b16 %v91, %v90
    %v105 = vpack.c.b16 %v93, %v92
    %v106 = vpack.c.b16 %v95, %v94
    %v107 = vpack.c.b16 %v97, %v96
    %v108 = vpack.c.b16 %v99, %v98
    %v109 = vpack.c.b16 %v101, %v100
    %118 = vmatprep.subr.bf16.mxu0 0
    %119 = vmatpush1.bf16.msra.mxu0 %v109
    %120 = vmatprep.subr.bf16.mxu0 0
    %121 = vmatpush1.bf16.msra.mxu0 %v108
    %122 = vmatprep.subr.bf16.mxu0 0
    %123 = vmatpush1.bf16.msra.mxu0 %v107
    %124 = vmatprep.subr.bf16.mxu0 0
    %125 = vmatpush1.bf16.msra.mxu0 %v106
    %126 = vmatprep.subr.bf16.mxu0 0
    %127 = vmatpush1.bf16.msra.mxu0 %v105
    %128 = vmatprep.subr.bf16.mxu0 0
    %129 = vmatpush1.bf16.msra.mxu0 %v104
    %130 = vmatprep.subr.bf16.mxu0 0
    %131 = vmatpush1.bf16.msra.mxu0 %v103
    %132 = vmatprep.subr.bf16.mxu0 0
    %133 = vmatpush1.bf16.msra.mxu0 %v102
    %134 = vmatprep.subr.bf16.mxu0 0
    %135 = vmatpush2.bf16.msra.mxu0 0
    %136 = vmatprep.subr.bf16.mxu0 0
    %137 = vmatpush2.bf16.msra.mxu0 0
    %138 = vmatprep.subr.bf16.mxu0 0
    %139 = vmatpush2.bf16.msra.mxu0 0
    %140 = vmatprep.subr.bf16.mxu0 0
    %141 = vmatpush2.bf16.msra.mxu0 0
    %142 = vmatprep.subr.bf16.mxu0 0
    %143 = vmatpush2.bf16.msra.mxu0 0
    %144 = vmatprep.subr.bf16.mxu0 0
    %145 = vmatpush2.bf16.msra.mxu0 0
    %146 = vmatprep.subr.bf16.mxu0 0
    %147 = vmatpush2.bf16.msra.mxu0 0
    %148 = vmatprep.subr.bf16.mxu0 0
    %149 = vmatpush2.bf16.msra.mxu0 0
    %150 = vmatprep.mubr.bf16.mxu0 0
    %151 = vmatmul.mubr.bf16.gmra.mxu0 %v66
    %v152 = vpop.f32.mrf.mxu0
    %v153 = vadd.f32 0.0, %v152
    %v154 = vpop.f32.mrf.mxu0
    %v155 = vpop.f32.mrf.mxu0
    %v156 = vadd.f32 0.0, %v155
    %v157 = vpop.f32.mrf.mxu0
    %158 = vmatprep.mubr.bf16.mxu0 0
    %159 = vmatmul.mubr.bf16.gmra.mxu0 %v67
    %v160 = vpop.f32.mrf.mxu0
    %v161 = vadd.f32 0.0, %v160
    %v162 = vpop.f32.mrf.mxu0
    %v163 = vpop.f32.mrf.mxu0
    %v164 = vadd.f32 0.0, %v163
    %v165 = vpop.f32.mrf.mxu0
    %166 = vdwg.mxu0
    %v167 = vadd.f32 %v34, %v153
    %v168 = vadd.f32 %v35, %v156
    %v169 = vadd.f32 %v36, %v161
    %v170 = vadd.f32 %v37, %v164
    %171 = vst [vmem:[#allocation2] sm:$0xff] %v167
    %172 = vst [vmem:[#allocation2 + $0x8] sm:$0xff] %v168
    %173 = vst [vmem:[#allocation2 + $0x10] sm:$0xff] %v169
    %174 = vst [vmem:[#allocation2 + $0x18] sm:$0xff] %v170
    // Predicated region
    $region18: #{a_call__.13} parent=1 // pred_check
      %p175 = pneg %p26
    $region19: #{a_call__.13} parent=1 // pred_check_branch
      %177 = sbr.rel (%p175) target = $region21
    $region20: #{a_call__.13} parent=1 // pred_region
      %v178 = vld [vmem:[#allocation2] sm:$0xff]
      %v179 = vld [vmem:[#allocation2 + $0x8] sm:$0xff]
      %v180 = vld [vmem:[#allocation2 + $0x10] sm:$0xff]
      %v181 = vld [vmem:[#allocation2 + $0x18] sm:$0xff]
      %182 = vst [vmem:[%s2] sm:$0xff] %v178
      %183 = vst [vmem:[%s2 + $0x8] sm:$0xff] %v179
      %184 = vst [vmem:[%s2 + $0x10] sm:$0xff] %v180
      %185 = vst [vmem:[%s2 + $0x18] sm:$0xff] %v181
    $region21: #{a_call__.13} parent=1 // pred_fallthru
      _
    // Predicated region
    $region22: #{a_call__.13} parent=1 // pred_check
      _
    $region23: #{a_call__.13} parent=1 // pred_check_branch
      %187 = sbr.rel (0) target = $region25
    $region24: #{a_call__.13} parent=1 // pred_region
      _
    $region25: #{a_call__.13} parent=1 // pred_fallthru
      _
    // Predicated region
    $region26: #{a_call__.13} parent=1 // pred_check
      _
    $region27: #{a_call__.13} parent=1 // pred_check_branch
      %189 = sbr.rel (0) target = $region29
    $region28: #{a_call__.13} parent=1 // pred_region
      _
    $region29: #{a_call__.13} parent=1 // pred_fallthru
      _
    %190 = vsyncpa [#allocation4], 1

// kernel: a_call__.15
$region0: #{a_call__.15}
  #allocation0 [shape = 'u32[]', space=smem, size = 0x4, offset = 0x4, fixed_abs, tag = 'smem constant byte address 0x4 - core index']
  #allocation1 [shape = 'u32[144,128]{1,0:T(1,128)}', space=vmem, size = 0x12000, scoped, tag = 'internal scratch']
  %s0 = inlined_call_operand.vmem [shape: f32[32,128], index: 0, kind: input, shape index: {}]
  %s1 = inlined_call_operand.vmem [shape: f32[1,128], index: 1, kind: input, shape index: {}]
  %s2 = inlined_call_operand.vmem [shape: f32[1,128], index: 2, kind: input, shape index: {}]
  %s3 = inlined_call_operand.vmem [shape: f32[32,128], index: 3, kind: output, shape index: {}]
  %s4 = sld [smem:[#allocation0]]
  $region22: #{a_call__.15} parent=0
    _
  %s6 = ssub.s32 1, %s4
  %s7 = scalar_select 0, %s6, %s4
  // Predicated region
  $region2: #{a_call__.15} parent=0 // pred_check
    _
  $region3: #{a_call__.15} parent=0 // pred_check_branch
    %9 = sbr.rel (0) target = $region5
  $region4: #{a_call__.15} parent=0 // pred_region
    _
  $region5: #{a_call__.15} parent=0 // pred_fallthru
    _
  // Predicated region
  $region6: #{a_call__.15} parent=0 // pred_check
    _
  $region7: #{a_call__.15} parent=0 // pred_check_branch
    %11 = sbr.rel (0) target = $region9
  $region8: #{a_call__.15} parent=0 // pred_region
    _
  $region9: #{a_call__.15} parent=0 // pred_fallthru
    _
  // Predicated region
  $region10: #{a_call__.15} parent=0 // pred_check
    _
  $region11: #{a_call__.15} parent=0 // pred_check_branch
    %13 = sbr.rel (0) target = $region13
  $region12: #{a_call__.15} parent=0 // pred_region
    _
  $region13: #{a_call__.15} parent=0 // pred_fallthru
    _
  %v14 = vld [vmem:[%s0] sm:$0xff]
  %v15 = vld [vmem:[%s0 + $0x8] sm:$0xff]
  %v16 = vld [vmem:[%s0 + $0x10] sm:$0xff]
  %v17 = vld [vmem:[%s0 + $0x18] sm:$0xff]
  %v18 = vld [vmem:[%s1] sm:$0x1]
  %v20 = vlaneseq
  %v21 = vshrl.u32 %v20, 7
  %v22 = vsub.s32 0, %v21
  %v23 = vrot.slane %v18, %v22
  %v25 = vmul.f32 %v14, %v23
  %v26 = vmul.f32 %v15, %v23
  %v27 = vmul.f32 %v16, %v23
  %v28 = vmul.f32 %v17, %v23
  %v29 = vld [vmem:[%s2] sm:$0x1]
  %v31 = vlaneseq
  %v32 = vshrl.u32 %v31, 7
  %v33 = vsub.s32 0, %v32
  %v34 = vrot.slane %v29, %v33
  %v36 = vadd.f32 %v25, %v34
  %v37 = vadd.f32 %v26, %v34
  %v38 = vadd.f32 %v27, %v34
  %v39 = vadd.f32 %v28, %v34
  %v40 = vmax.f32 %v36, 0.0
  %v41 = vmax.f32 %v37, 0.0
  %v42 = vmax.f32 %v38, 0.0
  %v43 = vmax.f32 %v39, 0.0
  %44 = vst [vmem:[%s3] sm:$0xff] %v40
  %45 = vst [vmem:[%s3 + $0x8] sm:$0xff] %v41
  %46 = vst [vmem:[%s3 + $0x10] sm:$0xff] %v42
  %47 = vst [vmem:[%s3 + $0x18] sm:$0xff] %v43
  // Predicated region
  $region14: #{a_call__.15} parent=0 // pred_check
    _
  $region15: #{a_call__.15} parent=0 // pred_check_branch
    %49 = sbr.rel (0) target = $region17
  $region16: #{a_call__.15} parent=0 // pred_region
    _
  $region17: #{a_call__.15} parent=0 // pred_fallthru
    _
  // Predicated region
  $region18: #{a_call__.15} parent=0 // pred_check
    _
  $region19: #{a_call__.15} parent=0 // pred_check_branch
    %51 = sbr.rel (0) target = $region21
  $region20: #{a_call__.15} parent=0 // pred_region
    _
  $region21: #{a_call__.15} parent=0 // pred_fallthru
    _

// kernel: a_call__.17
$region0: #{a_call__.17}
  #allocation0 [shape = 'u32[]', space=smem, size = 0x4, offset = 0x4, fixed_abs, tag = 'smem constant byte address 0x4 - core index']
  #allocation1 [shape = 'u32[144,128]{1,0:T(1,128)}', space=vmem, size = 0x12000, scoped, tag = 'internal scratch']
  %s0 = inlined_call_operand.vmem [shape: f32[128,128], index: 0, kind: input, shape index: {}]
  %s1 = inlined_call_operand.vmem [shape: f32[1,128], index: 1, kind: output, shape index: {0}]
  %s2 = inlined_call_operand.vmem [shape: f32[1,128], index: 2, kind: output, shape index: {1}]
  %3 = xla_tuple %s1, %s2
  %s4 = sld [smem:[#allocation0]]
  $region26: #{a_call__.17} parent=0
    _
  %s6 = ssub.s32 1, %s4
  %s7 = scalar_select 0, %s6, %s4
  // Predicated region
  $region2: #{a_call__.17} parent=0 // pred_check
    _
  $region3: #{a_call__.17} parent=0 // pred_check_branch
    %9 = sbr.rel (0) target = $region5
  $region4: #{a_call__.17} parent=0 // pred_region
    _
  $region5: #{a_call__.17} parent=0 // pred_fallthru
    _
  %p10 = scmp.eq.s32.totalorder 0, 0
  // Predicated region
  $region6: #{a_call__.17} parent=0 // pred_check
    %p11 = pneg %p10
  $region7: #{a_call__.17} parent=0 // pred_check_branch
    %13 = sbr.rel (%p11) target = $region9
  $region8: #{a_call__.17} parent=0 // pred_region
    %14 = vst [vmem:[%s1] sm:$0x1] 0.0
    %15 = vst [vmem:[%s2] sm:$0x1] 0.0
  $region9: #{a_call__.17} parent=0 // pred_fallthru
    _
  %v16 = vld [vmem:[%s0] sm:$0xff]
  %v17 = vld [vmem:[%s0 + $0x8] sm:$0xff]
  %v18 = vld [vmem:[%s0 + $0x10] sm:$0xff]
  %v19 = vld [vmem:[%s0 + $0x18] sm:$0xff]
  %v20 = vld [vmem:[%s0 + $0x20] sm:$0xff]
  %v21 = vld [vmem:[%s0 + $0x28] sm:$0xff]
  %v22 = vld [vmem:[%s0 + $0x30] sm:$0xff]
  %v23 = vld [vmem:[%s0 + $0x38] sm:$0xff]
  %v24 = vld [vmem:[%s0 + $0x40] sm:$0xff]
  %v25 = vld [vmem:[%s0 + $0x48] sm:$0xff]
  %v26 = vld [vmem:[%s0 + $0x50] sm:$0xff]
  %v27 = vld [vmem:[%s0 + $0x58] sm:$0xff]
  %v28 = vld [vmem:[%s0 + $0x60] sm:$0xff]
  %v29 = vld [vmem:[%s0 + $0x68] sm:$0xff]
  %v30 = vld [vmem:[%s0 + $0x70] sm:$0xff]
  %v31 = vld [vmem:[%s0 + $0x78] sm:$0xff]
  %v32 = vld [vmem:[%s1] sm:$0x1]
  %v33 = vadd.f32 %v16, %v17
  %v34 = vadd.f32 %v33, %v18
  %v35 = vadd.f32 %v34, %v19
  %v36 = vadd.f32 %v35, %v20
  %v37 = vadd.f32 %v36, %v21
  %v38 = vadd.f32 %v37, %v22
  %v39 = vadd.f32 %v38, %v23
  %v40 = vadd.f32 %v39, %v24
  %v41 = vadd.f32 %v40, %v25
  %v42 = vadd.f32 %v41, %v26
  %v43 = vadd.f32 %v42, %v27
  %v44 = vadd.f32 %v43, %v28
  %v45 = vadd.f32 %v44, %v29
  %v46 = vadd.f32 %v45, %v30
  %v47 = vadd.f32 %v46, %v31
  %v48 = vrot.slane %v47, 4
  %v49 = vadd.f32 %v47, %v48
  %v50 = vrot.slane %v49, 2
  %v51 = vadd.f32 %v49, %v50
  %v52 = vrot.slane %v51, 1
  %v53 = vadd.f32 %v51, %v52
  %v54 = vadd.f32 %v32, %v53
  %55 = vst [vmem:[%s1] sm:$0x1] %v54
  %v56 = vld [vmem:[%s2] sm:$0x1]
  %v57 = vmul.f32 %v16, %v16
  %v58 = vmul.f32 %v17, %v17
  %v59 = vmul.f32 %v18, %v18
  %v60 = vmul.f32 %v19, %v19
  %v61 = vmul.f32 %v20, %v20
  %v62 = vmul.f32 %v21, %v21
  %v63 = vmul.f32 %v22, %v22
  %v64 = vmul.f32 %v23, %v23
  %v65 = vmul.f32 %v24, %v24
  %v66 = vmul.f32 %v25, %v25
  %v67 = vmul.f32 %v26, %v26
  %v68 = vmul.f32 %v27, %v27
  %v69 = vmul.f32 %v28, %v28
  %v70 = vmul.f32 %v29, %v29
  %v71 = vmul.f32 %v30, %v30
  %v72 = vmul.f32 %v31, %v31
  %v73 = vadd.f32 %v57, %v58
  %v74 = vadd.f32 %v73, %v59
  %v75 = vadd.f32 %v74, %v60
  %v76 = vadd.f32 %v75, %v61
  %v77 = vadd.f32 %v76, %v62
  %v78 = vadd.f32 %v77, %v63
  %v79 = vadd.f32 %v78, %v64
  %v80 = vadd.f32 %v79, %v65
  %v81 = vadd.f32 %v80, %v66
  %v82 = vadd.f32 %v81, %v67
  %v83 = vadd.f32 %v82, %v68
  %v84 = vadd.f32 %v83, %v69
  %v85 = vadd.f32 %v84, %v70
  %v86 = vadd.f32 %v85, %v71
  %v87 = vadd.f32 %v86, %v72
  %v88 = vrot.slane %v87, 4
  %v89 = vadd.f32 %v87, %v88
  %v90 = vrot.slane %v89, 2
  %v91 = vadd.f32 %v89, %v90
  %v92 = vrot.slane %v91, 1
  %v93 = vadd.f32 %v91, %v92
  %v94 = vadd.f32 %v56, %v93
  %95 = vst [vmem:[%s2] sm:$0x1] %v94
  // Predicated region
  $region10: #{a_call__.17} parent=0 // pred_check
    _
  $region11: #{a_call__.17} parent=0 // pred_check_branch
    %97 = sbr.rel (0) target = $region13
  $region12: #{a_call__.17} parent=0 // pred_region
    _
  $region13: #{a_call__.17} parent=0 // pred_fallthru
    _
  // Predicated region
  $region14: #{a_call__.17} parent=0 // pred_check
    _
  $region15: #{a_call__.17} parent=0 // pred_check_branch
    %99 = sbr.rel (0) target = $region17
  $region16: #{a_call__.17} parent=0 // pred_region
    _
  $region17: #{a_call__.17} parent=0 // pred_fallthru
    _
  // Predicated region
  $region18: #{a_call__.17} parent=0 // pred_check
    _
  $region19: #{a_call__.17} parent=0 // pred_check_branch
    %101 = sbr.rel (0) target = $region21
  $region20: #{a_call__.17} parent=0 // pred_region
    _
  $region21: #{a_call__.17} parent=0 // pred_fallthru
    _
  // Predicated region
  $region22: #{a_call__.17} parent=0 // pred_check
    _
  $region23: #{a_call__.17} parent=0 // pred_check_branch
    %103 = sbr.rel (0) target = $region25
  $region24: #{a_call__.17} parent=0 // pred_region
    _
  $region25: #{a_call__.17} parent=0 // pred_fallthru
    _

// kernel: a_call__.16
$region0: #{a_call__.16}
  #allocation0 [shape = 'u32[]', space=smem, size = 0x4, offset = 0x4, fixed_abs, tag = 'smem constant byte address 0x4 - core index']
  #allocation1 [shape = 'u32[144,128]{1,0:T(1,128)}', space=vmem, size = 0x12000, scoped, tag = 'internal scratch']
  #allocation2 [shape = 'f32[32,128]{1,0:T(8,128)}', space=vmem, size = 0x4000, scoped, tag = 'scratch operand']
  %s0 = inlined_call_operand.vmem [shape: bf16[4,32,256], index: 0, kind: input, shape index: {}]
  %s1 = inlined_call_operand.hbm [shape: bf16[4,256,128], index: 1, kind: input, shape index: {}]
  %s2 = inlined_call_operand.vmem [shape: f32[4,32,128], index: 2, kind: output, shape index: {}]
  %s3 = sld [smem:[#allocation0]]
  $region53: #{a_call__.16} parent=0
    _
  %s5 = ssub.s32 1, %s3
  %s6 = scalar_select 0, %s5, %s3
  $region1: #{a_call__.16} parent=0
    #allocation3 [shape = 'u8[131072]{0}', space=vmem, size = 0x20000, scoped, tag = 'input window, operand 1']
    #allocation4 [shape = 's32[2]{0}', space=sflag, size = 0x8, scoped, tag = 'scoped memory for a_call__.16']
    %7 = vsyncpa [#allocation4], 0
    %s8 = scalar_lea.sflag [#allocation4], 1
    %9 = vsyncpa %s8, 0
    loop: start=0, step=1, limit=6
    $region2: #{a_call__.16} parent=1 // loop_pre_header
      _
    $region3: #{a_call__.16} parent=1 // loop_header
      %s11 = sphi 0, %s15
      %p12 = scmp.ge.s32.totalorder %s11, 6
      %s18 = sphi 0, %s44
      %s19 = sphi 0, %s40
      %s20 = sphi 0, %s36
      %s21 = sphi 0, %s32
      %s22 = sphi 0, %s18
      %s23 = sphi 0, %s19
      %s24 = sphi 0, %s20
      %s25 = sphi 0, %s21
      %s26 = sphi 0, %s22
      %s27 = sphi 0, %s23
      %s28 = sphi 0, %s24
      %s29 = sphi 0, %s25
      %s51 = sphi 0, %s53
      %s54 = sphi 0, %s51
      %s55 = sphi 0, %s54
      %s71 = sphi 0, %s55
      %s81 = sphi 0, %s83
      %s84 = sphi 0, %s81
      %s85 = sphi 0, %s84
      %s101 = sphi 0, %s85
      %s111 = sphi 0, %s113
      %s114 = sphi 0, %s111
      %s115 = sphi 0, %s114
      %s131 = sphi 0, %s115
    $region4: #{a_call__.16} parent=1 // loop_header_branch
      %14 = sbr.rel (%p12) target = $region8
    $region5: #{a_call__.16} parent=1 // loop_body
      %s16 = ssub.s32 %s11, 1
      %s17 = ssub.s32 %s11, 2
      %s30 = sadd.s32 1, %s21
      %p31 = scmp.ge.s32.totalorder %s30, 1
      %s32 = scalar_select %p31, 0, %s30
      %s33 = sadd.s32 1, %s20
      %s34 = scalar_select %p31, %s33, %s20
      %p35 = scmp.ge.s32.totalorder %s34, 1
      %s36 = scalar_select %p35, 0, %s34
      %s37 = sadd.s32 1, %s19
      %s38 = scalar_select %p35, %s37, %s19
      %p39 = scmp.ge.s32.totalorder %s38, 1
      %s40 = scalar_select %p39, 0, %s38
      %s41 = sadd.s32 1, %s18
      %s42 = scalar_select %p39, %s41, %s18
      %p43 = scmp.ge.s32.totalorder %s42, 4
      %s44 = scalar_select %p43, 0, %s42
      %s45 = ssub.s32 %s18, %s44
      %s46 = ssub.s32 %s19, %s40
      %s47 = sor.u32 %s45, %s46
      %s48 = ssub.s32 %s21, %s32
      %s49 = sor.u32 %s47, %s48
      %p50 = scmp.eq.s32.totalorder %s49, 0
      %s52 = sadd.s32 %s51, 1
      %s53 = scalar_select %p50, %s51, %s52
      %p56 = pneg %p50
      %p57 = scmp.eq.s32.totalorder %s11, 3
      %p58 = por %p56, %p57
      %p59 = scmp.ne.s32.totalorder %s51, %s54
      %p60 = scmp.eq.s32.totalorder %s11, 0
      %p61 = por %p59, %p60
      %p62 = scmp.ne.s32.totalorder %s51, %s54
      %p63 = scmp.eq.s32.totalorder %s16, 3
      %p64 = por %p62, %p63
      %p65 = scmp.ne.s32.totalorder %s54, %s55
      %p66 = scmp.eq.s32.totalorder %s16, 0
      %p67 = por %p65, %p66
      %p68 = scmp.ne.s32.totalorder %s54, %s55
      %p69 = scmp.eq.s32.totalorder %s17, 3
      %p70 = por %p68, %p69
      %p72 = scmp.ne.s32.totalorder %s55, %s71
      %p73 = scmp.eq.s32.totalorder %s17, 0
      %p74 = por %p72, %p73
      %s75 = ssub.s32 %s18, %s44
      %s76 = ssub.s32 %s21, %s32
      %s77 = sor.u32 %s75, %s76
      %s78 = ssub.s32 %s20, %s36
      %s79 = sor.u32 %s77, %s78
      %p80 = scmp.eq.s32.totalorder %s79, 0
      %s82 = sadd.s32 %s81, 1
      %s83 = scalar_select %p80, %s81, %s82
      %p86 = pneg %p80
      %p87 = scmp.eq.s32.totalorder %s11, 3
      %p88 = por %p86, %p87
      %p89 = scmp.ne.s32.totalorder %s81, %s84
      %p90 = scmp.eq.s32.totalorder %s11, 0
      %p91 = por %p89, %p90
      %p92 = scmp.ne.s32.totalorder %s81, %s84
      %p93 = scmp.eq.s32.totalorder %s16, 3
      %p94 = por %p92, %p93
      %p95 = scmp.ne.s32.totalorder %s84, %s85
      %p96 = scmp.eq.s32.totalorder %s16, 0
      %p97 = por %p95, %p96
      %p98 = scmp.ne.s32.totalorder %s84, %s85
      %p99 = scmp.eq.s32.totalorder %s17, 3
      %p100 = por %p98, %p99
      %p102 = scmp.ne.s32.totalorder %s85, %s101
      %p103 = scmp.eq.s32.totalorder %s17, 0
      %p104 = por %p102, %p103
      %s105 = ssub.s32 %s18, %s44
      %s106 = ssub.s32 %s19, %s40
      %s107 = sor.u32 %s105, %s106
      %s108 = ssub.s32 %s20, %s36
      %s109 = sor.u32 %s107, %s108
      %p110 = scmp.eq.s32.totalorder %s109, 0
      %s112 = sadd.s32 %s111, 1
      %s113 = scalar_select %p110, %s111, %s112
      %p116 = pneg %p110
      %p117 = scmp.eq.s32.totalorder %s11, 3
      %p118 = por %p116, %p117
      %p119 = scmp.ne.s32.totalorder %s111, %s114
      %p120 = scmp.eq.s32.totalorder %s11, 0
      %p121 = por %p119, %p120
      %p122 = scmp.ne.s32.totalorder %s111, %s114
      %p123 = scmp.eq.s32.totalorder %s16, 3
      %p124 = por %p122, %p123
      %p125 = scmp.ne.s32.totalorder %s114, %s115
      %p126 = scmp.eq.s32.totalorder %s16, 0
      %p127 = por %p125, %p126
      %p128 = scmp.ne.s32.totalorder %s114, %s115
      %p129 = scmp.eq.s32.totalorder %s17, 3
      %p130 = por %p128, %p129
      %p132 = scmp.ne.s32.totalorder %s115, %s131
      %p133 = scmp.eq.s32.totalorder %s17, 0
      %p134 = por %p132, %p133
      %p135 = scmp.le.s32.totalorder 1, %s11
      %p136 = scmp.lt.s32.totalorder %s11, 5
      %p137 = pnand %p135, %p136
      %p138 = pneg %p137
      // Predicated region
      $region9: #{a_call__.16} parent=5 // pred_check
        _
      $region10: #{a_call__.16} parent=5 // pred_check_branch
        %140 = sbr.rel (%p137) target = $region12
      $region11: #{a_call__.16} parent=5 // pred_region
        %s141 = ssub.s32 %s11, 1
      $region12: #{a_call__.16} parent=5 // pred_fallthru
        _
      %p142 = scmp.lt.s32.totalorder %s11, 4
      // Predicated region
      $region13: #{a_call__.16} parent=5 // pred_check
        %p143 = pneg %p142
      $region14: #{a_call__.16} parent=5 // pred_check_branch
        %145 = sbr.rel (%p143) target = $region16
      $region15: #{a_call__.16} parent=5 // pred_region
        // Predicated region
        $region17: #{a_call__.16} parent=15 // pred_check
          %p146 = pneg %p61
        $region18: #{a_call__.16} parent=15 // pred_check_branch
          %148 = sbr.rel (%p146) target = $region20
        $region19: #{a_call__.16} parent=15 // pred_region
          %s149 = smul.u32 4, %s19
          %s150 = smul.u32 2, %s21
          %p151 = scmp.lt.s32.totalorder %s18, 3
          %s152 = scalar_select %p151, %s18, 3
          %p153 = scmp.lt.s32.totalorder %s149, 3
          %s154 = scalar_select %p153, %s149, 3
          %p155 = scmp.lt.s32.totalorder %s150, 1
          %s156 = scalar_select %p155, %s150, 1
          %s157 = smul.addr %s154, 2
          %s158 = sadd.s32 %s156, %s157
          %s159 = smul.addr %s152, 8
          %s160 = sadd.s32 %s158, %s159
          %s161 = smul.addr %s160, 4
          %s162 = scalar_lea.vmem %s0, %s161
          %s163 = smul.u32 4, %s19
          %s164 = smul.u32 2, %s21
        $region20: #{a_call__.16} parent=15 // pred_fallthru
          _
        // Predicated region
        $region21: #{a_call__.16} parent=15 // pred_check
          %p165 = pneg %p91
        $region22: #{a_call__.16} parent=15 // pred_check_branch
          %167 = sbr.rel (%p165) target = $region24
        $region23: #{a_call__.16} parent=15 // pred_region
          %s168 = sand.u32 %s81, 1
          %s169 = scalar_lea.sflag [#allocation4], %s168
          %s170 = sand.u32 %s81, 1
          %s171 = smul.addr %s170, 128
          %s172 = scalar_lea.vmem [#allocation3], %s171
          %s173 = smul.u32 32, %s21
          %s175 = ssub.s32 2048, 2048
          %176 = vsyncadd %s169, %s175
          %s177 = sadd.s32 %s20, %s173
          %s178 = smul.addr %s18, 32
          %s179 = sadd.s32 %s177, %s178
          %s180 = smul.addr %s179, 64
          %s181 = scalar_lea.hbm %s1, %s180
          %s182 = sshll.u32 %s172, 4
          %s183 = int_to_ptr.vmem [resolvable:$true] %s182
          %188 = dma.hbm_to_vmem [thread:$0]  %s181, 2048, %s183, %s169, 64, 64, 4
        $region24: #{a_call__.16} parent=15 // pred_fallthru
          _
      $region16: #{a_call__.16} parent=5 // pred_fallthru
        _
      %p189 = scmp.le.s32.totalorder 1, %s11
      %p190 = scmp.lt.s32.totalorder %s11, 5
      %p191 = pnand %p189, %p190
      %p192 = pneg %p191
      // Predicated region
      $region25: #{a_call__.16} parent=5 // pred_check
        _
      $region26: #{a_call__.16} parent=5 // pred_check_branch
        %194 = sbr.rel (%p191) target = $region28
      $region27: #{a_call__.16} parent=5 // pred_region
        %s195 = ssub.s32 %s11, 1
        %s196 = sand.u32 %s84, 1
        %s197 = scalar_lea.sflag [#allocation4], %s196
        %s198 = sand.u32 %s84, 1
        %s199 = smul.addr %s198, 128
        %s200 = scalar_lea.vmem [#allocation3], %s199
        // Predicated region
        $region29: #{a_call__.16} parent=27 // pred_check
          %p201 = pneg %p97
        $region30: #{a_call__.16} parent=27 // pred_check_branch
          %203 = sbr.rel (%p201) target = $region32
        $region31: #{a_call__.16} parent=27 // pred_region
          %204 = dma.done %s197, 2048
        $region32: #{a_call__.16} parent=27 // pred_fallthru
          _
        %s205 = smul.u32 4, %s23
        %s206 = smul.u32 2, %s25
        %p207 = scmp.lt.s32.totalorder %s22, 3
        %s208 = scalar_select %p207, %s22, 3
        %p209 = scmp.lt.s32.totalorder %s205, 3
        %s210 = scalar_select %p209, %s205, 3
        %p211 = scmp.lt.s32.totalorder %s206, 1
        %s212 = scalar_select %p211, %s206, 1
        %s213 = smul.addr %s210, 2
        %s214 = sadd.s32 %s212, %s213
        %s215 = smul.addr %s208, 8
        %s216 = sadd.s32 %s214, %s215
        %s217 = smul.addr %s216, 4
        %s218 = scalar_lea.vmem %s0, %s217
        %p219 = pneg %p67
        %p220 = pneg %p64
        %s221 = sand.u32 %s84, 1
        %s222 = scalar_lea.sflag [#allocation4], %s221
        %s223 = sand.u32 %s84, 1
        %s224 = smul.addr %s223, 128
        %s225 = scalar_lea.vmem [#allocation3], %s224
        %p226 = pneg %p97
        %p227 = pneg %p94
        %p228 = pneg %p127
        %p229 = pneg %p124
        %s230 = smul.u32 4, %s23
        %p231 = scmp.lt.s32.totalorder %s22, 3
        %s232 = scalar_select %p231, %s22, 3
        %p233 = scmp.lt.s32.totalorder %s230, 3
        %s234 = scalar_select %p233, %s230, 3
        %p235 = scmp.lt.s32.totalorder %s24, 0
        %s236 = scalar_select %p235, %s24, 0
        %s237 = sadd.s32 %s236, %s234
        %s238 = smul.addr %s232, 4
        %s239 = sadd.s32 %s237, %s238
        %s240 = smul.addr %s239, 8
        %s241 = scalar_lea.vmem %s2, %s240
        %s242 = smul.u32 4, %s23
        %s243 = smul.u32 2, %s25
        %p244 = scmp.lt.s32.totalorder %s22, 3
        %s245 = scalar_select %p244, %s22, 3
        %p246 = scmp.lt.s32.totalorder %s242, 3
        %s247 = scalar_select %p246, %s242, 3
        %p248 = scmp.lt.s32.totalorder %s243, 1
        %s249 = scalar_select %p248, %s243, 1
        %s250 = smul.addr %s247, 2
        %s251 = sadd.s32 %s249, %s250
        %s252 = smul.addr %s245, 8
        %s253 = sadd.s32 %s251, %s252
        %s254 = smul.addr %s253, 4
        %s255 = scalar_lea.vmem %s0, %s254
        %s256 = smul.u32 4, %s23
        %s257 = smul.u32 2, %s25
        %s258 = smul.u32 32, %s25
        %s259 = smul.u32 4, %s23
        %p260 = scmp.lt.s32.totalorder %s22, 3
        %s261 = scalar_select %p260, %s22, 3
        %p262 = scmp.lt.s32.totalorder %s259, 3
        %s263 = scalar_select %p262, %s259, 3
        %p264 = scmp.lt.s32.totalorder %s24, 0
        %s265 = scalar_select %p264, %s24, 0
        %s266 = sadd.s32 %s265, %s263
        %s267 = smul.addr %s261, 4
        %s268 = sadd.s32 %s266, %s267
        %s269 = smul.addr %s268, 8
        %s270 = scalar_lea.vmem %s2, %s269
        %s271 = smul.u32 4, %s23
        %p273 = scmp.eq.s32.totalorder %s25, 0
        // Predicated region
        $region33: #{a_call__.16} parent=27 // pred_check
          %p274 = pneg %p273
        $region34: #{a_call__.16} parent=27 // pred_check_branch
          %276 = sbr.rel (%p274) target = $region36
        $region35: #{a_call__.16} parent=27 // pred_region
          %277 = vst [vmem:[#allocation2] sm:$0xff] 0.0
          %278 = vst [vmem:[#allocation2 + $0x8] sm:$0xff] 0.0
          %279 = vst [vmem:[#allocation2 + $0x10] sm:$0xff] 0.0
          %280 = vst [vmem:[#allocation2 + $0x18] sm:$0xff] 0.0
        $region36: #{a_call__.16} parent=27 // pred_fallthru
          _
        %v281 = vld [vmem:[#allocation2] sm:$0xff]
        %v282 = vld [vmem:[#allocation2 + $0x8] sm:$0xff]
        %v283 = vld [vmem:[#allocation2 + $0x10] sm:$0xff]
        %v284 = vld [vmem:[#allocation2 + $0x18] sm:$0xff]
        %v285 = vld [vmem:[%s255] sm:$0xff]
        %v286 = vld [vmem:[%s255 + $0x8] sm:$0xff]
        %v287 = vld [vmem:[%s255 + $0x10] sm:$0xff]
        %v288 = vld [vmem:[%s255 + $0x18] sm:$0xff]
        %v289 = vld [vmem:[%s200] sm:$0xf]
        %v290 = vld [vmem:[%s200 + $0x4] sm:$0xf]
        %v291 = vld [vmem:[%s200 + $0x8] sm:$0xf]
        %v292 = vld [vmem:[%s200 + $0xc] sm:$0xf]
        %v293 = vld [vmem:[%s200 + $0x10] sm:$0xf]
        %v294 = vld [vmem:[%s200 + $0x14] sm:$0xf]
        %v295 = vld [vmem:[%s200 + $0x18] sm:$0xf]
        %v296 = vld [vmem:[%s200 + $0x1c] sm:$0xf]
        %v297 = vld [vmem:[%s200 + $0x20] sm:$0xf]
        %v298 = vld [vmem:[%s200 + $0x24] sm:$0xf]
        %v299 = vld [vmem:[%s200 + $0x28] sm:$0xf]
        %v300 = vld [vmem:[%s200 + $0x2c] sm:$0xf]
        %v301 = vld [vmem:[%s200 + $0x30] sm:$0xf]
        %v302 = vld [vmem:[%s200 + $0x34] sm:$0xf]
        %v303 = vld [vmem:[%s200 + $0x38] sm:$0xf]
        %v304 = vld [vmem:[%s200 + $0x3c] sm:$0xf]
        %v305 = vld [vmem:[%s200 + $0x40] sm:$0xf]
        %v306 = vld [vmem:[%s200 + $0x44] sm:$0xf]
        %v307 = vld [vmem:[%s200 + $0x48] sm:$0xf]
        %v308 = vld [vmem:[%s200 + $0x4c] sm:$0xf]
        %v309 = vld [vmem:[%s200 + $0x50] sm:$0xf]
        %v310 = vld [vmem:[%s200 + $0x54] sm:$0xf]
        %v311 = vld [vmem:[%s200 + $0x58] sm:$0xf]
        %v312 = vld [vmem:[%s200 + $0x5c] sm:$0xf]
        %v313 = vld [vmem:[%s200 + $0x60] sm:$0xf]
        %v314 = vld [vmem:[%s200 + $0x64] sm:$0xf]
        %v315 = vld [vmem:[%s200 + $0x68] sm:$0xf]
        %v316 = vld [vmem:[%s200 + $0x6c] sm:$0xf]
        %v317 = vld [vmem:[%s200 + $0x70] sm:$0xf]
        %v318 = vld [vmem:[%s200 + $0x74] sm:$0xf]
        %v319 = vld [vmem:[%s200 + $0x78] sm:$0xf]
        %v320 = vld [vmem:[%s200 + $0x7c] sm:$0xf]
        %v325 = vunpack.c.l.b16 %v285
        %v326 = vunpack.c.h.b16 %v285
        %v327 = vunpack.c.l.b16 %v286
        %v328 = vunpack.c.h.b16 %v286
        %v329 = vunpack.c.l.b16 %v287
        %v330 = vunpack.c.h.b16 %v287
        %v331 = vunpack.c.l.b16 %v288
        %v332 = vunpack.c.h.b16 %v288
        %v333 = vpack.c.b16 %v327, %v325
        %v334 = vpack.c.b16 %v328, %v326
        %v335 = vpack.c.b16 %v331, %v329
        %v336 = vpack.c.b16 %v332, %v330
        %v373 = vunpack.c.l.b16 %v289
        %v374 = vunpack.c.l.b16 %v290
        %v375 = vunpack.c.l.b16 %v291
        %v376 = vunpack.c.l.b16 %v292
        %v377 = vunpack.c.l.b16 %v293
        %v378 = vunpack.c.l.b16 %v294
        %v379 = vunpack.c.l.b16 %v295
        %v380 = vunpack.c.l.b16 %v296
        %v381 = vunpack.c.l.b16 %v297
        %v382 = vunpack.c.l.b16 %v298
        %v383 = vunpack.c.l.b16 %v299
        %v384 = vunpack.c.l.b16 %v300
        %v385 = vunpack.c.l.b16 %v301
        %v386 = vunpack.c.l.b16 %v302
        %v387 = vunpack.c.l.b16 %v303
        %v388 = vunpack.c.l.b16 %v304
        %v389 = vunpack.c.l.b16 %v305
        %v390 = vunpack.c.l.b16 %v306
        %v391 = vunpack.c.l.b16 %v307
        %v392 = vunpack.c.l.b16 %v308
        %v393 = vunpack.c.l.b16 %v309
        %v394 = vunpack.c.l.b16 %v310
        %v395 = vunpack.c.l.b16 %v311
        %v396 = vunpack.c.l.b16 %v312
        %v397 = vunpack.c.l.b16 %v313
        %v398 = vunpack.c.l.b16 %v314
        %v399 = vunpack.c.l.b16 %v315
        %v400 = vunpack.c.l.b16 %v316
        %v401 = vunpack.c.l.b16 %v317
        %v402 = vunpack.c.l.b16 %v318
        %v403 = vunpack.c.l.b16 %v319
        %v404 = vunpack.c.l.b16 %v320
        %v405 = vpack.c.b16 %v374, %v373
        %v406 = vpack.c.b16 %v376, %v375
        %v407 = vpack.c.b16 %v378, %v377
        %v408 = vpack.c.b16 %v380, %v379
        %v409 = vpack.c.b16 %v382, %v381
        %v410 = vpack.c.b16 %v384, %v383
        %v411 = vpack.c.b16 %v386, %v385
        %v412 = vpack.c.b16 %v388, %v387
        %v413 = vpack.c.b16 %v390, %v389
        %v414 = vpack.c.b16 %v392, %v391
        %v415 = vpack.c.b16 %v394, %v393
        %v416 = vpack.c.b16 %v396, %v395
        %v417 = vpack.c.b16 %v398, %v397
        %v418 = vpack.c.b16 %v400, %v399
        %v419 = vpack.c.b16 %v402, %v401
        %v420 = vpack.c.b16 %v404, %v403
        %437 = vmatprep.subr.bf16.mxu0 0
        %438 = vmatpush1.bf16.msra.mxu0 %v412
        %439 = vmatprep.subr.bf16.mxu0 0
        %440 = vmatpush1.bf16.msra.mxu0 %v411
        %441 = vmatprep.subr.bf16.mxu0 0
        %442 = vmatpush1.bf16.msra.mxu0 %v410
        %443 = vmatprep.subr.bf16.mxu0 0
        %444 = vmatpush1.bf16.msra.mxu0 %v409
        %445 = vmatprep.subr.bf16.mxu0 0
        %446 = vmatpush1.bf16.msra.mxu0 %v408
        %447 = vmatprep.subr.bf16.mxu0 0
        %448 = vmatpush1.bf16.msra.mxu0 %v407
        %449 = vmatprep.subr.bf16.mxu0 0
        %450 = vmatpush1.bf16.msra.mxu0 %v406
        %451 = vmatprep.subr.bf16.mxu0 0
        %452 = vmatpush1.bf16.msra.mxu0 %v405
        %453 = vmatprep.subr.bf16.mxu0 0
        %454 = vmatpush2.bf16.msra.mxu0 %v420
        %455 = vmatprep.subr.bf16.mxu0 0
        %456 = vmatpush2.bf16.msra.mxu0 %v419
        %457 = vmatprep.subr.bf16.mxu0 0
        %458 = vmatpush2.bf16.msra.mxu0 %v418
        %459 = vmatprep.subr.bf16.mxu0 0
        %460 = vmatpush2.bf16.msra.mxu0 %v417
        %461 = vmatprep.subr.bf16.mxu0 0
        %462 = vmatpush2.bf16.msra.mxu0 %v416
        %463 = vmatprep.subr.bf16.mxu0 0
        %464 = vmatpush2.bf16.msra.mxu0 %v415
        %465 = vmatprep.subr.bf16.mxu0 0
        %466 = vmatpush2.bf16.msra.mxu0 %v414
        %467 = vmatprep.subr.bf16.mxu0 0
        %468 = vmatpush2.bf16.msra.mxu0 %v413
        %469 = vmatprep.mubr.bf16.mxu0 %v334
        %470 = vmatmul.mubr.bf16.gmra.mxu0 %v333
        %v471 = vpop.f32.mrf.mxu0
        %v472 = vadd.f32 0.0, %v471
        %v473 = vpop.f32.mrf.mxu0
        %v474 = vpop.f32.mrf.mxu0
        %v475 = vadd.f32 0.0, %v474
        %v476 = vpop.f32.mrf.mxu0
        %477 = vmatprep.mubr.bf16.mxu0 %v336
        %478 = vmatmul.mubr.bf16.gmra.mxu0 %v335
        %v479 = vpop.f32.mrf.mxu0
        %v480 = vadd.f32 0.0, %v479
        %v481 = vpop.f32.mrf.mxu0
        %v482 = vpop.f32.mrf.mxu0
        %v483 = vadd.f32 0.0, %v482
        %v484 = vpop.f32.mrf.mxu0
        %485 = vdwg.mxu0
        %v486 = vadd.f32 %v281, %v472
        %v487 = vadd.f32 %v282, %v475
        %v488 = vadd.f32 %v283, %v480
        %v489 = vadd.f32 %v284, %v483
        %490 = vst [vmem:[#allocation2] sm:$0xff] %v486
        %491 = vst [vmem:[#allocation2 + $0x8] sm:$0xff] %v487
        %492 = vst [vmem:[#allocation2 + $0x10] sm:$0xff] %v488
        %493 = vst [vmem:[#allocation2 + $0x18] sm:$0xff] %v489
        // Predicated region
        $region37: #{a_call__.16} parent=27 // pred_check
          %p494 = pneg %p273
        $region38: #{a_call__.16} parent=27 // pred_check_branch
          %496 = sbr.rel (%p494) target = $region40
        $region39: #{a_call__.16} parent=27 // pred_region
          %v497 = vld [vmem:[#allocation2] sm:$0xff]
          %v498 = vld [vmem:[#allocation2 + $0x8] sm:$0xff]
          %v499 = vld [vmem:[#allocation2 + $0x10] sm:$0xff]
          %v500 = vld [vmem:[#allocation2 + $0x18] sm:$0xff]
          %501 = vst [vmem:[%s270] sm:$0xff] %v497
          %502 = vst [vmem:[%s270 + $0x8] sm:$0xff] %v498
          %503 = vst [vmem:[%s270 + $0x10] sm:$0xff] %v499
          %504 = vst [vmem:[%s270 + $0x18] sm:$0xff] %v500
        $region40: #{a_call__.16} parent=27 // pred_fallthru
          _
        %s505 = smul.u32 4, %s23
        %p506 = scmp.lt.s32.totalorder %s22, 3
        %s507 = scalar_select %p506, %s22, 3
        %p508 = scmp.lt.s32.totalorder %s505, 3
        %s509 = scalar_select %p508, %s505, 3
        %p510 = scmp.lt.s32.totalorder %s24, 0
        %s511 = scalar_select %p510, %s24, 0
        %s512 = sadd.s32 %s511, %s509
        %s513 = smul.addr %s507, 4
        %s514 = sadd.s32 %s512, %s513
        %s515 = smul.addr %s514, 8
        %s516 = scalar_lea.vmem %s2, %s515
        // Predicated region
        $region41: #{a_call__.16} parent=27 // pred_check
          %p517 = pneg %p124
        $region42: #{a_call__.16} parent=27 // pred_check_branch
          %519 = sbr.rel (%p517) target = $region44
        $region43: #{a_call__.16} parent=27 // pred_region
          %s520 = smul.u32 4, %s23
        $region44: #{a_call__.16} parent=27 // pred_fallthru
          _
      $region28: #{a_call__.16} parent=5 // pred_fallthru
        _
      %p521 = scmp.le.s32.totalorder 2, %s11
      // Predicated region
      $region45: #{a_call__.16} parent=5 // pred_check
        %p522 = pneg %p521
      $region46: #{a_call__.16} parent=5 // pred_check_branch
        %524 = sbr.rel (%p522) target = $region48
      $region47: #{a_call__.16} parent=5 // pred_region
        %s525 = ssub.s32 %s11, 2
        // Predicated region
        $region49: #{a_call__.16} parent=47 // pred_check
          %p526 = pneg %p130
        $region50: #{a_call__.16} parent=47 // pred_check_branch
          %528 = sbr.rel (%p526) target = $region52
        $region51: #{a_call__.16} parent=47 // pred_region
          %s529 = smul.u32 4, %s27
          %p530 = scmp.lt.s32.totalorder %s26, 3
          %s531 = scalar_select %p530, %s26, 3
          %p532 = scmp.lt.s32.totalorder %s529, 3
          %s533 = scalar_select %p532, %s529, 3
          %p534 = scmp.lt.s32.totalorder %s28, 0
          %s535 = scalar_select %p534, %s28, 0
          %s536 = sadd.s32 %s535, %s533
          %s537 = smul.addr %s531, 4
          %s538 = sadd.s32 %s536, %s537
          %s539 = smul.addr %s538, 8
          %s540 = scalar_lea.vmem %s2, %s539
        $region52: #{a_call__.16} parent=47 // pred_fallthru
          _
      $region48: #{a_call__.16} parent=5 // pred_fallthru
        _
    $region6: #{a_call__.16} parent=1 // loop_footer
      %s15 = sadd.s32 1, %s11
    $region7: #{a_call__.16} parent=1 // loop_footer_branch
      %10 = sbr.rel target = $region3
    $region8: #{a_call__.16} parent=1 // loop_exit
      _
    %541 = vsyncpa [#allocation4], 1
    %s542 = scalar_lea.sflag [#allocation4], 1
    %543 = vsyncpa %s542, 1

// kernel: a_call__.18
$region0: #{a_call__.18}
  #allocation0 [shape = 'u32[]', space=smem, size = 0x4, offset = 0x4, fixed_abs, tag = 'smem constant byte address 0x4 - core index']
  #allocation1 [shape = 'u32[144,128]{1,0:T(1,128)}', space=vmem, size = 0x12000, scoped, tag = 'internal scratch']
  %s0 = inlined_call_operand.vmem [shape: f32[128,128], index: 0, kind: input, shape index: {}]
  %s1 = inlined_call_operand.vmem [shape: f32[1,128], index: 1, kind: input, shape index: {}]
  %s2 = inlined_call_operand.vmem [shape: f32[1,128], index: 2, kind: input, shape index: {}]
  %s3 = inlined_call_operand.vmem [shape: f32[128,128], index: 3, kind: output, shape index: {}]
  %s4 = sld [smem:[#allocation0]]
  $region22: #{a_call__.18} parent=0
    _
  %s6 = ssub.s32 1, %s4
  %s7 = scalar_select 0, %s6, %s4
  // Predicated region
  $region2: #{a_call__.18} parent=0 // pred_check
    _
  $region3: #{a_call__.18} parent=0 // pred_check_branch
    %9 = sbr.rel (0) target = $region5
  $region4: #{a_call__.18} parent=0 // pred_region
    _
  $region5: #{a_call__.18} parent=0 // pred_fallthru
    _
  // Predicated region
  $region6: #{a_call__.18} parent=0 // pred_check
    _
  $region7: #{a_call__.18} parent=0 // pred_check_branch
    %11 = sbr.rel (0) target = $region9
  $region8: #{a_call__.18} parent=0 // pred_region
    _
  $region9: #{a_call__.18} parent=0 // pred_fallthru
    _
  // Predicated region
  $region10: #{a_call__.18} parent=0 // pred_check
    _
  $region11: #{a_call__.18} parent=0 // pred_check_branch
    %13 = sbr.rel (0) target = $region13
  $region12: #{a_call__.18} parent=0 // pred_region
    _
  $region13: #{a_call__.18} parent=0 // pred_fallthru
    _
  %v14 = vld [vmem:[%s0] sm:$0xff]
  %v15 = vld [vmem:[%s0 + $0x8] sm:$0xff]
  %v16 = vld [vmem:[%s0 + $0x10] sm:$0xff]
  %v17 = vld [vmem:[%s0 + $0x18] sm:$0xff]
  %v18 = vld [vmem:[%s0 + $0x20] sm:$0xff]
  %v19 = vld [vmem:[%s0 + $0x28] sm:$0xff]
  %v20 = vld [vmem:[%s0 + $0x30] sm:$0xff]
  %v21 = vld [vmem:[%s0 + $0x38] sm:$0xff]
  %v22 = vld [vmem:[%s0 + $0x40] sm:$0xff]
  %v23 = vld [vmem:[%s0 + $0x48] sm:$0xff]
  %v24 = vld [vmem:[%s0 + $0x50] sm:$0xff]
  %v25 = vld [vmem:[%s0 + $0x58] sm:$0xff]
  %v26 = vld [vmem:[%s0 + $0x60] sm:$0xff]
  %v27 = vld [vmem:[%s0 + $0x68] sm:$0xff]
  %v28 = vld [vmem:[%s0 + $0x70] sm:$0xff]
  %v29 = vld [vmem:[%s0 + $0x78] sm:$0xff]
  %v30 = vld [vmem:[%s1] sm:$0x1]
  %v32 = vlaneseq
  %v33 = vshrl.u32 %v32, 7
  %v34 = vsub.s32 0, %v33
  %v35 = vrot.slane %v30, %v34
  %v37 = vmul.f32 %v14, %v35
  %v38 = vmul.f32 %v15, %v35
  %v39 = vmul.f32 %v16, %v35
  %v40 = vmul.f32 %v17, %v35
  %v41 = vmul.f32 %v18, %v35
  %v42 = vmul.f32 %v19, %v35
  %v43 = vmul.f32 %v20, %v35
  %v44 = vmul.f32 %v21, %v35
  %v45 = vmul.f32 %v22, %v35
  %v46 = vmul.f32 %v23, %v35
  %v47 = vmul.f32 %v24, %v35
  %v48 = vmul.f32 %v25, %v35
  %v49 = vmul.f32 %v26, %v35
  %v50 = vmul.f32 %v27, %v35
  %v51 = vmul.f32 %v28, %v35
  %v52 = vmul.f32 %v29, %v35
  %v53 = vld [vmem:[%s2] sm:$0x1]
  %v55 = vlaneseq
  %v56 = vshrl.u32 %v55, 7
  %v57 = vsub.s32 0, %v56
  %v58 = vrot.slane %v53, %v57
  %v60 = vadd.f32 %v37, %v58
  %v61 = vadd.f32 %v38, %v58
  %v62 = vadd.f32 %v39, %v58
  %v63 = vadd.f32 %v40, %v58
  %v64 = vadd.f32 %v41, %v58
  %v65 = vadd.f32 %v42, %v58
  %v66 = vadd.f32 %v43, %v58
  %v67 = vadd.f32 %v44, %v58
  %v68 = vadd.f32 %v45, %v58
  %v69 = vadd.f32 %v46, %v58
  %v70 = vadd.f32 %v47, %v58
  %v71 = vadd.f32 %v48, %v58
  %v72 = vadd.f32 %v49, %v58
  %v73 = vadd.f32 %v50, %v58
  %v74 = vadd.f32 %v51, %v58
  %v75 = vadd.f32 %v52, %v58
  %v76 = vmax.f32 %v60, 0.0
  %v77 = vmax.f32 %v61, 0.0
  %v78 = vmax.f32 %v62, 0.0
  %v79 = vmax.f32 %v63, 0.0
  %v80 = vmax.f32 %v64, 0.0
  %v81 = vmax.f32 %v65, 0.0
  %v82 = vmax.f32 %v66, 0.0
  %v83 = vmax.f32 %v67, 0.0
  %v84 = vmax.f32 %v68, 0.0
  %v85 = vmax.f32 %v69, 0.0
  %v86 = vmax.f32 %v70, 0.0
  %v87 = vmax.f32 %v71, 0.0
  %v88 = vmax.f32 %v72, 0.0
  %v89 = vmax.f32 %v73, 0.0
  %v90 = vmax.f32 %v74, 0.0
  %v91 = vmax.f32 %v75, 0.0
  %92 = vst [vmem:[%s3] sm:$0xff] %v76
  %93 = vst [vmem:[%s3 + $0x8] sm:$0xff] %v77
  %94 = vst [vmem:[%s3 + $0x10] sm:$0xff] %v78
  %95 = vst [vmem:[%s3 + $0x18] sm:$0xff] %v79
  %96 = vst [vmem:[%s3 + $0x20] sm:$0xff] %v80
  %97 = vst [vmem:[%s3 + $0x28] sm:$0xff] %v81
  %98 = vst [vmem:[%s3 + $0x30] sm:$0xff] %v82
  %99 = vst [vmem:[%s3 + $0x38] sm:$0xff] %v83
  %100 = vst [vmem:[%s3 + $0x40] sm:$0xff] %v84
  %101 = vst [vmem:[%s3 + $0x48] sm:$0xff] %v85
  %102 = vst [vmem:[%s3 + $0x50] sm:$0xff] %v86
  %103 = vst [vmem:[%s3 + $0x58] sm:$0xff] %v87
  %104 = vst [vmem:[%s3 + $0x60] sm:$0xff] %v88
  %105 = vst [vmem:[%s3 + $0x68] sm:$0xff] %v89
  %106 = vst [vmem:[%s3 + $0x70] sm:$0xff] %v90
  %107 = vst [vmem:[%s3 + $0x78] sm:$0xff] %v91
  // Predicated region
  $region14: #{a_call__.18} parent=0 // pred_check
    _
  $region15: #{a_call__.18} parent=0 // pred_check_branch
    %109 = sbr.rel (0) target = $region17
  $region16: #{a_call__.18} parent=0 // pred_region
    _
  $region17: #{a_call__.18} parent=0 // pred_fallthru
    _
  // Predicated region
  $region18: #{a_call__.18} parent=0 // pred_check
    _
  $region19: #{a_call__.18} parent=0 // pred_check_branch
    %111 = sbr.rel (0) target = $region21
  $region20: #{a_call__.18} parent=0 // pred_region
    _
  $region21: #{a_call__.18} parent=0 // pred_fallthru
    _

// kernel: a_call__.19
$region0: #{a_call__.19}
  #allocation0 [shape = 'u32[]', space=smem, size = 0x4, offset = 0x4, fixed_abs, tag = 'smem constant byte address 0x4 - core index']
  #allocation1 [shape = 'u32[144,128]{1,0:T(1,128)}', space=vmem, size = 0x12000, scoped, tag = 'internal scratch']
  #allocation2 [shape = 'f32[128,128]{1,0:T(8,128)}', space=vmem, size = 0x10000, scoped, tag = 'scratch operand']
  %s0 = inlined_call_operand.vmem [shape: bf16[4,128,128], index: 0, kind: input, shape index: {}]
  %s1 = inlined_call_operand.hbm [shape: bf16[4,128,128], index: 1, kind: input, shape index: {}]
  %s2 = inlined_call_operand.vmem [shape: f32[4,128,128], index: 2, kind: output, shape index: {}]
  %s3 = sld [smem:[#allocation0]]
  $region53: #{a_call__.19} parent=0
    _
  %s5 = ssub.s32 1, %s3
  %s6 = scalar_select 0, %s5, %s3
  $region1: #{a_call__.19} parent=0
    #allocation3 [shape = 'u8[65536]{0}', space=vmem, size = 0x10000, scoped, tag = 'input window, operand 1']
    #allocation4 [shape = 's32[2]{0}', space=sflag, size = 0x8, scoped, tag = 'scoped memory for a_call__.19']
    %7 = vsyncpa [#allocation4], 0
    %s8 = scalar_lea.sflag [#allocation4], 1
    %9 = vsyncpa %s8, 0
    loop: start=0, step=1, limit=6
    $region2: #{a_call__.19} parent=1 // loop_pre_header
      _
    $region3: #{a_call__.19} parent=1 // loop_header
      %s11 = sphi 0, %s15
      %p12 = scmp.ge.s32.totalorder %s11, 6
      %s18 = sphi 0, %s44
      %s19 = sphi 0, %s40
      %s20 = sphi 0, %s36
      %s21 = sphi 0, %s32
      %s22 = sphi 0, %s18
      %s23 = sphi 0, %s19
      %s24 = sphi 0, %s20
      %s25 = sphi 0, %s21
      %s26 = sphi 0, %s22
      %s27 = sphi 0, %s23
      %s28 = sphi 0, %s24
      %s29 = sphi 0, %s25
      %s51 = sphi 0, %s53
      %s54 = sphi 0, %s51
      %s55 = sphi 0, %s54
      %s71 = sphi 0, %s55
      %s81 = sphi 0, %s83
      %s84 = sphi 0, %s81
      %s85 = sphi 0, %s84
      %s101 = sphi 0, %s85
      %s111 = sphi 0, %s113
      %s114 = sphi 0, %s111
      %s115 = sphi 0, %s114
      %s131 = sphi 0, %s115
    $region4: #{a_call__.19} parent=1 // loop_header_branch
      %14 = sbr.rel (%p12) target = $region8
    $region5: #{a_call__.19} parent=1 // loop_body
      %s16 = ssub.s32 %s11, 1
      %s17 = ssub.s32 %s11, 2
      %s30 = sadd.s32 1, %s21
      %p31 = scmp.ge.s32.totalorder %s30, 1
      %s32 = scalar_select %p31, 0, %s30
      %s33 = sadd.s32 1, %s20
      %s34 = scalar_select %p31, %s33, %s20
      %p35 = scmp.ge.s32.totalorder %s34, 1
      %s36 = scalar_select %p35, 0, %s34
      %s37 = sadd.s32 1, %s19
      %s38 = scalar_select %p35, %s37, %s19
      %p39 = scmp.ge.s32.totalorder %s38, 1
      %s40 = scalar_select %p39, 0, %s38
      %s41 = sadd.s32 1, %s18
      %s42 = scalar_select %p39, %s41, %s18
      %p43 = scmp.ge.s32.totalorder %s42, 4
      %s44 = scalar_select %p43, 0, %s42
      %s45 = ssub.s32 %s18, %s44
      %s46 = ssub.s32 %s19, %s40
      %s47 = sor.u32 %s45, %s46
      %s48 = ssub.s32 %s21, %s32
      %s49 = sor.u32 %s47, %s48
      %p50 = scmp.eq.s32.totalorder %s49, 0
      %s52 = sadd.s32 %s51, 1
      %s53 = scalar_select %p50, %s51, %s52
      %p56 = pneg %p50
      %p57 = scmp.eq.s32.totalorder %s11, 3
      %p58 = por %p56, %p57
      %p59 = scmp.ne.s32.totalorder %s51, %s54
      %p60 = scmp.eq.s32.totalorder %s11, 0
      %p61 = por %p59, %p60
      %p62 = scmp.ne.s32.totalorder %s51, %s54
      %p63 = scmp.eq.s32.totalorder %s16, 3
      %p64 = por %p62, %p63
      %p65 = scmp.ne.s32.totalorder %s54, %s55
      %p66 = scmp.eq.s32.totalorder %s16, 0
      %p67 = por %p65, %p66
      %p68 = scmp.ne.s32.totalorder %s54, %s55
      %p69 = scmp.eq.s32.totalorder %s17, 3
      %p70 = por %p68, %p69
      %p72 = scmp.ne.s32.totalorder %s55, %s71
      %p73 = scmp.eq.s32.totalorder %s17, 0
      %p74 = por %p72, %p73
      %s75 = ssub.s32 %s18, %s44
      %s76 = ssub.s32 %s21, %s32
      %s77 = sor.u32 %s75, %s76
      %s78 = ssub.s32 %s20, %s36
      %s79 = sor.u32 %s77, %s78
      %p80 = scmp.eq.s32.totalorder %s79, 0
      %s82 = sadd.s32 %s81, 1
      %s83 = scalar_select %p80, %s81, %s82
      %p86 = pneg %p80
      %p87 = scmp.eq.s32.totalorder %s11, 3
      %p88 = por %p86, %p87
      %p89 = scmp.ne.s32.totalorder %s81, %s84
      %p90 = scmp.eq.s32.totalorder %s11, 0
      %p91 = por %p89, %p90
      %p92 = scmp.ne.s32.totalorder %s81, %s84
      %p93 = scmp.eq.s32.totalorder %s16, 3
      %p94 = por %p92, %p93
      %p95 = scmp.ne.s32.totalorder %s84, %s85
      %p96 = scmp.eq.s32.totalorder %s16, 0
      %p97 = por %p95, %p96
      %p98 = scmp.ne.s32.totalorder %s84, %s85
      %p99 = scmp.eq.s32.totalorder %s17, 3
      %p100 = por %p98, %p99
      %p102 = scmp.ne.s32.totalorder %s85, %s101
      %p103 = scmp.eq.s32.totalorder %s17, 0
      %p104 = por %p102, %p103
      %s105 = ssub.s32 %s18, %s44
      %s106 = ssub.s32 %s19, %s40
      %s107 = sor.u32 %s105, %s106
      %s108 = ssub.s32 %s20, %s36
      %s109 = sor.u32 %s107, %s108
      %p110 = scmp.eq.s32.totalorder %s109, 0
      %s112 = sadd.s32 %s111, 1
      %s113 = scalar_select %p110, %s111, %s112
      %p116 = pneg %p110
      %p117 = scmp.eq.s32.totalorder %s11, 3
      %p118 = por %p116, %p117
      %p119 = scmp.ne.s32.totalorder %s111, %s114
      %p120 = scmp.eq.s32.totalorder %s11, 0
      %p121 = por %p119, %p120
      %p122 = scmp.ne.s32.totalorder %s111, %s114
      %p123 = scmp.eq.s32.totalorder %s16, 3
      %p124 = por %p122, %p123
      %p125 = scmp.ne.s32.totalorder %s114, %s115
      %p126 = scmp.eq.s32.totalorder %s16, 0
      %p127 = por %p125, %p126
      %p128 = scmp.ne.s32.totalorder %s114, %s115
      %p129 = scmp.eq.s32.totalorder %s17, 3
      %p130 = por %p128, %p129
      %p132 = scmp.ne.s32.totalorder %s115, %s131
      %p133 = scmp.eq.s32.totalorder %s17, 0
      %p134 = por %p132, %p133
      %p135 = scmp.le.s32.totalorder 1, %s11
      %p136 = scmp.lt.s32.totalorder %s11, 5
      %p137 = pnand %p135, %p136
      %p138 = pneg %p137
      // Predicated region
      $region9: #{a_call__.19} parent=5 // pred_check
        _
      $region10: #{a_call__.19} parent=5 // pred_check_branch
        %140 = sbr.rel (%p137) target = $region12
      $region11: #{a_call__.19} parent=5 // pred_region
        %s141 = ssub.s32 %s11, 1
      $region12: #{a_call__.19} parent=5 // pred_fallthru
        _
      %p142 = scmp.lt.s32.totalorder %s11, 4
      // Predicated region
      $region13: #{a_call__.19} parent=5 // pred_check
        %p143 = pneg %p142
      $region14: #{a_call__.19} parent=5 // pred_check_branch
        %145 = sbr.rel (%p143) target = $region16
      $region15: #{a_call__.19} parent=5 // pred_region
        // Predicated region
        $region17: #{a_call__.19} parent=15 // pred_check
          %p146 = pneg %p61
        $region18: #{a_call__.19} parent=15 // pred_check_branch
          %148 = sbr.rel (%p146) target = $region20
        $region19: #{a_call__.19} parent=15 // pred_region
          %s149 = smul.u32 16, %s19
          %p150 = scmp.lt.s32.totalorder %s18, 3
          %s151 = scalar_select %p150, %s18, 3
          %p152 = scmp.lt.s32.totalorder %s149, 15
          %s153 = scalar_select %p152, %s149, 15
          %p154 = scmp.lt.s32.totalorder %s21, 0
          %s155 = scalar_select %p154, %s21, 0
          %s156 = sadd.s32 %s155, %s153
          %s157 = smul.addr %s151, 16
          %s158 = sadd.s32 %s156, %s157
          %s159 = smul.addr %s158, 4
          %s160 = scalar_lea.vmem %s0, %s159
          %s161 = smul.u32 16, %s19
        $region20: #{a_call__.19} parent=15 // pred_fallthru
          _
        // Predicated region
        $region21: #{a_call__.19} parent=15 // pred_check
          %p162 = pneg %p91
        $region22: #{a_call__.19} parent=15 // pred_check_branch
          %164 = sbr.rel (%p162) target = $region24
        $region23: #{a_call__.19} parent=15 // pred_region
          %s165 = sand.u32 %s81, 1
          %s166 = scalar_lea.sflag [#allocation4], %s165
          %s167 = sand.u32 %s81, 1
          %s168 = smul.addr %s167, 64
          %s169 = scalar_lea.vmem [#allocation3], %s168
          %s170 = smul.u32 16, %s21
          %s172 = ssub.s32 1024, 1024
          %173 = vsyncadd %s166, %s172
          %s174 = sadd.s32 %s20, %s170
          %s175 = smul.addr %s18, 16
          %s176 = sadd.s32 %s174, %s175
          %s177 = smul.addr %s176, 64
          %s178 = scalar_lea.hbm %s1, %s177
          %s179 = sshll.u32 %s169, 4
          %s180 = int_to_ptr.vmem [resolvable:$true] %s179
          %185 = dma.hbm_to_vmem [thread:$0]  %s178, 1024, %s180, %s166, 64, 64, 4
        $region24: #{a_call__.19} parent=15 // pred_fallthru
          _
      $region16: #{a_call__.19} parent=5 // pred_fallthru
        _
      %p186 = scmp.le.s32.totalorder 1, %s11
      %p187 = scmp.lt.s32.totalorder %s11, 5
      %p188 = pnand %p186, %p187
      %p189 = pneg %p188
      // Predicated region
      $region25: #{a_call__.19} parent=5 // pred_check
        _
      $region26: #{a_call__.19} parent=5 // pred_check_branch
        %191 = sbr.rel (%p188) target = $region28
      $region27: #{a_call__.19} parent=5 // pred_region
        %s192 = ssub.s32 %s11, 1
        %s193 = sand.u32 %s84, 1
        %s194 = scalar_lea.sflag [#allocation4], %s193
        %s195 = sand.u32 %s84, 1
        %s196 = smul.addr %s195, 64
        %s197 = scalar_lea.vmem [#allocation3], %s196
        // Predicated region
        $region29: #{a_call__.19} parent=27 // pred_check
          %p198 = pneg %p97
        $region30: #{a_call__.19} parent=27 // pred_check_branch
          %200 = sbr.rel (%p198) target = $region32
        $region31: #{a_call__.19} parent=27 // pred_region
          %201 = dma.done %s194, 1024
        $region32: #{a_call__.19} parent=27 // pred_fallthru
          _
        %s202 = smul.u32 16, %s23
        %p203 = scmp.lt.s32.totalorder %s22, 3
        %s204 = scalar_select %p203, %s22, 3
        %p205 = scmp.lt.s32.totalorder %s202, 15
        %s206 = scalar_select %p205, %s202, 15
        %p207 = scmp.lt.s32.totalorder %s25, 0
        %s208 = scalar_select %p207, %s25, 0
        %s209 = sadd.s32 %s208, %s206
        %s210 = smul.addr %s204, 16
        %s211 = sadd.s32 %s209, %s210
        %s212 = smul.addr %s211, 4
        %s213 = scalar_lea.vmem %s0, %s212
        %p214 = pneg %p67
        %p215 = pneg %p64
        %s216 = sand.u32 %s84, 1
        %s217 = scalar_lea.sflag [#allocation4], %s216
        %s218 = sand.u32 %s84, 1
        %s219 = smul.addr %s218, 64
        %s220 = scalar_lea.vmem [#allocation3], %s219
        %p221 = pneg %p97
        %p222 = pneg %p94
        %p223 = pneg %p127
        %p224 = pneg %p124
        %s225 = smul.u32 16, %s23
        %p226 = scmp.lt.s32.totalorder %s22, 3
        %s227 = scalar_select %p226, %s22, 3
        %p228 = scmp.lt.s32.totalorder %s225, 15
        %s229 = scalar_select %p228, %s225, 15
        %p230 = scmp.lt.s32.totalorder %s24, 0
        %s231 = scalar_select %p230, %s24, 0
        %s232 = sadd.s32 %s231, %s229
        %s233 = smul.addr %s227, 16
        %s234 = sadd.s32 %s232, %s233
        %s235 = smul.addr %s234, 8
        %s236 = scalar_lea.vmem %s2, %s235
        %s237 = smul.u32 16, %s23
        %p238 = scmp.lt.s32.totalorder %s22, 3
        %s239 = scalar_select %p238, %s22, 3
        %p240 = scmp.lt.s32.totalorder %s237, 15
        %s241 = scalar_select %p240, %s237, 15
        %p242 = scmp.lt.s32.totalorder %s25, 0
        %s243 = scalar_select %p242, %s25, 0
        %s244 = sadd.s32 %s243, %s241
        %s245 = smul.addr %s239, 16
        %s246 = sadd.s32 %s244, %s245
        %s247 = smul.addr %s246, 4
        %s248 = scalar_lea.vmem %s0, %s247
        %s249 = smul.u32 16, %s23
        %s250 = smul.u32 16, %s25
        %s251 = smul.u32 16, %s23
        %p252 = scmp.lt.s32.totalorder %s22, 3
        %s253 = scalar_select %p252, %s22, 3
        %p254 = scmp.lt.s32.totalorder %s251, 15
        %s255 = scalar_select %p254, %s251, 15
        %p256 = scmp.lt.s32.totalorder %s24, 0
        %s257 = scalar_select %p256, %s24, 0
        %s258 = sadd.s32 %s257, %s255
        %s259 = smul.addr %s253, 16
        %s260 = sadd.s32 %s258, %s259
        %s261 = smul.addr %s260, 8
        %s262 = scalar_lea.vmem %s2, %s261
        %s263 = smul.u32 16, %s23
        %p265 = scmp.eq.s32.totalorder %s25, 0
        // Predicated region
        $region33: #{a_call__.19} parent=27 // pred_check
          %p266 = pneg %p265
        $region34: #{a_call__.19} parent=27 // pred_check_branch
          %268 = sbr.rel (%p266) target = $region36
        $region35: #{a_call__.19} parent=27 // pred_region
          %269 = vst [vmem:[#allocation2] sm:$0xff] 0.0
          %270 = vst [vmem:[#allocation2 + $0x8] sm:$0xff] 0.0
          %271 = vst [vmem:[#allocation2 + $0x10] sm:$0xff] 0.0
          %272 = vst [vmem:[#allocation2 + $0x18] sm:$0xff] 0.0
          %273 = vst [vmem:[#allocation2 + $0x20] sm:$0xff] 0.0
          %274 = vst [vmem:[#allocation2 + $0x28] sm:$0xff] 0.0
          %275 = vst [vmem:[#allocation2 + $0x30] sm:$0xff] 0.0
          %276 = vst [vmem:[#allocation2 + $0x38] sm:$0xff] 0.0
          %277 = vst [vmem:[#allocation2 + $0x40] sm:$0xff] 0.0
          %278 = vst [vmem:[#allocation2 + $0x48] sm:$0xff] 0.0
          %279 = vst [vmem:[#allocation2 + $0x50] sm:$0xff] 0.0
          %280 = vst [vmem:[#allocation2 + $0x58] sm:$0xff] 0.0
          %281 = vst [vmem:[#allocation2 + $0x60] sm:$0xff] 0.0
          %282 = vst [vmem:[#allocation2 + $0x68] sm:$0xff] 0.0
          %283 = vst [vmem:[#allocation2 + $0x70] sm:$0xff] 0.0
          %284 = vst [vmem:[#allocation2 + $0x78] sm:$0xff] 0.0
        $region36: #{a_call__.19} parent=27 // pred_fallthru
          _
        %v285 = vld [vmem:[#allocation2] sm:$0xff]
        %v286 = vld [vmem:[#allocation2 + $0x8] sm:$0xff]
        %v287 = vld [vmem:[#allocation2 + $0x10] sm:$0xff]
        %v288 = vld [vmem:[#allocation2 + $0x18] sm:$0xff]
        %v289 = vld [vmem:[#allocation2 + $0x20] sm:$0xff]
        %v290 = vld [vmem:[#allocation2 + $0x28] sm:$0xff]
        %v291 = vld [vmem:[#allocation2 + $0x30] sm:$0xff]
        %v292 = vld [vmem:[#allocation2 + $0x38] sm:$0xff]
        %v293 = vld [vmem:[#allocation2 + $0x40] sm:$0xff]
        %v294 = vld [vmem:[#allocation2 + $0x48] sm:$0xff]
        %v295 = vld [vmem:[#allocation2 + $0x50] sm:$0xff]
        %v296 = vld [vmem:[#allocation2 + $0x58] sm:$0xff]
        %v297 = vld [vmem:[#allocation2 + $0x60] sm:$0xff]
        %v298 = vld [vmem:[#allocation2 + $0x68] sm:$0xff]
        %v299 = vld [vmem:[#allocation2 + $0x70] sm:$0xff]
        %v300 = vld [vmem:[#allocation2 + $0x78] sm:$0xff]
        %v301 = vld [vmem:[%s248] sm:$0xf]
        %v302 = vld [vmem:[%s248 + $0x4] sm:$0xf]
        %v303 = vld [vmem:[%s248 + $0x8] sm:$0xf]
        %v304 = vld [vmem:[%s248 + $0xc] sm:$0xf]
        %v305 = vld [vmem:[%s248 + $0x10] sm:$0xf]
        %v306 = vld [vmem:[%s248 + $0x14] sm:$0xf]
        %v307 = vld [vmem:[%s248 + $0x18] sm:$0xf]
        %v308 = vld [vmem:[%s248 + $0x1c] sm:$0xf]
        %v309 = vld [vmem:[%s248 + $0x20] sm:$0xf]
        %v310 = vld [vmem:[%s248 + $0x24] sm:$0xf]
        %v311 = vld [vmem:[%s248 + $0x28] sm:$0xf]
        %v312 = vld [vmem:[%s248 + $0x2c] sm:$0xf]
        %v313 = vld [vmem:[%s248 + $0x30] sm:$0xf]
        %v314 = vld [vmem:[%s248 + $0x34] sm:$0xf]
        %v315 = vld [vmem:[%s248 + $0x38] sm:$0xf]
        %v316 = vld [vmem:[%s248 + $0x3c] sm:$0xf]
        %v317 = vld [vmem:[%s197] sm:$0xf]
        %v318 = vld [vmem:[%s197 + $0x4] sm:$0xf]
        %v319 = vld [vmem:[%s197 + $0x8] sm:$0xf]
        %v320 = vld [vmem:[%s197 + $0xc] sm:$0xf]
        %v321 = vld [vmem:[%s197 + $0x10] sm:$0xf]
        %v322 = vld [vmem:[%s197 + $0x14] sm:$0xf]
        %v323 = vld [vmem:[%s197 + $0x18] sm:$0xf]
        %v324 = vld [vmem:[%s197 + $0x1c] sm:$0xf]
        %v325 = vld [vmem:[%s197 + $0x20] sm:$0xf]
        %v326 = vld [vmem:[%s197 + $0x24] sm:$0xf]
        %v327 = vld [vmem:[%s197 + $0x28] sm:$0xf]
        %v328 = vld [vmem:[%s197 + $0x2c] sm:$0xf]
        %v329 = vld [vmem:[%s197 + $0x30] sm:$0xf]
        %v330 = vld [vmem:[%s197 + $0x34] sm:$0xf]
        %v331 = vld [vmem:[%s197 + $0x38] sm:$0xf]
        %v332 = vld [vmem:[%s197 + $0x3c] sm:$0xf]
        %v349 = vunpack.c.l.b16 %v301
        %v350 = vunpack.c.l.b16 %v302
        %v351 = vunpack.c.l.b16 %v303
        %v352 = vunpack.c.l.b16 %v304
        %v353 = vunpack.c.l.b16 %v305
        %v354 = vunpack.c.l.b16 %v306
        %v355 = vunpack.c.l.b16 %v307
        %v356 = vunpack.c.l.b16 %v308
        %v357 = vunpack.c.l.b16 %v309
        %v358 = vunpack.c.l.b16 %v310
        %v359 = vunpack.c.l.b16 %v311
        %v360 = vunpack.c.l.b16 %v312
        %v361 = vunpack.c.l.b16 %v313
        %v362 = vunpack.c.l.b16 %v314
        %v363 = vunpack.c.l.b16 %v315
        %v364 = vunpack.c.l.b16 %v316
        %v365 = vpack.c.b16 %v350, %v349
        %v366 = vpack.c.b16 %v352, %v351
        %v367 = vpack.c.b16 %v354, %v353
        %v368 = vpack.c.b16 %v356, %v355
        %v369 = vpack.c.b16 %v358, %v357
        %v370 = vpack.c.b16 %v360, %v359
        %v371 = vpack.c.b16 %v362, %v361
        %v372 = vpack.c.b16 %v364, %v363
        %v397 = vunpack.c.l.b16 %v317
        %v398 = vunpack.c.l.b16 %v318
        %v399 = vunpack.c.l.b16 %v319
        %v400 = vunpack.c.l.b16 %v320
        %v401 = vunpack.c.l.b16 %v321
        %v402 = vunpack.c.l.b16 %v322
        %v403 = vunpack.c.l.b16 %v323
        %v404 = vunpack.c.l.b16 %v324
        %v405 = vunpack.c.l.b16 %v325
        %v406 = vunpack.c.l.b16 %v326
        %v407 = vunpack.c.l.b16 %v327
        %v408 = vunpack.c.l.b16 %v328
        %v409 = vunpack.c.l.b16 %v329
        %v410 = vunpack.c.l.b16 %v330
        %v411 = vunpack.c.l.b16 %v331
        %v412 = vunpack.c.l.b16 %v332
        %v413 = vpack.c.b16 %v398, %v397
        %v414 = vpack.c.b16 %v400, %v399
        %v415 = vpack.c.b16 %v402, %v401
        %v416 = vpack.c.b16 %v404, %v403
        %v417 = vpack.c.b16 %v406, %v405
        %v418 = vpack.c.b16 %v408, %v407
        %v419 = vpack.c.b16 %v410, %v409
        %v420 = vpack.c.b16 %v412, %v411
        %429 = vmatprep.subr.bf16.mxu0 0
        %430 = vmatpush1.bf16.msra.mxu0 %v420
        %431 = vmatprep.subr.bf16.mxu0 0
        %432 = vmatpush1.bf16.msra.mxu0 %v419
        %433 = vmatprep.subr.bf16.mxu0 0
        %434 = vmatpush1.bf16.msra.mxu0 %v418
        %435 = vmatprep.subr.bf16.mxu0 0
        %436 = vmatpush1.bf16.msra.mxu0 %v417
        %437 = vmatprep.subr.bf16.mxu0 0
        %438 = vmatpush1.bf16.msra.mxu0 %v416
        %439 = vmatprep.subr.bf16.mxu0 0
        %440 = vmatpush1.bf16.msra.mxu0 %v415
        %441 = vmatprep.subr.bf16.mxu0 0
        %442 = vmatpush1.bf16.msra.mxu0 %v414
        %443 = vmatprep.subr.bf16.mxu0 0
        %444 = vmatpush1.bf16.msra.mxu0 %v413
        %445 = vmatprep.subr.bf16.mxu0 0
        %446 = vmatpush2.bf16.msra.mxu0 0
        %447 = vmatprep.subr.bf16.mxu0 0
        %448 = vmatpush2.bf16.msra.mxu0 0
        %449 = vmatprep.subr.bf16.mxu0 0
        %450 = vmatpush2.bf16.msra.mxu0 0
        %451 = vmatprep.subr.bf16.mxu0 0
        %452 = vmatpush2.bf16.msra.mxu0 0
        %453 = vmatprep.subr.bf16.mxu0 0
        %454 = vmatpush2.bf16.msra.mxu0 0
        %455 = vmatprep.subr.bf16.mxu0 0
        %456 = vmatpush2.bf16.msra.mxu0 0
        %457 = vmatprep.subr.bf16.mxu0 0
        %458 = vmatpush2.bf16.msra.mxu0 0
        %459 = vmatprep.subr.bf16.mxu0 0
        %460 = vmatpush2.bf16.msra.mxu0 0
        %461 = vmatprep.mubr.bf16.mxu0 0
        %462 = vmatmul.mubr.bf16.gmra.mxu0 %v365
        %v463 = vpop.f32.mrf.mxu0
        %v464 = vadd.f32 0.0, %v463
        %v465 = vpop.f32.mrf.mxu0
        %v466 = vpop.f32.mrf.mxu0
        %v467 = vadd.f32 0.0, %v466
        %v468 = vpop.f32.mrf.mxu0
        %469 = vmatprep.mubr.bf16.mxu0 0
        %470 = vmatmul.mubr.bf16.gmra.mxu0 %v366
        %v471 = vpop.f32.mrf.mxu0
        %v472 = vadd.f32 0.0, %v471
        %v473 = vpop.f32.mrf.mxu0
        %v474 = vpop.f32.mrf.mxu0
        %v475 = vadd.f32 0.0, %v474
        %v476 = vpop.f32.mrf.mxu0
        %477 = vmatprep.mubr.bf16.mxu0 0
        %478 = vmatmul.mubr.bf16.gmra.mxu0 %v367
        %v479 = vpop.f32.mrf.mxu0
        %v480 = vadd.f32 0.0, %v479
        %v481 = vpop.f32.mrf.mxu0
        %v482 = vpop.f32.mrf.mxu0
        %v483 = vadd.f32 0.0, %v482
        %v484 = vpop.f32.mrf.mxu0
        %485 = vmatprep.mubr.bf16.mxu0 0
        %486 = vmatmul.mubr.bf16.gmra.mxu0 %v368
        %v487 = vpop.f32.mrf.mxu0
        %v488 = vadd.f32 0.0, %v487
        %v489 = vpop.f32.mrf.mxu0
        %v490 = vpop.f32.mrf.mxu0
        %v491 = vadd.f32 0.0, %v490
        %v492 = vpop.f32.mrf.mxu0
        %493 = vmatprep.mubr.bf16.mxu0 0
        %494 = vmatmul.mubr.bf16.gmra.mxu0 %v369
        %v495 = vpop.f32.mrf.mxu0
        %v496 = vadd.f32 0.0, %v495
        %v497 = vpop.f32.mrf.mxu0
        %v498 = vpop.f32.mrf.mxu0
        %v499 = vadd.f32 0.0, %v498
        %v500 = vpop.f32.mrf.mxu0
        %501 = vmatprep.mubr.bf16.mxu0 0
        %502 = vmatmul.mubr.bf16.gmra.mxu0 %v370
        %v503 = vpop.f32.mrf.mxu0
        %v504 = vadd.f32 0.0, %v503
        %v505 = vpop.f32.mrf.mxu0
        %v506 = vpop.f32.mrf.mxu0
        %v507 = vadd.f32 0.0, %v506
        %v508 = vpop.f32.mrf.mxu0
        %509 = vmatprep.mubr.bf16.mxu0 0
        %510 = vmatmul.mubr.bf16.gmra.mxu0 %v371
        %v511 = vpop.f32.mrf.mxu0
        %v512 = vadd.f32 0.0, %v511
        %v513 = vpop.f32.mrf.mxu0
        %v514 = vpop.f32.mrf.mxu0
        %v515 = vadd.f32 0.0, %v514
        %v516 = vpop.f32.mrf.mxu0
        %517 = vmatprep.mubr.bf16.mxu0 0
        %518 = vmatmul.mubr.bf16.gmra.mxu0 %v372
        %v519 = vpop.f32.mrf.mxu0
        %v520 = vadd.f32 0.0, %v519
        %v521 = vpop.f32.mrf.mxu0
        %v522 = vpop.f32.mrf.mxu0
        %v523 = vadd.f32 0.0, %v522
        %v524 = vpop.f32.mrf.mxu0
        %525 = vdwg.mxu0
        %v526 = vadd.f32 %v285, %v464
        %v527 = vadd.f32 %v286, %v467
        %v528 = vadd.f32 %v287, %v472
        %v529 = vadd.f32 %v288, %v475
        %v530 = vadd.f32 %v289, %v480
        %v531 = vadd.f32 %v290, %v483
        %v532 = vadd.f32 %v291, %v488
        %v533 = vadd.f32 %v292, %v491
        %v534 = vadd.f32 %v293, %v496
        %v535 = vadd.f32 %v294, %v499
        %v536 = vadd.f32 %v295, %v504
        %v537 = vadd.f32 %v296, %v507
        %v538 = vadd.f32 %v297, %v512
        %v539 = vadd.f32 %v298, %v515
        %v540 = vadd.f32 %v299, %v520
        %v541 = vadd.f32 %v300, %v523
        %542 = vst [vmem:[#allocation2] sm:$0xff] %v526
        %543 = vst [vmem:[#allocation2 + $0x8] sm:$0xff] %v527
        %544 = vst [vmem:[#allocation2 + $0x10] sm:$0xff] %v528
        %545 = vst [vmem:[#allocation2 + $0x18] sm:$0xff] %v529
        %546 = vst [vmem:[#allocation2 + $0x20] sm:$0xff] %v530
        %547 = vst [vmem:[#allocation2 + $0x28] sm:$0xff] %v531
        %548 = vst [vmem:[#allocation2 + $0x30] sm:$0xff] %v532
        %549 = vst [vmem:[#allocation2 + $0x38] sm:$0xff] %v533
        %550 = vst [vmem:[#allocation2 + $0x40] sm:$0xff] %v534
        %551 = vst [vmem:[#allocation2 + $0x48] sm:$0xff] %v535
        %552 = vst [vmem:[#allocation2 + $0x50] sm:$0xff] %v536
        %553 = vst [vmem:[#allocation2 + $0x58] sm:$0xff] %v537
        %554 = vst [vmem:[#allocation2 + $0x60] sm:$0xff] %v538
        %555 = vst [vmem:[#allocation2 + $0x68] sm:$0xff] %v539
        %556 = vst [vmem:[#allocation2 + $0x70] sm:$0xff] %v540
        %557 = vst [vmem:[#allocation2 + $0x78] sm:$0xff] %v541
        // Predicated region
        $region37: #{a_call__.19} parent=27 // pred_check
          %p558 = pneg %p265
        $region38: #{a_call__.19} parent=27 // pred_check_branch
          %560 = sbr.rel (%p558) target = $region40
        $region39: #{a_call__.19} parent=27 // pred_region
          %v561 = vld [vmem:[#allocation2] sm:$0xff]
          %v562 = vld [vmem:[#allocation2 + $0x8] sm:$0xff]
          %v563 = vld [vmem:[#allocation2 + $0x10] sm:$0xff]
          %v564 = vld [vmem:[#allocation2 + $0x18] sm:$0xff]
          %v565 = vld [vmem:[#allocation2 + $0x20] sm:$0xff]
          %v566 = vld [vmem:[#allocation2 + $0x28] sm:$0xff]
          %v567 = vld [vmem:[#allocation2 + $0x30] sm:$0xff]
          %v568 = vld [vmem:[#allocation2 + $0x38] sm:$0xff]
          %v569 = vld [vmem:[#allocation2 + $0x40] sm:$0xff]
          %v570 = vld [vmem:[#allocation2 + $0x48] sm:$0xff]
          %v571 = vld [vmem:[#allocation2 + $0x50] sm:$0xff]
          %v572 = vld [vmem:[#allocation2 + $0x58] sm:$0xff]
          %v573 = vld [vmem:[#allocation2 + $0x60] sm:$0xff]
          %v574 = vld [vmem:[#allocation2 + $0x68] sm:$0xff]
          %v575 = vld [vmem:[#allocation2 + $0x70] sm:$0xff]
          %v576 = vld [vmem:[#allocation2 + $0x78] sm:$0xff]
          %577 = vst [vmem:[%s262] sm:$0xff] %v561
          %578 = vst [vmem:[%s262 + $0x8] sm:$0xff] %v562
          %579 = vst [vmem:[%s262 + $0x10] sm:$0xff] %v563
          %580 = vst [vmem:[%s262 + $0x18] sm:$0xff] %v564
          %581 = vst [vmem:[%s262 + $0x20] sm:$0xff] %v565
          %582 = vst [vmem:[%s262 + $0x28] sm:$0xff] %v566
          %583 = vst [vmem:[%s262 + $0x30] sm:$0xff] %v567
          %584 = vst [vmem:[%s262 + $0x38] sm:$0xff] %v568
          %585 = vst [vmem:[%s262 + $0x40] sm:$0xff] %v569
          %586 = vst [vmem:[%s262 + $0x48] sm:$0xff] %v570
          %587 = vst [vmem:[%s262 + $0x50] sm:$0xff] %v571
          %588 = vst [vmem:[%s262 + $0x58] sm:$0xff] %v572
          %589 = vst [vmem:[%s262 + $0x60] sm:$0xff] %v573
          %590 = vst [vmem:[%s262 + $0x68] sm:$0xff] %v574
          %591 = vst [vmem:[%s262 + $0x70] sm:$0xff] %v575
          %592 = vst [vmem:[%s262 + $0x78] sm:$0xff] %v576
        $region40: #{a_call__.19} parent=27 // pred_fallthru
          _
        %s593 = smul.u32 16, %s23
        %p594 = scmp.lt.s32.totalorder %s22, 3
        %s595 = scalar_select %p594, %s22, 3
        %p596 = scmp.lt.s32.totalorder %s593, 15
        %s597 = scalar_select %p596, %s593, 15
        %p598 = scmp.lt.s32.totalorder %s24, 0
        %s599 = scalar_select %p598, %s24, 0
        %s600 = sadd.s32 %s599, %s597
        %s601 = smul.addr %s595, 16
        %s602 = sadd.s32 %s600, %s601
        %s603 = smul.addr %s602, 8
        %s604 = scalar_lea.vmem %s2, %s603
        // Predicated region
        $region41: #{a_call__.19} parent=27 // pred_check
          %p605 = pneg %p124
        $region42: #{a_call__.19} parent=27 // pred_check_branch
          %607 = sbr.rel (%p605) target = $region44
        $region43: #{a_call__.19} parent=27 // pred_region
          %s608 = smul.u32 16, %s23
        $region44: #{a_call__.19} parent=27 // pred_fallthru
          _
      $region28: #{a_call__.19} parent=5 // pred_fallthru
        _
      %p609 = scmp.le.s32.totalorder 2, %s11
      // Predicated region
      $region45: #{a_call__.19} parent=5 // pred_check
        %p610 = pneg %p609
      $region46: #{a_call__.19} parent=5 // pred_check_branch
        %612 = sbr.rel (%p610) target = $region48
      $region47: #{a_call__.19} parent=5 // pred_region
        %s613 = ssub.s32 %s11, 2
        // Predicated region
        $region49: #{a_call__.19} parent=47 // pred_check
          %p614 = pneg %p130
        $region50: #{a_call__.19} parent=47 // pred_check_branch
          %616 = sbr.rel (%p614) target = $region52
        $region51: #{a_call__.19} parent=47 // pred_region
          %s617 = smul.u32 16, %s27
          %p618 = scmp.lt.s32.totalorder %s26, 3
          %s619 = scalar_select %p618, %s26, 3
          %p620 = scmp.lt.s32.totalorder %s617, 15
          %s621 = scalar_select %p620, %s617, 15
          %p622 = scmp.lt.s32.totalorder %s28, 0
          %s623 = scalar_select %p622, %s28, 0
          %s624 = sadd.s32 %s623, %s621
          %s625 = smul.addr %s619, 16
          %s626 = sadd.s32 %s624, %s625
          %s627 = smul.addr %s626, 8
          %s628 = scalar_lea.vmem %s2, %s627
        $region52: #{a_call__.19} parent=47 // pred_fallthru
          _
      $region48: #{a_call__.19} parent=5 // pred_fallthru
        _
    $region6: #{a_call__.19} parent=1 // loop_footer
      %s15 = sadd.s32 1, %s11
    $region7: #{a_call__.19} parent=1 // loop_footer_branch
      %10 = sbr.rel target = $region3
    $region8: #{a_call__.19} parent=1 // loop_exit
      _
    %629 = vsyncpa [#allocation4], 1
    %s630 = scalar_lea.sflag [#allocation4], 1
    %631 = vsyncpa %s630, 1

// kernel: a_call__.20
$region0: #{a_call__.20}
  #allocation0 [shape = 'u32[]', space=smem, size = 0x4, offset = 0x4, fixed_abs, tag = 'smem constant byte address 0x4 - core index']
  #allocation1 [shape = 'u32[144,128]{1,0:T(1,128)}', space=vmem, size = 0x12000, scoped, tag = 'internal scratch']
  %s0 = inlined_call_operand.vmem [shape: f32[512,128], index: 0, kind: input, shape index: {}]
  %s1 = inlined_call_operand.vmem [shape: f32[1,128], index: 1, kind: output, shape index: {0}]
  %s2 = inlined_call_operand.vmem [shape: f32[1,128], index: 2, kind: output, shape index: {1}]
  %3 = xla_tuple %s1, %s2
  %s4 = sld [smem:[#allocation0]]
  $region26: #{a_call__.20} parent=0
    _
  %s6 = ssub.s32 1, %s4
  %s7 = scalar_select 0, %s6, %s4
  // Predicated region
  $region2: #{a_call__.20} parent=0 // pred_check
    _
  $region3: #{a_call__.20} parent=0 // pred_check_branch
    %9 = sbr.rel (0) target = $region5
  $region4: #{a_call__.20} parent=0 // pred_region
    _
  $region5: #{a_call__.20} parent=0 // pred_fallthru
    _
  %p10 = scmp.eq.s32.totalorder 0, 0
  // Predicated region
  $region6: #{a_call__.20} parent=0 // pred_check
    %p11 = pneg %p10
  $region7: #{a_call__.20} parent=0 // pred_check_branch
    %13 = sbr.rel (%p11) target = $region9
  $region8: #{a_call__.20} parent=0 // pred_region
    %14 = vst [vmem:[%s1] sm:$0x1] 0.0
    %15 = vst [vmem:[%s2] sm:$0x1] 0.0
  $region9: #{a_call__.20} parent=0 // pred_fallthru
    _
  %v16 = vld [vmem:[%s0] sm:$0xff]
  %v17 = vld [vmem:[%s0 + $0x8] sm:$0xff]
  %v18 = vld [vmem:[%s0 + $0x10] sm:$0xff]
  %v19 = vld [vmem:[%s0 + $0x18] sm:$0xff]
  %v20 = vld [vmem:[%s0 + $0x20] sm:$0xff]
  %v21 = vld [vmem:[%s0 + $0x28] sm:$0xff]
  %v22 = vld [vmem:[%s0 + $0x30] sm:$0xff]
  %v23 = vld [vmem:[%s0 + $0x38] sm:$0xff]
  %v24 = vld [vmem:[%s0 + $0x40] sm:$0xff]
  %v25 = vld [vmem:[%s0 + $0x48] sm:$0xff]
  %v26 = vld [vmem:[%s0 + $0x50] sm:$0xff]
  %v27 = vld [vmem:[%s0 + $0x58] sm:$0xff]
  %v28 = vld [vmem:[%s0 + $0x60] sm:$0xff]
  %v29 = vld [vmem:[%s0 + $0x68] sm:$0xff]
  %v30 = vld [vmem:[%s0 + $0x70] sm:$0xff]
  %v31 = vld [vmem:[%s0 + $0x78] sm:$0xff]
  %v32 = vld [vmem:[%s0 + $0x80] sm:$0xff]
  %v33 = vld [vmem:[%s0 + $0x88] sm:$0xff]
  %v34 = vld [vmem:[%s0 + $0x90] sm:$0xff]
  %v35 = vld [vmem:[%s0 + $0x98] sm:$0xff]
  %v36 = vld [vmem:[%s0 + $0xa0] sm:$0xff]
  %v37 = vld [vmem:[%s0 + $0xa8] sm:$0xff]
  %v38 = vld [vmem:[%s0 + $0xb0] sm:$0xff]
  %v39 = vld [vmem:[%s0 + $0xb8] sm:$0xff]
  %v40 = vld [vmem:[%s0 + $0xc0] sm:$0xff]
  %v41 = vld [vmem:[%s0 + $0xc8] sm:$0xff]
  %v42 = vld [vmem:[%s0 + $0xd0] sm:$0xff]
  %v43 = vld [vmem:[%s0 + $0xd8] sm:$0xff]
  %v44 = vld [vmem:[%s0 + $0xe0] sm:$0xff]
  %v45 = vld [vmem:[%s0 + $0xe8] sm:$0xff]
  %v46 = vld [vmem:[%s0 + $0xf0] sm:$0xff]
  %v47 = vld [vmem:[%s0 + $0xf8] sm:$0xff]
  %v48 = vld [vmem:[%s0 + $0x100] sm:$0xff]
  %v49 = vld [vmem:[%s0 + $0x108] sm:$0xff]
  %v50 = vld [vmem:[%s0 + $0x110] sm:$0xff]
  %v51 = vld [vmem:[%s0 + $0x118] sm:$0xff]
  %v52 = vld [vmem:[%s0 + $0x120] sm:$0xff]
  %v53 = vld [vmem:[%s0 + $0x128] sm:$0xff]
  %v54 = vld [vmem:[%s0 + $0x130] sm:$0xff]
  %v55 = vld [vmem:[%s0 + $0x138] sm:$0xff]
  %v56 = vld [vmem:[%s0 + $0x140] sm:$0xff]
  %v57 = vld [vmem:[%s0 + $0x148] sm:$0xff]
  %v58 = vld [vmem:[%s0 + $0x150] sm:$0xff]
  %v59 = vld [vmem:[%s0 + $0x158] sm:$0xff]
  %v60 = vld [vmem:[%s0 + $0x160] sm:$0xff]
  %v61 = vld [vmem:[%s0 + $0x168] sm:$0xff]
  %v62 = vld [vmem:[%s0 + $0x170] sm:$0xff]
  %v63 = vld [vmem:[%s0 + $0x178] sm:$0xff]
  %v64 = vld [vmem:[%s0 + $0x180] sm:$0xff]
  %v65 = vld [vmem:[%s0 + $0x188] sm:$0xff]
  %v66 = vld [vmem:[%s0 + $0x190] sm:$0xff]
  %v67 = vld [vmem:[%s0 + $0x198] sm:$0xff]
  %v68 = vld [vmem:[%s0 + $0x1a0] sm:$0xff]
  %v69 = vld [vmem:[%s0 + $0x1a8] sm:$0xff]
  %v70 = vld [vmem:[%s0 + $0x1b0] sm:$0xff]
  %v71 = vld [vmem:[%s0 + $0x1b8] sm:$0xff]
  %v72 = vld [vmem:[%s0 + $0x1c0] sm:$0xff]
  %v73 = vld [vmem:[%s0 + $0x1c8] sm:$0xff]
  %v74 = vld [vmem:[%s0 + $0x1d0] sm:$0xff]
  %v75 = vld [vmem:[%s0 + $0x1d8] sm:$0xff]
  %v76 = vld [vmem:[%s0 + $0x1e0] sm:$0xff]
  %v77 = vld [vmem:[%s0 + $0x1e8] sm:$0xff]
  %v78 = vld [vmem:[%s0 + $0x1f0] sm:$0xff]
  %v79 = vld [vmem:[%s0 + $0x1f8] sm:$0xff]
  %v80 = vld [vmem:[%s1] sm:$0x1]
  %v81 = vadd.f32 %v16, %v17
  %v82 = vadd.f32 %v81, %v18
  %v83 = vadd.f32 %v82, %v19
  %v84 = vadd.f32 %v83, %v20
  %v85 = vadd.f32 %v84, %v21
  %v86 = vadd.f32 %v85, %v22
  %v87 = vadd.f32 %v86, %v23
  %v88 = vadd.f32 %v87, %v24
  %v89 = vadd.f32 %v88, %v25
  %v90 = vadd.f32 %v89, %v26
  %v91 = vadd.f32 %v90, %v27
  %v92 = vadd.f32 %v91, %v28
  %v93 = vadd.f32 %v92, %v29
  %v94 = vadd.f32 %v93, %v30
  %v95 = vadd.f32 %v94, %v31
  %v96 = vadd.f32 %v95, %v32
  %v97 = vadd.f32 %v96, %v33
  %v98 = vadd.f32 %v97, %v34
  %v99 = vadd.f32 %v98, %v35
  %v100 = vadd.f32 %v99, %v36
  %v101 = vadd.f32 %v100, %v37
  %v102 = vadd.f32 %v101, %v38
  %v103 = vadd.f32 %v102, %v39
  %v104 = vadd.f32 %v103, %v40
  %v105 = vadd.f32 %v104, %v41
  %v106 = vadd.f32 %v105, %v42
  %v107 = vadd.f32 %v106, %v43
  %v108 = vadd.f32 %v107, %v44
  %v109 = vadd.f32 %v108, %v45
  %v110 = vadd.f32 %v109, %v46
  %v111 = vadd.f32 %v110, %v47
  %v112 = vadd.f32 %v111, %v48
  %v113 = vadd.f32 %v112, %v49
  %v114 = vadd.f32 %v113, %v50
  %v115 = vadd.f32 %v114, %v51
  %v116 = vadd.f32 %v115, %v52
  %v117 = vadd.f32 %v116, %v53
  %v118 = vadd.f32 %v117, %v54
  %v119 = vadd.f32 %v118, %v55
  %v120 = vadd.f32 %v119, %v56
  %v121 = vadd.f32 %v120, %v57
  %v122 = vadd.f32 %v121, %v58
  %v123 = vadd.f32 %v122, %v59
  %v124 = vadd.f32 %v123, %v60
  %v125 = vadd.f32 %v124, %v61
  %v126 = vadd.f32 %v125, %v62
  %v127 = vadd.f32 %v126, %v63
  %v128 = vadd.f32 %v127, %v64
  %v129 = vadd.f32 %v128, %v65
  %v130 = vadd.f32 %v129, %v66
  %v131 = vadd.f32 %v130, %v67
  %v132 = vadd.f32 %v131, %v68
  %v133 = vadd.f32 %v132, %v69
  %v134 = vadd.f32 %v133, %v70
  %v135 = vadd.f32 %v134, %v71
  %v136 = vadd.f32 %v135, %v72
  %v137 = vadd.f32 %v136, %v73
  %v138 = vadd.f32 %v137, %v74
  %v139 = vadd.f32 %v138, %v75
  %v140 = vadd.f32 %v139, %v76
  %v141 = vadd.f32 %v140, %v77
  %v142 = vadd.f32 %v141, %v78
  %v143 = vadd.f32 %v142, %v79
  %v144 = vrot.slane %v143, 4
  %v145 = vadd.f32 %v143, %v144
  %v146 = vrot.slane %v145, 2
  %v147 = vadd.f32 %v145, %v146
  %v148 = vrot.slane %v147, 1
  %v149 = vadd.f32 %v147, %v148
  %v150 = vadd.f32 %v80, %v149
  %151 = vst [vmem:[%s1] sm:$0x1] %v150
  %v152 = vld [vmem:[%s2] sm:$0x1]
  %v153 = vmul.f32 %v16, %v16
  %v154 = vmul.f32 %v17, %v17
  %v155 = vmul.f32 %v18, %v18
  %v156 = vmul.f32 %v19, %v19
  %v157 = vmul.f32 %v20, %v20
  %v158 = vmul.f32 %v21, %v21
  %v159 = vmul.f32 %v22, %v22
  %v160 = vmul.f32 %v23, %v23
  %v161 = vmul.f32 %v24, %v24
  %v162 = vmul.f32 %v25, %v25
  %v163 = vmul.f32 %v26, %v26
  %v164 = vmul.f32 %v27, %v27
  %v165 = vmul.f32 %v28, %v28
  %v166 = vmul.f32 %v29, %v29
  %v167 = vmul.f32 %v30, %v30
  %v168 = vmul.f32 %v31, %v31
  %v169 = vmul.f32 %v32, %v32
  %v170 = vmul.f32 %v33, %v33
  %v171 = vmul.f32 %v34, %v34
  %v172 = vmul.f32 %v35, %v35
  %v173 = vmul.f32 %v36, %v36
  %v174 = vmul.f32 %v37, %v37
  %v175 = vmul.f32 %v38, %v38
  %v176 = vmul.f32 %v39, %v39
  %v177 = vmul.f32 %v40, %v40
  %v178 = vmul.f32 %v41, %v41
  %v179 = vmul.f32 %v42, %v42
  %v180 = vmul.f32 %v43, %v43
  %v181 = vmul.f32 %v44, %v44
  %v182 = vmul.f32 %v45, %v45
  %v183 = vmul.f32 %v46, %v46
  %v184 = vmul.f32 %v47, %v47
  %v185 = vmul.f32 %v48, %v48
  %v186 = vmul.f32 %v49, %v49
  %v187 = vmul.f32 %v50, %v50
  %v188 = vmul.f32 %v51, %v51
  %v189 = vmul.f32 %v52, %v52
  %v190 = vmul.f32 %v53, %v53
  %v191 = vmul.f32 %v54, %v54
  %v192 = vmul.f32 %v55, %v55
  %v193 = vmul.f32 %v56, %v56
  %v194 = vmul.f32 %v57, %v57
  %v195 = vmul.f32 %v58, %v58
  %v196 = vmul.f32 %v59, %v59
  %v197 = vmul.f32 %v60, %v60
  %v198 = vmul.f32 %v61, %v61
  %v199 = vmul.f32 %v62, %v62
  %v200 = vmul.f32 %v63, %v63
  %v201 = vmul.f32 %v64, %v64
  %v202 = vmul.f32 %v65, %v65
  %v203 = vmul.f32 %v66, %v66
  %v204 = vmul.f32 %v67, %v67
  %v205 = vmul.f32 %v68, %v68
  %v206 = vmul.f32 %v69, %v69
  %v207 = vmul.f32 %v70, %v70
  %v208 = vmul.f32 %v71, %v71
  %v209 = vmul.f32 %v72, %v72
  %v210 = vmul.f32 %v73, %v73
  %v211 = vmul.f32 %v74, %v74
  %v212 = vmul.f32 %v75, %v75
  %v213 = vmul.f32 %v76, %v76
  %v214 = vmul.f32 %v77, %v77
  %v215 = vmul.f32 %v78, %v78
  %v216 = vmul.f32 %v79, %v79
  %v217 = vadd.f32 %v153, %v154
  %v218 = vadd.f32 %v217, %v155
  %v219 = vadd.f32 %v218, %v156
  %v220 = vadd.f32 %v219, %v157
  %v221 = vadd.f32 %v220, %v158
  %v222 = vadd.f32 %v221, %v159
  %v223 = vadd.f32 %v222, %v160
  %v224 = vadd.f32 %v223, %v161
  %v225 = vadd.f32 %v224, %v162
  %v226 = vadd.f32 %v225, %v163
  %v227 = vadd.f32 %v226, %v164
  %v228 = vadd.f32 %v227, %v165
  %v229 = vadd.f32 %v228, %v166
  %v230 = vadd.f32 %v229, %v167
  %v231 = vadd.f32 %v230, %v168
  %v232 = vadd.f32 %v231, %v169
  %v233 = vadd.f32 %v232, %v170
  %v234 = vadd.f32 %v233, %v171
  %v235 = vadd.f32 %v234, %v172
  %v236 = vadd.f32 %v235, %v173
  %v237 = vadd.f32 %v236, %v174
  %v238 = vadd.f32 %v237, %v175
  %v239 = vadd.f32 %v238, %v176
  %v240 = vadd.f32 %v239, %v177
  %v241 = vadd.f32 %v240, %v178
  %v242 = vadd.f32 %v241, %v179
  %v243 = vadd.f32 %v242, %v180
  %v244 = vadd.f32 %v243, %v181
  %v245 = vadd.f32 %v244, %v182
  %v246 = vadd.f32 %v245, %v183
  %v247 = vadd.f32 %v246, %v184
  %v248 = vadd.f32 %v247, %v185
  %v249 = vadd.f32 %v248, %v186
  %v250 = vadd.f32 %v249, %v187
  %v251 = vadd.f32 %v250, %v188
  %v252 = vadd.f32 %v251, %v189
  %v253 = vadd.f32 %v252, %v190
  %v254 = vadd.f32 %v253, %v191
  %v255 = vadd.f32 %v254, %v192
  %v256 = vadd.f32 %v255, %v193
  %v257 = vadd.f32 %v256, %v194
  %v258 = vadd.f32 %v257, %v195
  %v259 = vadd.f32 %v258, %v196
  %v260 = vadd.f32 %v259, %v197
  %v261 = vadd.f32 %v260, %v198
  %v262 = vadd.f32 %v261, %v199
  %v263 = vadd.f32 %v262, %v200
  %v264 = vadd.f32 %v263, %v201
  %v265 = vadd.f32 %v264, %v202
  %v266 = vadd.f32 %v265, %v203
  %v267 = vadd.f32 %v266, %v204
  %v268 = vadd.f32 %v267, %v205
  %v269 = vadd.f32 %v268, %v206
  %v270 = vadd.f32 %v269, %v207
  %v271 = vadd.f32 %v270, %v208
  %v272 = vadd.f32 %v271, %v209
  %v273 = vadd.f32 %v272, %v210
  %v274 = vadd.f32 %v273, %v211
  %v275 = vadd.f32 %v274, %v212
  %v276 = vadd.f32 %v275, %v213
  %v277 = vadd.f32 %v276, %v214
  %v278 = vadd.f32 %v277, %v215
  %v279 = vadd.f32 %v278, %v216
  %v280 = vrot.slane %v279, 4
  %v281 = vadd.f32 %v279, %v280
  %v282 = vrot.slane %v281, 2
  %v283 = vadd.f32 %v281, %v282
  %v284 = vrot.slane %v283, 1
  %v285 = vadd.f32 %v283, %v284
  %v286 = vadd.f32 %v152, %v285
  %287 = vst [vmem:[%s2] sm:$0x1] %v286
  // Predicated region
  $region10: #{a_call__.20} parent=0 // pred_check
    _
  $region11: #{a_call__.20} parent=0 // pred_check_branch
    %289 = sbr.rel (0) target = $region13
  $region12: #{a_call__.20} parent=0 // pred_region
    _
  $region13: #{a_call__.20} parent=0 // pred_fallthru
    _
  // Predicated region
  $region14: #{a_call__.20} parent=0 // pred_check
    _
  $region15: #{a_call__.20} parent=0 // pred_check_branch
    %291 = sbr.rel (0) target = $region17
  $region16: #{a_call__.20} parent=0 // pred_region
    _
  $region17: #{a_call__.20} parent=0 // pred_fallthru
    _
  // Predicated region
  $region18: #{a_call__.20} parent=0 // pred_check
    _
  $region19: #{a_call__.20} parent=0 // pred_check_branch
    %293 = sbr.rel (0) target = $region21
  $region20: #{a_call__.20} parent=0 // pred_region
    _
  $region21: #{a_call__.20} parent=0 // pred_fallthru
    _
  // Predicated region
  $region22: #{a_call__.20} parent=0 // pred_check
    _
  $region23: #{a_call__.20} parent=0 // pred_check_branch
    %295 = sbr.rel (0) target = $region25
  $region24: #{a_call__.20} parent=0 // pred_region
    _
  $region25: #{a_call__.20} parent=0 // pred_fallthru
    _

// kernel: a_call__.21
$region0: #{a_call__.21}
  #allocation0 [shape = 'u32[]', space=smem, size = 0x4, offset = 0x4, fixed_abs, tag = 'smem constant byte address 0x4 - core index']
  #allocation1 [shape = 'u32[144,128]{1,0:T(1,128)}', space=vmem, size = 0x12000, scoped, tag = 'internal scratch']
  %s0 = inlined_call_operand.vmem [shape: f32[512,128], index: 0, kind: input, shape index: {}]
  %s1 = inlined_call_operand.vmem [shape: f32[1,128], index: 1, kind: input, shape index: {}]
  %s2 = inlined_call_operand.vmem [shape: f32[1,128], index: 2, kind: input, shape index: {}]
  %s3 = inlined_call_operand.vmem [shape: f32[512,128], index: 3, kind: output, shape index: {}]
  %s4 = sld [smem:[#allocation0]]
  $region22: #{a_call__.21} parent=0
    _
  %s6 = ssub.s32 1, %s4
  %s7 = scalar_select 0, %s6, %s4
  // Predicated region
  $region2: #{a_call__.21} parent=0 // pred_check
    _
  $region3: #{a_call__.21} parent=0 // pred_check_branch
    %9 = sbr.rel (0) target = $region5
  $region4: #{a_call__.21} parent=0 // pred_region
    _
  $region5: #{a_call__.21} parent=0 // pred_fallthru
    _
  // Predicated region
  $region6: #{a_call__.21} parent=0 // pred_check
    _
  $region7: #{a_call__.21} parent=0 // pred_check_branch
    %11 = sbr.rel (0) target = $region9
  $region8: #{a_call__.21} parent=0 // pred_region
    _
  $region9: #{a_call__.21} parent=0 // pred_fallthru
    _
  // Predicated region
  $region10: #{a_call__.21} parent=0 // pred_check
    _
  $region11: #{a_call__.21} parent=0 // pred_check_branch
    %13 = sbr.rel (0) target = $region13
  $region12: #{a_call__.21} parent=0 // pred_region
    _
  $region13: #{a_call__.21} parent=0 // pred_fallthru
    _
  %v14 = vld [vmem:[%s0] sm:$0xff]
  %v15 = vld [vmem:[%s0 + $0x8] sm:$0xff]
  %v16 = vld [vmem:[%s0 + $0x10] sm:$0xff]
  %v17 = vld [vmem:[%s0 + $0x18] sm:$0xff]
  %v18 = vld [vmem:[%s0 + $0x20] sm:$0xff]
  %v19 = vld [vmem:[%s0 + $0x28] sm:$0xff]
  %v20 = vld [vmem:[%s0 + $0x30] sm:$0xff]
  %v21 = vld [vmem:[%s0 + $0x38] sm:$0xff]
  %v22 = vld [vmem:[%s0 + $0x40] sm:$0xff]
  %v23 = vld [vmem:[%s0 + $0x48] sm:$0xff]
  %v24 = vld [vmem:[%s0 + $0x50] sm:$0xff]
  %v25 = vld [vmem:[%s0 + $0x58] sm:$0xff]
  %v26 = vld [vmem:[%s0 + $0x60] sm:$0xff]
  %v27 = vld [vmem:[%s0 + $0x68] sm:$0xff]
  %v28 = vld [vmem:[%s0 + $0x70] sm:$0xff]
  %v29 = vld [vmem:[%s0 + $0x78] sm:$0xff]
  %v30 = vld [vmem:[%s0 + $0x80] sm:$0xff]
  %v31 = vld [vmem:[%s0 + $0x88] sm:$0xff]
  %v32 = vld [vmem:[%s0 + $0x90] sm:$0xff]
  %v33 = vld [vmem:[%s0 + $0x98] sm:$0xff]
  %v34 = vld [vmem:[%s0 + $0xa0] sm:$0xff]
  %v35 = vld [vmem:[%s0 + $0xa8] sm:$0xff]
  %v36 = vld [vmem:[%s0 + $0xb0] sm:$0xff]
  %v37 = vld [vmem:[%s0 + $0xb8] sm:$0xff]
  %v38 = vld [vmem:[%s0 + $0xc0] sm:$0xff]
  %v39 = vld [vmem:[%s0 + $0xc8] sm:$0xff]
  %v40 = vld [vmem:[%s0 + $0xd0] sm:$0xff]
  %v41 = vld [vmem:[%s0 + $0xd8] sm:$0xff]
  %v42 = vld [vmem:[%s0 + $0xe0] sm:$0xff]
  %v43 = vld [vmem:[%s0 + $0xe8] sm:$0xff]
  %v44 = vld [vmem:[%s0 + $0xf0] sm:$0xff]
  %v45 = vld [vmem:[%s0 + $0xf8] sm:$0xff]
  %v46 = vld [vmem:[%s0 + $0x100] sm:$0xff]
  %v47 = vld [vmem:[%s0 + $0x108] sm:$0xff]
  %v48 = vld [vmem:[%s0 + $0x110] sm:$0xff]
  %v49 = vld [vmem:[%s0 + $0x118] sm:$0xff]
  %v50 = vld [vmem:[%s0 + $0x120] sm:$0xff]
  %v51 = vld [vmem:[%s0 + $0x128] sm:$0xff]
  %v52 = vld [vmem:[%s0 + $0x130] sm:$0xff]
  %v53 = vld [vmem:[%s0 + $0x138] sm:$0xff]
  %v54 = vld [vmem:[%s0 + $0x140] sm:$0xff]
  %v55 = vld [vmem:[%s0 + $0x148] sm:$0xff]
  %v56 = vld [vmem:[%s0 + $0x150] sm:$0xff]
  %v57 = vld [vmem:[%s0 + $0x158] sm:$0xff]
  %v58 = vld [vmem:[%s0 + $0x160] sm:$0xff]
  %v59 = vld [vmem:[%s0 + $0x168] sm:$0xff]
  %v60 = vld [vmem:[%s0 + $0x170] sm:$0xff]
  %v61 = vld [vmem:[%s0 + $0x178] sm:$0xff]
  %v62 = vld [vmem:[%s0 + $0x180] sm:$0xff]
  %v63 = vld [vmem:[%s0 + $0x188] sm:$0xff]
  %v64 = vld [vmem:[%s0 + $0x190] sm:$0xff]
  %v65 = vld [vmem:[%s0 + $0x198] sm:$0xff]
  %v66 = vld [vmem:[%s0 + $0x1a0] sm:$0xff]
  %v67 = vld [vmem:[%s0 + $0x1a8] sm:$0xff]
  %v68 = vld [vmem:[%s0 + $0x1b0] sm:$0xff]
  %v69 = vld [vmem:[%s0 + $0x1b8] sm:$0xff]
  %v70 = vld [vmem:[%s0 + $0x1c0] sm:$0xff]
  %v71 = vld [vmem:[%s0 + $0x1c8] sm:$0xff]
  %v72 = vld [vmem:[%s0 + $0x1d0] sm:$0xff]
  %v73 = vld [vmem:[%s0 + $0x1d8] sm:$0xff]
  %v74 = vld [vmem:[%s0 + $0x1e0] sm:$0xff]
  %v75 = vld [vmem:[%s0 + $0x1e8] sm:$0xff]
  %v76 = vld [vmem:[%s0 + $0x1f0] sm:$0xff]
  %v77 = vld [vmem:[%s0 + $0x1f8] sm:$0xff]
  %v78 = vld [vmem:[%s1] sm:$0x1]
  %v80 = vlaneseq
  %v81 = vshrl.u32 %v80, 7
  %v82 = vsub.s32 0, %v81
  %v83 = vrot.slane %v78, %v82
  %v85 = vmul.f32 %v14, %v83
  %v86 = vmul.f32 %v15, %v83
  %v87 = vmul.f32 %v16, %v83
  %v88 = vmul.f32 %v17, %v83
  %v89 = vmul.f32 %v18, %v83
  %v90 = vmul.f32 %v19, %v83
  %v91 = vmul.f32 %v20, %v83
  %v92 = vmul.f32 %v21, %v83
  %v93 = vmul.f32 %v22, %v83
  %v94 = vmul.f32 %v23, %v83
  %v95 = vmul.f32 %v24, %v83
  %v96 = vmul.f32 %v25, %v83
  %v97 = vmul.f32 %v26, %v83
  %v98 = vmul.f32 %v27, %v83
  %v99 = vmul.f32 %v28, %v83
  %v100 = vmul.f32 %v29, %v83
  %v101 = vmul.f32 %v30, %v83
  %v102 = vmul.f32 %v31, %v83
  %v103 = vmul.f32 %v32, %v83
  %v104 = vmul.f32 %v33, %v83
  %v105 = vmul.f32 %v34, %v83
  %v106 = vmul.f32 %v35, %v83
  %v107 = vmul.f32 %v36, %v83
  %v108 = vmul.f32 %v37, %v83
  %v109 = vmul.f32 %v38, %v83
  %v110 = vmul.f32 %v39, %v83
  %v111 = vmul.f32 %v40, %v83
  %v112 = vmul.f32 %v41, %v83
  %v113 = vmul.f32 %v42, %v83
  %v114 = vmul.f32 %v43, %v83
  %v115 = vmul.f32 %v44, %v83
  %v116 = vmul.f32 %v45, %v83
  %v117 = vmul.f32 %v46, %v83
  %v118 = vmul.f32 %v47, %v83
  %v119 = vmul.f32 %v48, %v83
  %v120 = vmul.f32 %v49, %v83
  %v121 = vmul.f32 %v50, %v83
  %v122 = vmul.f32 %v51, %v83
  %v123 = vmul.f32 %v52, %v83
  %v124 = vmul.f32 %v53, %v83
  %v125 = vmul.f32 %v54, %v83
  %v126 = vmul.f32 %v55, %v83
  %v127 = vmul.f32 %v56, %v83
  %v128 = vmul.f32 %v57, %v83
  %v129 = vmul.f32 %v58, %v83
  %v130 = vmul.f32 %v59, %v83
  %v131 = vmul.f32 %v60, %v83
  %v132 = vmul.f32 %v61, %v83
  %v133 = vmul.f32 %v62, %v83
  %v134 = vmul.f32 %v63, %v83
  %v135 = vmul.f32 %v64, %v83
  %v136 = vmul.f32 %v65, %v83
  %v137 = vmul.f32 %v66, %v83
  %v138 = vmul.f32 %v67, %v83
  %v139 = vmul.f32 %v68, %v83
  %v140 = vmul.f32 %v69, %v83
  %v141 = vmul.f32 %v70, %v83
  %v142 = vmul.f32 %v71, %v83
  %v143 = vmul.f32 %v72, %v83
  %v144 = vmul.f32 %v73, %v83
  %v145 = vmul.f32 %v74, %v83
  %v146 = vmul.f32 %v75, %v83
  %v147 = vmul.f32 %v76, %v83
  %v148 = vmul.f32 %v77, %v83
  %v149 = vld [vmem:[%s2] sm:$0x1]
  %v151 = vlaneseq
  %v152 = vshrl.u32 %v151, 7
  %v153 = vsub.s32 0, %v152
  %v154 = vrot.slane %v149, %v153
  %v156 = vadd.f32 %v85, %v154
  %v157 = vadd.f32 %v86, %v154
  %v158 = vadd.f32 %v87, %v154
  %v159 = vadd.f32 %v88, %v154
  %v160 = vadd.f32 %v89, %v154
  %v161 = vadd.f32 %v90, %v154
  %v162 = vadd.f32 %v91, %v154
  %v163 = vadd.f32 %v92, %v154
  %v164 = vadd.f32 %v93, %v154
  %v165 = vadd.f32 %v94, %v154
  %v166 = vadd.f32 %v95, %v154
  %v167 = vadd.f32 %v96, %v154
  %v168 = vadd.f32 %v97, %v154
  %v169 = vadd.f32 %v98, %v154
  %v170 = vadd.f32 %v99, %v154
  %v171 = vadd.f32 %v100, %v154
  %v172 = vadd.f32 %v101, %v154
  %v173 = vadd.f32 %v102, %v154
  %v174 = vadd.f32 %v103, %v154
  %v175 = vadd.f32 %v104, %v154
  %v176 = vadd.f32 %v105, %v154
  %v177 = vadd.f32 %v106, %v154
  %v178 = vadd.f32 %v107, %v154
  %v179 = vadd.f32 %v108, %v154
  %v180 = vadd.f32 %v109, %v154
  %v181 = vadd.f32 %v110, %v154
  %v182 = vadd.f32 %v111, %v154
  %v183 = vadd.f32 %v112, %v154
  %v184 = vadd.f32 %v113, %v154
  %v185 = vadd.f32 %v114, %v154
  %v186 = vadd.f32 %v115, %v154
  %v187 = vadd.f32 %v116, %v154
  %v188 = vadd.f32 %v117, %v154
  %v189 = vadd.f32 %v118, %v154
  %v190 = vadd.f32 %v119, %v154
  %v191 = vadd.f32 %v120, %v154
  %v192 = vadd.f32 %v121, %v154
  %v193 = vadd.f32 %v122, %v154
  %v194 = vadd.f32 %v123, %v154
  %v195 = vadd.f32 %v124, %v154
  %v196 = vadd.f32 %v125, %v154
  %v197 = vadd.f32 %v126, %v154
  %v198 = vadd.f32 %v127, %v154
  %v199 = vadd.f32 %v128, %v154
  %v200 = vadd.f32 %v129, %v154
  %v201 = vadd.f32 %v130, %v154
  %v202 = vadd.f32 %v131, %v154
  %v203 = vadd.f32 %v132, %v154
  %v204 = vadd.f32 %v133, %v154
  %v205 = vadd.f32 %v134, %v154
  %v206 = vadd.f32 %v135, %v154
  %v207 = vadd.f32 %v136, %v154
  %v208 = vadd.f32 %v137, %v154
  %v209 = vadd.f32 %v138, %v154
  %v210 = vadd.f32 %v139, %v154
  %v211 = vadd.f32 %v140, %v154
  %v212 = vadd.f32 %v141, %v154
  %v213 = vadd.f32 %v142, %v154
  %v214 = vadd.f32 %v143, %v154
  %v215 = vadd.f32 %v144, %v154
  %v216 = vadd.f32 %v145, %v154
  %v217 = vadd.f32 %v146, %v154
  %v218 = vadd.f32 %v147, %v154
  %v219 = vadd.f32 %v148, %v154
  %v220 = vmax.f32 %v156, 0.0
  %v221 = vmax.f32 %v157, 0.0
  %v222 = vmax.f32 %v158, 0.0
  %v223 = vmax.f32 %v159, 0.0
  %v224 = vmax.f32 %v160, 0.0
  %v225 = vmax.f32 %v161, 0.0
  %v226 = vmax.f32 %v162, 0.0
  %v227 = vmax.f32 %v163, 0.0
  %v228 = vmax.f32 %v164, 0.0
  %v229 = vmax.f32 %v165, 0.0
  %v230 = vmax.f32 %v166, 0.0
  %v231 = vmax.f32 %v167, 0.0
  %v232 = vmax.f32 %v168, 0.0
  %v233 = vmax.f32 %v169, 0.0
  %v234 = vmax.f32 %v170, 0.0
  %v235 = vmax.f32 %v171, 0.0
  %v236 = vmax.f32 %v172, 0.0
  %v237 = vmax.f32 %v173, 0.0
  %v238 = vmax.f32 %v174, 0.0
  %v239 = vmax.f32 %v175, 0.0
  %v240 = vmax.f32 %v176, 0.0
  %v241 = vmax.f32 %v177, 0.0
  %v242 = vmax.f32 %v178, 0.0
  %v243 = vmax.f32 %v179, 0.0
  %v244 = vmax.f32 %v180, 0.0
  %v245 = vmax.f32 %v181, 0.0
  %v246 = vmax.f32 %v182, 0.0
  %v247 = vmax.f32 %v183, 0.0
  %v248 = vmax.f32 %v184, 0.0
  %v249 = vmax.f32 %v185, 0.0
  %v250 = vmax.f32 %v186, 0.0
  %v251 = vmax.f32 %v187, 0.0
  %v252 = vmax.f32 %v188, 0.0
  %v253 = vmax.f32 %v189, 0.0
  %v254 = vmax.f32 %v190, 0.0
  %v255 = vmax.f32 %v191, 0.0
  %v256 = vmax.f32 %v192, 0.0
  %v257 = vmax.f32 %v193, 0.0
  %v258 = vmax.f32 %v194, 0.0
  %v259 = vmax.f32 %v195, 0.0
  %v260 = vmax.f32 %v196, 0.0
  %v261 = vmax.f32 %v197, 0.0
  %v262 = vmax.f32 %v198, 0.0
  %v263 = vmax.f32 %v199, 0.0
  %v264 = vmax.f32 %v200, 0.0
  %v265 = vmax.f32 %v201, 0.0
  %v266 = vmax.f32 %v202, 0.0
  %v267 = vmax.f32 %v203, 0.0
  %v268 = vmax.f32 %v204, 0.0
  %v269 = vmax.f32 %v205, 0.0
  %v270 = vmax.f32 %v206, 0.0
  %v271 = vmax.f32 %v207, 0.0
  %v272 = vmax.f32 %v208, 0.0
  %v273 = vmax.f32 %v209, 0.0
  %v274 = vmax.f32 %v210, 0.0
  %v275 = vmax.f32 %v211, 0.0
  %v276 = vmax.f32 %v212, 0.0
  %v277 = vmax.f32 %v213, 0.0
  %v278 = vmax.f32 %v214, 0.0
  %v279 = vmax.f32 %v215, 0.0
  %v280 = vmax.f32 %v216, 0.0
  %v281 = vmax.f32 %v217, 0.0
  %v282 = vmax.f32 %v218, 0.0
  %v283 = vmax.f32 %v219, 0.0
  %284 = vst [vmem:[%s3] sm:$0xff] %v220
  %285 = vst [vmem:[%s3 + $0x8] sm:$0xff] %v221
  %286 = vst [vmem:[%s3 + $0x10] sm:$0xff] %v222
  %287 = vst [vmem:[%s3 + $0x18] sm:$0xff] %v223
  %288 = vst [vmem:[%s3 + $0x20] sm:$0xff] %v224
  %289 = vst [vmem:[%s3 + $0x28] sm:$0xff] %v225
  %290 = vst [vmem:[%s3 + $0x30] sm:$0xff] %v226
  %291 = vst [vmem:[%s3 + $0x38] sm:$0xff] %v227
  %292 = vst [vmem:[%s3 + $0x40] sm:$0xff] %v228
  %293 = vst [vmem:[%s3 + $0x48] sm:$0xff] %v229
  %294 = vst [vmem:[%s3 + $0x50] sm:$0xff] %v230
  %295 = vst [vmem:[%s3 + $0x58] sm:$0xff] %v231
  %296 = vst [vmem:[%s3 + $0x60] sm:$0xff] %v232
  %297 = vst [vmem:[%s3 + $0x68] sm:$0xff] %v233
  %298 = vst [vmem:[%s3 + $0x70] sm:$0xff] %v234
  %299 = vst [vmem:[%s3 + $0x78] sm:$0xff] %v235
  %300 = vst [vmem:[%s3 + $0x80] sm:$0xff] %v236
  %301 = vst [vmem:[%s3 + $0x88] sm:$0xff] %v237
  %302 = vst [vmem:[%s3 + $0x90] sm:$0xff] %v238
  %303 = vst [vmem:[%s3 + $0x98] sm:$0xff] %v239
  %304 = vst [vmem:[%s3 + $0xa0] sm:$0xff] %v240
  %305 = vst [vmem:[%s3 + $0xa8] sm:$0xff] %v241
  %306 = vst [vmem:[%s3 + $0xb0] sm:$0xff] %v242
  %307 = vst [vmem:[%s3 + $0xb8] sm:$0xff] %v243
  %308 = vst [vmem:[%s3 + $0xc0] sm:$0xff] %v244
  %309 = vst [vmem:[%s3 + $0xc8] sm:$0xff] %v245
  %310 = vst [vmem:[%s3 + $0xd0] sm:$0xff] %v246
  %311 = vst [vmem:[%s3 + $0xd8] sm:$0xff] %v247
  %312 = vst [vmem:[%s3 + $0xe0] sm:$0xff] %v248
  %313 = vst [vmem:[%s3 + $0xe8] sm:$0xff] %v249
  %314 = vst [vmem:[%s3 + $0xf0] sm:$0xff] %v250
  %315 = vst [vmem:[%s3 + $0xf8] sm:$0xff] %v251
  %316 = vst [vmem:[%s3 + $0x100] sm:$0xff] %v252
  %317 = vst [vmem:[%s3 + $0x108] sm:$0xff] %v253
  %318 = vst [vmem:[%s3 + $0x110] sm:$0xff] %v254
  %319 = vst [vmem:[%s3 + $0x118] sm:$0xff] %v255
  %320 = vst [vmem:[%s3 + $0x120] sm:$0xff] %v256
  %321 = vst [vmem:[%s3 + $0x128] sm:$0xff] %v257
  %322 = vst [vmem:[%s3 + $0x130] sm:$0xff] %v258
  %323 = vst [vmem:[%s3 + $0x138] sm:$0xff] %v259
  %324 = vst [vmem:[%s3 + $0x140] sm:$0xff] %v260
  %325 = vst [vmem:[%s3 + $0x148] sm:$0xff] %v261
  %326 = vst [vmem:[%s3 + $0x150] sm:$0xff] %v262
  %327 = vst [vmem:[%s3 + $0x158] sm:$0xff] %v263
  %328 = vst [vmem:[%s3 + $0x160] sm:$0xff] %v264
  %329 = vst [vmem:[%s3 + $0x168] sm:$0xff] %v265
  %330 = vst [vmem:[%s3 + $0x170] sm:$0xff] %v266
  %331 = vst [vmem:[%s3 + $0x178] sm:$0xff] %v267
  %332 = vst [vmem:[%s3 + $0x180] sm:$0xff] %v268
  %333 = vst [vmem:[%s3 + $0x188] sm:$0xff] %v269
  %334 = vst [vmem:[%s3 + $0x190] sm:$0xff] %v270
  %335 = vst [vmem:[%s3 + $0x198] sm:$0xff] %v271
  %336 = vst [vmem:[%s3 + $0x1a0] sm:$0xff] %v272
  %337 = vst [vmem:[%s3 + $0x1a8] sm:$0xff] %v273
  %338 = vst [vmem:[%s3 + $0x1b0] sm:$0xff] %v274
  %339 = vst [vmem:[%s3 + $0x1b8] sm:$0xff] %v275
  %340 = vst [vmem:[%s3 + $0x1c0] sm:$0xff] %v276
  %341 = vst [vmem:[%s3 + $0x1c8] sm:$0xff] %v277
  %342 = vst [vmem:[%s3 + $0x1d0] sm:$0xff] %v278
  %343 = vst [vmem:[%s3 + $0x1d8] sm:$0xff] %v279
  %344 = vst [vmem:[%s3 + $0x1e0] sm:$0xff] %v280
  %345 = vst [vmem:[%s3 + $0x1e8] sm:$0xff] %v281
  %346 = vst [vmem:[%s3 + $0x1f0] sm:$0xff] %v282
  %347 = vst [vmem:[%s3 + $0x1f8] sm:$0xff] %v283
  // Predicated region
  $region14: #{a_call__.21} parent=0 // pred_check
    _
  $region15: #{a_call__.21} parent=0 // pred_check_branch
    %349 = sbr.rel (0) target = $region17
  $region16: #{a_call__.21} parent=0 // pred_region
    _
  $region17: #{a_call__.21} parent=0 // pred_fallthru
    _
  // Predicated region
  $region18: #{a_call__.21} parent=0 // pred_check
    _
  $region19: #{a_call__.21} parent=0 // pred_check_branch
    %351 = sbr.rel (0) target = $region21
  $region20: #{a_call__.21} parent=0 // pred_region
    _
  $region21: #{a_call__.21} parent=0 // pred_fallthru
    _

// kernel: a_call__.23
$region0: #{a_call__.23}
  #allocation0 [shape = 'u32[]', space=smem, size = 0x4, offset = 0x4, fixed_abs, tag = 'smem constant byte address 0x4 - core index']
  #allocation1 [shape = 'u32[144,128]{1,0:T(1,128)}', space=vmem, size = 0x12000, scoped, tag = 'internal scratch']
  %s0 = inlined_call_operand.vmem [shape: f32[2048,128], index: 0, kind: input, shape index: {}]
  %s1 = inlined_call_operand.vmem [shape: f32[1,128], index: 1, kind: output, shape index: {0}]
  %s2 = inlined_call_operand.vmem [shape: f32[1,128], index: 2, kind: output, shape index: {1}]
  %3 = xla_tuple %s1, %s2
  %s4 = sld [smem:[#allocation0]]
  $region49: #{a_call__.23} parent=0
    _
  %s6 = ssub.s32 1, %s4
  %s7 = scalar_select 0, %s6, %s4
  loop: start=0, step=1, limit=6
  $region2: #{a_call__.23} parent=0 // loop_pre_header
    _
  $region3: #{a_call__.23} parent=0 // loop_header
    %s9 = sphi 0, %s13
    %p10 = scmp.ge.s32.totalorder %s9, 6
    %s19 = sphi 0, %s21
    %s22 = sphi 0, %s19
    %s23 = sphi 0, %s22
    %s39 = sphi 0, %s23
    %s43 = sphi 0, %s43
    %s45 = sphi 0, %s43
    %s46 = sphi 0, %s45
    %s60 = sphi 0, %s46
    %s64 = sphi 0, %s64
    %s66 = sphi 0, %s64
    %s67 = sphi 0, %s66
    %s81 = sphi 0, %s67
  $region4: #{a_call__.23} parent=0 // loop_header_branch
    %12 = sbr.rel (%p10) target = $region8
  $region5: #{a_call__.23} parent=0 // loop_body
    %s14 = ssub.s32 %s9, 1
    %s15 = ssub.s32 %s9, 2
    %s16 = sadd.s32 %s9, 1
    %s17 = ssub.s32 %s9, %s16
    %p18 = scmp.eq.s32.totalorder %s17, 0
    %s20 = sadd.s32 %s19, 1
    %s21 = scalar_select %p18, %s19, %s20
    %p24 = pneg %p18
    %p25 = scmp.eq.s32.totalorder %s9, 3
    %p26 = por %p24, %p25
    %p27 = scmp.ne.s32.totalorder %s19, %s22
    %p28 = scmp.eq.s32.totalorder %s9, 0
    %p29 = por %p27, %p28
    %p30 = scmp.ne.s32.totalorder %s19, %s22
    %p31 = scmp.eq.s32.totalorder %s14, 3
    %p32 = por %p30, %p31
    %p33 = scmp.ne.s32.totalorder %s22, %s23
    %p34 = scmp.eq.s32.totalorder %s14, 0
    %p35 = por %p33, %p34
    %p36 = scmp.ne.s32.totalorder %s22, %s23
    %p37 = scmp.eq.s32.totalorder %s15, 3
    %p38 = por %p36, %p37
    %p40 = scmp.ne.s32.totalorder %s23, %s39
    %p41 = scmp.eq.s32.totalorder %s15, 0
    %p42 = por %p40, %p41
    %s44 = sadd.s32 %s43, 1
    %p47 = scmp.eq.s32.totalorder %s9, 3
    %p48 = scmp.ne.s32.totalorder %s43, %s45
    %p49 = scmp.eq.s32.totalorder %s9, 0
    %p50 = por %p48, %p49
    %p51 = scmp.ne.s32.totalorder %s43, %s45
    %p52 = scmp.eq.s32.totalorder %s14, 3
    %p53 = por %p51, %p52
    %p54 = scmp.ne.s32.totalorder %s45, %s46
    %p55 = scmp.eq.s32.totalorder %s14, 0
    %p56 = por %p54, %p55
    %p57 = scmp.ne.s32.totalorder %s45, %s46
    %p58 = scmp.eq.s32.totalorder %s15, 3
    %p59 = por %p57, %p58
    %p61 = scmp.ne.s32.totalorder %s46, %s60
    %p62 = scmp.eq.s32.totalorder %s15, 0
    %p63 = por %p61, %p62
    %s65 = sadd.s32 %s64, 1
    %p68 = scmp.eq.s32.totalorder %s9, 3
    %p69 = scmp.ne.s32.totalorder %s64, %s66
    %p70 = scmp.eq.s32.totalorder %s9, 0
    %p71 = por %p69, %p70
    %p72 = scmp.ne.s32.totalorder %s64, %s66
    %p73 = scmp.eq.s32.totalorder %s14, 3
    %p74 = por %p72, %p73
    %p75 = scmp.ne.s32.totalorder %s66, %s67
    %p76 = scmp.eq.s32.totalorder %s14, 0
    %p77 = por %p75, %p76
    %p78 = scmp.ne.s32.totalorder %s66, %s67
    %p79 = scmp.eq.s32.totalorder %s15, 3
    %p80 = por %p78, %p79
    %p82 = scmp.ne.s32.totalorder %s67, %s81
    %p83 = scmp.eq.s32.totalorder %s15, 0
    %p84 = por %p82, %p83
    %p85 = scmp.le.s32.totalorder 1, %s9
    %p86 = scmp.lt.s32.totalorder %s9, 5
    %p87 = pnand %p85, %p86
    %p88 = pneg %p87
    // Predicated region
    $region9: #{a_call__.23} parent=5 // pred_check
      _
    $region10: #{a_call__.23} parent=5 // pred_check_branch
      %90 = sbr.rel (%p87) target = $region12
    $region11: #{a_call__.23} parent=5 // pred_region
      %s91 = ssub.s32 %s9, 1
    $region12: #{a_call__.23} parent=5 // pred_fallthru
      _
    %p92 = scmp.lt.s32.totalorder %s9, 4
    // Predicated region
    $region13: #{a_call__.23} parent=5 // pred_check
      %p93 = pneg %p92
    $region14: #{a_call__.23} parent=5 // pred_check_branch
      %95 = sbr.rel (%p93) target = $region16
    $region15: #{a_call__.23} parent=5 // pred_region
      // Predicated region
      $region17: #{a_call__.23} parent=15 // pred_check
        %p96 = pneg %p29
      $region18: #{a_call__.23} parent=15 // pred_check_branch
        %98 = sbr.rel (%p96) target = $region20
      $region19: #{a_call__.23} parent=15 // pred_region
        %s99 = smul.u32 64, %s9
        %p100 = scmp.lt.s32.totalorder %s99, 255
        %s101 = scalar_select %p100, %s99, 255
        %s102 = smul.addr %s101, 8
        %s103 = scalar_lea.vmem %s0, %s102
        %s104 = smul.u32 64, %s9
      $region20: #{a_call__.23} parent=15 // pred_fallthru
        _
    $region16: #{a_call__.23} parent=5 // pred_fallthru
      _
    %p105 = scmp.le.s32.totalorder 1, %s9
    %p106 = scmp.lt.s32.totalorder %s9, 5
    %p107 = pnand %p105, %p106
    %p108 = pneg %p107
    // Predicated region
    $region21: #{a_call__.23} parent=5 // pred_check
      _
    $region22: #{a_call__.23} parent=5 // pred_check_branch
      %110 = sbr.rel (%p107) target = $region24
    $region23: #{a_call__.23} parent=5 // pred_region
      %s111 = ssub.s32 %s9, 1
      %s112 = smul.u32 64, %s14
      %p113 = scmp.lt.s32.totalorder %s112, 255
      %s114 = scalar_select %p113, %s112, 255
      %s115 = smul.addr %s114, 8
      %s116 = scalar_lea.vmem %s0, %s115
      %p117 = pneg %p35
      %p118 = pneg %p32
      %p119 = pneg %p56
      %p120 = pneg %p53
      %p121 = pneg %p77
      %p122 = pneg %p74
      %s123 = smul.u32 64, %s14
      %p124 = scmp.lt.s32.totalorder %s123, 255
      %s125 = scalar_select %p124, %s123, 255
      %s126 = smul.addr %s125, 8
      %s127 = scalar_lea.vmem %s0, %s126
      %s128 = smul.u32 64, %s14
      %p129 = scmp.eq.s32.totalorder %s14, 0
      // Predicated region
      $region25: #{a_call__.23} parent=23 // pred_check
        %p130 = pneg %p129
      $region26: #{a_call__.23} parent=23 // pred_check_branch
        %132 = sbr.rel (%p130) target = $region28
      $region27: #{a_call__.23} parent=23 // pred_region
        %133 = vst [vmem:[%s1] sm:$0x1] 0.0
        %134 = vst [vmem:[%s2] sm:$0x1] 0.0
      $region28: #{a_call__.23} parent=23 // pred_fallthru
        _
      %v135 = vld [vmem:[%s127] sm:$0xff]
      %v136 = vld [vmem:[%s127 + $0x8] sm:$0xff]
      %v137 = vld [vmem:[%s127 + $0x10] sm:$0xff]
      %v138 = vld [vmem:[%s127 + $0x18] sm:$0xff]
      %v139 = vld [vmem:[%s127 + $0x20] sm:$0xff]
      %v140 = vld [vmem:[%s127 + $0x28] sm:$0xff]
      %v141 = vld [vmem:[%s127 + $0x30] sm:$0xff]
      %v142 = vld [vmem:[%s127 + $0x38] sm:$0xff]
      %v143 = vld [vmem:[%s127 + $0x40] sm:$0xff]
      %v144 = vld [vmem:[%s127 + $0x48] sm:$0xff]
      %v145 = vld [vmem:[%s127 + $0x50] sm:$0xff]
      %v146 = vld [vmem:[%s127 + $0x58] sm:$0xff]
      %v147 = vld [vmem:[%s127 + $0x60] sm:$0xff]
      %v148 = vld [vmem:[%s127 + $0x68] sm:$0xff]
      %v149 = vld [vmem:[%s127 + $0x70] sm:$0xff]
      %v150 = vld [vmem:[%s127 + $0x78] sm:$0xff]
      %v151 = vld [vmem:[%s127 + $0x80] sm:$0xff]
      %v152 = vld [vmem:[%s127 + $0x88] sm:$0xff]
      %v153 = vld [vmem:[%s127 + $0x90] sm:$0xff]
      %v154 = vld [vmem:[%s127 + $0x98] sm:$0xff]
      %v155 = vld [vmem:[%s127 + $0xa0] sm:$0xff]
      %v156 = vld [vmem:[%s127 + $0xa8] sm:$0xff]
      %v157 = vld [vmem:[%s127 + $0xb0] sm:$0xff]
      %v158 = vld [vmem:[%s127 + $0xb8] sm:$0xff]
      %v159 = vld [vmem:[%s127 + $0xc0] sm:$0xff]
      %v160 = vld [vmem:[%s127 + $0xc8] sm:$0xff]
      %v161 = vld [vmem:[%s127 + $0xd0] sm:$0xff]
      %v162 = vld [vmem:[%s127 + $0xd8] sm:$0xff]
      %v163 = vld [vmem:[%s127 + $0xe0] sm:$0xff]
      %v164 = vld [vmem:[%s127 + $0xe8] sm:$0xff]
      %v165 = vld [vmem:[%s127 + $0xf0] sm:$0xff]
      %v166 = vld [vmem:[%s127 + $0xf8] sm:$0xff]
      %v167 = vld [vmem:[%s127 + $0x100] sm:$0xff]
      %v168 = vld [vmem:[%s127 + $0x108] sm:$0xff]
      %v169 = vld [vmem:[%s127 + $0x110] sm:$0xff]
      %v170 = vld [vmem:[%s127 + $0x118] sm:$0xff]
      %v171 = vld [vmem:[%s127 + $0x120] sm:$0xff]
      %v172 = vld [vmem:[%s127 + $0x128] sm:$0xff]
      %v173 = vld [vmem:[%s127 + $0x130] sm:$0xff]
      %v174 = vld [vmem:[%s127 + $0x138] sm:$0xff]
      %v175 = vld [vmem:[%s127 + $0x140] sm:$0xff]
      %v176 = vld [vmem:[%s127 + $0x148] sm:$0xff]
      %v177 = vld [vmem:[%s127 + $0x150] sm:$0xff]
      %v178 = vld [vmem:[%s127 + $0x158] sm:$0xff]
      %v179 = vld [vmem:[%s127 + $0x160] sm:$0xff]
      %v180 = vld [vmem:[%s127 + $0x168] sm:$0xff]
      %v181 = vld [vmem:[%s127 + $0x170] sm:$0xff]
      %v182 = vld [vmem:[%s127 + $0x178] sm:$0xff]
      %v183 = vld [vmem:[%s127 + $0x180] sm:$0xff]
      %v184 = vld [vmem:[%s127 + $0x188] sm:$0xff]
      %v185 = vld [vmem:[%s127 + $0x190] sm:$0xff]
      %v186 = vld [vmem:[%s127 + $0x198] sm:$0xff]
      %v187 = vld [vmem:[%s127 + $0x1a0] sm:$0xff]
      %v188 = vld [vmem:[%s127 + $0x1a8] sm:$0xff]
      %v189 = vld [vmem:[%s127 + $0x1b0] sm:$0xff]
      %v190 = vld [vmem:[%s127 + $0x1b8] sm:$0xff]
      %v191 = vld [vmem:[%s127 + $0x1c0] sm:$0xff]
      %v192 = vld [vmem:[%s127 + $0x1c8] sm:$0xff]
      %v193 = vld [vmem:[%s127 + $0x1d0] sm:$0xff]
      %v194 = vld [vmem:[%s127 + $0x1d8] sm:$0xff]
      %v195 = vld [vmem:[%s127 + $0x1e0] sm:$0xff]
      %v196 = vld [vmem:[%s127 + $0x1e8] sm:$0xff]
      %v197 = vld [vmem:[%s127 + $0x1f0] sm:$0xff]
      %v198 = vld [vmem:[%s127 + $0x1f8] sm:$0xff]
      %v199 = vld [vmem:[%s1] sm:$0x1]
      %v200 = vadd.f32 %v135, %v136
      %v201 = vadd.f32 %v200, %v137
      %v202 = vadd.f32 %v201, %v138
      %v203 = vadd.f32 %v202, %v139
      %v204 = vadd.f32 %v203, %v140
      %v205 = vadd.f32 %v204, %v141
      %v206 = vadd.f32 %v205, %v142
      %v207 = vadd.f32 %v206, %v143
      %v208 = vadd.f32 %v207, %v144
      %v209 = vadd.f32 %v208, %v145
      %v210 = vadd.f32 %v209, %v146
      %v211 = vadd.f32 %v210, %v147
      %v212 = vadd.f32 %v211, %v148
      %v213 = vadd.f32 %v212, %v149
      %v214 = vadd.f32 %v213, %v150
      %v215 = vadd.f32 %v214, %v151
      %v216 = vadd.f32 %v215, %v152
      %v217 = vadd.f32 %v216, %v153
      %v218 = vadd.f32 %v217, %v154
      %v219 = vadd.f32 %v218, %v155
      %v220 = vadd.f32 %v219, %v156
      %v221 = vadd.f32 %v220, %v157
      %v222 = vadd.f32 %v221, %v158
      %v223 = vadd.f32 %v222, %v159
      %v224 = vadd.f32 %v223, %v160
      %v225 = vadd.f32 %v224, %v161
      %v226 = vadd.f32 %v225, %v162
      %v227 = vadd.f32 %v226, %v163
      %v228 = vadd.f32 %v227, %v164
      %v229 = vadd.f32 %v228, %v165
      %v230 = vadd.f32 %v229, %v166
      %v231 = vadd.f32 %v230, %v167
      %v232 = vadd.f32 %v231, %v168
      %v233 = vadd.f32 %v232, %v169
      %v234 = vadd.f32 %v233, %v170
      %v235 = vadd.f32 %v234, %v171
      %v236 = vadd.f32 %v235, %v172
      %v237 = vadd.f32 %v236, %v173
      %v238 = vadd.f32 %v237, %v174
      %v239 = vadd.f32 %v238, %v175
      %v240 = vadd.f32 %v239, %v176
      %v241 = vadd.f32 %v240, %v177
      %v242 = vadd.f32 %v241, %v178
      %v243 = vadd.f32 %v242, %v179
      %v244 = vadd.f32 %v243, %v180
      %v245 = vadd.f32 %v244, %v181
      %v246 = vadd.f32 %v245, %v182
      %v247 = vadd.f32 %v246, %v183
      %v248 = vadd.f32 %v247, %v184
      %v249 = vadd.f32 %v248, %v185
      %v250 = vadd.f32 %v249, %v186
      %v251 = vadd.f32 %v250, %v187
      %v252 = vadd.f32 %v251, %v188
      %v253 = vadd.f32 %v252, %v189
      %v254 = vadd.f32 %v253, %v190
      %v255 = vadd.f32 %v254, %v191
      %v256 = vadd.f32 %v255, %v192
      %v257 = vadd.f32 %v256, %v193
      %v258 = vadd.f32 %v257, %v194
      %v259 = vadd.f32 %v258, %v195
      %v260 = vadd.f32 %v259, %v196
      %v261 = vadd.f32 %v260, %v197
      %v262 = vadd.f32 %v261, %v198
      %v263 = vrot.slane %v262, 4
      %v264 = vadd.f32 %v262, %v263
      %v265 = vrot.slane %v264, 2
      %v266 = vadd.f32 %v264, %v265
      %v267 = vrot.slane %v266, 1
      %v268 = vadd.f32 %v266, %v267
      %v269 = vadd.f32 %v199, %v268
      %270 = vst [vmem:[%s1] sm:$0x1] %v269
      %v271 = vld [vmem:[%s2] sm:$0x1]
      %v272 = vmul.f32 %v135, %v135
      %v273 = vmul.f32 %v136, %v136
      %v274 = vmul.f32 %v137, %v137
      %v275 = vmul.f32 %v138, %v138
      %v276 = vmul.f32 %v139, %v139
      %v277 = vmul.f32 %v140, %v140
      %v278 = vmul.f32 %v141, %v141
      %v279 = vmul.f32 %v142, %v142
      %v280 = vmul.f32 %v143, %v143
      %v281 = vmul.f32 %v144, %v144
      %v282 = vmul.f32 %v145, %v145
      %v283 = vmul.f32 %v146, %v146
      %v284 = vmul.f32 %v147, %v147
      %v285 = vmul.f32 %v148, %v148
      %v286 = vmul.f32 %v149, %v149
      %v287 = vmul.f32 %v150, %v150
      %v288 = vmul.f32 %v151, %v151
      %v289 = vmul.f32 %v152, %v152
      %v290 = vmul.f32 %v153, %v153
      %v291 = vmul.f32 %v154, %v154
      %v292 = vmul.f32 %v155, %v155
      %v293 = vmul.f32 %v156, %v156
      %v294 = vmul.f32 %v157, %v157
      %v295 = vmul.f32 %v158, %v158
      %v296 = vmul.f32 %v159, %v159
      %v297 = vmul.f32 %v160, %v160
      %v298 = vmul.f32 %v161, %v161
      %v299 = vmul.f32 %v162, %v162
      %v300 = vmul.f32 %v163, %v163
      %v301 = vmul.f32 %v164, %v164
      %v302 = vmul.f32 %v165, %v165
      %v303 = vmul.f32 %v166, %v166
      %v304 = vmul.f32 %v167, %v167
      %v305 = vmul.f32 %v168, %v168
      %v306 = vmul.f32 %v169, %v169
      %v307 = vmul.f32 %v170, %v170
      %v308 = vmul.f32 %v171, %v171
      %v309 = vmul.f32 %v172, %v172
      %v310 = vmul.f32 %v173, %v173
      %v311 = vmul.f32 %v174, %v174
      %v312 = vmul.f32 %v175, %v175
      %v313 = vmul.f32 %v176, %v176
      %v314 = vmul.f32 %v177, %v177
      %v315 = vmul.f32 %v178, %v178
      %v316 = vmul.f32 %v179, %v179
      %v317 = vmul.f32 %v180, %v180
      %v318 = vmul.f32 %v181, %v181
      %v319 = vmul.f32 %v182, %v182
      %v320 = vmul.f32 %v183, %v183
      %v321 = vmul.f32 %v184, %v184
      %v322 = vmul.f32 %v185, %v185
      %v323 = vmul.f32 %v186, %v186
      %v324 = vmul.f32 %v187, %v187
      %v325 = vmul.f32 %v188, %v188
      %v326 = vmul.f32 %v189, %v189
      %v327 = vmul.f32 %v190, %v190
      %v328 = vmul.f32 %v191, %v191
      %v329 = vmul.f32 %v192, %v192
      %v330 = vmul.f32 %v193, %v193
      %v331 = vmul.f32 %v194, %v194
      %v332 = vmul.f32 %v195, %v195
      %v333 = vmul.f32 %v196, %v196
      %v334 = vmul.f32 %v197, %v197
      %v335 = vmul.f32 %v198, %v198
      %v336 = vadd.f32 %v272, %v273
      %v337 = vadd.f32 %v336, %v274
      %v338 = vadd.f32 %v337, %v275
      %v339 = vadd.f32 %v338, %v276
      %v340 = vadd.f32 %v339, %v277
      %v341 = vadd.f32 %v340, %v278
      %v342 = vadd.f32 %v341, %v279
      %v343 = vadd.f32 %v342, %v280
      %v344 = vadd.f32 %v343, %v281
      %v345 = vadd.f32 %v344, %v282
      %v346 = vadd.f32 %v345, %v283
      %v347 = vadd.f32 %v346, %v284
      %v348 = vadd.f32 %v347, %v285
      %v349 = vadd.f32 %v348, %v286
      %v350 = vadd.f32 %v349, %v287
      %v351 = vadd.f32 %v350, %v288
      %v352 = vadd.f32 %v351, %v289
      %v353 = vadd.f32 %v352, %v290
      %v354 = vadd.f32 %v353, %v291
      %v355 = vadd.f32 %v354, %v292
      %v356 = vadd.f32 %v355, %v293
      %v357 = vadd.f32 %v356, %v294
      %v358 = vadd.f32 %v357, %v295
      %v359 = vadd.f32 %v358, %v296
      %v360 = vadd.f32 %v359, %v297
      %v361 = vadd.f32 %v360, %v298
      %v362 = vadd.f32 %v361, %v299
      %v363 = vadd.f32 %v362, %v300
      %v364 = vadd.f32 %v363, %v301
      %v365 = vadd.f32 %v364, %v302
      %v366 = vadd.f32 %v365, %v303
      %v367 = vadd.f32 %v366, %v304
      %v368 = vadd.f32 %v367, %v305
      %v369 = vadd.f32 %v368, %v306
      %v370 = vadd.f32 %v369, %v307
      %v371 = vadd.f32 %v370, %v308
      %v372 = vadd.f32 %v371, %v309
      %v373 = vadd.f32 %v372, %v310
      %v374 = vadd.f32 %v373, %v311
      %v375 = vadd.f32 %v374, %v312
      %v376 = vadd.f32 %v375, %v313
      %v377 = vadd.f32 %v376, %v314
      %v378 = vadd.f32 %v377, %v315
      %v379 = vadd.f32 %v378, %v316
      %v380 = vadd.f32 %v379, %v317
      %v381 = vadd.f32 %v380, %v318
      %v382 = vadd.f32 %v381, %v319
      %v383 = vadd.f32 %v382, %v320
      %v384 = vadd.f32 %v383, %v321
      %v385 = vadd.f32 %v384, %v322
      %v386 = vadd.f32 %v385, %v323
      %v387 = vadd.f32 %v386, %v324
      %v388 = vadd.f32 %v387, %v325
      %v389 = vadd.f32 %v388, %v326
      %v390 = vadd.f32 %v389, %v327
      %v391 = vadd.f32 %v390, %v328
      %v392 = vadd.f32 %v391, %v329
      %v393 = vadd.f32 %v392, %v330
      %v394 = vadd.f32 %v393, %v331
      %v395 = vadd.f32 %v394, %v332
      %v396 = vadd.f32 %v395, %v333
      %v397 = vadd.f32 %v396, %v334
      %v398 = vadd.f32 %v397, %v335
      %v399 = vrot.slane %v398, 4
      %v400 = vadd.f32 %v398, %v399
      %v401 = vrot.slane %v400, 2
      %v402 = vadd.f32 %v400, %v401
      %v403 = vrot.slane %v402, 1
      %v404 = vadd.f32 %v402, %v403
      %v405 = vadd.f32 %v271, %v404
      %406 = vst [vmem:[%s2] sm:$0x1] %v405
      // Predicated region
      $region29: #{a_call__.23} parent=23 // pred_check
        %p407 = pneg %p53
      $region30: #{a_call__.23} parent=23 // pred_check_branch
        %409 = sbr.rel (%p407) target = $region32
      $region31: #{a_call__.23} parent=23 // pred_region
        _
      $region32: #{a_call__.23} parent=23 // pred_fallthru
        _
      // Predicated region
      $region33: #{a_call__.23} parent=23 // pred_check
        %p410 = pneg %p74
      $region34: #{a_call__.23} parent=23 // pred_check_branch
        %412 = sbr.rel (%p410) target = $region36
      $region35: #{a_call__.23} parent=23 // pred_region
        _
      $region36: #{a_call__.23} parent=23 // pred_fallthru
        _
      // Predicated region
      $region37: #{a_call__.23} parent=23 // pred_check
        %p413 = pneg %p53
      $region38: #{a_call__.23} parent=23 // pred_check_branch
        %415 = sbr.rel (%p413) target = $region40
      $region39: #{a_call__.23} parent=23 // pred_region
        _
      $region40: #{a_call__.23} parent=23 // pred_fallthru
        _
      // Predicated region
      $region41: #{a_call__.23} parent=23 // pred_check
        %p416 = pneg %p74
      $region42: #{a_call__.23} parent=23 // pred_check_branch
        %418 = sbr.rel (%p416) target = $region44
      $region43: #{a_call__.23} parent=23 // pred_region
        _
      $region44: #{a_call__.23} parent=23 // pred_fallthru
        _
    $region24: #{a_call__.23} parent=5 // pred_fallthru
      _
    %p419 = scmp.le.s32.totalorder 2, %s9
    // Predicated region
    $region45: #{a_call__.23} parent=5 // pred_check
      %p420 = pneg %p419
    $region46: #{a_call__.23} parent=5 // pred_check_branch
      %422 = sbr.rel (%p420) target = $region48
    $region47: #{a_call__.23} parent=5 // pred_region
      %s423 = ssub.s32 %s9, 2
    $region48: #{a_call__.23} parent=5 // pred_fallthru
      _
  $region6: #{a_call__.23} parent=0 // loop_footer
    %s13 = sadd.s32 1, %s9
  $region7: #{a_call__.23} parent=0 // loop_footer_branch
    %8 = sbr.rel target = $region3
  $region8: #{a_call__.23} parent=0 // loop_exit
    _

// kernel: a_call__.22
$region0: #{a_call__.22}
  #allocation0 [shape = 'u32[]', space=smem, size = 0x4, offset = 0x4, fixed_abs, tag = 'smem constant byte address 0x4 - core index']
  #allocation1 [shape = 'u32[144,128]{1,0:T(1,128)}', space=vmem, size = 0x12000, scoped, tag = 'internal scratch']
  #allocation2 [shape = 'f32[512,128]{1,0:T(8,128)}', space=vmem, size = 0x40000, scoped, tag = 'scratch operand']
  %s0 = inlined_call_operand.vmem [shape: bf16[4,512,128], index: 0, kind: input, shape index: {}]
  %s1 = inlined_call_operand.vmem [shape: bf16[4,128,128], index: 1, kind: input, shape index: {}]
  %s2 = inlined_call_operand.vmem [shape: f32[4,512,128], index: 2, kind: output, shape index: {}]
  %s3 = sld [smem:[#allocation0]]
  $region49: #{a_call__.22} parent=0
    _
  %s5 = ssub.s32 1, %s3
  %s6 = scalar_select 0, %s5, %s3
  loop: start=0, step=1, limit=6
  $region2: #{a_call__.22} parent=0 // loop_pre_header
    _
  $region3: #{a_call__.22} parent=0 // loop_header
    %s8 = sphi 0, %s12
    %p9 = scmp.ge.s32.totalorder %s8, 6
    %s15 = sphi 0, %s41
    %s16 = sphi 0, %s37
    %s17 = sphi 0, %s33
    %s18 = sphi 0, %s29
    %s19 = sphi 0, %s15
    %s20 = sphi 0, %s16
    %s21 = sphi 0, %s17
    %s22 = sphi 0, %s18
    %s23 = sphi 0, %s19
    %s24 = sphi 0, %s20
    %s25 = sphi 0, %s21
    %s26 = sphi 0, %s22
    %s48 = sphi 0, %s50
    %s51 = sphi 0, %s48
    %s52 = sphi 0, %s51
    %s68 = sphi 0, %s52
    %s78 = sphi 0, %s80
    %s81 = sphi 0, %s78
    %s82 = sphi 0, %s81
    %s98 = sphi 0, %s82
    %s108 = sphi 0, %s110
    %s111 = sphi 0, %s108
    %s112 = sphi 0, %s111
    %s128 = sphi 0, %s112
  $region4: #{a_call__.22} parent=0 // loop_header_branch
    %11 = sbr.rel (%p9) target = $region8
  $region5: #{a_call__.22} parent=0 // loop_body
    %s13 = ssub.s32 %s8, 1
    %s14 = ssub.s32 %s8, 2
    %s27 = sadd.s32 1, %s18
    %p28 = scmp.ge.s32.totalorder %s27, 1
    %s29 = scalar_select %p28, 0, %s27
    %s30 = sadd.s32 1, %s17
    %s31 = scalar_select %p28, %s30, %s17
    %p32 = scmp.ge.s32.totalorder %s31, 1
    %s33 = scalar_select %p32, 0, %s31
    %s34 = sadd.s32 1, %s16
    %s35 = scalar_select %p32, %s34, %s16
    %p36 = scmp.ge.s32.totalorder %s35, 1
    %s37 = scalar_select %p36, 0, %s35
    %s38 = sadd.s32 1, %s15
    %s39 = scalar_select %p36, %s38, %s15
    %p40 = scmp.ge.s32.totalorder %s39, 4
    %s41 = scalar_select %p40, 0, %s39
    %s42 = ssub.s32 %s15, %s41
    %s43 = ssub.s32 %s16, %s37
    %s44 = sor.u32 %s42, %s43
    %s45 = ssub.s32 %s18, %s29
    %s46 = sor.u32 %s44, %s45
    %p47 = scmp.eq.s32.totalorder %s46, 0
    %s49 = sadd.s32 %s48, 1
    %s50 = scalar_select %p47, %s48, %s49
    %p53 = pneg %p47
    %p54 = scmp.eq.s32.totalorder %s8, 3
    %p55 = por %p53, %p54
    %p56 = scmp.ne.s32.totalorder %s48, %s51
    %p57 = scmp.eq.s32.totalorder %s8, 0
    %p58 = por %p56, %p57
    %p59 = scmp.ne.s32.totalorder %s48, %s51
    %p60 = scmp.eq.s32.totalorder %s13, 3
    %p61 = por %p59, %p60
    %p62 = scmp.ne.s32.totalorder %s51, %s52
    %p63 = scmp.eq.s32.totalorder %s13, 0
    %p64 = por %p62, %p63
    %p65 = scmp.ne.s32.totalorder %s51, %s52
    %p66 = scmp.eq.s32.totalorder %s14, 3
    %p67 = por %p65, %p66
    %p69 = scmp.ne.s32.totalorder %s52, %s68
    %p70 = scmp.eq.s32.totalorder %s14, 0
    %p71 = por %p69, %p70
    %s72 = ssub.s32 %s15, %s41
    %s73 = ssub.s32 %s18, %s29
    %s74 = sor.u32 %s72, %s73
    %s75 = ssub.s32 %s17, %s33
    %s76 = sor.u32 %s74, %s75
    %p77 = scmp.eq.s32.totalorder %s76, 0
    %s79 = sadd.s32 %s78, 1
    %s80 = scalar_select %p77, %s78, %s79
    %p83 = pneg %p77
    %p84 = scmp.eq.s32.totalorder %s8, 3
    %p85 = por %p83, %p84
    %p86 = scmp.ne.s32.totalorder %s78, %s81
    %p87 = scmp.eq.s32.totalorder %s8, 0
    %p88 = por %p86, %p87
    %p89 = scmp.ne.s32.totalorder %s78, %s81
    %p90 = scmp.eq.s32.totalorder %s13, 3
    %p91 = por %p89, %p90
    %p92 = scmp.ne.s32.totalorder %s81, %s82
    %p93 = scmp.eq.s32.totalorder %s13, 0
    %p94 = por %p92, %p93
    %p95 = scmp.ne.s32.totalorder %s81, %s82
    %p96 = scmp.eq.s32.totalorder %s14, 3
    %p97 = por %p95, %p96
    %p99 = scmp.ne.s32.totalorder %s82, %s98
    %p100 = scmp.eq.s32.totalorder %s14, 0
    %p101 = por %p99, %p100
    %s102 = ssub.s32 %s15, %s41
    %s103 = ssub.s32 %s16, %s37
    %s104 = sor.u32 %s102, %s103
    %s105 = ssub.s32 %s17, %s33
    %s106 = sor.u32 %s104, %s105
    %p107 = scmp.eq.s32.totalorder %s106, 0
    %s109 = sadd.s32 %s108, 1
    %s110 = scalar_select %p107, %s108, %s109
    %p113 = pneg %p107
    %p114 = scmp.eq.s32.totalorder %s8, 3
    %p115 = por %p113, %p114
    %p116 = scmp.ne.s32.totalorder %s108, %s111
    %p117 = scmp.eq.s32.totalorder %s8, 0
    %p118 = por %p116, %p117
    %p119 = scmp.ne.s32.totalorder %s108, %s111
    %p120 = scmp.eq.s32.totalorder %s13, 3
    %p121 = por %p119, %p120
    %p122 = scmp.ne.s32.totalorder %s111, %s112
    %p123 = scmp.eq.s32.totalorder %s13, 0
    %p124 = por %p122, %p123
    %p125 = scmp.ne.s32.totalorder %s111, %s112
    %p126 = scmp.eq.s32.totalorder %s14, 3
    %p127 = por %p125, %p126
    %p129 = scmp.ne.s32.totalorder %s112, %s128
    %p130 = scmp.eq.s32.totalorder %s14, 0
    %p131 = por %p129, %p130
    %p132 = scmp.le.s32.totalorder 1, %s8
    %p133 = scmp.lt.s32.totalorder %s8, 5
    %p134 = pnand %p132, %p133
    %p135 = pneg %p134
    // Predicated region
    $region9: #{a_call__.22} parent=5 // pred_check
      _
    $region10: #{a_call__.22} parent=5 // pred_check_branch
      %137 = sbr.rel (%p134) target = $region12
    $region11: #{a_call__.22} parent=5 // pred_region
      %s138 = ssub.s32 %s8, 1
    $region12: #{a_call__.22} parent=5 // pred_fallthru
      _
    %p139 = scmp.lt.s32.totalorder %s8, 4
    // Predicated region
    $region13: #{a_call__.22} parent=5 // pred_check
      %p140 = pneg %p139
    $region14: #{a_call__.22} parent=5 // pred_check_branch
      %142 = sbr.rel (%p140) target = $region16
    $region15: #{a_call__.22} parent=5 // pred_region
      // Predicated region
      $region17: #{a_call__.22} parent=15 // pred_check
        %p143 = pneg %p58
      $region18: #{a_call__.22} parent=15 // pred_check_branch
        %145 = sbr.rel (%p143) target = $region20
      $region19: #{a_call__.22} parent=15 // pred_region
        %s146 = smul.u32 64, %s16
        %p147 = scmp.lt.s32.totalorder %s15, 3
        %s148 = scalar_select %p147, %s15, 3
        %p149 = scmp.lt.s32.totalorder %s146, 63
        %s150 = scalar_select %p149, %s146, 63
        %p151 = scmp.lt.s32.totalorder %s18, 0
        %s152 = scalar_select %p151, %s18, 0
        %s153 = sadd.s32 %s152, %s150
        %s154 = smul.addr %s148, 64
        %s155 = sadd.s32 %s153, %s154
        %s156 = smul.addr %s155, 4
        %s157 = scalar_lea.vmem %s0, %s156
        %s158 = smul.u32 64, %s16
      $region20: #{a_call__.22} parent=15 // pred_fallthru
        _
      // Predicated region
      $region21: #{a_call__.22} parent=15 // pred_check
        %p159 = pneg %p88
      $region22: #{a_call__.22} parent=15 // pred_check_branch
        %161 = sbr.rel (%p159) target = $region24
      $region23: #{a_call__.22} parent=15 // pred_region
        %s162 = smul.u32 16, %s18
        %p163 = scmp.lt.s32.totalorder %s15, 3
        %s164 = scalar_select %p163, %s15, 3
        %p165 = scmp.lt.s32.totalorder %s162, 15
        %s166 = scalar_select %p165, %s162, 15
        %p167 = scmp.lt.s32.totalorder %s17, 0
        %s168 = scalar_select %p167, %s17, 0
        %s169 = sadd.s32 %s168, %s166
        %s170 = smul.addr %s164, 16
        %s171 = sadd.s32 %s169, %s170
        %s172 = smul.addr %s171, 4
        %s173 = scalar_lea.vmem %s1, %s172
        %s174 = smul.u32 16, %s18
      $region24: #{a_call__.22} parent=15 // pred_fallthru
        _
    $region16: #{a_call__.22} parent=5 // pred_fallthru
      _
    %p175 = scmp.le.s32.totalorder 1, %s8
    %p176 = scmp.lt.s32.totalorder %s8, 5
    %p177 = pnand %p175, %p176
    %p178 = pneg %p177
    // Predicated region
    $region25: #{a_call__.22} parent=5 // pred_check
      _
    $region26: #{a_call__.22} parent=5 // pred_check_branch
      %180 = sbr.rel (%p177) target = $region28
    $region27: #{a_call__.22} parent=5 // pred_region
      %s181 = ssub.s32 %s8, 1
      %s182 = smul.u32 64, %s20
      %p183 = scmp.lt.s32.totalorder %s19, 3
      %s184 = scalar_select %p183, %s19, 3
      %p185 = scmp.lt.s32.totalorder %s182, 63
      %s186 = scalar_select %p185, %s182, 63
      %p187 = scmp.lt.s32.totalorder %s22, 0
      %s188 = scalar_select %p187, %s22, 0
      %s189 = sadd.s32 %s188, %s186
      %s190 = smul.addr %s184, 64
      %s191 = sadd.s32 %s189, %s190
      %s192 = smul.addr %s191, 4
      %s193 = scalar_lea.vmem %s0, %s192
      %p194 = pneg %p64
      %p195 = pneg %p61
      %s196 = smul.u32 16, %s22
      %p197 = scmp.lt.s32.totalorder %s19, 3
      %s198 = scalar_select %p197, %s19, 3
      %p199 = scmp.lt.s32.totalorder %s196, 15
      %s200 = scalar_select %p199, %s196, 15
      %p201 = scmp.lt.s32.totalorder %s21, 0
      %s202 = scalar_select %p201, %s21, 0
      %s203 = sadd.s32 %s202, %s200
      %s204 = smul.addr %s198, 16
      %s205 = sadd.s32 %s203, %s204
      %s206 = smul.addr %s205, 4
      %s207 = scalar_lea.vmem %s1, %s206
      %p208 = pneg %p94
      %p209 = pneg %p91
      %p210 = pneg %p124
      %p211 = pneg %p121
      %s212 = smul.u32 64, %s20
      %p213 = scmp.lt.s32.totalorder %s19, 3
      %s214 = scalar_select %p213, %s19, 3
      %p215 = scmp.lt.s32.totalorder %s212, 63
      %s216 = scalar_select %p215, %s212, 63
      %p217 = scmp.lt.s32.totalorder %s21, 0
      %s218 = scalar_select %p217, %s21, 0
      %s219 = sadd.s32 %s218, %s216
      %s220 = smul.addr %s214, 64
      %s221 = sadd.s32 %s219, %s220
      %s222 = smul.addr %s221, 8
      %s223 = scalar_lea.vmem %s2, %s222
      %s224 = smul.u32 64, %s20
      %p225 = scmp.lt.s32.totalorder %s19, 3
      %s226 = scalar_select %p225, %s19, 3
      %p227 = scmp.lt.s32.totalorder %s224, 63
      %s228 = scalar_select %p227, %s224, 63
      %p229 = scmp.lt.s32.totalorder %s22, 0
      %s230 = scalar_select %p229, %s22, 0
      %s231 = sadd.s32 %s230, %s228
      %s232 = smul.addr %s226, 64
      %s233 = sadd.s32 %s231, %s232
      %s234 = smul.addr %s233, 4
      %s235 = scalar_lea.vmem %s0, %s234
      %s236 = smul.u32 64, %s20
      %s237 = smul.u32 16, %s22
      %p238 = scmp.lt.s32.totalorder %s19, 3
      %s239 = scalar_select %p238, %s19, 3
      %p240 = scmp.lt.s32.totalorder %s237, 15
      %s241 = scalar_select %p240, %s237, 15
      %p242 = scmp.lt.s32.totalorder %s21, 0
      %s243 = scalar_select %p242, %s21, 0
      %s244 = sadd.s32 %s243, %s241
      %s245 = smul.addr %s239, 16
      %s246 = sadd.s32 %s244, %s245
      %s247 = smul.addr %s246, 4
      %s248 = scalar_lea.vmem %s1, %s247
      %s249 = smul.u32 16, %s22
      %s250 = smul.u32 64, %s20
      %p251 = scmp.lt.s32.totalorder %s19, 3
      %s252 = scalar_select %p251, %s19, 3
      %p253 = scmp.lt.s32.totalorder %s250, 63
      %s254 = scalar_select %p253, %s250, 63
      %p255 = scmp.lt.s32.totalorder %s21, 0
      %s256 = scalar_select %p255, %s21, 0
      %s257 = sadd.s32 %s256, %s254
      %s258 = smul.addr %s252, 64
      %s259 = sadd.s32 %s257, %s258
      %s260 = smul.addr %s259, 8
      %s261 = scalar_lea.vmem %s2, %s260
      %s262 = smul.u32 64, %s20
      %p264 = scmp.eq.s32.totalorder %s22, 0
      // Predicated region
      $region29: #{a_call__.22} parent=27 // pred_check
        %p265 = pneg %p264
      $region30: #{a_call__.22} parent=27 // pred_check_branch
        %267 = sbr.rel (%p265) target = $region32
      $region31: #{a_call__.22} parent=27 // pred_region
        %268 = vst [vmem:[#allocation2] sm:$0xff] 0.0
        %269 = vst [vmem:[#allocation2 + $0x8] sm:$0xff] 0.0
        %270 = vst [vmem:[#allocation2 + $0x10] sm:$0xff] 0.0
        %271 = vst [vmem:[#allocation2 + $0x18] sm:$0xff] 0.0
        %272 = vst [vmem:[#allocation2 + $0x20] sm:$0xff] 0.0
        %273 = vst [vmem:[#allocation2 + $0x28] sm:$0xff] 0.0
        %274 = vst [vmem:[#allocation2 + $0x30] sm:$0xff] 0.0
        %275 = vst [vmem:[#allocation2 + $0x38] sm:$0xff] 0.0
        %276 = vst [vmem:[#allocation2 + $0x40] sm:$0xff] 0.0
        %277 = vst [vmem:[#allocation2 + $0x48] sm:$0xff] 0.0
        %278 = vst [vmem:[#allocation2 + $0x50] sm:$0xff] 0.0
        %279 = vst [vmem:[#allocation2 + $0x58] sm:$0xff] 0.0
        %280 = vst [vmem:[#allocation2 + $0x60] sm:$0xff] 0.0
        %281 = vst [vmem:[#allocation2 + $0x68] sm:$0xff] 0.0
        %282 = vst [vmem:[#allocation2 + $0x70] sm:$0xff] 0.0
        %283 = vst [vmem:[#allocation2 + $0x78] sm:$0xff] 0.0
        %284 = vst [vmem:[#allocation2 + $0x80] sm:$0xff] 0.0
        %285 = vst [vmem:[#allocation2 + $0x88] sm:$0xff] 0.0
        %286 = vst [vmem:[#allocation2 + $0x90] sm:$0xff] 0.0
        %287 = vst [vmem:[#allocation2 + $0x98] sm:$0xff] 0.0
        %288 = vst [vmem:[#allocation2 + $0xa0] sm:$0xff] 0.0
        %289 = vst [vmem:[#allocation2 + $0xa8] sm:$0xff] 0.0
        %290 = vst [vmem:[#allocation2 + $0xb0] sm:$0xff] 0.0
        %291 = vst [vmem:[#allocation2 + $0xb8] sm:$0xff] 0.0
        %292 = vst [vmem:[#allocation2 + $0xc0] sm:$0xff] 0.0
        %293 = vst [vmem:[#allocation2 + $0xc8] sm:$0xff] 0.0
        %294 = vst [vmem:[#allocation2 + $0xd0] sm:$0xff] 0.0
        %295 = vst [vmem:[#allocation2 + $0xd8] sm:$0xff] 0.0
        %296 = vst [vmem:[#allocation2 + $0xe0] sm:$0xff] 0.0
        %297 = vst [vmem:[#allocation2 + $0xe8] sm:$0xff] 0.0
        %298 = vst [vmem:[#allocation2 + $0xf0] sm:$0xff] 0.0
        %299 = vst [vmem:[#allocation2 + $0xf8] sm:$0xff] 0.0
        %300 = vst [vmem:[#allocation2 + $0x100] sm:$0xff] 0.0
        %301 = vst [vmem:[#allocation2 + $0x108] sm:$0xff] 0.0
        %302 = vst [vmem:[#allocation2 + $0x110] sm:$0xff] 0.0
        %303 = vst [vmem:[#allocation2 + $0x118] sm:$0xff] 0.0
        %304 = vst [vmem:[#allocation2 + $0x120] sm:$0xff] 0.0
        %305 = vst [vmem:[#allocation2 + $0x128] sm:$0xff] 0.0
        %306 = vst [vmem:[#allocation2 + $0x130] sm:$0xff] 0.0
        %307 = vst [vmem:[#allocation2 + $0x138] sm:$0xff] 0.0
        %308 = vst [vmem:[#allocation2 + $0x140] sm:$0xff] 0.0
        %309 = vst [vmem:[#allocation2 + $0x148] sm:$0xff] 0.0
        %310 = vst [vmem:[#allocation2 + $0x150] sm:$0xff] 0.0
        %311 = vst [vmem:[#allocation2 + $0x158] sm:$0xff] 0.0
        %312 = vst [vmem:[#allocation2 + $0x160] sm:$0xff] 0.0
        %313 = vst [vmem:[#allocation2 + $0x168] sm:$0xff] 0.0
        %314 = vst [vmem:[#allocation2 + $0x170] sm:$0xff] 0.0
        %315 = vst [vmem:[#allocation2 + $0x178] sm:$0xff] 0.0
        %316 = vst [vmem:[#allocation2 + $0x180] sm:$0xff] 0.0
        %317 = vst [vmem:[#allocation2 + $0x188] sm:$0xff] 0.0
        %318 = vst [vmem:[#allocation2 + $0x190] sm:$0xff] 0.0
        %319 = vst [vmem:[#allocation2 + $0x198] sm:$0xff] 0.0
        %320 = vst [vmem:[#allocation2 + $0x1a0] sm:$0xff] 0.0
        %321 = vst [vmem:[#allocation2 + $0x1a8] sm:$0xff] 0.0
        %322 = vst [vmem:[#allocation2 + $0x1b0] sm:$0xff] 0.0
        %323 = vst [vmem:[#allocation2 + $0x1b8] sm:$0xff] 0.0
        %324 = vst [vmem:[#allocation2 + $0x1c0] sm:$0xff] 0.0
        %325 = vst [vmem:[#allocation2 + $0x1c8] sm:$0xff] 0.0
        %326 = vst [vmem:[#allocation2 + $0x1d0] sm:$0xff] 0.0
        %327 = vst [vmem:[#allocation2 + $0x1d8] sm:$0xff] 0.0
        %328 = vst [vmem:[#allocation2 + $0x1e0] sm:$0xff] 0.0
        %329 = vst [vmem:[#allocation2 + $0x1e8] sm:$0xff] 0.0
        %330 = vst [vmem:[#allocation2 + $0x1f0] sm:$0xff] 0.0
        %331 = vst [vmem:[#allocation2 + $0x1f8] sm:$0xff] 0.0
      $region32: #{a_call__.22} parent=27 // pred_fallthru
        _
      %v332 = vld [vmem:[#allocation2] sm:$0xff]
      %v333 = vld [vmem:[#allocation2 + $0x8] sm:$0xff]
      %v334 = vld [vmem:[#allocation2 + $0x10] sm:$0xff]
      %v335 = vld [vmem:[#allocation2 + $0x18] sm:$0xff]
      %v336 = vld [vmem:[#allocation2 + $0x20] sm:$0xff]
      %v337 = vld [vmem:[#allocation2 + $0x28] sm:$0xff]
      %v338 = vld [vmem:[#allocation2 + $0x30] sm:$0xff]
      %v339 = vld [vmem:[#allocation2 + $0x38] sm:$0xff]
      %v340 = vld [vmem:[#allocation2 + $0x40] sm:$0xff]
      %v341 = vld [vmem:[#allocation2 + $0x48] sm:$0xff]
      %v342 = vld [vmem:[#allocation2 + $0x50] sm:$0xff]
      %v343 = vld [vmem:[#allocation2 + $0x58] sm:$0xff]
      %v344 = vld [vmem:[#allocation2 + $0x60] sm:$0xff]
      %v345 = vld [vmem:[#allocation2 + $0x68] sm:$0xff]
      %v346 = vld [vmem:[#allocation2 + $0x70] sm:$0xff]
      %v347 = vld [vmem:[#allocation2 + $0x78] sm:$0xff]
      %v348 = vld [vmem:[#allocation2 + $0x80] sm:$0xff]
      %v349 = vld [vmem:[#allocation2 + $0x88] sm:$0xff]
      %v350 = vld [vmem:[#allocation2 + $0x90] sm:$0xff]
      %v351 = vld [vmem:[#allocation2 + $0x98] sm:$0xff]
      %v352 = vld [vmem:[#allocation2 + $0xa0] sm:$0xff]
      %v353 = vld [vmem:[#allocation2 + $0xa8] sm:$0xff]
      %v354 = vld [vmem:[#allocation2 + $0xb0] sm:$0xff]
      %v355 = vld [vmem:[#allocation2 + $0xb8] sm:$0xff]
      %v356 = vld [vmem:[#allocation2 + $0xc0] sm:$0xff]
      %v357 = vld [vmem:[#allocation2 + $0xc8] sm:$0xff]
      %v358 = vld [vmem:[#allocation2 + $0xd0] sm:$0xff]
      %v359 = vld [vmem:[#allocation2 + $0xd8] sm:$0xff]
      %v360 = vld [vmem:[#allocation2 + $0xe0] sm:$0xff]
      %v361 = vld [vmem:[#allocation2 + $0xe8] sm:$0xff]
      %v362 = vld [vmem:[#allocation2 + $0xf0] sm:$0xff]
      %v363 = vld [vmem:[#allocation2 + $0xf8] sm:$0xff]
      %v364 = vld [vmem:[#allocation2 + $0x100] sm:$0xff]
      %v365 = vld [vmem:[#allocation2 + $0x108] sm:$0xff]
      %v366 = vld [vmem:[#allocation2 + $0x110] sm:$0xff]
      %v367 = vld [vmem:[#allocation2 + $0x118] sm:$0xff]
      %v368 = vld [vmem:[#allocation2 + $0x120] sm:$0xff]
      %v369 = vld [vmem:[#allocation2 + $0x128] sm:$0xff]
      %v370 = vld [vmem:[#allocation2 + $0x130] sm:$0xff]
      %v371 = vld [vmem:[#allocation2 + $0x138] sm:$0xff]
      %v372 = vld [vmem:[#allocation2 + $0x140] sm:$0xff]
      %v373 = vld [vmem:[#allocation2 + $0x148] sm:$0xff]
      %v374 = vld [vmem:[#allocation2 + $0x150] sm:$0xff]
      %v375 = vld [vmem:[#allocation2 + $0x158] sm:$0xff]
      %v376 = vld [vmem:[#allocation2 + $0x160] sm:$0xff]
      %v377 = vld [vmem:[#allocation2 + $0x168] sm:$0xff]
      %v378 = vld [vmem:[#allocation2 + $0x170] sm:$0xff]
      %v379 = vld [vmem:[#allocation2 + $0x178] sm:$0xff]
      %v380 = vld [vmem:[#allocation2 + $0x180] sm:$0xff]
      %v381 = vld [vmem:[#allocation2 + $0x188] sm:$0xff]
      %v382 = vld [vmem:[#allocation2 + $0x190] sm:$0xff]
      %v383 = vld [vmem:[#allocation2 + $0x198] sm:$0xff]
      %v384 = vld [vmem:[#allocation2 + $0x1a0] sm:$0xff]
      %v385 = vld [vmem:[#allocation2 + $0x1a8] sm:$0xff]
      %v386 = vld [vmem:[#allocation2 + $0x1b0] sm:$0xff]
      %v387 = vld [vmem:[#allocation2 + $0x1b8] sm:$0xff]
      %v388 = vld [vmem:[#allocation2 + $0x1c0] sm:$0xff]
      %v389 = vld [vmem:[#allocation2 + $0x1c8] sm:$0xff]
      %v390 = vld [vmem:[#allocation2 + $0x1d0] sm:$0xff]
      %v391 = vld [vmem:[#allocation2 + $0x1d8] sm:$0xff]
      %v392 = vld [vmem:[#allocation2 + $0x1e0] sm:$0xff]
      %v393 = vld [vmem:[#allocation2 + $0x1e8] sm:$0xff]
      %v394 = vld [vmem:[#allocation2 + $0x1f0] sm:$0xff]
      %v395 = vld [vmem:[#allocation2 + $0x1f8] sm:$0xff]
      %v396 = vld [vmem:[%s235] sm:$0xf]
      %v397 = vld [vmem:[%s235 + $0x4] sm:$0xf]
      %v398 = vld [vmem:[%s235 + $0x8] sm:$0xf]
      %v399 = vld [vmem:[%s235 + $0xc] sm:$0xf]
      %v400 = vld [vmem:[%s235 + $0x10] sm:$0xf]
      %v401 = vld [vmem:[%s235 + $0x14] sm:$0xf]
      %v402 = vld [vmem:[%s235 + $0x18] sm:$0xf]
      %v403 = vld [vmem:[%s235 + $0x1c] sm:$0xf]
      %v404 = vld [vmem:[%s235 + $0x20] sm:$0xf]
      %v405 = vld [vmem:[%s235 + $0x24] sm:$0xf]
      %v406 = vld [vmem:[%s235 + $0x28] sm:$0xf]
      %v407 = vld [vmem:[%s235 + $0x2c] sm:$0xf]
      %v408 = vld [vmem:[%s235 + $0x30] sm:$0xf]
      %v409 = vld [vmem:[%s235 + $0x34] sm:$0xf]
      %v410 = vld [vmem:[%s235 + $0x38] sm:$0xf]
      %v411 = vld [vmem:[%s235 + $0x3c] sm:$0xf]
      %v412 = vld [vmem:[%s235 + $0x40] sm:$0xf]
      %v413 = vld [vmem:[%s235 + $0x44] sm:$0xf]
      %v414 = vld [vmem:[%s235 + $0x48] sm:$0xf]
      %v415 = vld [vmem:[%s235 + $0x4c] sm:$0xf]
      %v416 = vld [vmem:[%s235 + $0x50] sm:$0xf]
      %v417 = vld [vmem:[%s235 + $0x54] sm:$0xf]
      %v418 = vld [vmem:[%s235 + $0x58] sm:$0xf]
      %v419 = vld [vmem:[%s235 + $0x5c] sm:$0xf]
      %v420 = vld [vmem:[%s235 + $0x60] sm:$0xf]
      %v421 = vld [vmem:[%s235 + $0x64] sm:$0xf]
      %v422 = vld [vmem:[%s235 + $0x68] sm:$0xf]
      %v423 = vld [vmem:[%s235 + $0x6c] sm:$0xf]
      %v424 = vld [vmem:[%s235 + $0x70] sm:$0xf]
      %v425 = vld [vmem:[%s235 + $0x74] sm:$0xf]
      %v426 = vld [vmem:[%s235 + $0x78] sm:$0xf]
      %v427 = vld [vmem:[%s235 + $0x7c] sm:$0xf]
      %v428 = vld [vmem:[%s235 + $0x80] sm:$0xf]
      %v429 = vld [vmem:[%s235 + $0x84] sm:$0xf]
      %v430 = vld [vmem:[%s235 + $0x88] sm:$0xf]
      %v431 = vld [vmem:[%s235 + $0x8c] sm:$0xf]
      %v432 = vld [vmem:[%s235 + $0x90] sm:$0xf]
      %v433 = vld [vmem:[%s235 + $0x94] sm:$0xf]
      %v434 = vld [vmem:[%s235 + $0x98] sm:$0xf]
      %v435 = vld [vmem:[%s235 + $0x9c] sm:$0xf]
      %v436 = vld [vmem:[%s235 + $0xa0] sm:$0xf]
      %v437 = vld [vmem:[%s235 + $0xa4] sm:$0xf]
      %v438 = vld [vmem:[%s235 + $0xa8] sm:$0xf]
      %v439 = vld [vmem:[%s235 + $0xac] sm:$0xf]
      %v440 = vld [vmem:[%s235 + $0xb0] sm:$0xf]
      %v441 = vld [vmem:[%s235 + $0xb4] sm:$0xf]
      %v442 = vld [vmem:[%s235 + $0xb8] sm:$0xf]
      %v443 = vld [vmem:[%s235 + $0xbc] sm:$0xf]
      %v444 = vld [vmem:[%s235 + $0xc0] sm:$0xf]
      %v445 = vld [vmem:[%s235 + $0xc4] sm:$0xf]
      %v446 = vld [vmem:[%s235 + $0xc8] sm:$0xf]
      %v447 = vld [vmem:[%s235 + $0xcc] sm:$0xf]
      %v448 = vld [vmem:[%s235 + $0xd0] sm:$0xf]
      %v449 = vld [vmem:[%s235 + $0xd4] sm:$0xf]
      %v450 = vld [vmem:[%s235 + $0xd8] sm:$0xf]
      %v451 = vld [vmem:[%s235 + $0xdc] sm:$0xf]
      %v452 = vld [vmem:[%s235 + $0xe0] sm:$0xf]
      %v453 = vld [vmem:[%s235 + $0xe4] sm:$0xf]
      %v454 = vld [vmem:[%s235 + $0xe8] sm:$0xf]
      %v455 = vld [vmem:[%s235 + $0xec] sm:$0xf]
      %v456 = vld [vmem:[%s235 + $0xf0] sm:$0xf]
      %v457 = vld [vmem:[%s235 + $0xf4] sm:$0xf]
      %v458 = vld [vmem:[%s235 + $0xf8] sm:$0xf]
      %v459 = vld [vmem:[%s235 + $0xfc] sm:$0xf]
      %v460 = vld [vmem:[%s248] sm:$0xf]
      %v461 = vld [vmem:[%s248 + $0x4] sm:$0xf]
      %v462 = vld [vmem:[%s248 + $0x8] sm:$0xf]
      %v463 = vld [vmem:[%s248 + $0xc] sm:$0xf]
      %v464 = vld [vmem:[%s248 + $0x10] sm:$0xf]
      %v465 = vld [vmem:[%s248 + $0x14] sm:$0xf]
      %v466 = vld [vmem:[%s248 + $0x18] sm:$0xf]
      %v467 = vld [vmem:[%s248 + $0x1c] sm:$0xf]
      %v468 = vld [vmem:[%s248 + $0x20] sm:$0xf]
      %v469 = vld [vmem:[%s248 + $0x24] sm:$0xf]
      %v470 = vld [vmem:[%s248 + $0x28] sm:$0xf]
      %v471 = vld [vmem:[%s248 + $0x2c] sm:$0xf]
      %v472 = vld [vmem:[%s248 + $0x30] sm:$0xf]
      %v473 = vld [vmem:[%s248 + $0x34] sm:$0xf]
      %v474 = vld [vmem:[%s248 + $0x38] sm:$0xf]
      %v475 = vld [vmem:[%s248 + $0x3c] sm:$0xf]
      %v540 = vunpack.c.l.b16 %v396
      %v541 = vunpack.c.l.b16 %v397
      %v542 = vunpack.c.l.b16 %v398
      %v543 = vunpack.c.l.b16 %v399
      %v544 = vunpack.c.l.b16 %v400
      %v545 = vunpack.c.l.b16 %v401
      %v546 = vunpack.c.l.b16 %v402
      %v547 = vunpack.c.l.b16 %v403
      %v548 = vunpack.c.l.b16 %v404
      %v549 = vunpack.c.l.b16 %v405
      %v550 = vunpack.c.l.b16 %v406
      %v551 = vunpack.c.l.b16 %v407
      %v552 = vunpack.c.l.b16 %v408
      %v553 = vunpack.c.l.b16 %v409
      %v554 = vunpack.c.l.b16 %v410
      %v555 = vunpack.c.l.b16 %v411
      %v556 = vunpack.c.l.b16 %v412
      %v557 = vunpack.c.l.b16 %v413
      %v558 = vunpack.c.l.b16 %v414
      %v559 = vunpack.c.l.b16 %v415
      %v560 = vunpack.c.l.b16 %v416
      %v561 = vunpack.c.l.b16 %v417
      %v562 = vunpack.c.l.b16 %v418
      %v563 = vunpack.c.l.b16 %v419
      %v564 = vunpack.c.l.b16 %v420
      %v565 = vunpack.c.l.b16 %v421
      %v566 = vunpack.c.l.b16 %v422
      %v567 = vunpack.c.l.b16 %v423
      %v568 = vunpack.c.l.b16 %v424
      %v569 = vunpack.c.l.b16 %v425
      %v570 = vunpack.c.l.b16 %v426
      %v571 = vunpack.c.l.b16 %v427
      %v572 = vunpack.c.l.b16 %v428
      %v573 = vunpack.c.l.b16 %v429
      %v574 = vunpack.c.l.b16 %v430
      %v575 = vunpack.c.l.b16 %v431
      %v576 = vunpack.c.l.b16 %v432
      %v577 = vunpack.c.l.b16 %v433
      %v578 = vunpack.c.l.b16 %v434
      %v579 = vunpack.c.l.b16 %v435
      %v580 = vunpack.c.l.b16 %v436
      %v581 = vunpack.c.l.b16 %v437
      %v582 = vunpack.c.l.b16 %v438
      %v583 = vunpack.c.l.b16 %v439
      %v584 = vunpack.c.l.b16 %v440
      %v585 = vunpack.c.l.b16 %v441
      %v586 = vunpack.c.l.b16 %v442
      %v587 = vunpack.c.l.b16 %v443
      %v588 = vunpack.c.l.b16 %v444
      %v589 = vunpack.c.l.b16 %v445
      %v590 = vunpack.c.l.b16 %v446
      %v591 = vunpack.c.l.b16 %v447
      %v592 = vunpack.c.l.b16 %v448
      %v593 = vunpack.c.l.b16 %v449
      %v594 = vunpack.c.l.b16 %v450
      %v595 = vunpack.c.l.b16 %v451
      %v596 = vunpack.c.l.b16 %v452
      %v597 = vunpack.c.l.b16 %v453
      %v598 = vunpack.c.l.b16 %v454
      %v599 = vunpack.c.l.b16 %v455
      %v600 = vunpack.c.l.b16 %v456
      %v601 = vunpack.c.l.b16 %v457
      %v602 = vunpack.c.l.b16 %v458
      %v603 = vunpack.c.l.b16 %v459
      %v604 = vpack.c.b16 %v541, %v540
      %v605 = vpack.c.b16 %v543, %v542
      %v606 = vpack.c.b16 %v545, %v544
      %v607 = vpack.c.b16 %v547, %v546
      %v608 = vpack.c.b16 %v549, %v548
      %v609 = vpack.c.b16 %v551, %v550
      %v610 = vpack.c.b16 %v553, %v552
      %v611 = vpack.c.b16 %v555, %v554
      %v612 = vpack.c.b16 %v557, %v556
      %v613 = vpack.c.b16 %v559, %v558
      %v614 = vpack.c.b16 %v561, %v560
      %v615 = vpack.c.b16 %v563, %v562
      %v616 = vpack.c.b16 %v565, %v564
      %v617 = vpack.c.b16 %v567, %v566
      %v618 = vpack.c.b16 %v569, %v568
      %v619 = vpack.c.b16 %v571, %v570
      %v620 = vpack.c.b16 %v573, %v572
      %v621 = vpack.c.b16 %v575, %v574
      %v622 = vpack.c.b16 %v577, %v576
      %v623 = vpack.c.b16 %v579, %v578
      %v624 = vpack.c.b16 %v581, %v580
      %v625 = vpack.c.b16 %v583, %v582
      %v626 = vpack.c.b16 %v585, %v584
      %v627 = vpack.c.b16 %v587, %v586
      %v628 = vpack.c.b16 %v589, %v588
      %v629 = vpack.c.b16 %v591, %v590
      %v630 = vpack.c.b16 %v593, %v592
      %v631 = vpack.c.b16 %v595, %v594
      %v632 = vpack.c.b16 %v597, %v596
      %v633 = vpack.c.b16 %v599, %v598
      %v634 = vpack.c.b16 %v601, %v600
      %v635 = vpack.c.b16 %v603, %v602
      %v684 = vunpack.c.l.b16 %v460
      %v685 = vunpack.c.l.b16 %v461
      %v686 = vunpack.c.l.b16 %v462
      %v687 = vunpack.c.l.b16 %v463
      %v688 = vunpack.c.l.b16 %v464
      %v689 = vunpack.c.l.b16 %v465
      %v690 = vunpack.c.l.b16 %v466
      %v691 = vunpack.c.l.b16 %v467
      %v692 = vunpack.c.l.b16 %v468
      %v693 = vunpack.c.l.b16 %v469
      %v694 = vunpack.c.l.b16 %v470
      %v695 = vunpack.c.l.b16 %v471
      %v696 = vunpack.c.l.b16 %v472
      %v697 = vunpack.c.l.b16 %v473
      %v698 = vunpack.c.l.b16 %v474
      %v699 = vunpack.c.l.b16 %v475
      %v700 = vpack.c.b16 %v685, %v684
      %v701 = vpack.c.b16 %v687, %v686
      %v702 = vpack.c.b16 %v689, %v688
      %v703 = vpack.c.b16 %v691, %v690
      %v704 = vpack.c.b16 %v693, %v692
      %v705 = vpack.c.b16 %v695, %v694
      %v706 = vpack.c.b16 %v697, %v696
      %v707 = vpack.c.b16 %v699, %v698
      %716 = vmatprep.subr.bf16.mxu0 0
      %717 = vmatpush1.bf16.msra.mxu0 %v707
      %718 = vmatprep.subr.bf16.mxu0 0
      %719 = vmatpush1.bf16.msra.mxu0 %v706
      %720 = vmatprep.subr.bf16.mxu0 0
      %721 = vmatpush1.bf16.msra.mxu0 %v705
      %722 = vmatprep.subr.bf16.mxu0 0
      %723 = vmatpush1.bf16.msra.mxu0 %v704
      %724 = vmatprep.subr.bf16.mxu0 0
      %725 = vmatpush1.bf16.msra.mxu0 %v703
      %726 = vmatprep.subr.bf16.mxu0 0
      %727 = vmatpush1.bf16.msra.mxu0 %v702
      %728 = vmatprep.subr.bf16.mxu0 0
      %729 = vmatpush1.bf16.msra.mxu0 %v701
      %730 = vmatprep.subr.bf16.mxu0 0
      %731 = vmatpush1.bf16.msra.mxu0 %v700
      %732 = vmatprep.subr.bf16.mxu0 0
      %733 = vmatpush2.bf16.msra.mxu0 0
      %734 = vmatprep.subr.bf16.mxu0 0
      %735 = vmatpush2.bf16.msra.mxu0 0
      %736 = vmatprep.subr.bf16.mxu0 0
      %737 = vmatpush2.bf16.msra.mxu0 0
      %738 = vmatprep.subr.bf16.mxu0 0
      %739 = vmatpush2.bf16.msra.mxu0 0
      %740 = vmatprep.subr.bf16.mxu0 0
      %741 = vmatpush2.bf16.msra.mxu0 0
      %742 = vmatprep.subr.bf16.mxu0 0
      %743 = vmatpush2.bf16.msra.mxu0 0
      %744 = vmatprep.subr.bf16.mxu0 0
      %745 = vmatpush2.bf16.msra.mxu0 0
      %746 = vmatprep.subr.bf16.mxu0 0
      %747 = vmatpush2.bf16.msra.mxu0 0
      %748 = vmatprep.mubr.bf16.mxu0 0
      %749 = vmatmul.mubr.bf16.gmra.mxu0 %v604
      %v750 = vpop.f32.mrf.mxu0
      %v751 = vadd.f32 0.0, %v750
      %v752 = vpop.f32.mrf.mxu0
      %v753 = vpop.f32.mrf.mxu0
      %v754 = vadd.f32 0.0, %v753
      %v755 = vpop.f32.mrf.mxu0
      %756 = vmatprep.mubr.bf16.mxu0 0
      %757 = vmatmul.mubr.bf16.gmra.mxu0 %v605
      %v758 = vpop.f32.mrf.mxu0
      %v759 = vadd.f32 0.0, %v758
      %v760 = vpop.f32.mrf.mxu0
      %v761 = vpop.f32.mrf.mxu0
      %v762 = vadd.f32 0.0, %v761
      %v763 = vpop.f32.mrf.mxu0
      %764 = vmatprep.mubr.bf16.mxu0 0
      %765 = vmatmul.mubr.bf16.gmra.mxu0 %v606
      %v766 = vpop.f32.mrf.mxu0
      %v767 = vadd.f32 0.0, %v766
      %v768 = vpop.f32.mrf.mxu0
      %v769 = vpop.f32.mrf.mxu0
      %v770 = vadd.f32 0.0, %v769
      %v771 = vpop.f32.mrf.mxu0
      %772 = vmatprep.mubr.bf16.mxu0 0
      %773 = vmatmul.mubr.bf16.gmra.mxu0 %v607
      %v774 = vpop.f32.mrf.mxu0
      %v775 = vadd.f32 0.0, %v774
      %v776 = vpop.f32.mrf.mxu0
      %v777 = vpop.f32.mrf.mxu0
      %v778 = vadd.f32 0.0, %v777
      %v779 = vpop.f32.mrf.mxu0
      %780 = vmatprep.mubr.bf16.mxu0 0
      %781 = vmatmul.mubr.bf16.gmra.mxu0 %v608
      %v782 = vpop.f32.mrf.mxu0
      %v783 = vadd.f32 0.0, %v782
      %v784 = vpop.f32.mrf.mxu0
      %v785 = vpop.f32.mrf.mxu0
      %v786 = vadd.f32 0.0, %v785
      %v787 = vpop.f32.mrf.mxu0
      %788 = vmatprep.mubr.bf16.mxu0 0
      %789 = vmatmul.mubr.bf16.gmra.mxu0 %v609
      %v790 = vpop.f32.mrf.mxu0
      %v791 = vadd.f32 0.0, %v790
      %v792 = vpop.f32.mrf.mxu0
      %v793 = vpop.f32.mrf.mxu0
      %v794 = vadd.f32 0.0, %v793
      %v795 = vpop.f32.mrf.mxu0
      %796 = vmatprep.mubr.bf16.mxu0 0
      %797 = vmatmul.mubr.bf16.gmra.mxu0 %v610
      %v798 = vpop.f32.mrf.mxu0
      %v799 = vadd.f32 0.0, %v798
      %v800 = vpop.f32.mrf.mxu0
      %v801 = vpop.f32.mrf.mxu0
      %v802 = vadd.f32 0.0, %v801
      %v803 = vpop.f32.mrf.mxu0
      %804 = vmatprep.mubr.bf16.mxu0 0
      %805 = vmatmul.mubr.bf16.gmra.mxu0 %v611
      %v806 = vpop.f32.mrf.mxu0
      %v807 = vadd.f32 0.0, %v806
      %v808 = vpop.f32.mrf.mxu0
      %v809 = vpop.f32.mrf.mxu0
      %v810 = vadd.f32 0.0, %v809
      %v811 = vpop.f32.mrf.mxu0
      %812 = vmatprep.mubr.bf16.mxu0 0
      %813 = vmatmul.mubr.bf16.gmra.mxu0 %v612
      %v814 = vpop.f32.mrf.mxu0
      %v815 = vadd.f32 0.0, %v814
      %v816 = vpop.f32.mrf.mxu0
      %v817 = vpop.f32.mrf.mxu0
      %v818 = vadd.f32 0.0, %v817
      %v819 = vpop.f32.mrf.mxu0
      %820 = vmatprep.mubr.bf16.mxu0 0
      %821 = vmatmul.mubr.bf16.gmra.mxu0 %v613
      %v822 = vpop.f32.mrf.mxu0
      %v823 = vadd.f32 0.0, %v822
      %v824 = vpop.f32.mrf.mxu0
      %v825 = vpop.f32.mrf.mxu0
      %v826 = vadd.f32 0.0, %v825
      %v827 = vpop.f32.mrf.mxu0
      %828 = vmatprep.mubr.bf16.mxu0 0
      %829 = vmatmul.mubr.bf16.gmra.mxu0 %v614
      %v830 = vpop.f32.mrf.mxu0
      %v831 = vadd.f32 0.0, %v830
      %v832 = vpop.f32.mrf.mxu0
      %v833 = vpop.f32.mrf.mxu0
      %v834 = vadd.f32 0.0, %v833
      %v835 = vpop.f32.mrf.mxu0
      %836 = vmatprep.mubr.bf16.mxu0 0
      %837 = vmatmul.mubr.bf16.gmra.mxu0 %v615
      %v838 = vpop.f32.mrf.mxu0
      %v839 = vadd.f32 0.0, %v838
      %v840 = vpop.f32.mrf.mxu0
      %v841 = vpop.f32.mrf.mxu0
      %v842 = vadd.f32 0.0, %v841
      %v843 = vpop.f32.mrf.mxu0
      %844 = vmatprep.mubr.bf16.mxu0 0
      %845 = vmatmul.mubr.bf16.gmra.mxu0 %v616
      %v846 = vpop.f32.mrf.mxu0
      %v847 = vadd.f32 0.0, %v846
      %v848 = vpop.f32.mrf.mxu0
      %v849 = vpop.f32.mrf.mxu0
      %v850 = vadd.f32 0.0, %v849
      %v851 = vpop.f32.mrf.mxu0
      %852 = vmatprep.mubr.bf16.mxu0 0
      %853 = vmatmul.mubr.bf16.gmra.mxu0 %v617
      %v854 = vpop.f32.mrf.mxu0
      %v855 = vadd.f32 0.0, %v854
      %v856 = vpop.f32.mrf.mxu0
      %v857 = vpop.f32.mrf.mxu0
      %v858 = vadd.f32 0.0, %v857
      %v859 = vpop.f32.mrf.mxu0
      %860 = vmatprep.mubr.bf16.mxu0 0
      %861 = vmatmul.mubr.bf16.gmra.mxu0 %v618
      %v862 = vpop.f32.mrf.mxu0
      %v863 = vadd.f32 0.0, %v862
      %v864 = vpop.f32.mrf.mxu0
      %v865 = vpop.f32.mrf.mxu0
      %v866 = vadd.f32 0.0, %v865
      %v867 = vpop.f32.mrf.mxu0
      %868 = vmatprep.mubr.bf16.mxu0 0
      %869 = vmatmul.mubr.bf16.gmra.mxu0 %v619
      %v870 = vpop.f32.mrf.mxu0
      %v871 = vadd.f32 0.0, %v870
      %v872 = vpop.f32.mrf.mxu0
      %v873 = vpop.f32.mrf.mxu0
      %v874 = vadd.f32 0.0, %v873
      %v875 = vpop.f32.mrf.mxu0
      %876 = vmatprep.mubr.bf16.mxu0 0
      %877 = vmatmul.mubr.bf16.gmra.mxu0 %v620
      %v878 = vpop.f32.mrf.mxu0
      %v879 = vadd.f32 0.0, %v878
      %v880 = vpop.f32.mrf.mxu0
      %v881 = vpop.f32.mrf.mxu0
      %v882 = vadd.f32 0.0, %v881
      %v883 = vpop.f32.mrf.mxu0
      %884 = vmatprep.mubr.bf16.mxu0 0
      %885 = vmatmul.mubr.bf16.gmra.mxu0 %v621
      %v886 = vpop.f32.mrf.mxu0
      %v887 = vadd.f32 0.0, %v886
      %v888 = vpop.f32.mrf.mxu0
      %v889 = vpop.f32.mrf.mxu0
      %v890 = vadd.f32 0.0, %v889
      %v891 = vpop.f32.mrf.mxu0
      %892 = vmatprep.mubr.bf16.mxu0 0
      %893 = vmatmul.mubr.bf16.gmra.mxu0 %v622
      %v894 = vpop.f32.mrf.mxu0
      %v895 = vadd.f32 0.0, %v894
      %v896 = vpop.f32.mrf.mxu0
      %v897 = vpop.f32.mrf.mxu0
      %v898 = vadd.f32 0.0, %v897
      %v899 = vpop.f32.mrf.mxu0
      %900 = vmatprep.mubr.bf16.mxu0 0
      %901 = vmatmul.mubr.bf16.gmra.mxu0 %v623
      %v902 = vpop.f32.mrf.mxu0
      %v903 = vadd.f32 0.0, %v902
      %v904 = vpop.f32.mrf.mxu0
      %v905 = vpop.f32.mrf.mxu0
      %v906 = vadd.f32 0.0, %v905
      %v907 = vpop.f32.mrf.mxu0
      %908 = vmatprep.mubr.bf16.mxu0 0
      %909 = vmatmul.mubr.bf16.gmra.mxu0 %v624
      %v910 = vpop.f32.mrf.mxu0
      %v911 = vadd.f32 0.0, %v910
      %v912 = vpop.f32.mrf.mxu0
      %v913 = vpop.f32.mrf.mxu0
      %v914 = vadd.f32 0.0, %v913
      %v915 = vpop.f32.mrf.mxu0
      %916 = vmatprep.mubr.bf16.mxu0 0
      %917 = vmatmul.mubr.bf16.gmra.mxu0 %v625
      %v918 = vpop.f32.mrf.mxu0
      %v919 = vadd.f32 0.0, %v918
      %v920 = vpop.f32.mrf.mxu0
      %v921 = vpop.f32.mrf.mxu0
      %v922 = vadd.f32 0.0, %v921
      %v923 = vpop.f32.mrf.mxu0
      %924 = vmatprep.mubr.bf16.mxu0 0
      %925 = vmatmul.mubr.bf16.gmra.mxu0 %v626
      %v926 = vpop.f32.mrf.mxu0
      %v927 = vadd.f32 0.0, %v926
      %v928 = vpop.f32.mrf.mxu0
      %v929 = vpop.f32.mrf.mxu0
      %v930 = vadd.f32 0.0, %v929
      %v931 = vpop.f32.mrf.mxu0
      %932 = vmatprep.mubr.bf16.mxu0 0
      %933 = vmatmul.mubr.bf16.gmra.mxu0 %v627
      %v934 = vpop.f32.mrf.mxu0
      %v935 = vadd.f32 0.0, %v934
      %v936 = vpop.f32.mrf.mxu0
      %v937 = vpop.f32.mrf.mxu0
      %v938 = vadd.f32 0.0, %v937
      %v939 = vpop.f32.mrf.mxu0
      %940 = vmatprep.mubr.bf16.mxu0 0
      %941 = vmatmul.mubr.bf16.gmra.mxu0 %v628
      %v942 = vpop.f32.mrf.mxu0
      %v943 = vadd.f32 0.0, %v942
      %v944 = vpop.f32.mrf.mxu0
      %v945 = vpop.f32.mrf.mxu0
      %v946 = vadd.f32 0.0, %v945
      %v947 = vpop.f32.mrf.mxu0
      %948 = vmatprep.mubr.bf16.mxu0 0
      %949 = vmatmul.mubr.bf16.gmra.mxu0 %v629
      %v950 = vpop.f32.mrf.mxu0
      %v951 = vadd.f32 0.0, %v950
      %v952 = vpop.f32.mrf.mxu0
      %v953 = vpop.f32.mrf.mxu0
      %v954 = vadd.f32 0.0, %v953
      %v955 = vpop.f32.mrf.mxu0
      %956 = vmatprep.mubr.bf16.mxu0 0
      %957 = vmatmul.mubr.bf16.gmra.mxu0 %v630
      %v958 = vpop.f32.mrf.mxu0
      %v959 = vadd.f32 0.0, %v958
      %v960 = vpop.f32.mrf.mxu0
      %v961 = vpop.f32.mrf.mxu0
      %v962 = vadd.f32 0.0, %v961
      %v963 = vpop.f32.mrf.mxu0
      %964 = vmatprep.mubr.bf16.mxu0 0
      %965 = vmatmul.mubr.bf16.gmra.mxu0 %v631
      %v966 = vpop.f32.mrf.mxu0
      %v967 = vadd.f32 0.0, %v966
      %v968 = vpop.f32.mrf.mxu0
      %v969 = vpop.f32.mrf.mxu0
      %v970 = vadd.f32 0.0, %v969
      %v971 = vpop.f32.mrf.mxu0
      %972 = vmatprep.mubr.bf16.mxu0 0
      %973 = vmatmul.mubr.bf16.gmra.mxu0 %v632
      %v974 = vpop.f32.mrf.mxu0
      %v975 = vadd.f32 0.0, %v974
      %v976 = vpop.f32.mrf.mxu0
      %v977 = vpop.f32.mrf.mxu0
      %v978 = vadd.f32 0.0, %v977
      %v979 = vpop.f32.mrf.mxu0
      %980 = vmatprep.mubr.bf16.mxu0 0
      %981 = vmatmul.mubr.bf16.gmra.mxu0 %v633
      %v982 = vpop.f32.mrf.mxu0
      %v983 = vadd.f32 0.0, %v982
      %v984 = vpop.f32.mrf.mxu0
      %v985 = vpop.f32.mrf.mxu0
      %v986 = vadd.f32 0.0, %v985
      %v987 = vpop.f32.mrf.mxu0
      %988 = vmatprep.mubr.bf16.mxu0 0
      %989 = vmatmul.mubr.bf16.gmra.mxu0 %v634
      %v990 = vpop.f32.mrf.mxu0
      %v991 = vadd.f32 0.0, %v990
      %v992 = vpop.f32.mrf.mxu0
      %v993 = vpop.f32.mrf.mxu0
      %v994 = vadd.f32 0.0, %v993
      %v995 = vpop.f32.mrf.mxu0
      %996 = vmatprep.mubr.bf16.mxu0 0
      %997 = vmatmul.mubr.bf16.gmra.mxu0 %v635
      %v998 = vpop.f32.mrf.mxu0
      %v999 = vadd.f32 0.0, %v998
      %v1000 = vpop.f32.mrf.mxu0
      %v1001 = vpop.f32.mrf.mxu0
      %v1002 = vadd.f32 0.0, %v1001
      %v1003 = vpop.f32.mrf.mxu0
      %1004 = vdwg.mxu0
      %v1005 = vadd.f32 %v332, %v751
      %v1006 = vadd.f32 %v333, %v754
      %v1007 = vadd.f32 %v334, %v759
      %v1008 = vadd.f32 %v335, %v762
      %v1009 = vadd.f32 %v336, %v767
      %v1010 = vadd.f32 %v337, %v770
      %v1011 = vadd.f32 %v338, %v775
      %v1012 = vadd.f32 %v339, %v778
      %v1013 = vadd.f32 %v340, %v783
      %v1014 = vadd.f32 %v341, %v786
      %v1015 = vadd.f32 %v342, %v791
      %v1016 = vadd.f32 %v343, %v794
      %v1017 = vadd.f32 %v344, %v799
      %v1018 = vadd.f32 %v345, %v802
      %v1019 = vadd.f32 %v346, %v807
      %v1020 = vadd.f32 %v347, %v810
      %v1021 = vadd.f32 %v348, %v815
      %v1022 = vadd.f32 %v349, %v818
      %v1023 = vadd.f32 %v350, %v823
      %v1024 = vadd.f32 %v351, %v826
      %v1025 = vadd.f32 %v352, %v831
      %v1026 = vadd.f32 %v353, %v834
      %v1027 = vadd.f32 %v354, %v839
      %v1028 = vadd.f32 %v355, %v842
      %v1029 = vadd.f32 %v356, %v847
      %v1030 = vadd.f32 %v357, %v850
      %v1031 = vadd.f32 %v358, %v855
      %v1032 = vadd.f32 %v359, %v858
      %v1033 = vadd.f32 %v360, %v863
      %v1034 = vadd.f32 %v361, %v866
      %v1035 = vadd.f32 %v362, %v871
      %v1036 = vadd.f32 %v363, %v874
      %v1037 = vadd.f32 %v364, %v879
      %v1038 = vadd.f32 %v365, %v882
      %v1039 = vadd.f32 %v366, %v887
      %v1040 = vadd.f32 %v367, %v890
      %v1041 = vadd.f32 %v368, %v895
      %v1042 = vadd.f32 %v369, %v898
      %v1043 = vadd.f32 %v370, %v903
      %v1044 = vadd.f32 %v371, %v906
      %v1045 = vadd.f32 %v372, %v911
      %v1046 = vadd.f32 %v373, %v914
      %v1047 = vadd.f32 %v374, %v919
      %v1048 = vadd.f32 %v375, %v922
      %v1049 = vadd.f32 %v376, %v927
      %v1050 = vadd.f32 %v377, %v930
      %v1051 = vadd.f32 %v378, %v935
      %v1052 = vadd.f32 %v379, %v938
      %v1053 = vadd.f32 %v380, %v943
      %v1054 = vadd.f32 %v381, %v946
      %v1055 = vadd.f32 %v382, %v951
      %v1056 = vadd.f32 %v383, %v954
      %v1057 = vadd.f32 %v384, %v959
      %v1058 = vadd.f32 %v385, %v962
      %v1059 = vadd.f32 %v386, %v967
      %v1060 = vadd.f32 %v387, %v970
      %v1061 = vadd.f32 %v388, %v975
      %v1062 = vadd.f32 %v389, %v978
      %v1063 = vadd.f32 %v390, %v983
      %v1064 = vadd.f32 %v391, %v986
      %v1065 = vadd.f32 %v392, %v991
      %v1066 = vadd.f32 %v393, %v994
      %v1067 = vadd.f32 %v394, %v999
      %v1068 = vadd.f32 %v395, %v1002
      %1069 = vst [vmem:[#allocation2] sm:$0xff] %v1005
      %1070 = vst [vmem:[#allocation2 + $0x8] sm:$0xff] %v1006
      %1071 = vst [vmem:[#allocation2 + $0x10] sm:$0xff] %v1007
      %1072 = vst [vmem:[#allocation2 + $0x18] sm:$0xff] %v1008
      %1073 = vst [vmem:[#allocation2 + $0x20] sm:$0xff] %v1009
      %1074 = vst [vmem:[#allocation2 + $0x28] sm:$0xff] %v1010
      %1075 = vst [vmem:[#allocation2 + $0x30] sm:$0xff] %v1011
      %1076 = vst [vmem:[#allocation2 + $0x38] sm:$0xff] %v1012
      %1077 = vst [vmem:[#allocation2 + $0x40] sm:$0xff] %v1013
      %1078 = vst [vmem:[#allocation2 + $0x48] sm:$0xff] %v1014
      %1079 = vst [vmem:[#allocation2 + $0x50] sm:$0xff] %v1015
      %1080 = vst [vmem:[#allocation2 + $0x58] sm:$0xff] %v1016
      %1081 = vst [vmem:[#allocation2 + $0x60] sm:$0xff] %v1017
      %1082 = vst [vmem:[#allocation2 + $0x68] sm:$0xff] %v1018
      %1083 = vst [vmem:[#allocation2 + $0x70] sm:$0xff] %v1019
      %1084 = vst [vmem:[#allocation2 + $0x78] sm:$0xff] %v1020
      %1085 = vst [vmem:[#allocation2 + $0x80] sm:$0xff] %v1021
      %1086 = vst [vmem:[#allocation2 + $0x88] sm:$0xff] %v1022
      %1087 = vst [vmem:[#allocation2 + $0x90] sm:$0xff] %v1023
      %1088 = vst [vmem:[#allocation2 + $0x98] sm:$0xff] %v1024
      %1089 = vst [vmem:[#allocation2 + $0xa0] sm:$0xff] %v1025
      %1090 = vst [vmem:[#allocation2 + $0xa8] sm:$0xff] %v1026
      %1091 = vst [vmem:[#allocation2 + $0xb0] sm:$0xff] %v1027
      %1092 = vst [vmem:[#allocation2 + $0xb8] sm:$0xff] %v1028
      %1093 = vst [vmem:[#allocation2 + $0xc0] sm:$0xff] %v1029
      %1094 = vst [vmem:[#allocation2 + $0xc8] sm:$0xff] %v1030
      %1095 = vst [vmem:[#allocation2 + $0xd0] sm:$0xff] %v1031
      %1096 = vst [vmem:[#allocation2 + $0xd8] sm:$0xff] %v1032
      %1097 = vst [vmem:[#allocation2 + $0xe0] sm:$0xff] %v1033
      %1098 = vst [vmem:[#allocation2 + $0xe8] sm:$0xff] %v1034
      %1099 = vst [vmem:[#allocation2 + $0xf0] sm:$0xff] %v1035
      %1100 = vst [vmem:[#allocation2 + $0xf8] sm:$0xff] %v1036
      %1101 = vst [vmem:[#allocation2 + $0x100] sm:$0xff] %v1037
      %1102 = vst [vmem:[#allocation2 + $0x108] sm:$0xff] %v1038
      %1103 = vst [vmem:[#allocation2 + $0x110] sm:$0xff] %v1039
      %1104 = vst [vmem:[#allocation2 + $0x118] sm:$0xff] %v1040
      %1105 = vst [vmem:[#allocation2 + $0x120] sm:$0xff] %v1041
      %1106 = vst [vmem:[#allocation2 + $0x128] sm:$0xff] %v1042
      %1107 = vst [vmem:[#allocation2 + $0x130] sm:$0xff] %v1043
      %1108 = vst [vmem:[#allocation2 + $0x138] sm:$0xff] %v1044
      %1109 = vst [vmem:[#allocation2 + $0x140] sm:$0xff] %v1045
      %1110 = vst [vmem:[#allocation2 + $0x148] sm:$0xff] %v1046
      %1111 = vst [vmem:[#allocation2 + $0x150] sm:$0xff] %v1047
      %1112 = vst [vmem:[#allocation2 + $0x158] sm:$0xff] %v1048
      %1113 = vst [vmem:[#allocation2 + $0x160] sm:$0xff] %v1049
      %1114 = vst [vmem:[#allocation2 + $0x168] sm:$0xff] %v1050
      %1115 = vst [vmem:[#allocation2 + $0x170] sm:$0xff] %v1051
      %1116 = vst [vmem:[#allocation2 + $0x178] sm:$0xff] %v1052
      %1117 = vst [vmem:[#allocation2 + $0x180] sm:$0xff] %v1053
      %1118 = vst [vmem:[#allocation2 + $0x188] sm:$0xff] %v1054
      %1119 = vst [vmem:[#allocation2 + $0x190] sm:$0xff] %v1055
      %1120 = vst [vmem:[#allocation2 + $0x198] sm:$0xff] %v1056
      %1121 = vst [vmem:[#allocation2 + $0x1a0] sm:$0xff] %v1057
      %1122 = vst [vmem:[#allocation2 + $0x1a8] sm:$0xff] %v1058
      %1123 = vst [vmem:[#allocation2 + $0x1b0] sm:$0xff] %v1059
      %1124 = vst [vmem:[#allocation2 + $0x1b8] sm:$0xff] %v1060
      %1125 = vst [vmem:[#allocation2 + $0x1c0] sm:$0xff] %v1061
      %1126 = vst [vmem:[#allocation2 + $0x1c8] sm:$0xff] %v1062
      %1127 = vst [vmem:[#allocation2 + $0x1d0] sm:$0xff] %v1063
      %1128 = vst [vmem:[#allocation2 + $0x1d8] sm:$0xff] %v1064
      %1129 = vst [vmem:[#allocation2 + $0x1e0] sm:$0xff] %v1065
      %1130 = vst [vmem:[#allocation2 + $0x1e8] sm:$0xff] %v1066
      %1131 = vst [vmem:[#allocation2 + $0x1f0] sm:$0xff] %v1067
      %1132 = vst [vmem:[#allocation2 + $0x1f8] sm:$0xff] %v1068
      // Predicated region
      $region33: #{a_call__.22} parent=27 // pred_check
        %p1133 = pneg %p264
      $region34: #{a_call__.22} parent=27 // pred_check_branch
        %1135 = sbr.rel (%p1133) target = $region36
      $region35: #{a_call__.22} parent=27 // pred_region
        %v1136 = vld [vmem:[#allocation2] sm:$0xff]
        %v1137 = vld [vmem:[#allocation2 + $0x8] sm:$0xff]
        %v1138 = vld [vmem:[#allocation2 + $0x10] sm:$0xff]
        %v1139 = vld [vmem:[#allocation2 + $0x18] sm:$0xff]
        %v1140 = vld [vmem:[#allocation2 + $0x20] sm:$0xff]
        %v1141 = vld [vmem:[#allocation2 + $0x28] sm:$0xff]
        %v1142 = vld [vmem:[#allocation2 + $0x30] sm:$0xff]
        %v1143 = vld [vmem:[#allocation2 + $0x38] sm:$0xff]
        %v1144 = vld [vmem:[#allocation2 + $0x40] sm:$0xff]
        %v1145 = vld [vmem:[#allocation2 + $0x48] sm:$0xff]
        %v1146 = vld [vmem:[#allocation2 + $0x50] sm:$0xff]
        %v1147 = vld [vmem:[#allocation2 + $0x58] sm:$0xff]
        %v1148 = vld [vmem:[#allocation2 + $0x60] sm:$0xff]
        %v1149 = vld [vmem:[#allocation2 + $0x68] sm:$0xff]
        %v1150 = vld [vmem:[#allocation2 + $0x70] sm:$0xff]
        %v1151 = vld [vmem:[#allocation2 + $0x78] sm:$0xff]
        %v1152 = vld [vmem:[#allocation2 + $0x80] sm:$0xff]
        %v1153 = vld [vmem:[#allocation2 + $0x88] sm:$0xff]
        %v1154 = vld [vmem:[#allocation2 + $0x90] sm:$0xff]
        %v1155 = vld [vmem:[#allocation2 + $0x98] sm:$0xff]
        %v1156 = vld [vmem:[#allocation2 + $0xa0] sm:$0xff]
        %v1157 = vld [vmem:[#allocation2 + $0xa8] sm:$0xff]
        %v1158 = vld [vmem:[#allocation2 + $0xb0] sm:$0xff]
        %v1159 = vld [vmem:[#allocation2 + $0xb8] sm:$0xff]
        %v1160 = vld [vmem:[#allocation2 + $0xc0] sm:$0xff]
        %v1161 = vld [vmem:[#allocation2 + $0xc8] sm:$0xff]
        %v1162 = vld [vmem:[#allocation2 + $0xd0] sm:$0xff]
        %v1163 = vld [vmem:[#allocation2 + $0xd8] sm:$0xff]
        %v1164 = vld [vmem:[#allocation2 + $0xe0] sm:$0xff]
        %v1165 = vld [vmem:[#allocation2 + $0xe8] sm:$0xff]
        %v1166 = vld [vmem:[#allocation2 + $0xf0] sm:$0xff]
        %v1167 = vld [vmem:[#allocation2 + $0xf8] sm:$0xff]
        %v1168 = vld [vmem:[#allocation2 + $0x100] sm:$0xff]
        %v1169 = vld [vmem:[#allocation2 + $0x108] sm:$0xff]
        %v1170 = vld [vmem:[#allocation2 + $0x110] sm:$0xff]
        %v1171 = vld [vmem:[#allocation2 + $0x118] sm:$0xff]
        %v1172 = vld [vmem:[#allocation2 + $0x120] sm:$0xff]
        %v1173 = vld [vmem:[#allocation2 + $0x128] sm:$0xff]
        %v1174 = vld [vmem:[#allocation2 + $0x130] sm:$0xff]
        %v1175 = vld [vmem:[#allocation2 + $0x138] sm:$0xff]
        %v1176 = vld [vmem:[#allocation2 + $0x140] sm:$0xff]
        %v1177 = vld [vmem:[#allocation2 + $0x148] sm:$0xff]
        %v1178 = vld [vmem:[#allocation2 + $0x150] sm:$0xff]
        %v1179 = vld [vmem:[#allocation2 + $0x158] sm:$0xff]
        %v1180 = vld [vmem:[#allocation2 + $0x160] sm:$0xff]
        %v1181 = vld [vmem:[#allocation2 + $0x168] sm:$0xff]
        %v1182 = vld [vmem:[#allocation2 + $0x170] sm:$0xff]
        %v1183 = vld [vmem:[#allocation2 + $0x178] sm:$0xff]
        %v1184 = vld [vmem:[#allocation2 + $0x180] sm:$0xff]
        %v1185 = vld [vmem:[#allocation2 + $0x188] sm:$0xff]
        %v1186 = vld [vmem:[#allocation2 + $0x190] sm:$0xff]
        %v1187 = vld [vmem:[#allocation2 + $0x198] sm:$0xff]
        %v1188 = vld [vmem:[#allocation2 + $0x1a0] sm:$0xff]
        %v1189 = vld [vmem:[#allocation2 + $0x1a8] sm:$0xff]
        %v1190 = vld [vmem:[#allocation2 + $0x1b0] sm:$0xff]
        %v1191 = vld [vmem:[#allocation2 + $0x1b8] sm:$0xff]
        %v1192 = vld [vmem:[#allocation2 + $0x1c0] sm:$0xff]
        %v1193 = vld [vmem:[#allocation2 + $0x1c8] sm:$0xff]
        %v1194 = vld [vmem:[#allocation2 + $0x1d0] sm:$0xff]
        %v1195 = vld [vmem:[#allocation2 + $0x1d8] sm:$0xff]
        %v1196 = vld [vmem:[#allocation2 + $0x1e0] sm:$0xff]
        %v1197 = vld [vmem:[#allocation2 + $0x1e8] sm:$0xff]
        %v1198 = vld [vmem:[#allocation2 + $0x1f0] sm:$0xff]
        %v1199 = vld [vmem:[#allocation2 + $0x1f8] sm:$0xff]
        %1200 = vst [vmem:[%s261] sm:$0xff] %v1136
        %1201 = vst [vmem:[%s261 + $0x8] sm:$0xff] %v1137
        %1202 = vst [vmem:[%s261 + $0x10] sm:$0xff] %v1138
        %1203 = vst [vmem:[%s261 + $0x18] sm:$0xff] %v1139
        %1204 = vst [vmem:[%s261 + $0x20] sm:$0xff] %v1140
        %1205 = vst [vmem:[%s261 + $0x28] sm:$0xff] %v1141
        %1206 = vst [vmem:[%s261 + $0x30] sm:$0xff] %v1142
        %1207 = vst [vmem:[%s261 + $0x38] sm:$0xff] %v1143
        %1208 = vst [vmem:[%s261 + $0x40] sm:$0xff] %v1144
        %1209 = vst [vmem:[%s261 + $0x48] sm:$0xff] %v1145
        %1210 = vst [vmem:[%s261 + $0x50] sm:$0xff] %v1146
        %1211 = vst [vmem:[%s261 + $0x58] sm:$0xff] %v1147
        %1212 = vst [vmem:[%s261 + $0x60] sm:$0xff] %v1148
        %1213 = vst [vmem:[%s261 + $0x68] sm:$0xff] %v1149
        %1214 = vst [vmem:[%s261 + $0x70] sm:$0xff] %v1150
        %1215 = vst [vmem:[%s261 + $0x78] sm:$0xff] %v1151
        %1216 = vst [vmem:[%s261 + $0x80] sm:$0xff] %v1152
        %1217 = vst [vmem:[%s261 + $0x88] sm:$0xff] %v1153
        %1218 = vst [vmem:[%s261 + $0x90] sm:$0xff] %v1154
        %1219 = vst [vmem:[%s261 + $0x98] sm:$0xff] %v1155
        %1220 = vst [vmem:[%s261 + $0xa0] sm:$0xff] %v1156
        %1221 = vst [vmem:[%s261 + $0xa8] sm:$0xff] %v1157
        %1222 = vst [vmem:[%s261 + $0xb0] sm:$0xff] %v1158
        %1223 = vst [vmem:[%s261 + $0xb8] sm:$0xff] %v1159
        %1224 = vst [vmem:[%s261 + $0xc0] sm:$0xff] %v1160
        %1225 = vst [vmem:[%s261 + $0xc8] sm:$0xff] %v1161
        %1226 = vst [vmem:[%s261 + $0xd0] sm:$0xff] %v1162
        %1227 = vst [vmem:[%s261 + $0xd8] sm:$0xff] %v1163
        %1228 = vst [vmem:[%s261 + $0xe0] sm:$0xff] %v1164
        %1229 = vst [vmem:[%s261 + $0xe8] sm:$0xff] %v1165
        %1230 = vst [vmem:[%s261 + $0xf0] sm:$0xff] %v1166
        %1231 = vst [vmem:[%s261 + $0xf8] sm:$0xff] %v1167
        %1232 = vst [vmem:[%s261 + $0x100] sm:$0xff] %v1168
        %1233 = vst [vmem:[%s261 + $0x108] sm:$0xff] %v1169
        %1234 = vst [vmem:[%s261 + $0x110] sm:$0xff] %v1170
        %1235 = vst [vmem:[%s261 + $0x118] sm:$0xff] %v1171
        %1236 = vst [vmem:[%s261 + $0x120] sm:$0xff] %v1172
        %1237 = vst [vmem:[%s261 + $0x128] sm:$0xff] %v1173
        %1238 = vst [vmem:[%s261 + $0x130] sm:$0xff] %v1174
        %1239 = vst [vmem:[%s261 + $0x138] sm:$0xff] %v1175
        %1240 = vst [vmem:[%s261 + $0x140] sm:$0xff] %v1176
        %1241 = vst [vmem:[%s261 + $0x148] sm:$0xff] %v1177
        %1242 = vst [vmem:[%s261 + $0x150] sm:$0xff] %v1178
        %1243 = vst [vmem:[%s261 + $0x158] sm:$0xff] %v1179
        %1244 = vst [vmem:[%s261 + $0x160] sm:$0xff] %v1180
        %1245 = vst [vmem:[%s261 + $0x168] sm:$0xff] %v1181
        %1246 = vst [vmem:[%s261 + $0x170] sm:$0xff] %v1182
        %1247 = vst [vmem:[%s261 + $0x178] sm:$0xff] %v1183
        %1248 = vst [vmem:[%s261 + $0x180] sm:$0xff] %v1184
        %1249 = vst [vmem:[%s261 + $0x188] sm:$0xff] %v1185
        %1250 = vst [vmem:[%s261 + $0x190] sm:$0xff] %v1186
        %1251 = vst [vmem:[%s261 + $0x198] sm:$0xff] %v1187
        %1252 = vst [vmem:[%s261 + $0x1a0] sm:$0xff] %v1188
        %1253 = vst [vmem:[%s261 + $0x1a8] sm:$0xff] %v1189
        %1254 = vst [vmem:[%s261 + $0x1b0] sm:$0xff] %v1190
        %1255 = vst [vmem:[%s261 + $0x1b8] sm:$0xff] %v1191
        %1256 = vst [vmem:[%s261 + $0x1c0] sm:$0xff] %v1192
        %1257 = vst [vmem:[%s261 + $0x1c8] sm:$0xff] %v1193
        %1258 = vst [vmem:[%s261 + $0x1d0] sm:$0xff] %v1194
        %1259 = vst [vmem:[%s261 + $0x1d8] sm:$0xff] %v1195
        %1260 = vst [vmem:[%s261 + $0x1e0] sm:$0xff] %v1196
        %1261 = vst [vmem:[%s261 + $0x1e8] sm:$0xff] %v1197
        %1262 = vst [vmem:[%s261 + $0x1f0] sm:$0xff] %v1198
        %1263 = vst [vmem:[%s261 + $0x1f8] sm:$0xff] %v1199
      $region36: #{a_call__.22} parent=27 // pred_fallthru
        _
      %s1264 = smul.u32 64, %s20
      %p1265 = scmp.lt.s32.totalorder %s19, 3
      %s1266 = scalar_select %p1265, %s19, 3
      %p1267 = scmp.lt.s32.totalorder %s1264, 63
      %s1268 = scalar_select %p1267, %s1264, 63
      %p1269 = scmp.lt.s32.totalorder %s21, 0
      %s1270 = scalar_select %p1269, %s21, 0
      %s1271 = sadd.s32 %s1270, %s1268
      %s1272 = smul.addr %s1266, 64
      %s1273 = sadd.s32 %s1271, %s1272
      %s1274 = smul.addr %s1273, 8
      %s1275 = scalar_lea.vmem %s2, %s1274
      // Predicated region
      $region37: #{a_call__.22} parent=27 // pred_check
        %p1276 = pneg %p121
      $region38: #{a_call__.22} parent=27 // pred_check_branch
        %1278 = sbr.rel (%p1276) target = $region40
      $region39: #{a_call__.22} parent=27 // pred_region
        %s1279 = smul.u32 64, %s20
      $region40: #{a_call__.22} parent=27 // pred_fallthru
        _
    $region28: #{a_call__.22} parent=5 // pred_fallthru
      _
    %p1280 = scmp.le.s32.totalorder 2, %s8
    // Predicated region
    $region41: #{a_call__.22} parent=5 // pred_check
      %p1281 = pneg %p1280
    $region42: #{a_call__.22} parent=5 // pred_check_branch
      %1283 = sbr.rel (%p1281) target = $region44
    $region43: #{a_call__.22} parent=5 // pred_region
      %s1284 = ssub.s32 %s8, 2
      // Predicated region
      $region45: #{a_call__.22} parent=43 // pred_check
        %p1285 = pneg %p127
      $region46: #{a_call__.22} parent=43 // pred_check_branch
        %1287 = sbr.rel (%p1285) target = $region48
      $region47: #{a_call__.22} parent=43 // pred_region
        %s1288 = smul.u32 64, %s24
        %p1289 = scmp.lt.s32.totalorder %s23, 3
        %s1290 = scalar_select %p1289, %s23, 3
        %p1291 = scmp.lt.s32.totalorder %s1288, 63
        %s1292 = scalar_select %p1291, %s1288, 63
        %p1293 = scmp.lt.s32.totalorder %s25, 0
        %s1294 = scalar_select %p1293, %s25, 0
        %s1295 = sadd.s32 %s1294, %s1292
        %s1296 = smul.addr %s1290, 64
        %s1297 = sadd.s32 %s1295, %s1296
        %s1298 = smul.addr %s1297, 8
        %s1299 = scalar_lea.vmem %s2, %s1298
      $region48: #{a_call__.22} parent=43 // pred_fallthru
        _
    $region44: #{a_call__.22} parent=5 // pred_fallthru
      _
  $region6: #{a_call__.22} parent=0 // loop_footer
    %s12 = sadd.s32 1, %s8
  $region7: #{a_call__.22} parent=0 // loop_footer_branch
    %7 = sbr.rel target = $region3
  $region8: #{a_call__.22} parent=0 // loop_exit
    _

// kernel: a_call__.24
$region0: #{a_call__.24}
  #allocation0 [shape = 'u32[]', space=smem, size = 0x4, offset = 0x4, fixed_abs, tag = 'smem constant byte address 0x4 - core index']
  #allocation1 [shape = 'u32[144,128]{1,0:T(1,128)}', space=vmem, size = 0x12000, scoped, tag = 'internal scratch']
  %s0 = inlined_call_operand.vmem [shape: f32[2048,128], index: 0, kind: input, shape index: {}]
  %s1 = inlined_call_operand.vmem [shape: f32[1,128], index: 1, kind: input, shape index: {}]
  %s2 = inlined_call_operand.vmem [shape: f32[1,128], index: 2, kind: input, shape index: {}]
  %s3 = inlined_call_operand.vmem [shape: f32[2048,128], index: 3, kind: output, shape index: {}]
  %s4 = sld [smem:[#allocation0]]
  $region45: #{a_call__.24} parent=0
    _
  %s6 = ssub.s32 1, %s4
  %s7 = scalar_select 0, %s6, %s4
  loop: start=0, step=1, limit=6
  $region2: #{a_call__.24} parent=0 // loop_pre_header
    _
  $region3: #{a_call__.24} parent=0 // loop_header
    %s9 = sphi 0, %s13
    %p10 = scmp.ge.s32.totalorder %s9, 6
    %s19 = sphi 0, %s21
    %s22 = sphi 0, %s19
    %s23 = sphi 0, %s22
    %s39 = sphi 0, %s23
    %s43 = sphi 0, %s43
    %s45 = sphi 0, %s43
    %s46 = sphi 0, %s45
    %s60 = sphi 0, %s46
    %s64 = sphi 0, %s64
    %s66 = sphi 0, %s64
    %s67 = sphi 0, %s66
    %s81 = sphi 0, %s67
    %s87 = sphi 0, %s89
    %s90 = sphi 0, %s87
    %s91 = sphi 0, %s90
    %s107 = sphi 0, %s91
  $region4: #{a_call__.24} parent=0 // loop_header_branch
    %12 = sbr.rel (%p10) target = $region8
  $region5: #{a_call__.24} parent=0 // loop_body
    %s14 = ssub.s32 %s9, 1
    %s15 = ssub.s32 %s9, 2
    %s16 = sadd.s32 %s9, 1
    %s17 = ssub.s32 %s9, %s16
    %p18 = scmp.eq.s32.totalorder %s17, 0
    %s20 = sadd.s32 %s19, 1
    %s21 = scalar_select %p18, %s19, %s20
    %p24 = pneg %p18
    %p25 = scmp.eq.s32.totalorder %s9, 3
    %p26 = por %p24, %p25
    %p27 = scmp.ne.s32.totalorder %s19, %s22
    %p28 = scmp.eq.s32.totalorder %s9, 0
    %p29 = por %p27, %p28
    %p30 = scmp.ne.s32.totalorder %s19, %s22
    %p31 = scmp.eq.s32.totalorder %s14, 3
    %p32 = por %p30, %p31
    %p33 = scmp.ne.s32.totalorder %s22, %s23
    %p34 = scmp.eq.s32.totalorder %s14, 0
    %p35 = por %p33, %p34
    %p36 = scmp.ne.s32.totalorder %s22, %s23
    %p37 = scmp.eq.s32.totalorder %s15, 3
    %p38 = por %p36, %p37
    %p40 = scmp.ne.s32.totalorder %s23, %s39
    %p41 = scmp.eq.s32.totalorder %s15, 0
    %p42 = por %p40, %p41
    %s44 = sadd.s32 %s43, 1
    %p47 = scmp.eq.s32.totalorder %s9, 3
    %p48 = scmp.ne.s32.totalorder %s43, %s45
    %p49 = scmp.eq.s32.totalorder %s9, 0
    %p50 = por %p48, %p49
    %p51 = scmp.ne.s32.totalorder %s43, %s45
    %p52 = scmp.eq.s32.totalorder %s14, 3
    %p53 = por %p51, %p52
    %p54 = scmp.ne.s32.totalorder %s45, %s46
    %p55 = scmp.eq.s32.totalorder %s14, 0
    %p56 = por %p54, %p55
    %p57 = scmp.ne.s32.totalorder %s45, %s46
    %p58 = scmp.eq.s32.totalorder %s15, 3
    %p59 = por %p57, %p58
    %p61 = scmp.ne.s32.totalorder %s46, %s60
    %p62 = scmp.eq.s32.totalorder %s15, 0
    %p63 = por %p61, %p62
    %s65 = sadd.s32 %s64, 1
    %p68 = scmp.eq.s32.totalorder %s9, 3
    %p69 = scmp.ne.s32.totalorder %s64, %s66
    %p70 = scmp.eq.s32.totalorder %s9, 0
    %p71 = por %p69, %p70
    %p72 = scmp.ne.s32.totalorder %s64, %s66
    %p73 = scmp.eq.s32.totalorder %s14, 3
    %p74 = por %p72, %p73
    %p75 = scmp.ne.s32.totalorder %s66, %s67
    %p76 = scmp.eq.s32.totalorder %s14, 0
    %p77 = por %p75, %p76
    %p78 = scmp.ne.s32.totalorder %s66, %s67
    %p79 = scmp.eq.s32.totalorder %s15, 3
    %p80 = por %p78, %p79
    %p82 = scmp.ne.s32.totalorder %s67, %s81
    %p83 = scmp.eq.s32.totalorder %s15, 0
    %p84 = por %p82, %p83
    %s85 = ssub.s32 %s9, %s16
    %p86 = scmp.eq.s32.totalorder %s85, 0
    %s88 = sadd.s32 %s87, 1
    %s89 = scalar_select %p86, %s87, %s88
    %p92 = pneg %p86
    %p93 = scmp.eq.s32.totalorder %s9, 3
    %p94 = por %p92, %p93
    %p95 = scmp.ne.s32.totalorder %s87, %s90
    %p96 = scmp.eq.s32.totalorder %s9, 0
    %p97 = por %p95, %p96
    %p98 = scmp.ne.s32.totalorder %s87, %s90
    %p99 = scmp.eq.s32.totalorder %s14, 3
    %p100 = por %p98, %p99
    %p101 = scmp.ne.s32.totalorder %s90, %s91
    %p102 = scmp.eq.s32.totalorder %s14, 0
    %p103 = por %p101, %p102
    %p104 = scmp.ne.s32.totalorder %s90, %s91
    %p105 = scmp.eq.s32.totalorder %s15, 3
    %p106 = por %p104, %p105
    %p108 = scmp.ne.s32.totalorder %s91, %s107
    %p109 = scmp.eq.s32.totalorder %s15, 0
    %p110 = por %p108, %p109
    %p111 = scmp.le.s32.totalorder 1, %s9
    %p112 = scmp.lt.s32.totalorder %s9, 5
    %p113 = pnand %p111, %p112
    %p114 = pneg %p113
    // Predicated region
    $region9: #{a_call__.24} parent=5 // pred_check
      _
    $region10: #{a_call__.24} parent=5 // pred_check_branch
      %116 = sbr.rel (%p113) target = $region12
    $region11: #{a_call__.24} parent=5 // pred_region
      %s117 = ssub.s32 %s9, 1
      // Predicated region
      $region13: #{a_call__.24} parent=11 // pred_check
        %p118 = pneg %p56
      $region14: #{a_call__.24} parent=11 // pred_check_branch
        %120 = sbr.rel (%p118) target = $region16
      $region15: #{a_call__.24} parent=11 // pred_region
        _
      $region16: #{a_call__.24} parent=11 // pred_fallthru
        _
      // Predicated region
      $region17: #{a_call__.24} parent=11 // pred_check
        %p121 = pneg %p77
      $region18: #{a_call__.24} parent=11 // pred_check_branch
        %123 = sbr.rel (%p121) target = $region20
      $region19: #{a_call__.24} parent=11 // pred_region
        _
      $region20: #{a_call__.24} parent=11 // pred_fallthru
        _
    $region12: #{a_call__.24} parent=5 // pred_fallthru
      _
    %p124 = scmp.lt.s32.totalorder %s9, 4
    // Predicated region
    $region21: #{a_call__.24} parent=5 // pred_check
      %p125 = pneg %p124
    $region22: #{a_call__.24} parent=5 // pred_check_branch
      %127 = sbr.rel (%p125) target = $region24
    $region23: #{a_call__.24} parent=5 // pred_region
      // Predicated region
      $region25: #{a_call__.24} parent=23 // pred_check
        %p128 = pneg %p29
      $region26: #{a_call__.24} parent=23 // pred_check_branch
        %130 = sbr.rel (%p128) target = $region28
      $region27: #{a_call__.24} parent=23 // pred_region
        %s131 = smul.u32 64, %s9
        %p132 = scmp.lt.s32.totalorder %s131, 255
        %s133 = scalar_select %p132, %s131, 255
        %s134 = smul.addr %s133, 8
        %s135 = scalar_lea.vmem %s0, %s134
        %s136 = smul.u32 64, %s9
      $region28: #{a_call__.24} parent=23 // pred_fallthru
        _
    $region24: #{a_call__.24} parent=5 // pred_fallthru
      _
    %p137 = scmp.le.s32.totalorder 1, %s9
    %p138 = scmp.lt.s32.totalorder %s9, 5
    %p139 = pnand %p137, %p138
    %p140 = pneg %p139
    // Predicated region
    $region29: #{a_call__.24} parent=5 // pred_check
      _
    $region30: #{a_call__.24} parent=5 // pred_check_branch
      %142 = sbr.rel (%p139) target = $region32
    $region31: #{a_call__.24} parent=5 // pred_region
      %s143 = ssub.s32 %s9, 1
      %s144 = smul.u32 64, %s14
      %p145 = scmp.lt.s32.totalorder %s144, 255
      %s146 = scalar_select %p145, %s144, 255
      %s147 = smul.addr %s146, 8
      %s148 = scalar_lea.vmem %s0, %s147
      %p149 = pneg %p35
      %p150 = pneg %p32
      %p151 = pneg %p56
      %p152 = pneg %p53
      %p153 = pneg %p77
      %p154 = pneg %p74
      %p155 = pneg %p103
      %p156 = pneg %p100
      %s157 = smul.u32 64, %s14
      %p158 = scmp.lt.s32.totalorder %s157, 255
      %s159 = scalar_select %p158, %s157, 255
      %s160 = smul.addr %s159, 8
      %s161 = scalar_lea.vmem %s3, %s160
      %s162 = smul.u32 64, %s14
      %p163 = scmp.lt.s32.totalorder %s162, 255
      %s164 = scalar_select %p163, %s162, 255
      %s165 = smul.addr %s164, 8
      %s166 = scalar_lea.vmem %s0, %s165
      %s167 = smul.u32 64, %s14
      %s168 = smul.u32 64, %s14
      %p169 = scmp.lt.s32.totalorder %s168, 255
      %s170 = scalar_select %p169, %s168, 255
      %s171 = smul.addr %s170, 8
      %s172 = scalar_lea.vmem %s3, %s171
      %s173 = smul.u32 64, %s14
      %v174 = vld [vmem:[%s166] sm:$0xff]
      %v175 = vld [vmem:[%s166 + $0x8] sm:$0xff]
      %v176 = vld [vmem:[%s166 + $0x10] sm:$0xff]
      %v177 = vld [vmem:[%s166 + $0x18] sm:$0xff]
      %v178 = vld [vmem:[%s166 + $0x20] sm:$0xff]
      %v179 = vld [vmem:[%s166 + $0x28] sm:$0xff]
      %v180 = vld [vmem:[%s166 + $0x30] sm:$0xff]
      %v181 = vld [vmem:[%s166 + $0x38] sm:$0xff]
      %v182 = vld [vmem:[%s166 + $0x40] sm:$0xff]
      %v183 = vld [vmem:[%s166 + $0x48] sm:$0xff]
      %v184 = vld [vmem:[%s166 + $0x50] sm:$0xff]
      %v185 = vld [vmem:[%s166 + $0x58] sm:$0xff]
      %v186 = vld [vmem:[%s166 + $0x60] sm:$0xff]
      %v187 = vld [vmem:[%s166 + $0x68] sm:$0xff]
      %v188 = vld [vmem:[%s166 + $0x70] sm:$0xff]
      %v189 = vld [vmem:[%s166 + $0x78] sm:$0xff]
      %v190 = vld [vmem:[%s166 + $0x80] sm:$0xff]
      %v191 = vld [vmem:[%s166 + $0x88] sm:$0xff]
      %v192 = vld [vmem:[%s166 + $0x90] sm:$0xff]
      %v193 = vld [vmem:[%s166 + $0x98] sm:$0xff]
      %v194 = vld [vmem:[%s166 + $0xa0] sm:$0xff]
      %v195 = vld [vmem:[%s166 + $0xa8] sm:$0xff]
      %v196 = vld [vmem:[%s166 + $0xb0] sm:$0xff]
      %v197 = vld [vmem:[%s166 + $0xb8] sm:$0xff]
      %v198 = vld [vmem:[%s166 + $0xc0] sm:$0xff]
      %v199 = vld [vmem:[%s166 + $0xc8] sm:$0xff]
      %v200 = vld [vmem:[%s166 + $0xd0] sm:$0xff]
      %v201 = vld [vmem:[%s166 + $0xd8] sm:$0xff]
      %v202 = vld [vmem:[%s166 + $0xe0] sm:$0xff]
      %v203 = vld [vmem:[%s166 + $0xe8] sm:$0xff]
      %v204 = vld [vmem:[%s166 + $0xf0] sm:$0xff]
      %v205 = vld [vmem:[%s166 + $0xf8] sm:$0xff]
      %v206 = vld [vmem:[%s166 + $0x100] sm:$0xff]
      %v207 = vld [vmem:[%s166 + $0x108] sm:$0xff]
      %v208 = vld [vmem:[%s166 + $0x110] sm:$0xff]
      %v209 = vld [vmem:[%s166 + $0x118] sm:$0xff]
      %v210 = vld [vmem:[%s166 + $0x120] sm:$0xff]
      %v211 = vld [vmem:[%s166 + $0x128] sm:$0xff]
      %v212 = vld [vmem:[%s166 + $0x130] sm:$0xff]
      %v213 = vld [vmem:[%s166 + $0x138] sm:$0xff]
      %v214 = vld [vmem:[%s166 + $0x140] sm:$0xff]
      %v215 = vld [vmem:[%s166 + $0x148] sm:$0xff]
      %v216 = vld [vmem:[%s166 + $0x150] sm:$0xff]
      %v217 = vld [vmem:[%s166 + $0x158] sm:$0xff]
      %v218 = vld [vmem:[%s166 + $0x160] sm:$0xff]
      %v219 = vld [vmem:[%s166 + $0x168] sm:$0xff]
      %v220 = vld [vmem:[%s166 + $0x170] sm:$0xff]
      %v221 = vld [vmem:[%s166 + $0x178] sm:$0xff]
      %v222 = vld [vmem:[%s166 + $0x180] sm:$0xff]
      %v223 = vld [vmem:[%s166 + $0x188] sm:$0xff]
      %v224 = vld [vmem:[%s166 + $0x190] sm:$0xff]
      %v225 = vld [vmem:[%s166 + $0x198] sm:$0xff]
      %v226 = vld [vmem:[%s166 + $0x1a0] sm:$0xff]
      %v227 = vld [vmem:[%s166 + $0x1a8] sm:$0xff]
      %v228 = vld [vmem:[%s166 + $0x1b0] sm:$0xff]
      %v229 = vld [vmem:[%s166 + $0x1b8] sm:$0xff]
      %v230 = vld [vmem:[%s166 + $0x1c0] sm:$0xff]
      %v231 = vld [vmem:[%s166 + $0x1c8] sm:$0xff]
      %v232 = vld [vmem:[%s166 + $0x1d0] sm:$0xff]
      %v233 = vld [vmem:[%s166 + $0x1d8] sm:$0xff]
      %v234 = vld [vmem:[%s166 + $0x1e0] sm:$0xff]
      %v235 = vld [vmem:[%s166 + $0x1e8] sm:$0xff]
      %v236 = vld [vmem:[%s166 + $0x1f0] sm:$0xff]
      %v237 = vld [vmem:[%s166 + $0x1f8] sm:$0xff]
      %v238 = vld [vmem:[%s1] sm:$0x1]
      %v240 = vlaneseq
      %v241 = vshrl.u32 %v240, 7
      %v242 = vsub.s32 0, %v241
      %v243 = vrot.slane %v238, %v242
      %v245 = vmul.f32 %v174, %v243
      %v246 = vmul.f32 %v175, %v243
      %v247 = vmul.f32 %v176, %v243
      %v248 = vmul.f32 %v177, %v243
      %v249 = vmul.f32 %v178, %v243
      %v250 = vmul.f32 %v179, %v243
      %v251 = vmul.f32 %v180, %v243
      %v252 = vmul.f32 %v181, %v243
      %v253 = vmul.f32 %v182, %v243
      %v254 = vmul.f32 %v183, %v243
      %v255 = vmul.f32 %v184, %v243
      %v256 = vmul.f32 %v185, %v243
      %v257 = vmul.f32 %v186, %v243
      %v258 = vmul.f32 %v187, %v243
      %v259 = vmul.f32 %v188, %v243
      %v260 = vmul.f32 %v189, %v243
      %v261 = vmul.f32 %v190, %v243
      %v262 = vmul.f32 %v191, %v243
      %v263 = vmul.f32 %v192, %v243
      %v264 = vmul.f32 %v193, %v243
      %v265 = vmul.f32 %v194, %v243
      %v266 = vmul.f32 %v195, %v243
      %v267 = vmul.f32 %v196, %v243
      %v268 = vmul.f32 %v197, %v243
      %v269 = vmul.f32 %v198, %v243
      %v270 = vmul.f32 %v199, %v243
      %v271 = vmul.f32 %v200, %v243
      %v272 = vmul.f32 %v201, %v243
      %v273 = vmul.f32 %v202, %v243
      %v274 = vmul.f32 %v203, %v243
      %v275 = vmul.f32 %v204, %v243
      %v276 = vmul.f32 %v205, %v243
      %v277 = vmul.f32 %v206, %v243
      %v278 = vmul.f32 %v207, %v243
      %v279 = vmul.f32 %v208, %v243
      %v280 = vmul.f32 %v209, %v243
      %v281 = vmul.f32 %v210, %v243
      %v282 = vmul.f32 %v211, %v243
      %v283 = vmul.f32 %v212, %v243
      %v284 = vmul.f32 %v213, %v243
      %v285 = vmul.f32 %v214, %v243
      %v286 = vmul.f32 %v215, %v243
      %v287 = vmul.f32 %v216, %v243
      %v288 = vmul.f32 %v217, %v243
      %v289 = vmul.f32 %v218, %v243
      %v290 = vmul.f32 %v219, %v243
      %v291 = vmul.f32 %v220, %v243
      %v292 = vmul.f32 %v221, %v243
      %v293 = vmul.f32 %v222, %v243
      %v294 = vmul.f32 %v223, %v243
      %v295 = vmul.f32 %v224, %v243
      %v296 = vmul.f32 %v225, %v243
      %v297 = vmul.f32 %v226, %v243
      %v298 = vmul.f32 %v227, %v243
      %v299 = vmul.f32 %v228, %v243
      %v300 = vmul.f32 %v229, %v243
      %v301 = vmul.f32 %v230, %v243
      %v302 = vmul.f32 %v231, %v243
      %v303 = vmul.f32 %v232, %v243
      %v304 = vmul.f32 %v233, %v243
      %v305 = vmul.f32 %v234, %v243
      %v306 = vmul.f32 %v235, %v243
      %v307 = vmul.f32 %v236, %v243
      %v308 = vmul.f32 %v237, %v243
      %v309 = vld [vmem:[%s2] sm:$0x1]
      %v311 = vlaneseq
      %v312 = vshrl.u32 %v311, 7
      %v313 = vsub.s32 0, %v312
      %v314 = vrot.slane %v309, %v313
      %v316 = vadd.f32 %v245, %v314
      %v317 = vadd.f32 %v246, %v314
      %v318 = vadd.f32 %v247, %v314
      %v319 = vadd.f32 %v248, %v314
      %v320 = vadd.f32 %v249, %v314
      %v321 = vadd.f32 %v250, %v314
      %v322 = vadd.f32 %v251, %v314
      %v323 = vadd.f32 %v252, %v314
      %v324 = vadd.f32 %v253, %v314
      %v325 = vadd.f32 %v254, %v314
      %v326 = vadd.f32 %v255, %v314
      %v327 = vadd.f32 %v256, %v314
      %v328 = vadd.f32 %v257, %v314
      %v329 = vadd.f32 %v258, %v314
      %v330 = vadd.f32 %v259, %v314
      %v331 = vadd.f32 %v260, %v314
      %v332 = vadd.f32 %v261, %v314
      %v333 = vadd.f32 %v262, %v314
      %v334 = vadd.f32 %v263, %v314
      %v335 = vadd.f32 %v264, %v314
      %v336 = vadd.f32 %v265, %v314
      %v337 = vadd.f32 %v266, %v314
      %v338 = vadd.f32 %v267, %v314
      %v339 = vadd.f32 %v268, %v314
      %v340 = vadd.f32 %v269, %v314
      %v341 = vadd.f32 %v270, %v314
      %v342 = vadd.f32 %v271, %v314
      %v343 = vadd.f32 %v272, %v314
      %v344 = vadd.f32 %v273, %v314
      %v345 = vadd.f32 %v274, %v314
      %v346 = vadd.f32 %v275, %v314
      %v347 = vadd.f32 %v276, %v314
      %v348 = vadd.f32 %v277, %v314
      %v349 = vadd.f32 %v278, %v314
      %v350 = vadd.f32 %v279, %v314
      %v351 = vadd.f32 %v280, %v314
      %v352 = vadd.f32 %v281, %v314
      %v353 = vadd.f32 %v282, %v314
      %v354 = vadd.f32 %v283, %v314
      %v355 = vadd.f32 %v284, %v314
      %v356 = vadd.f32 %v285, %v314
      %v357 = vadd.f32 %v286, %v314
      %v358 = vadd.f32 %v287, %v314
      %v359 = vadd.f32 %v288, %v314
      %v360 = vadd.f32 %v289, %v314
      %v361 = vadd.f32 %v290, %v314
      %v362 = vadd.f32 %v291, %v314
      %v363 = vadd.f32 %v292, %v314
      %v364 = vadd.f32 %v293, %v314
      %v365 = vadd.f32 %v294, %v314
      %v366 = vadd.f32 %v295, %v314
      %v367 = vadd.f32 %v296, %v314
      %v368 = vadd.f32 %v297, %v314
      %v369 = vadd.f32 %v298, %v314
      %v370 = vadd.f32 %v299, %v314
      %v371 = vadd.f32 %v300, %v314
      %v372 = vadd.f32 %v301, %v314
      %v373 = vadd.f32 %v302, %v314
      %v374 = vadd.f32 %v303, %v314
      %v375 = vadd.f32 %v304, %v314
      %v376 = vadd.f32 %v305, %v314
      %v377 = vadd.f32 %v306, %v314
      %v378 = vadd.f32 %v307, %v314
      %v379 = vadd.f32 %v308, %v314
      %v380 = vmax.f32 %v316, 0.0
      %v381 = vmax.f32 %v317, 0.0
      %v382 = vmax.f32 %v318, 0.0
      %v383 = vmax.f32 %v319, 0.0
      %v384 = vmax.f32 %v320, 0.0
      %v385 = vmax.f32 %v321, 0.0
      %v386 = vmax.f32 %v322, 0.0
      %v387 = vmax.f32 %v323, 0.0
      %v388 = vmax.f32 %v324, 0.0
      %v389 = vmax.f32 %v325, 0.0
      %v390 = vmax.f32 %v326, 0.0
      %v391 = vmax.f32 %v327, 0.0
      %v392 = vmax.f32 %v328, 0.0
      %v393 = vmax.f32 %v329, 0.0
      %v394 = vmax.f32 %v330, 0.0
      %v395 = vmax.f32 %v331, 0.0
      %v396 = vmax.f32 %v332, 0.0
      %v397 = vmax.f32 %v333, 0.0
      %v398 = vmax.f32 %v334, 0.0
      %v399 = vmax.f32 %v335, 0.0
      %v400 = vmax.f32 %v336, 0.0
      %v401 = vmax.f32 %v337, 0.0
      %v402 = vmax.f32 %v338, 0.0
      %v403 = vmax.f32 %v339, 0.0
      %v404 = vmax.f32 %v340, 0.0
      %v405 = vmax.f32 %v341, 0.0
      %v406 = vmax.f32 %v342, 0.0
      %v407 = vmax.f32 %v343, 0.0
      %v408 = vmax.f32 %v344, 0.0
      %v409 = vmax.f32 %v345, 0.0
      %v410 = vmax.f32 %v346, 0.0
      %v411 = vmax.f32 %v347, 0.0
      %v412 = vmax.f32 %v348, 0.0
      %v413 = vmax.f32 %v349, 0.0
      %v414 = vmax.f32 %v350, 0.0
      %v415 = vmax.f32 %v351, 0.0
      %v416 = vmax.f32 %v352, 0.0
      %v417 = vmax.f32 %v353, 0.0
      %v418 = vmax.f32 %v354, 0.0
      %v419 = vmax.f32 %v355, 0.0
      %v420 = vmax.f32 %v356, 0.0
      %v421 = vmax.f32 %v357, 0.0
      %v422 = vmax.f32 %v358, 0.0
      %v423 = vmax.f32 %v359, 0.0
      %v424 = vmax.f32 %v360, 0.0
      %v425 = vmax.f32 %v361, 0.0
      %v426 = vmax.f32 %v362, 0.0
      %v427 = vmax.f32 %v363, 0.0
      %v428 = vmax.f32 %v364, 0.0
      %v429 = vmax.f32 %v365, 0.0
      %v430 = vmax.f32 %v366, 0.0
      %v431 = vmax.f32 %v367, 0.0
      %v432 = vmax.f32 %v368, 0.0
      %v433 = vmax.f32 %v369, 0.0
      %v434 = vmax.f32 %v370, 0.0
      %v435 = vmax.f32 %v371, 0.0
      %v436 = vmax.f32 %v372, 0.0
      %v437 = vmax.f32 %v373, 0.0
      %v438 = vmax.f32 %v374, 0.0
      %v439 = vmax.f32 %v375, 0.0
      %v440 = vmax.f32 %v376, 0.0
      %v441 = vmax.f32 %v377, 0.0
      %v442 = vmax.f32 %v378, 0.0
      %v443 = vmax.f32 %v379, 0.0
      %444 = vst [vmem:[%s172] sm:$0xff] %v380
      %445 = vst [vmem:[%s172 + $0x8] sm:$0xff] %v381
      %446 = vst [vmem:[%s172 + $0x10] sm:$0xff] %v382
      %447 = vst [vmem:[%s172 + $0x18] sm:$0xff] %v383
      %448 = vst [vmem:[%s172 + $0x20] sm:$0xff] %v384
      %449 = vst [vmem:[%s172 + $0x28] sm:$0xff] %v385
      %450 = vst [vmem:[%s172 + $0x30] sm:$0xff] %v386
      %451 = vst [vmem:[%s172 + $0x38] sm:$0xff] %v387
      %452 = vst [vmem:[%s172 + $0x40] sm:$0xff] %v388
      %453 = vst [vmem:[%s172 + $0x48] sm:$0xff] %v389
      %454 = vst [vmem:[%s172 + $0x50] sm:$0xff] %v390
      %455 = vst [vmem:[%s172 + $0x58] sm:$0xff] %v391
      %456 = vst [vmem:[%s172 + $0x60] sm:$0xff] %v392
      %457 = vst [vmem:[%s172 + $0x68] sm:$0xff] %v393
      %458 = vst [vmem:[%s172 + $0x70] sm:$0xff] %v394
      %459 = vst [vmem:[%s172 + $0x78] sm:$0xff] %v395
      %460 = vst [vmem:[%s172 + $0x80] sm:$0xff] %v396
      %461 = vst [vmem:[%s172 + $0x88] sm:$0xff] %v397
      %462 = vst [vmem:[%s172 + $0x90] sm:$0xff] %v398
      %463 = vst [vmem:[%s172 + $0x98] sm:$0xff] %v399
      %464 = vst [vmem:[%s172 + $0xa0] sm:$0xff] %v400
      %465 = vst [vmem:[%s172 + $0xa8] sm:$0xff] %v401
      %466 = vst [vmem:[%s172 + $0xb0] sm:$0xff] %v402
      %467 = vst [vmem:[%s172 + $0xb8] sm:$0xff] %v403
      %468 = vst [vmem:[%s172 + $0xc0] sm:$0xff] %v404
      %469 = vst [vmem:[%s172 + $0xc8] sm:$0xff] %v405
      %470 = vst [vmem:[%s172 + $0xd0] sm:$0xff] %v406
      %471 = vst [vmem:[%s172 + $0xd8] sm:$0xff] %v407
      %472 = vst [vmem:[%s172 + $0xe0] sm:$0xff] %v408
      %473 = vst [vmem:[%s172 + $0xe8] sm:$0xff] %v409
      %474 = vst [vmem:[%s172 + $0xf0] sm:$0xff] %v410
      %475 = vst [vmem:[%s172 + $0xf8] sm:$0xff] %v411
      %476 = vst [vmem:[%s172 + $0x100] sm:$0xff] %v412
      %477 = vst [vmem:[%s172 + $0x108] sm:$0xff] %v413
      %478 = vst [vmem:[%s172 + $0x110] sm:$0xff] %v414
      %479 = vst [vmem:[%s172 + $0x118] sm:$0xff] %v415
      %480 = vst [vmem:[%s172 + $0x120] sm:$0xff] %v416
      %481 = vst [vmem:[%s172 + $0x128] sm:$0xff] %v417
      %482 = vst [vmem:[%s172 + $0x130] sm:$0xff] %v418
      %483 = vst [vmem:[%s172 + $0x138] sm:$0xff] %v419
      %484 = vst [vmem:[%s172 + $0x140] sm:$0xff] %v420
      %485 = vst [vmem:[%s172 + $0x148] sm:$0xff] %v421
      %486 = vst [vmem:[%s172 + $0x150] sm:$0xff] %v422
      %487 = vst [vmem:[%s172 + $0x158] sm:$0xff] %v423
      %488 = vst [vmem:[%s172 + $0x160] sm:$0xff] %v424
      %489 = vst [vmem:[%s172 + $0x168] sm:$0xff] %v425
      %490 = vst [vmem:[%s172 + $0x170] sm:$0xff] %v426
      %491 = vst [vmem:[%s172 + $0x178] sm:$0xff] %v427
      %492 = vst [vmem:[%s172 + $0x180] sm:$0xff] %v428
      %493 = vst [vmem:[%s172 + $0x188] sm:$0xff] %v429
      %494 = vst [vmem:[%s172 + $0x190] sm:$0xff] %v430
      %495 = vst [vmem:[%s172 + $0x198] sm:$0xff] %v431
      %496 = vst [vmem:[%s172 + $0x1a0] sm:$0xff] %v432
      %497 = vst [vmem:[%s172 + $0x1a8] sm:$0xff] %v433
      %498 = vst [vmem:[%s172 + $0x1b0] sm:$0xff] %v434
      %499 = vst [vmem:[%s172 + $0x1b8] sm:$0xff] %v435
      %500 = vst [vmem:[%s172 + $0x1c0] sm:$0xff] %v436
      %501 = vst [vmem:[%s172 + $0x1c8] sm:$0xff] %v437
      %502 = vst [vmem:[%s172 + $0x1d0] sm:$0xff] %v438
      %503 = vst [vmem:[%s172 + $0x1d8] sm:$0xff] %v439
      %504 = vst [vmem:[%s172 + $0x1e0] sm:$0xff] %v440
      %505 = vst [vmem:[%s172 + $0x1e8] sm:$0xff] %v441
      %506 = vst [vmem:[%s172 + $0x1f0] sm:$0xff] %v442
      %507 = vst [vmem:[%s172 + $0x1f8] sm:$0xff] %v443
      %s508 = smul.u32 64, %s14
      %p509 = scmp.lt.s32.totalorder %s508, 255
      %s510 = scalar_select %p509, %s508, 255
      %s511 = smul.addr %s510, 8
      %s512 = scalar_lea.vmem %s3, %s511
      // Predicated region
      $region33: #{a_call__.24} parent=31 // pred_check
        %p513 = pneg %p100
      $region34: #{a_call__.24} parent=31 // pred_check_branch
        %515 = sbr.rel (%p513) target = $region36
      $region35: #{a_call__.24} parent=31 // pred_region
        %s516 = smul.u32 64, %s14
      $region36: #{a_call__.24} parent=31 // pred_fallthru
        _
    $region32: #{a_call__.24} parent=5 // pred_fallthru
      _
    %p517 = scmp.le.s32.totalorder 2, %s9
    // Predicated region
    $region37: #{a_call__.24} parent=5 // pred_check
      %p518 = pneg %p517
    $region38: #{a_call__.24} parent=5 // pred_check_branch
      %520 = sbr.rel (%p518) target = $region40
    $region39: #{a_call__.24} parent=5 // pred_region
      %s521 = ssub.s32 %s9, 2
      // Predicated region
      $region41: #{a_call__.24} parent=39 // pred_check
        %p522 = pneg %p106
      $region42: #{a_call__.24} parent=39 // pred_check_branch
        %524 = sbr.rel (%p522) target = $region44
      $region43: #{a_call__.24} parent=39 // pred_region
        %s525 = smul.u32 64, %s15
        %p526 = scmp.lt.s32.totalorder %s525, 255
        %s527 = scalar_select %p526, %s525, 255
        %s528 = smul.addr %s527, 8
        %s529 = scalar_lea.vmem %s3, %s528
      $region44: #{a_call__.24} parent=39 // pred_fallthru
        _
    $region40: #{a_call__.24} parent=5 // pred_fallthru
      _
  $region6: #{a_call__.24} parent=0 // loop_footer
    %s13 = sadd.s32 1, %s9
  $region7: #{a_call__.24} parent=0 // loop_footer_branch
    %8 = sbr.rel target = $region3
  $region8: #{a_call__.24} parent=0 // loop_exit
    _

// kernel: a_call__.25
$region0: #{a_call__.25}
  #allocation0 [shape = 'u32[]', space=smem, size = 0x4, offset = 0x4, fixed_abs, tag = 'smem constant byte address 0x4 - core index']
  #allocation1 [shape = 'u32[144,128]{1,0:T(1,128)}', space=vmem, size = 0x12000, scoped, tag = 'internal scratch']
  #allocation2 [shape = 'f32[512,128]{1,0:T(8,128)}', space=vmem, size = 0x40000, scoped, tag = 'scratch operand']
  %s0 = inlined_call_operand.vmem [shape: bf16[4,2048,128], index: 0, kind: input, shape index: {}]
  %s1 = inlined_call_operand.vmem [shape: bf16[4,128,128], index: 1, kind: input, shape index: {}]
  %s2 = inlined_call_operand.vmem [shape: f32[4,2048,128], index: 2, kind: output, shape index: {}]
  %s3 = sld [smem:[#allocation0]]
  $region49: #{a_call__.25} parent=0
    _
  %s5 = ssub.s32 1, %s3
  %s6 = scalar_select 0, %s5, %s3
  loop: start=0, step=1, limit=18
  $region2: #{a_call__.25} parent=0 // loop_pre_header
    _
  $region3: #{a_call__.25} parent=0 // loop_header
    %s8 = sphi 0, %s12
    %p9 = scmp.ge.s32.totalorder %s8, 18
    %s15 = sphi 0, %s41
    %s16 = sphi 0, %s37
    %s17 = sphi 0, %s33
    %s18 = sphi 0, %s29
    %s19 = sphi 0, %s15
    %s20 = sphi 0, %s16
    %s21 = sphi 0, %s17
    %s22 = sphi 0, %s18
    %s23 = sphi 0, %s19
    %s24 = sphi 0, %s20
    %s25 = sphi 0, %s21
    %s26 = sphi 0, %s22
    %s48 = sphi 0, %s50
    %s51 = sphi 0, %s48
    %s52 = sphi 0, %s51
    %s68 = sphi 0, %s52
    %s78 = sphi 0, %s80
    %s81 = sphi 0, %s78
    %s82 = sphi 0, %s81
    %s98 = sphi 0, %s82
    %s108 = sphi 0, %s110
    %s111 = sphi 0, %s108
    %s112 = sphi 0, %s111
    %s128 = sphi 0, %s112
  $region4: #{a_call__.25} parent=0 // loop_header_branch
    %11 = sbr.rel (%p9) target = $region8
  $region5: #{a_call__.25} parent=0 // loop_body
    %s13 = ssub.s32 %s8, 1
    %s14 = ssub.s32 %s8, 2
    %s27 = sadd.s32 1, %s18
    %p28 = scmp.ge.s32.totalorder %s27, 1
    %s29 = scalar_select %p28, 0, %s27
    %s30 = sadd.s32 1, %s17
    %s31 = scalar_select %p28, %s30, %s17
    %p32 = scmp.ge.s32.totalorder %s31, 1
    %s33 = scalar_select %p32, 0, %s31
    %s34 = sadd.s32 1, %s16
    %s35 = scalar_select %p32, %s34, %s16
    %p36 = scmp.ge.s32.totalorder %s35, 4
    %s37 = scalar_select %p36, 0, %s35
    %s38 = sadd.s32 1, %s15
    %s39 = scalar_select %p36, %s38, %s15
    %p40 = scmp.ge.s32.totalorder %s39, 4
    %s41 = scalar_select %p40, 0, %s39
    %s42 = ssub.s32 %s15, %s41
    %s43 = ssub.s32 %s16, %s37
    %s44 = sor.u32 %s42, %s43
    %s45 = ssub.s32 %s18, %s29
    %s46 = sor.u32 %s44, %s45
    %p47 = scmp.eq.s32.totalorder %s46, 0
    %s49 = sadd.s32 %s48, 1
    %s50 = scalar_select %p47, %s48, %s49
    %p53 = pneg %p47
    %p54 = scmp.eq.s32.totalorder %s8, 15
    %p55 = por %p53, %p54
    %p56 = scmp.ne.s32.totalorder %s48, %s51
    %p57 = scmp.eq.s32.totalorder %s8, 0
    %p58 = por %p56, %p57
    %p59 = scmp.ne.s32.totalorder %s48, %s51
    %p60 = scmp.eq.s32.totalorder %s13, 15
    %p61 = por %p59, %p60
    %p62 = scmp.ne.s32.totalorder %s51, %s52
    %p63 = scmp.eq.s32.totalorder %s13, 0
    %p64 = por %p62, %p63
    %p65 = scmp.ne.s32.totalorder %s51, %s52
    %p66 = scmp.eq.s32.totalorder %s14, 15
    %p67 = por %p65, %p66
    %p69 = scmp.ne.s32.totalorder %s52, %s68
    %p70 = scmp.eq.s32.totalorder %s14, 0
    %p71 = por %p69, %p70
    %s72 = ssub.s32 %s15, %s41
    %s73 = ssub.s32 %s18, %s29
    %s74 = sor.u32 %s72, %s73
    %s75 = ssub.s32 %s17, %s33
    %s76 = sor.u32 %s74, %s75
    %p77 = scmp.eq.s32.totalorder %s76, 0
    %s79 = sadd.s32 %s78, 1
    %s80 = scalar_select %p77, %s78, %s79
    %p83 = pneg %p77
    %p84 = scmp.eq.s32.totalorder %s8, 15
    %p85 = por %p83, %p84
    %p86 = scmp.ne.s32.totalorder %s78, %s81
    %p87 = scmp.eq.s32.totalorder %s8, 0
    %p88 = por %p86, %p87
    %p89 = scmp.ne.s32.totalorder %s78, %s81
    %p90 = scmp.eq.s32.totalorder %s13, 15
    %p91 = por %p89, %p90
    %p92 = scmp.ne.s32.totalorder %s81, %s82
    %p93 = scmp.eq.s32.totalorder %s13, 0
    %p94 = por %p92, %p93
    %p95 = scmp.ne.s32.totalorder %s81, %s82
    %p96 = scmp.eq.s32.totalorder %s14, 15
    %p97 = por %p95, %p96
    %p99 = scmp.ne.s32.totalorder %s82, %s98
    %p100 = scmp.eq.s32.totalorder %s14, 0
    %p101 = por %p99, %p100
    %s102 = ssub.s32 %s15, %s41
    %s103 = ssub.s32 %s16, %s37
    %s104 = sor.u32 %s102, %s103
    %s105 = ssub.s32 %s17, %s33
    %s106 = sor.u32 %s104, %s105
    %p107 = scmp.eq.s32.totalorder %s106, 0
    %s109 = sadd.s32 %s108, 1
    %s110 = scalar_select %p107, %s108, %s109
    %p113 = pneg %p107
    %p114 = scmp.eq.s32.totalorder %s8, 15
    %p115 = por %p113, %p114
    %p116 = scmp.ne.s32.totalorder %s108, %s111
    %p117 = scmp.eq.s32.totalorder %s8, 0
    %p118 = por %p116, %p117
    %p119 = scmp.ne.s32.totalorder %s108, %s111
    %p120 = scmp.eq.s32.totalorder %s13, 15
    %p121 = por %p119, %p120
    %p122 = scmp.ne.s32.totalorder %s111, %s112
    %p123 = scmp.eq.s32.totalorder %s13, 0
    %p124 = por %p122, %p123
    %p125 = scmp.ne.s32.totalorder %s111, %s112
    %p126 = scmp.eq.s32.totalorder %s14, 15
    %p127 = por %p125, %p126
    %p129 = scmp.ne.s32.totalorder %s112, %s128
    %p130 = scmp.eq.s32.totalorder %s14, 0
    %p131 = por %p129, %p130
    %p132 = scmp.le.s32.totalorder 1, %s8
    %p133 = scmp.lt.s32.totalorder %s8, 17
    %p134 = pnand %p132, %p133
    %p135 = pneg %p134
    // Predicated region
    $region9: #{a_call__.25} parent=5 // pred_check
      _
    $region10: #{a_call__.25} parent=5 // pred_check_branch
      %137 = sbr.rel (%p134) target = $region12
    $region11: #{a_call__.25} parent=5 // pred_region
      %s138 = ssub.s32 %s8, 1
    $region12: #{a_call__.25} parent=5 // pred_fallthru
      _
    %p139 = scmp.lt.s32.totalorder %s8, 16
    // Predicated region
    $region13: #{a_call__.25} parent=5 // pred_check
      %p140 = pneg %p139
    $region14: #{a_call__.25} parent=5 // pred_check_branch
      %142 = sbr.rel (%p140) target = $region16
    $region15: #{a_call__.25} parent=5 // pred_region
      // Predicated region
      $region17: #{a_call__.25} parent=15 // pred_check
        %p143 = pneg %p58
      $region18: #{a_call__.25} parent=15 // pred_check_branch
        %145 = sbr.rel (%p143) target = $region20
      $region19: #{a_call__.25} parent=15 // pred_region
        %s146 = smul.u32 64, %s16
        %p147 = scmp.lt.s32.totalorder %s15, 3
        %s148 = scalar_select %p147, %s15, 3
        %p149 = scmp.lt.s32.totalorder %s146, 255
        %s150 = scalar_select %p149, %s146, 255
        %p151 = scmp.lt.s32.totalorder %s18, 0
        %s152 = scalar_select %p151, %s18, 0
        %s153 = sadd.s32 %s152, %s150
        %s154 = smul.addr %s148, 256
        %s155 = sadd.s32 %s153, %s154
        %s156 = smul.addr %s155, 4
        %s157 = scalar_lea.vmem %s0, %s156
        %s158 = smul.u32 64, %s16
      $region20: #{a_call__.25} parent=15 // pred_fallthru
        _
      // Predicated region
      $region21: #{a_call__.25} parent=15 // pred_check
        %p159 = pneg %p88
      $region22: #{a_call__.25} parent=15 // pred_check_branch
        %161 = sbr.rel (%p159) target = $region24
      $region23: #{a_call__.25} parent=15 // pred_region
        %s162 = smul.u32 16, %s18
        %p163 = scmp.lt.s32.totalorder %s15, 3
        %s164 = scalar_select %p163, %s15, 3
        %p165 = scmp.lt.s32.totalorder %s162, 15
        %s166 = scalar_select %p165, %s162, 15
        %p167 = scmp.lt.s32.totalorder %s17, 0
        %s168 = scalar_select %p167, %s17, 0
        %s169 = sadd.s32 %s168, %s166
        %s170 = smul.addr %s164, 16
        %s171 = sadd.s32 %s169, %s170
        %s172 = smul.addr %s171, 4
        %s173 = scalar_lea.vmem %s1, %s172
        %s174 = smul.u32 16, %s18
      $region24: #{a_call__.25} parent=15 // pred_fallthru
        _
    $region16: #{a_call__.25} parent=5 // pred_fallthru
      _
    %p175 = scmp.le.s32.totalorder 1, %s8
    %p176 = scmp.lt.s32.totalorder %s8, 17
    %p177 = pnand %p175, %p176
    %p178 = pneg %p177
    // Predicated region
    $region25: #{a_call__.25} parent=5 // pred_check
      _
    $region26: #{a_call__.25} parent=5 // pred_check_branch
      %180 = sbr.rel (%p177) target = $region28
    $region27: #{a_call__.25} parent=5 // pred_region
      %s181 = ssub.s32 %s8, 1
      %s182 = smul.u32 64, %s20
      %p183 = scmp.lt.s32.totalorder %s19, 3
      %s184 = scalar_select %p183, %s19, 3
      %p185 = scmp.lt.s32.totalorder %s182, 255
      %s186 = scalar_select %p185, %s182, 255
      %p187 = scmp.lt.s32.totalorder %s22, 0
      %s188 = scalar_select %p187, %s22, 0
      %s189 = sadd.s32 %s188, %s186
      %s190 = smul.addr %s184, 256
      %s191 = sadd.s32 %s189, %s190
      %s192 = smul.addr %s191, 4
      %s193 = scalar_lea.vmem %s0, %s192
      %p194 = pneg %p64
      %p195 = pneg %p61
      %s196 = smul.u32 16, %s22
      %p197 = scmp.lt.s32.totalorder %s19, 3
      %s198 = scalar_select %p197, %s19, 3
      %p199 = scmp.lt.s32.totalorder %s196, 15
      %s200 = scalar_select %p199, %s196, 15
      %p201 = scmp.lt.s32.totalorder %s21, 0
      %s202 = scalar_select %p201, %s21, 0
      %s203 = sadd.s32 %s202, %s200
      %s204 = smul.addr %s198, 16
      %s205 = sadd.s32 %s203, %s204
      %s206 = smul.addr %s205, 4
      %s207 = scalar_lea.vmem %s1, %s206
      %p208 = pneg %p94
      %p209 = pneg %p91
      %p210 = pneg %p124
      %p211 = pneg %p121
      %s212 = smul.u32 64, %s20
      %p213 = scmp.lt.s32.totalorder %s19, 3
      %s214 = scalar_select %p213, %s19, 3
      %p215 = scmp.lt.s32.totalorder %s212, 255
      %s216 = scalar_select %p215, %s212, 255
      %p217 = scmp.lt.s32.totalorder %s21, 0
      %s218 = scalar_select %p217, %s21, 0
      %s219 = sadd.s32 %s218, %s216
      %s220 = smul.addr %s214, 256
      %s221 = sadd.s32 %s219, %s220
      %s222 = smul.addr %s221, 8
      %s223 = scalar_lea.vmem %s2, %s222
      %s224 = smul.u32 64, %s20
      %p225 = scmp.lt.s32.totalorder %s19, 3
      %s226 = scalar_select %p225, %s19, 3
      %p227 = scmp.lt.s32.totalorder %s224, 255
      %s228 = scalar_select %p227, %s224, 255
      %p229 = scmp.lt.s32.totalorder %s22, 0
      %s230 = scalar_select %p229, %s22, 0
      %s231 = sadd.s32 %s230, %s228
      %s232 = smul.addr %s226, 256
      %s233 = sadd.s32 %s231, %s232
      %s234 = smul.addr %s233, 4
      %s235 = scalar_lea.vmem %s0, %s234
      %s236 = smul.u32 64, %s20
      %s237 = smul.u32 16, %s22
      %p238 = scmp.lt.s32.totalorder %s19, 3
      %s239 = scalar_select %p238, %s19, 3
      %p240 = scmp.lt.s32.totalorder %s237, 15
      %s241 = scalar_select %p240, %s237, 15
      %p242 = scmp.lt.s32.totalorder %s21, 0
      %s243 = scalar_select %p242, %s21, 0
      %s244 = sadd.s32 %s243, %s241
      %s245 = smul.addr %s239, 16
      %s246 = sadd.s32 %s244, %s245
      %s247 = smul.addr %s246, 4
      %s248 = scalar_lea.vmem %s1, %s247
      %s249 = smul.u32 16, %s22
      %s250 = smul.u32 64, %s20
      %p251 = scmp.lt.s32.totalorder %s19, 3
      %s252 = scalar_select %p251, %s19, 3
      %p253 = scmp.lt.s32.totalorder %s250, 255
      %s254 = scalar_select %p253, %s250, 255
      %p255 = scmp.lt.s32.totalorder %s21, 0
      %s256 = scalar_select %p255, %s21, 0
      %s257 = sadd.s32 %s256, %s254
      %s258 = smul.addr %s252, 256
      %s259 = sadd.s32 %s257, %s258
      %s260 = smul.addr %s259, 8
      %s261 = scalar_lea.vmem %s2, %s260
      %s262 = smul.u32 64, %s20
      %p264 = scmp.eq.s32.totalorder %s22, 0
      // Predicated region
      $region29: #{a_call__.25} parent=27 // pred_check
        %p265 = pneg %p264
      $region30: #{a_call__.25} parent=27 // pred_check_branch
        %267 = sbr.rel (%p265) target = $region32
      $region31: #{a_call__.25} parent=27 // pred_region
        %268 = vst [vmem:[#allocation2] sm:$0xff] 0.0
        %269 = vst [vmem:[#allocation2 + $0x8] sm:$0xff] 0.0
        %270 = vst [vmem:[#allocation2 + $0x10] sm:$0xff] 0.0
        %271 = vst [vmem:[#allocation2 + $0x18] sm:$0xff] 0.0
        %272 = vst [vmem:[#allocation2 + $0x20] sm:$0xff] 0.0
        %273 = vst [vmem:[#allocation2 + $0x28] sm:$0xff] 0.0
        %274 = vst [vmem:[#allocation2 + $0x30] sm:$0xff] 0.0
        %275 = vst [vmem:[#allocation2 + $0x38] sm:$0xff] 0.0
        %276 = vst [vmem:[#allocation2 + $0x40] sm:$0xff] 0.0
        %277 = vst [vmem:[#allocation2 + $0x48] sm:$0xff] 0.0
        %278 = vst [vmem:[#allocation2 + $0x50] sm:$0xff] 0.0
        %279 = vst [vmem:[#allocation2 + $0x58] sm:$0xff] 0.0
        %280 = vst [vmem:[#allocation2 + $0x60] sm:$0xff] 0.0
        %281 = vst [vmem:[#allocation2 + $0x68] sm:$0xff] 0.0
        %282 = vst [vmem:[#allocation2 + $0x70] sm:$0xff] 0.0
        %283 = vst [vmem:[#allocation2 + $0x78] sm:$0xff] 0.0
        %284 = vst [vmem:[#allocation2 + $0x80] sm:$0xff] 0.0
        %285 = vst [vmem:[#allocation2 + $0x88] sm:$0xff] 0.0
        %286 = vst [vmem:[#allocation2 + $0x90] sm:$0xff] 0.0
        %287 = vst [vmem:[#allocation2 + $0x98] sm:$0xff] 0.0
        %288 = vst [vmem:[#allocation2 + $0xa0] sm:$0xff] 0.0
        %289 = vst [vmem:[#allocation2 + $0xa8] sm:$0xff] 0.0
        %290 = vst [vmem:[#allocation2 + $0xb0] sm:$0xff] 0.0
        %291 = vst [vmem:[#allocation2 + $0xb8] sm:$0xff] 0.0
        %292 = vst [vmem:[#allocation2 + $0xc0] sm:$0xff] 0.0
        %293 = vst [vmem:[#allocation2 + $0xc8] sm:$0xff] 0.0
        %294 = vst [vmem:[#allocation2 + $0xd0] sm:$0xff] 0.0
        %295 = vst [vmem:[#allocation2 + $0xd8] sm:$0xff] 0.0
        %296 = vst [vmem:[#allocation2 + $0xe0] sm:$0xff] 0.0
        %297 = vst [vmem:[#allocation2 + $0xe8] sm:$0xff] 0.0
        %298 = vst [vmem:[#allocation2 + $0xf0] sm:$0xff] 0.0
        %299 = vst [vmem:[#allocation2 + $0xf8] sm:$0xff] 0.0
        %300 = vst [vmem:[#allocation2 + $0x100] sm:$0xff] 0.0
        %301 = vst [vmem:[#allocation2 + $0x108] sm:$0xff] 0.0
        %302 = vst [vmem:[#allocation2 + $0x110] sm:$0xff] 0.0
        %303 = vst [vmem:[#allocation2 + $0x118] sm:$0xff] 0.0
        %304 = vst [vmem:[#allocation2 + $0x120] sm:$0xff] 0.0
        %305 = vst [vmem:[#allocation2 + $0x128] sm:$0xff] 0.0
        %306 = vst [vmem:[#allocation2 + $0x130] sm:$0xff] 0.0
        %307 = vst [vmem:[#allocation2 + $0x138] sm:$0xff] 0.0
        %308 = vst [vmem:[#allocation2 + $0x140] sm:$0xff] 0.0
        %309 = vst [vmem:[#allocation2 + $0x148] sm:$0xff] 0.0
        %310 = vst [vmem:[#allocation2 + $0x150] sm:$0xff] 0.0
        %311 = vst [vmem:[#allocation2 + $0x158] sm:$0xff] 0.0
        %312 = vst [vmem:[#allocation2 + $0x160] sm:$0xff] 0.0
        %313 = vst [vmem:[#allocation2 + $0x168] sm:$0xff] 0.0
        %314 = vst [vmem:[#allocation2 + $0x170] sm:$0xff] 0.0
        %315 = vst [vmem:[#allocation2 + $0x178] sm:$0xff] 0.0
        %316 = vst [vmem:[#allocation2 + $0x180] sm:$0xff] 0.0
        %317 = vst [vmem:[#allocation2 + $0x188] sm:$0xff] 0.0
        %318 = vst [vmem:[#allocation2 + $0x190] sm:$0xff] 0.0
        %319 = vst [vmem:[#allocation2 + $0x198] sm:$0xff] 0.0
        %320 = vst [vmem:[#allocation2 + $0x1a0] sm:$0xff] 0.0
        %321 = vst [vmem:[#allocation2 + $0x1a8] sm:$0xff] 0.0
        %322 = vst [vmem:[#allocation2 + $0x1b0] sm:$0xff] 0.0
        %323 = vst [vmem:[#allocation2 + $0x1b8] sm:$0xff] 0.0
        %324 = vst [vmem:[#allocation2 + $0x1c0] sm:$0xff] 0.0
        %325 = vst [vmem:[#allocation2 + $0x1c8] sm:$0xff] 0.0
        %326 = vst [vmem:[#allocation2 + $0x1d0] sm:$0xff] 0.0
        %327 = vst [vmem:[#allocation2 + $0x1d8] sm:$0xff] 0.0
        %328 = vst [vmem:[#allocation2 + $0x1e0] sm:$0xff] 0.0
        %329 = vst [vmem:[#allocation2 + $0x1e8] sm:$0xff] 0.0
        %330 = vst [vmem:[#allocation2 + $0x1f0] sm:$0xff] 0.0
        %331 = vst [vmem:[#allocation2 + $0x1f8] sm:$0xff] 0.0
      $region32: #{a_call__.25} parent=27 // pred_fallthru
        _
      %v332 = vld [vmem:[#allocation2] sm:$0xff]
      %v333 = vld [vmem:[#allocation2 + $0x8] sm:$0xff]
      %v334 = vld [vmem:[#allocation2 + $0x10] sm:$0xff]
      %v335 = vld [vmem:[#allocation2 + $0x18] sm:$0xff]
      %v336 = vld [vmem:[#allocation2 + $0x20] sm:$0xff]
      %v337 = vld [vmem:[#allocation2 + $0x28] sm:$0xff]
      %v338 = vld [vmem:[#allocation2 + $0x30] sm:$0xff]
      %v339 = vld [vmem:[#allocation2 + $0x38] sm:$0xff]
      %v340 = vld [vmem:[#allocation2 + $0x40] sm:$0xff]
      %v341 = vld [vmem:[#allocation2 + $0x48] sm:$0xff]
      %v342 = vld [vmem:[#allocation2 + $0x50] sm:$0xff]
      %v343 = vld [vmem:[#allocation2 + $0x58] sm:$0xff]
      %v344 = vld [vmem:[#allocation2 + $0x60] sm:$0xff]
      %v345 = vld [vmem:[#allocation2 + $0x68] sm:$0xff]
      %v346 = vld [vmem:[#allocation2 + $0x70] sm:$0xff]
      %v347 = vld [vmem:[#allocation2 + $0x78] sm:$0xff]
      %v348 = vld [vmem:[#allocation2 + $0x80] sm:$0xff]
      %v349 = vld [vmem:[#allocation2 + $0x88] sm:$0xff]
      %v350 = vld [vmem:[#allocation2 + $0x90] sm:$0xff]
      %v351 = vld [vmem:[#allocation2 + $0x98] sm:$0xff]
      %v352 = vld [vmem:[#allocation2 + $0xa0] sm:$0xff]
      %v353 = vld [vmem:[#allocation2 + $0xa8] sm:$0xff]
      %v354 = vld [vmem:[#allocation2 + $0xb0] sm:$0xff]
      %v355 = vld [vmem:[#allocation2 + $0xb8] sm:$0xff]
      %v356 = vld [vmem:[#allocation2 + $0xc0] sm:$0xff]
      %v357 = vld [vmem:[#allocation2 + $0xc8] sm:$0xff]
      %v358 = vld [vmem:[#allocation2 + $0xd0] sm:$0xff]
      %v359 = vld [vmem:[#allocation2 + $0xd8] sm:$0xff]
      %v360 = vld [vmem:[#allocation2 + $0xe0] sm:$0xff]
      %v361 = vld [vmem:[#allocation2 + $0xe8] sm:$0xff]
      %v362 = vld [vmem:[#allocation2 + $0xf0] sm:$0xff]
      %v363 = vld [vmem:[#allocation2 + $0xf8] sm:$0xff]
      %v364 = vld [vmem:[#allocation2 + $0x100] sm:$0xff]
      %v365 = vld [vmem:[#allocation2 + $0x108] sm:$0xff]
      %v366 = vld [vmem:[#allocation2 + $0x110] sm:$0xff]
      %v367 = vld [vmem:[#allocation2 + $0x118] sm:$0xff]
      %v368 = vld [vmem:[#allocation2 + $0x120] sm:$0xff]
      %v369 = vld [vmem:[#allocation2 + $0x128] sm:$0xff]
      %v370 = vld [vmem:[#allocation2 + $0x130] sm:$0xff]
      %v371 = vld [vmem:[#allocation2 + $0x138] sm:$0xff]
      %v372 = vld [vmem:[#allocation2 + $0x140] sm:$0xff]
      %v373 = vld [vmem:[#allocation2 + $0x148] sm:$0xff]
      %v374 = vld [vmem:[#allocation2 + $0x150] sm:$0xff]
      %v375 = vld [vmem:[#allocation2 + $0x158] sm:$0xff]
      %v376 = vld [vmem:[#allocation2 + $0x160] sm:$0xff]
      %v377 = vld [vmem:[#allocation2 + $0x168] sm:$0xff]
      %v378 = vld [vmem:[#allocation2 + $0x170] sm:$0xff]
      %v379 = vld [vmem:[#allocation2 + $0x178] sm:$0xff]
      %v380 = vld [vmem:[#allocation2 + $0x180] sm:$0xff]
      %v381 = vld [vmem:[#allocation2 + $0x188] sm:$0xff]
      %v382 = vld [vmem:[#allocation2 + $0x190] sm:$0xff]
      %v383 = vld [vmem:[#allocation2 + $0x198] sm:$0xff]
      %v384 = vld [vmem:[#allocation2 + $0x1a0] sm:$0xff]
      %v385 = vld [vmem:[#allocation2 + $0x1a8] sm:$0xff]
      %v386 = vld [vmem:[#allocation2 + $0x1b0] sm:$0xff]
      %v387 = vld [vmem:[#allocation2 + $0x1b8] sm:$0xff]
      %v388 = vld [vmem:[#allocation2 + $0x1c0] sm:$0xff]
      %v389 = vld [vmem:[#allocation2 + $0x1c8] sm:$0xff]
      %v390 = vld [vmem:[#allocation2 + $0x1d0] sm:$0xff]
      %v391 = vld [vmem:[#allocation2 + $0x1d8] sm:$0xff]
      %v392 = vld [vmem:[#allocation2 + $0x1e0] sm:$0xff]
      %v393 = vld [vmem:[#allocation2 + $0x1e8] sm:$0xff]
      %v394 = vld [vmem:[#allocation2 + $0x1f0] sm:$0xff]
      %v395 = vld [vmem:[#allocation2 + $0x1f8] sm:$0xff]
      %v396 = vld [vmem:[%s235] sm:$0xf]
      %v397 = vld [vmem:[%s235 + $0x4] sm:$0xf]
      %v398 = vld [vmem:[%s235 + $0x8] sm:$0xf]
      %v399 = vld [vmem:[%s235 + $0xc] sm:$0xf]
      %v400 = vld [vmem:[%s235 + $0x10] sm:$0xf]
      %v401 = vld [vmem:[%s235 + $0x14] sm:$0xf]
      %v402 = vld [vmem:[%s235 + $0x18] sm:$0xf]
      %v403 = vld [vmem:[%s235 + $0x1c] sm:$0xf]
      %v404 = vld [vmem:[%s235 + $0x20] sm:$0xf]
      %v405 = vld [vmem:[%s235 + $0x24] sm:$0xf]
      %v406 = vld [vmem:[%s235 + $0x28] sm:$0xf]
      %v407 = vld [vmem:[%s235 + $0x2c] sm:$0xf]
      %v408 = vld [vmem:[%s235 + $0x30] sm:$0xf]
      %v409 = vld [vmem:[%s235 + $0x34] sm:$0xf]
      %v410 = vld [vmem:[%s235 + $0x38] sm:$0xf]
      %v411 = vld [vmem:[%s235 + $0x3c] sm:$0xf]
      %v412 = vld [vmem:[%s235 + $0x40] sm:$0xf]
      %v413 = vld [vmem:[%s235 + $0x44] sm:$0xf]
      %v414 = vld [vmem:[%s235 + $0x48] sm:$0xf]
      %v415 = vld [vmem:[%s235 + $0x4c] sm:$0xf]
      %v416 = vld [vmem:[%s235 + $0x50] sm:$0xf]
      %v417 = vld [vmem:[%s235 + $0x54] sm:$0xf]
      %v418 = vld [vmem:[%s235 + $0x58] sm:$0xf]
      %v419 = vld [vmem:[%s235 + $0x5c] sm:$0xf]
      %v420 = vld [vmem:[%s235 + $0x60] sm:$0xf]
      %v421 = vld [vmem:[%s235 + $0x64] sm:$0xf]
      %v422 = vld [vmem:[%s235 + $0x68] sm:$0xf]
      %v423 = vld [vmem:[%s235 + $0x6c] sm:$0xf]
      %v424 = vld [vmem:[%s235 + $0x70] sm:$0xf]
      %v425 = vld [vmem:[%s235 + $0x74] sm:$0xf]
      %v426 = vld [vmem:[%s235 + $0x78] sm:$0xf]
      %v427 = vld [vmem:[%s235 + $0x7c] sm:$0xf]
      %v428 = vld [vmem:[%s235 + $0x80] sm:$0xf]
      %v429 = vld [vmem:[%s235 + $0x84] sm:$0xf]
      %v430 = vld [vmem:[%s235 + $0x88] sm:$0xf]
      %v431 = vld [vmem:[%s235 + $0x8c] sm:$0xf]
      %v432 = vld [vmem:[%s235 + $0x90] sm:$0xf]
      %v433 = vld [vmem:[%s235 + $0x94] sm:$0xf]
      %v434 = vld [vmem:[%s235 + $0x98] sm:$0xf]
      %v435 = vld [vmem:[%s235 + $0x9c] sm:$0xf]
      %v436 = vld [vmem:[%s235 + $0xa0] sm:$0xf]
      %v437 = vld [vmem:[%s235 + $0xa4] sm:$0xf]
      %v438 = vld [vmem:[%s235 + $0xa8] sm:$0xf]
      %v439 = vld [vmem:[%s235 + $0xac] sm:$0xf]
      %v440 = vld [vmem:[%s235 + $0xb0] sm:$0xf]
      %v441 = vld [vmem:[%s235 + $0xb4] sm:$0xf]
      %v442 = vld [vmem:[%s235 + $0xb8] sm:$0xf]
      %v443 = vld [vmem:[%s235 + $0xbc] sm:$0xf]
      %v444 = vld [vmem:[%s235 + $0xc0] sm:$0xf]
      %v445 = vld [vmem:[%s235 + $0xc4] sm:$0xf]
      %v446 = vld [vmem:[%s235 + $0xc8] sm:$0xf]
      %v447 = vld [vmem:[%s235 + $0xcc] sm:$0xf]
      %v448 = vld [vmem:[%s235 + $0xd0] sm:$0xf]
      %v449 = vld [vmem:[%s235 + $0xd4] sm:$0xf]
      %v450 = vld [vmem:[%s235 + $0xd8] sm:$0xf]
      %v451 = vld [vmem:[%s235 + $0xdc] sm:$0xf]
      %v452 = vld [vmem:[%s235 + $0xe0] sm:$0xf]
      %v453 = vld [vmem:[%s235 + $0xe4] sm:$0xf]
      %v454 = vld [vmem:[%s235 + $0xe8] sm:$0xf]
      %v455 = vld [vmem:[%s235 + $0xec] sm:$0xf]
      %v456 = vld [vmem:[%s235 + $0xf0] sm:$0xf]
      %v457 = vld [vmem:[%s235 + $0xf4] sm:$0xf]
      %v458 = vld [vmem:[%s235 + $0xf8] sm:$0xf]
      %v459 = vld [vmem:[%s235 + $0xfc] sm:$0xf]
      %v460 = vld [vmem:[%s248] sm:$0xf]
      %v461 = vld [vmem:[%s248 + $0x4] sm:$0xf]
      %v462 = vld [vmem:[%s248 + $0x8] sm:$0xf]
      %v463 = vld [vmem:[%s248 + $0xc] sm:$0xf]
      %v464 = vld [vmem:[%s248 + $0x10] sm:$0xf]
      %v465 = vld [vmem:[%s248 + $0x14] sm:$0xf]
      %v466 = vld [vmem:[%s248 + $0x18] sm:$0xf]
      %v467 = vld [vmem:[%s248 + $0x1c] sm:$0xf]
      %v468 = vld [vmem:[%s248 + $0x20] sm:$0xf]
      %v469 = vld [vmem:[%s248 + $0x24] sm:$0xf]
      %v470 = vld [vmem:[%s248 + $0x28] sm:$0xf]
      %v471 = vld [vmem:[%s248 + $0x2c] sm:$0xf]
      %v472 = vld [vmem:[%s248 + $0x30] sm:$0xf]
      %v473 = vld [vmem:[%s248 + $0x34] sm:$0xf]
      %v474 = vld [vmem:[%s248 + $0x38] sm:$0xf]
      %v475 = vld [vmem:[%s248 + $0x3c] sm:$0xf]
      %v540 = vunpack.c.l.b16 %v396
      %v541 = vunpack.c.l.b16 %v397
      %v542 = vunpack.c.l.b16 %v398
      %v543 = vunpack.c.l.b16 %v399
      %v544 = vunpack.c.l.b16 %v400
      %v545 = vunpack.c.l.b16 %v401
      %v546 = vunpack.c.l.b16 %v402
      %v547 = vunpack.c.l.b16 %v403
      %v548 = vunpack.c.l.b16 %v404
      %v549 = vunpack.c.l.b16 %v405
      %v550 = vunpack.c.l.b16 %v406
      %v551 = vunpack.c.l.b16 %v407
      %v552 = vunpack.c.l.b16 %v408
      %v553 = vunpack.c.l.b16 %v409
      %v554 = vunpack.c.l.b16 %v410
      %v555 = vunpack.c.l.b16 %v411
      %v556 = vunpack.c.l.b16 %v412
      %v557 = vunpack.c.l.b16 %v413
      %v558 = vunpack.c.l.b16 %v414
      %v559 = vunpack.c.l.b16 %v415
      %v560 = vunpack.c.l.b16 %v416
      %v561 = vunpack.c.l.b16 %v417
      %v562 = vunpack.c.l.b16 %v418
      %v563 = vunpack.c.l.b16 %v419
      %v564 = vunpack.c.l.b16 %v420
      %v565 = vunpack.c.l.b16 %v421
      %v566 = vunpack.c.l.b16 %v422
      %v567 = vunpack.c.l.b16 %v423
      %v568 = vunpack.c.l.b16 %v424
      %v569 = vunpack.c.l.b16 %v425
      %v570 = vunpack.c.l.b16 %v426
      %v571 = vunpack.c.l.b16 %v427
      %v572 = vunpack.c.l.b16 %v428
      %v573 = vunpack.c.l.b16 %v429
      %v574 = vunpack.c.l.b16 %v430
      %v575 = vunpack.c.l.b16 %v431
      %v576 = vunpack.c.l.b16 %v432
      %v577 = vunpack.c.l.b16 %v433
      %v578 = vunpack.c.l.b16 %v434
      %v579 = vunpack.c.l.b16 %v435
      %v580 = vunpack.c.l.b16 %v436
      %v581 = vunpack.c.l.b16 %v437
      %v582 = vunpack.c.l.b16 %v438
      %v583 = vunpack.c.l.b16 %v439
      %v584 = vunpack.c.l.b16 %v440
      %v585 = vunpack.c.l.b16 %v441
      %v586 = vunpack.c.l.b16 %v442
      %v587 = vunpack.c.l.b16 %v443
      %v588 = vunpack.c.l.b16 %v444
      %v589 = vunpack.c.l.b16 %v445
      %v590 = vunpack.c.l.b16 %v446
      %v591 = vunpack.c.l.b16 %v447
      %v592 = vunpack.c.l.b16 %v448
      %v593 = vunpack.c.l.b16 %v449
      %v594 = vunpack.c.l.b16 %v450
      %v595 = vunpack.c.l.b16 %v451
      %v596 = vunpack.c.l.b16 %v452
      %v597 = vunpack.c.l.b16 %v453
      %v598 = vunpack.c.l.b16 %v454
      %v599 = vunpack.c.l.b16 %v455
      %v600 = vunpack.c.l.b16 %v456
      %v601 = vunpack.c.l.b16 %v457
      %v602 = vunpack.c.l.b16 %v458
      %v603 = vunpack.c.l.b16 %v459
      %v604 = vpack.c.b16 %v541, %v540
      %v605 = vpack.c.b16 %v543, %v542
      %v606 = vpack.c.b16 %v545, %v544
      %v607 = vpack.c.b16 %v547, %v546
      %v608 = vpack.c.b16 %v549, %v548
      %v609 = vpack.c.b16 %v551, %v550
      %v610 = vpack.c.b16 %v553, %v552
      %v611 = vpack.c.b16 %v555, %v554
      %v612 = vpack.c.b16 %v557, %v556
      %v613 = vpack.c.b16 %v559, %v558
      %v614 = vpack.c.b16 %v561, %v560
      %v615 = vpack.c.b16 %v563, %v562
      %v616 = vpack.c.b16 %v565, %v564
      %v617 = vpack.c.b16 %v567, %v566
      %v618 = vpack.c.b16 %v569, %v568
      %v619 = vpack.c.b16 %v571, %v570
      %v620 = vpack.c.b16 %v573, %v572
      %v621 = vpack.c.b16 %v575, %v574
      %v622 = vpack.c.b16 %v577, %v576
      %v623 = vpack.c.b16 %v579, %v578
      %v624 = vpack.c.b16 %v581, %v580
      %v625 = vpack.c.b16 %v583, %v582
      %v626 = vpack.c.b16 %v585, %v584
      %v627 = vpack.c.b16 %v587, %v586
      %v628 = vpack.c.b16 %v589, %v588
      %v629 = vpack.c.b16 %v591, %v590
      %v630 = vpack.c.b16 %v593, %v592
      %v631 = vpack.c.b16 %v595, %v594
      %v632 = vpack.c.b16 %v597, %v596
      %v633 = vpack.c.b16 %v599, %v598
      %v634 = vpack.c.b16 %v601, %v600
      %v635 = vpack.c.b16 %v603, %v602
      %v684 = vunpack.c.l.b16 %v460
      %v685 = vunpack.c.l.b16 %v461
      %v686 = vunpack.c.l.b16 %v462
      %v687 = vunpack.c.l.b16 %v463
      %v688 = vunpack.c.l.b16 %v464
      %v689 = vunpack.c.l.b16 %v465
      %v690 = vunpack.c.l.b16 %v466
      %v691 = vunpack.c.l.b16 %v467
      %v692 = vunpack.c.l.b16 %v468
      %v693 = vunpack.c.l.b16 %v469
      %v694 = vunpack.c.l.b16 %v470
      %v695 = vunpack.c.l.b16 %v471
      %v696 = vunpack.c.l.b16 %v472
      %v697 = vunpack.c.l.b16 %v473
      %v698 = vunpack.c.l.b16 %v474
      %v699 = vunpack.c.l.b16 %v475
      %v700 = vpack.c.b16 %v685, %v684
      %v701 = vpack.c.b16 %v687, %v686
      %v702 = vpack.c.b16 %v689, %v688
      %v703 = vpack.c.b16 %v691, %v690
      %v704 = vpack.c.b16 %v693, %v692
      %v705 = vpack.c.b16 %v695, %v694
      %v706 = vpack.c.b16 %v697, %v696
      %v707 = vpack.c.b16 %v699, %v698
      %716 = vmatprep.subr.bf16.mxu0 0
      %717 = vmatpush1.bf16.msra.mxu0 %v707
      %718 = vmatprep.subr.bf16.mxu0 0
      %719 = vmatpush1.bf16.msra.mxu0 %v706
      %720 = vmatprep.subr.bf16.mxu0 0
      %721 = vmatpush1.bf16.msra.mxu0 %v705
      %722 = vmatprep.subr.bf16.mxu0 0
      %723 = vmatpush1.bf16.msra.mxu0 %v704
      %724 = vmatprep.subr.bf16.mxu0 0
      %725 = vmatpush1.bf16.msra.mxu0 %v703
      %726 = vmatprep.subr.bf16.mxu0 0
      %727 = vmatpush1.bf16.msra.mxu0 %v702
      %728 = vmatprep.subr.bf16.mxu0 0
      %729 = vmatpush1.bf16.msra.mxu0 %v701
      %730 = vmatprep.subr.bf16.mxu0 0
      %731 = vmatpush1.bf16.msra.mxu0 %v700
      %732 = vmatprep.subr.bf16.mxu0 0
      %733 = vmatpush2.bf16.msra.mxu0 0
      %734 = vmatprep.subr.bf16.mxu0 0
      %735 = vmatpush2.bf16.msra.mxu0 0
      %736 = vmatprep.subr.bf16.mxu0 0
      %737 = vmatpush2.bf16.msra.mxu0 0
      %738 = vmatprep.subr.bf16.mxu0 0
      %739 = vmatpush2.bf16.msra.mxu0 0
      %740 = vmatprep.subr.bf16.mxu0 0
      %741 = vmatpush2.bf16.msra.mxu0 0
      %742 = vmatprep.subr.bf16.mxu0 0
      %743 = vmatpush2.bf16.msra.mxu0 0
      %744 = vmatprep.subr.bf16.mxu0 0
      %745 = vmatpush2.bf16.msra.mxu0 0
      %746 = vmatprep.subr.bf16.mxu0 0
      %747 = vmatpush2.bf16.msra.mxu0 0
      %748 = vmatprep.mubr.bf16.mxu0 0
      %749 = vmatmul.mubr.bf16.gmra.mxu0 %v604
      %v750 = vpop.f32.mrf.mxu0
      %v751 = vadd.f32 0.0, %v750
      %v752 = vpop.f32.mrf.mxu0
      %v753 = vpop.f32.mrf.mxu0
      %v754 = vadd.f32 0.0, %v753
      %v755 = vpop.f32.mrf.mxu0
      %756 = vmatprep.mubr.bf16.mxu0 0
      %757 = vmatmul.mubr.bf16.gmra.mxu0 %v605
      %v758 = vpop.f32.mrf.mxu0
      %v759 = vadd.f32 0.0, %v758
      %v760 = vpop.f32.mrf.mxu0
      %v761 = vpop.f32.mrf.mxu0
      %v762 = vadd.f32 0.0, %v761
      %v763 = vpop.f32.mrf.mxu0
      %764 = vmatprep.mubr.bf16.mxu0 0
      %765 = vmatmul.mubr.bf16.gmra.mxu0 %v606
      %v766 = vpop.f32.mrf.mxu0
      %v767 = vadd.f32 0.0, %v766
      %v768 = vpop.f32.mrf.mxu0
      %v769 = vpop.f32.mrf.mxu0
      %v770 = vadd.f32 0.0, %v769
      %v771 = vpop.f32.mrf.mxu0
      %772 = vmatprep.mubr.bf16.mxu0 0
      %773 = vmatmul.mubr.bf16.gmra.mxu0 %v607
      %v774 = vpop.f32.mrf.mxu0
      %v775 = vadd.f32 0.0, %v774
      %v776 = vpop.f32.mrf.mxu0
      %v777 = vpop.f32.mrf.mxu0
      %v778 = vadd.f32 0.0, %v777
      %v779 = vpop.f32.mrf.mxu0
      %780 = vmatprep.mubr.bf16.mxu0 0
      %781 = vmatmul.mubr.bf16.gmra.mxu0 %v608
      %v782 = vpop.f32.mrf.mxu0
      %v783 = vadd.f32 0.0, %v782
      %v784 = vpop.f32.mrf.mxu0
      %v785 = vpop.f32.mrf.mxu0
      %v786 = vadd.f32 0.0, %v785
      %v787 = vpop.f32.mrf.mxu0
      %788 = vmatprep.mubr.bf16.mxu0 0
      %789 = vmatmul.mubr.bf16.gmra.mxu0 %v609
      %v790 = vpop.f32.mrf.mxu0
      %v791 = vadd.f32 0.0, %v790
      %v792 = vpop.f32.mrf.mxu0
      %v793 = vpop.f32.mrf.mxu0
      %v794 = vadd.f32 0.0, %v793
      %v795 = vpop.f32.mrf.mxu0
      %796 = vmatprep.mubr.bf16.mxu0 0
      %797 = vmatmul.mubr.bf16.gmra.mxu0 %v610
      %v798 = vpop.f32.mrf.mxu0
      %v799 = vadd.f32 0.0, %v798
      %v800 = vpop.f32.mrf.mxu0
      %v801 = vpop.f32.mrf.mxu0
      %v802 = vadd.f32 0.0, %v801
      %v803 = vpop.f32.mrf.mxu0
      %804 = vmatprep.mubr.bf16.mxu0 0
      %805 = vmatmul.mubr.bf16.gmra.mxu0 %v611
      %v806 = vpop.f32.mrf.mxu0
      %v807 = vadd.f32 0.0, %v806
      %v808 = vpop.f32.mrf.mxu0
      %v809 = vpop.f32.mrf.mxu0
      %v810 = vadd.f32 0.0, %v809
      %v811 = vpop.f32.mrf.mxu0
      %812 = vmatprep.mubr.bf16.mxu0 0
      %813 = vmatmul.mubr.bf16.gmra.mxu0 %v612
      %v814 = vpop.f32.mrf.mxu0
      %v815 = vadd.f32 0.0, %v814
      %v816 = vpop.f32.mrf.mxu0
      %v817 = vpop.f32.mrf.mxu0
      %v818 = vadd.f32 0.0, %v817
      %v819 = vpop.f32.mrf.mxu0
      %820 = vmatprep.mubr.bf16.mxu0 0
      %821 = vmatmul.mubr.bf16.gmra.mxu0 %v613
      %v822 = vpop.f32.mrf.mxu0
      %v823 = vadd.f32 0.0, %v822
      %v824 = vpop.f32.mrf.mxu0
      %v825 = vpop.f32.mrf.mxu0
      %v826 = vadd.f32 0.0, %v825
      %v827 = vpop.f32.mrf.mxu0
      %828 = vmatprep.mubr.bf16.mxu0 0
      %829 = vmatmul.mubr.bf16.gmra.mxu0 %v614
      %v830 = vpop.f32.mrf.mxu0
      %v831 = vadd.f32 0.0, %v830
      %v832 = vpop.f32.mrf.mxu0
      %v833 = vpop.f32.mrf.mxu0
      %v834 = vadd.f32 0.0, %v833
      %v835 = vpop.f32.mrf.mxu0
      %836 = vmatprep.mubr.bf16.mxu0 0
      %837 = vmatmul.mubr.bf16.gmra.mxu0 %v615
      %v838 = vpop.f32.mrf.mxu0
      %v839 = vadd.f32 0.0, %v838
      %v840 = vpop.f32.mrf.mxu0
      %v841 = vpop.f32.mrf.mxu0
      %v842 = vadd.f32 0.0, %v841
      %v843 = vpop.f32.mrf.mxu0
      %844 = vmatprep.mubr.bf16.mxu0 0
      %845 = vmatmul.mubr.bf16.gmra.mxu0 %v616
      %v846 = vpop.f32.mrf.mxu0
      %v847 = vadd.f32 0.0, %v846
      %v848 = vpop.f32.mrf.mxu0
      %v849 = vpop.f32.mrf.mxu0
      %v850 = vadd.f32 0.0, %v849
      %v851 = vpop.f32.mrf.mxu0
      %852 = vmatprep.mubr.bf16.mxu0 0
      %853 = vmatmul.mubr.bf16.gmra.mxu0 %v617
      %v854 = vpop.f32.mrf.mxu0
      %v855 = vadd.f32 0.0, %v854
      %v856 = vpop.f32.mrf.mxu0
      %v857 = vpop.f32.mrf.mxu0
      %v858 = vadd.f32 0.0, %v857
      %v859 = vpop.f32.mrf.mxu0
      %860 = vmatprep.mubr.bf16.mxu0 0
      %861 = vmatmul.mubr.bf16.gmra.mxu0 %v618
      %v862 = vpop.f32.mrf.mxu0
      %v863 = vadd.f32 0.0, %v862
      %v864 = vpop.f32.mrf.mxu0
      %v865 = vpop.f32.mrf.mxu0
      %v866 = vadd.f32 0.0, %v865
      %v867 = vpop.f32.mrf.mxu0
      %868 = vmatprep.mubr.bf16.mxu0 0
      %869 = vmatmul.mubr.bf16.gmra.mxu0 %v619
      %v870 = vpop.f32.mrf.mxu0
      %v871 = vadd.f32 0.0, %v870
      %v872 = vpop.f32.mrf.mxu0
      %v873 = vpop.f32.mrf.mxu0
      %v874 = vadd.f32 0.0, %v873
      %v875 = vpop.f32.mrf.mxu0
      %876 = vmatprep.mubr.bf16.mxu0 0
      %877 = vmatmul.mubr.bf16.gmra.mxu0 %v620
      %v878 = vpop.f32.mrf.mxu0
      %v879 = vadd.f32 0.0, %v878
      %v880 = vpop.f32.mrf.mxu0
      %v881 = vpop.f32.mrf.mxu0
      %v882 = vadd.f32 0.0, %v881
      %v883 = vpop.f32.mrf.mxu0
      %884 = vmatprep.mubr.bf16.mxu0 0
      %885 = vmatmul.mubr.bf16.gmra.mxu0 %v621
      %v886 = vpop.f32.mrf.mxu0
      %v887 = vadd.f32 0.0, %v886
      %v888 = vpop.f32.mrf.mxu0
      %v889 = vpop.f32.mrf.mxu0
      %v890 = vadd.f32 0.0, %v889
      %v891 = vpop.f32.mrf.mxu0
      %892 = vmatprep.mubr.bf16.mxu0 0
      %893 = vmatmul.mubr.bf16.gmra.mxu0 %v622
      %v894 = vpop.f32.mrf.mxu0
      %v895 = vadd.f32 0.0, %v894
      %v896 = vpop.f32.mrf.mxu0
      %v897 = vpop.f32.mrf.mxu0
      %v898 = vadd.f32 0.0, %v897
      %v899 = vpop.f32.mrf.mxu0
      %900 = vmatprep.mubr.bf16.mxu0 0
      %901 = vmatmul.mubr.bf16.gmra.mxu0 %v623
      %v902 = vpop.f32.mrf.mxu0
      %v903 = vadd.f32 0.0, %v902
      %v904 = vpop.f32.mrf.mxu0
      %v905 = vpop.f32.mrf.mxu0
      %v906 = vadd.f32 0.0, %v905
      %v907 = vpop.f32.mrf.mxu0
      %908 = vmatprep.mubr.bf16.mxu0 0
      %909 = vmatmul.mubr.bf16.gmra.mxu0 %v624
      %v910 = vpop.f32.mrf.mxu0
      %v911 = vadd.f32 0.0, %v910
      %v912 = vpop.f32.mrf.mxu0
      %v913 = vpop.f32.mrf.mxu0
      %v914 = vadd.f32 0.0, %v913
      %v915 = vpop.f32.mrf.mxu0
      %916 = vmatprep.mubr.bf16.mxu0 0
      %917 = vmatmul.mubr.bf16.gmra.mxu0 %v625
      %v918 = vpop.f32.mrf.mxu0
      %v919 = vadd.f32 0.0, %v918
      %v920 = vpop.f32.mrf.mxu0
      %v921 = vpop.f32.mrf.mxu0
      %v922 = vadd.f32 0.0, %v921
      %v923 = vpop.f32.mrf.mxu0
      %924 = vmatprep.mubr.bf16.mxu0 0
      %925 = vmatmul.mubr.bf16.gmra.mxu0 %v626
      %v926 = vpop.f32.mrf.mxu0
      %v927 = vadd.f32 0.0, %v926
      %v928 = vpop.f32.mrf.mxu0
      %v929 = vpop.f32.mrf.mxu0
      %v930 = vadd.f32 0.0, %v929
      %v931 = vpop.f32.mrf.mxu0
      %932 = vmatprep.mubr.bf16.mxu0 0
      %933 = vmatmul.mubr.bf16.gmra.mxu0 %v627
      %v934 = vpop.f32.mrf.mxu0
      %v935 = vadd.f32 0.0, %v934
      %v936 = vpop.f32.mrf.mxu0
      %v937 = vpop.f32.mrf.mxu0
      %v938 = vadd.f32 0.0, %v937
      %v939 = vpop.f32.mrf.mxu0
      %940 = vmatprep.mubr.bf16.mxu0 0
      %941 = vmatmul.mubr.bf16.gmra.mxu0 %v628
      %v942 = vpop.f32.mrf.mxu0
      %v943 = vadd.f32 0.0, %v942
      %v944 = vpop.f32.mrf.mxu0
      %v945 = vpop.f32.mrf.mxu0
      %v946 = vadd.f32 0.0, %v945
      %v947 = vpop.f32.mrf.mxu0
      %948 = vmatprep.mubr.bf16.mxu0 0
      %949 = vmatmul.mubr.bf16.gmra.mxu0 %v629
      %v950 = vpop.f32.mrf.mxu0
      %v951 = vadd.f32 0.0, %v950
      %v952 = vpop.f32.mrf.mxu0
      %v953 = vpop.f32.mrf.mxu0
      %v954 = vadd.f32 0.0, %v953
      %v955 = vpop.f32.mrf.mxu0
      %956 = vmatprep.mubr.bf16.mxu0 0
      %957 = vmatmul.mubr.bf16.gmra.mxu0 %v630
      %v958 = vpop.f32.mrf.mxu0
      %v959 = vadd.f32 0.0, %v958
      %v960 = vpop.f32.mrf.mxu0
      %v961 = vpop.f32.mrf.mxu0
      %v962 = vadd.f32 0.0, %v961
      %v963 = vpop.f32.mrf.mxu0
      %964 = vmatprep.mubr.bf16.mxu0 0
      %965 = vmatmul.mubr.bf16.gmra.mxu0 %v631
      %v966 = vpop.f32.mrf.mxu0
      %v967 = vadd.f32 0.0, %v966
      %v968 = vpop.f32.mrf.mxu0
      %v969 = vpop.f32.mrf.mxu0
      %v970 = vadd.f32 0.0, %v969
      %v971 = vpop.f32.mrf.mxu0
      %972 = vmatprep.mubr.bf16.mxu0 0
      %973 = vmatmul.mubr.bf16.gmra.mxu0 %v632
      %v974 = vpop.f32.mrf.mxu0
      %v975 = vadd.f32 0.0, %v974
      %v976 = vpop.f32.mrf.mxu0
      %v977 = vpop.f32.mrf.mxu0
      %v978 = vadd.f32 0.0, %v977
      %v979 = vpop.f32.mrf.mxu0
      %980 = vmatprep.mubr.bf16.mxu0 0
      %981 = vmatmul.mubr.bf16.gmra.mxu0 %v633
      %v982 = vpop.f32.mrf.mxu0
      %v983 = vadd.f32 0.0, %v982
      %v984 = vpop.f32.mrf.mxu0
      %v985 = vpop.f32.mrf.mxu0
      %v986 = vadd.f32 0.0, %v985
      %v987 = vpop.f32.mrf.mxu0
      %988 = vmatprep.mubr.bf16.mxu0 0
      %989 = vmatmul.mubr.bf16.gmra.mxu0 %v634
      %v990 = vpop.f32.mrf.mxu0
      %v991 = vadd.f32 0.0, %v990
      %v992 = vpop.f32.mrf.mxu0
      %v993 = vpop.f32.mrf.mxu0
      %v994 = vadd.f32 0.0, %v993
      %v995 = vpop.f32.mrf.mxu0
      %996 = vmatprep.mubr.bf16.mxu0 0
      %997 = vmatmul.mubr.bf16.gmra.mxu0 %v635
      %v998 = vpop.f32.mrf.mxu0
      %v999 = vadd.f32 0.0, %v998
      %v1000 = vpop.f32.mrf.mxu0
      %v1001 = vpop.f32.mrf.mxu0
      %v1002 = vadd.f32 0.0, %v1001
      %v1003 = vpop.f32.mrf.mxu0
      %1004 = vdwg.mxu0
      %v1005 = vadd.f32 %v332, %v751
      %v1006 = vadd.f32 %v333, %v754
      %v1007 = vadd.f32 %v334, %v759
      %v1008 = vadd.f32 %v335, %v762
      %v1009 = vadd.f32 %v336, %v767
      %v1010 = vadd.f32 %v337, %v770
      %v1011 = vadd.f32 %v338, %v775
      %v1012 = vadd.f32 %v339, %v778
      %v1013 = vadd.f32 %v340, %v783
      %v1014 = vadd.f32 %v341, %v786
      %v1015 = vadd.f32 %v342, %v791
      %v1016 = vadd.f32 %v343, %v794
      %v1017 = vadd.f32 %v344, %v799
      %v1018 = vadd.f32 %v345, %v802
      %v1019 = vadd.f32 %v346, %v807
      %v1020 = vadd.f32 %v347, %v810
      %v1021 = vadd.f32 %v348, %v815
      %v1022 = vadd.f32 %v349, %v818
      %v1023 = vadd.f32 %v350, %v823
      %v1024 = vadd.f32 %v351, %v826
      %v1025 = vadd.f32 %v352, %v831
      %v1026 = vadd.f32 %v353, %v834
      %v1027 = vadd.f32 %v354, %v839
      %v1028 = vadd.f32 %v355, %v842
      %v1029 = vadd.f32 %v356, %v847
      %v1030 = vadd.f32 %v357, %v850
      %v1031 = vadd.f32 %v358, %v855
      %v1032 = vadd.f32 %v359, %v858
      %v1033 = vadd.f32 %v360, %v863
      %v1034 = vadd.f32 %v361, %v866
      %v1035 = vadd.f32 %v362, %v871
      %v1036 = vadd.f32 %v363, %v874
      %v1037 = vadd.f32 %v364, %v879
      %v1038 = vadd.f32 %v365, %v882
      %v1039 = vadd.f32 %v366, %v887
      %v1040 = vadd.f32 %v367, %v890
      %v1041 = vadd.f32 %v368, %v895
      %v1042 = vadd.f32 %v369, %v898
      %v1043 = vadd.f32 %v370, %v903
      %v1044 = vadd.f32 %v371, %v906
      %v1045 = vadd.f32 %v372, %v911
      %v1046 = vadd.f32 %v373, %v914
      %v1047 = vadd.f32 %v374, %v919
      %v1048 = vadd.f32 %v375, %v922
      %v1049 = vadd.f32 %v376, %v927
      %v1050 = vadd.f32 %v377, %v930
      %v1051 = vadd.f32 %v378, %v935
      %v1052 = vadd.f32 %v379, %v938
      %v1053 = vadd.f32 %v380, %v943
      %v1054 = vadd.f32 %v381, %v946
      %v1055 = vadd.f32 %v382, %v951
      %v1056 = vadd.f32 %v383, %v954
      %v1057 = vadd.f32 %v384, %v959
      %v1058 = vadd.f32 %v385, %v962
      %v1059 = vadd.f32 %v386, %v967
      %v1060 = vadd.f32 %v387, %v970
      %v1061 = vadd.f32 %v388, %v975
      %v1062 = vadd.f32 %v389, %v978
      %v1063 = vadd.f32 %v390, %v983
      %v1064 = vadd.f32 %v391, %v986
      %v1065 = vadd.f32 %v392, %v991
      %v1066 = vadd.f32 %v393, %v994
      %v1067 = vadd.f32 %v394, %v999
      %v1068 = vadd.f32 %v395, %v1002
      %1069 = vst [vmem:[#allocation2] sm:$0xff] %v1005
      %1070 = vst [vmem:[#allocation2 + $0x8] sm:$0xff] %v1006
      %1071 = vst [vmem:[#allocation2 + $0x10] sm:$0xff] %v1007
      %1072 = vst [vmem:[#allocation2 + $0x18] sm:$0xff] %v1008
      %1073 = vst [vmem:[#allocation2 + $0x20] sm:$0xff] %v1009
      %1074 = vst [vmem:[#allocation2 + $0x28] sm:$0xff] %v1010
      %1075 = vst [vmem:[#allocation2 + $0x30] sm:$0xff] %v1011
      %1076 = vst [vmem:[#allocation2 + $0x38] sm:$0xff] %v1012
      %1077 = vst [vmem:[#allocation2 + $0x40] sm:$0xff] %v1013
      %1078 = vst [vmem:[#allocation2 + $0x48] sm:$0xff] %v1014
      %1079 = vst [vmem:[#allocation2 + $0x50] sm:$0xff] %v1015
      %1080 = vst [vmem:[#allocation2 + $0x58] sm:$0xff] %v1016
      %1081 = vst [vmem:[#allocation2 + $0x60] sm:$0xff] %v1017
      %1082 = vst [vmem:[#allocation2 + $0x68] sm:$0xff] %v1018
      %1083 = vst [vmem:[#allocation2 + $0x70] sm:$0xff] %v1019
      %1084 = vst [vmem:[#allocation2 + $0x78] sm:$0xff] %v1020
      %1085 = vst [vmem:[#allocation2 + $0x80] sm:$0xff] %v1021
      %1086 = vst [vmem:[#allocation2 + $0x88] sm:$0xff] %v1022
      %1087 = vst [vmem:[#allocation2 + $0x90] sm:$0xff] %v1023
      %1088 = vst [vmem:[#allocation2 + $0x98] sm:$0xff] %v1024
      %1089 = vst [vmem:[#allocation2 + $0xa0] sm:$0xff] %v1025
      %1090 = vst [vmem:[#allocation2 + $0xa8] sm:$0xff] %v1026
      %1091 = vst [vmem:[#allocation2 + $0xb0] sm:$0xff] %v1027
      %1092 = vst [vmem:[#allocation2 + $0xb8] sm:$0xff] %v1028
      %1093 = vst [vmem:[#allocation2 + $0xc0] sm:$0xff] %v1029
      %1094 = vst [vmem:[#allocation2 + $0xc8] sm:$0xff] %v1030
      %1095 = vst [vmem:[#allocation2 + $0xd0] sm:$0xff] %v1031
      %1096 = vst [vmem:[#allocation2 + $0xd8] sm:$0xff] %v1032
      %1097 = vst [vmem:[#allocation2 + $0xe0] sm:$0xff] %v1033
      %1098 = vst [vmem:[#allocation2 + $0xe8] sm:$0xff] %v1034
      %1099 = vst [vmem:[#allocation2 + $0xf0] sm:$0xff] %v1035
      %1100 = vst [vmem:[#allocation2 + $0xf8] sm:$0xff] %v1036
      %1101 = vst [vmem:[#allocation2 + $0x100] sm:$0xff] %v1037
      %1102 = vst [vmem:[#allocation2 + $0x108] sm:$0xff] %v1038
      %1103 = vst [vmem:[#allocation2 + $0x110] sm:$0xff] %v1039
      %1104 = vst [vmem:[#allocation2 + $0x118] sm:$0xff] %v1040
      %1105 = vst [vmem:[#allocation2 + $0x120] sm:$0xff] %v1041
      %1106 = vst [vmem:[#allocation2 + $0x128] sm:$0xff] %v1042
      %1107 = vst [vmem:[#allocation2 + $0x130] sm:$0xff] %v1043
      %1108 = vst [vmem:[#allocation2 + $0x138] sm:$0xff] %v1044
      %1109 = vst [vmem:[#allocation2 + $0x140] sm:$0xff] %v1045
      %1110 = vst [vmem:[#allocation2 + $0x148] sm:$0xff] %v1046
      %1111 = vst [vmem:[#allocation2 + $0x150] sm:$0xff] %v1047
      %1112 = vst [vmem:[#allocation2 + $0x158] sm:$0xff] %v1048
      %1113 = vst [vmem:[#allocation2 + $0x160] sm:$0xff] %v1049
      %1114 = vst [vmem:[#allocation2 + $0x168] sm:$0xff] %v1050
      %1115 = vst [vmem:[#allocation2 + $0x170] sm:$0xff] %v1051
      %1116 = vst [vmem:[#allocation2 + $0x178] sm:$0xff] %v1052
      %1117 = vst [vmem:[#allocation2 + $0x180] sm:$0xff] %v1053
      %1118 = vst [vmem:[#allocation2 + $0x188] sm:$0xff] %v1054
      %1119 = vst [vmem:[#allocation2 + $0x190] sm:$0xff] %v1055
      %1120 = vst [vmem:[#allocation2 + $0x198] sm:$0xff] %v1056
      %1121 = vst [vmem:[#allocation2 + $0x1a0] sm:$0xff] %v1057
      %1122 = vst [vmem:[#allocation2 + $0x1a8] sm:$0xff] %v1058
      %1123 = vst [vmem:[#allocation2 + $0x1b0] sm:$0xff] %v1059
      %1124 = vst [vmem:[#allocation2 + $0x1b8] sm:$0xff] %v1060
      %1125 = vst [vmem:[#allocation2 + $0x1c0] sm:$0xff] %v1061
      %1126 = vst [vmem:[#allocation2 + $0x1c8] sm:$0xff] %v1062
      %1127 = vst [vmem:[#allocation2 + $0x1d0] sm:$0xff] %v1063
      %1128 = vst [vmem:[#allocation2 + $0x1d8] sm:$0xff] %v1064
      %1129 = vst [vmem:[#allocation2 + $0x1e0] sm:$0xff] %v1065
      %1130 = vst [vmem:[#allocation2 + $0x1e8] sm:$0xff] %v1066
      %1131 = vst [vmem:[#allocation2 + $0x1f0] sm:$0xff] %v1067
      %1132 = vst [vmem:[#allocation2 + $0x1f8] sm:$0xff] %v1068
      // Predicated region
      $region33: #{a_call__.25} parent=27 // pred_check
        %p1133 = pneg %p264
      $region34: #{a_call__.25} parent=27 // pred_check_branch
        %1135 = sbr.rel (%p1133) target = $region36
      $region35: #{a_call__.25} parent=27 // pred_region
        %v1136 = vld [vmem:[#allocation2] sm:$0xff]
        %v1137 = vld [vmem:[#allocation2 + $0x8] sm:$0xff]
        %v1138 = vld [vmem:[#allocation2 + $0x10] sm:$0xff]
        %v1139 = vld [vmem:[#allocation2 + $0x18] sm:$0xff]
        %v1140 = vld [vmem:[#allocation2 + $0x20] sm:$0xff]
        %v1141 = vld [vmem:[#allocation2 + $0x28] sm:$0xff]
        %v1142 = vld [vmem:[#allocation2 + $0x30] sm:$0xff]
        %v1143 = vld [vmem:[#allocation2 + $0x38] sm:$0xff]
        %v1144 = vld [vmem:[#allocation2 + $0x40] sm:$0xff]
        %v1145 = vld [vmem:[#allocation2 + $0x48] sm:$0xff]
        %v1146 = vld [vmem:[#allocation2 + $0x50] sm:$0xff]
        %v1147 = vld [vmem:[#allocation2 + $0x58] sm:$0xff]
        %v1148 = vld [vmem:[#allocation2 + $0x60] sm:$0xff]
        %v1149 = vld [vmem:[#allocation2 + $0x68] sm:$0xff]
        %v1150 = vld [vmem:[#allocation2 + $0x70] sm:$0xff]
        %v1151 = vld [vmem:[#allocation2 + $0x78] sm:$0xff]
        %v1152 = vld [vmem:[#allocation2 + $0x80] sm:$0xff]
        %v1153 = vld [vmem:[#allocation2 + $0x88] sm:$0xff]
        %v1154 = vld [vmem:[#allocation2 + $0x90] sm:$0xff]
        %v1155 = vld [vmem:[#allocation2 + $0x98] sm:$0xff]
        %v1156 = vld [vmem:[#allocation2 + $0xa0] sm:$0xff]
        %v1157 = vld [vmem:[#allocation2 + $0xa8] sm:$0xff]
        %v1158 = vld [vmem:[#allocation2 + $0xb0] sm:$0xff]
        %v1159 = vld [vmem:[#allocation2 + $0xb8] sm:$0xff]
        %v1160 = vld [vmem:[#allocation2 + $0xc0] sm:$0xff]
        %v1161 = vld [vmem:[#allocation2 + $0xc8] sm:$0xff]
        %v1162 = vld [vmem:[#allocation2 + $0xd0] sm:$0xff]
        %v1163 = vld [vmem:[#allocation2 + $0xd8] sm:$0xff]
        %v1164 = vld [vmem:[#allocation2 + $0xe0] sm:$0xff]
        %v1165 = vld [vmem:[#allocation2 + $0xe8] sm:$0xff]
        %v1166 = vld [vmem:[#allocation2 + $0xf0] sm:$0xff]
        %v1167 = vld [vmem:[#allocation2 + $0xf8] sm:$0xff]
        %v1168 = vld [vmem:[#allocation2 + $0x100] sm:$0xff]
        %v1169 = vld [vmem:[#allocation2 + $0x108] sm:$0xff]
        %v1170 = vld [vmem:[#allocation2 + $0x110] sm:$0xff]
        %v1171 = vld [vmem:[#allocation2 + $0x118] sm:$0xff]
        %v1172 = vld [vmem:[#allocation2 + $0x120] sm:$0xff]
        %v1173 = vld [vmem:[#allocation2 + $0x128] sm:$0xff]
        %v1174 = vld [vmem:[#allocation2 + $0x130] sm:$0xff]
        %v1175 = vld [vmem:[#allocation2 + $0x138] sm:$0xff]
        %v1176 = vld [vmem:[#allocation2 + $0x140] sm:$0xff]
        %v1177 = vld [vmem:[#allocation2 + $0x148] sm:$0xff]
        %v1178 = vld [vmem:[#allocation2 + $0x150] sm:$0xff]
        %v1179 = vld [vmem:[#allocation2 + $0x158] sm:$0xff]
        %v1180 = vld [vmem:[#allocation2 + $0x160] sm:$0xff]
        %v1181 = vld [vmem:[#allocation2 + $0x168] sm:$0xff]
        %v1182 = vld [vmem:[#allocation2 + $0x170] sm:$0xff]
        %v1183 = vld [vmem:[#allocation2 + $0x178] sm:$0xff]
        %v1184 = vld [vmem:[#allocation2 + $0x180] sm:$0xff]
        %v1185 = vld [vmem:[#allocation2 + $0x188] sm:$0xff]
        %v1186 = vld [vmem:[#allocation2 + $0x190] sm:$0xff]
        %v1187 = vld [vmem:[#allocation2 + $0x198] sm:$0xff]
        %v1188 = vld [vmem:[#allocation2 + $0x1a0] sm:$0xff]
        %v1189 = vld [vmem:[#allocation2 + $0x1a8] sm:$0xff]
        %v1190 = vld [vmem:[#allocation2 + $0x1b0] sm:$0xff]
        %v1191 = vld [vmem:[#allocation2 + $0x1b8] sm:$0xff]
        %v1192 = vld [vmem:[#allocation2 + $0x1c0] sm:$0xff]
        %v1193 = vld [vmem:[#allocation2 + $0x1c8] sm:$0xff]
        %v1194 = vld [vmem:[#allocation2 + $0x1d0] sm:$0xff]
        %v1195 = vld [vmem:[#allocation2 + $0x1d8] sm:$0xff]
        %v1196 = vld [vmem:[#allocation2 + $0x1e0] sm:$0xff]
        %v1197 = vld [vmem:[#allocation2 + $0x1e8] sm:$0xff]
        %v1198 = vld [vmem:[#allocation2 + $0x1f0] sm:$0xff]
        %v1199 = vld [vmem:[#allocation2 + $0x1f8] sm:$0xff]
        %v1200 = vtanh.pop %v1136
        %v1201 = vtanh.pop %v1137
        %v1202 = vtanh.pop %v1138
        %v1203 = vtanh.pop %v1139
        %v1204 = vtanh.pop %v1140
        %v1205 = vtanh.pop %v1141
        %v1206 = vtanh.pop %v1142
        %v1207 = vtanh.pop %v1143
        %v1208 = vtanh.pop %v1144
        %v1209 = vtanh.pop %v1145
        %v1210 = vtanh.pop %v1146
        %v1211 = vtanh.pop %v1147
        %v1212 = vtanh.pop %v1148
        %v1213 = vtanh.pop %v1149
        %v1214 = vtanh.pop %v1150
        %v1215 = vtanh.pop %v1151
        %v1216 = vtanh.pop %v1152
        %v1217 = vtanh.pop %v1153
        %v1218 = vtanh.pop %v1154
        %v1219 = vtanh.pop %v1155
        %v1220 = vtanh.pop %v1156
        %v1221 = vtanh.pop %v1157
        %v1222 = vtanh.pop %v1158
        %v1223 = vtanh.pop %v1159
        %v1224 = vtanh.pop %v1160
        %v1225 = vtanh.pop %v1161
        %v1226 = vtanh.pop %v1162
        %v1227 = vtanh.pop %v1163
        %v1228 = vtanh.pop %v1164
        %v1229 = vtanh.pop %v1165
        %v1230 = vtanh.pop %v1166
        %v1231 = vtanh.pop %v1167
        %v1232 = vtanh.pop %v1168
        %v1233 = vtanh.pop %v1169
        %v1234 = vtanh.pop %v1170
        %v1235 = vtanh.pop %v1171
        %v1236 = vtanh.pop %v1172
        %v1237 = vtanh.pop %v1173
        %v1238 = vtanh.pop %v1174
        %v1239 = vtanh.pop %v1175
        %v1240 = vtanh.pop %v1176
        %v1241 = vtanh.pop %v1177
        %v1242 = vtanh.pop %v1178
        %v1243 = vtanh.pop %v1179
        %v1244 = vtanh.pop %v1180
        %v1245 = vtanh.pop %v1181
        %v1246 = vtanh.pop %v1182
        %v1247 = vtanh.pop %v1183
        %v1248 = vtanh.pop %v1184
        %v1249 = vtanh.pop %v1185
        %v1250 = vtanh.pop %v1186
        %v1251 = vtanh.pop %v1187
        %v1252 = vtanh.pop %v1188
        %v1253 = vtanh.pop %v1189
        %v1254 = vtanh.pop %v1190
        %v1255 = vtanh.pop %v1191
        %v1256 = vtanh.pop %v1192
        %v1257 = vtanh.pop %v1193
        %v1258 = vtanh.pop %v1194
        %v1259 = vtanh.pop %v1195
        %v1260 = vtanh.pop %v1196
        %v1261 = vtanh.pop %v1197
        %v1262 = vtanh.pop %v1198
        %v1263 = vtanh.pop %v1199
        %1264 = vst [vmem:[%s261] sm:$0xff] %v1200
        %1265 = vst [vmem:[%s261 + $0x8] sm:$0xff] %v1201
        %1266 = vst [vmem:[%s261 + $0x10] sm:$0xff] %v1202
        %1267 = vst [vmem:[%s261 + $0x18] sm:$0xff] %v1203
        %1268 = vst [vmem:[%s261 + $0x20] sm:$0xff] %v1204
        %1269 = vst [vmem:[%s261 + $0x28] sm:$0xff] %v1205
        %1270 = vst [vmem:[%s261 + $0x30] sm:$0xff] %v1206
        %1271 = vst [vmem:[%s261 + $0x38] sm:$0xff] %v1207
        %1272 = vst [vmem:[%s261 + $0x40] sm:$0xff] %v1208
        %1273 = vst [vmem:[%s261 + $0x48] sm:$0xff] %v1209
        %1274 = vst [vmem:[%s261 + $0x50] sm:$0xff] %v1210
        %1275 = vst [vmem:[%s261 + $0x58] sm:$0xff] %v1211
        %1276 = vst [vmem:[%s261 + $0x60] sm:$0xff] %v1212
        %1277 = vst [vmem:[%s261 + $0x68] sm:$0xff] %v1213
        %1278 = vst [vmem:[%s261 + $0x70] sm:$0xff] %v1214
        %1279 = vst [vmem:[%s261 + $0x78] sm:$0xff] %v1215
        %1280 = vst [vmem:[%s261 + $0x80] sm:$0xff] %v1216
        %1281 = vst [vmem:[%s261 + $0x88] sm:$0xff] %v1217
        %1282 = vst [vmem:[%s261 + $0x90] sm:$0xff] %v1218
        %1283 = vst [vmem:[%s261 + $0x98] sm:$0xff] %v1219
        %1284 = vst [vmem:[%s261 + $0xa0] sm:$0xff] %v1220
        %1285 = vst [vmem:[%s261 + $0xa8] sm:$0xff] %v1221
        %1286 = vst [vmem:[%s261 + $0xb0] sm:$0xff] %v1222
        %1287 = vst [vmem:[%s261 + $0xb8] sm:$0xff] %v1223
        %1288 = vst [vmem:[%s261 + $0xc0] sm:$0xff] %v1224
        %1289 = vst [vmem:[%s261 + $0xc8] sm:$0xff] %v1225
        %1290 = vst [vmem:[%s261 + $0xd0] sm:$0xff] %v1226
        %1291 = vst [vmem:[%s261 + $0xd8] sm:$0xff] %v1227
        %1292 = vst [vmem:[%s261 + $0xe0] sm:$0xff] %v1228
        %1293 = vst [vmem:[%s261 + $0xe8] sm:$0xff] %v1229
        %1294 = vst [vmem:[%s261 + $0xf0] sm:$0xff] %v1230
        %1295 = vst [vmem:[%s261 + $0xf8] sm:$0xff] %v1231
        %1296 = vst [vmem:[%s261 + $0x100] sm:$0xff] %v1232
        %1297 = vst [vmem:[%s261 + $0x108] sm:$0xff] %v1233
        %1298 = vst [vmem:[%s261 + $0x110] sm:$0xff] %v1234
        %1299 = vst [vmem:[%s261 + $0x118] sm:$0xff] %v1235
        %1300 = vst [vmem:[%s261 + $0x120] sm:$0xff] %v1236
        %1301 = vst [vmem:[%s261 + $0x128] sm:$0xff] %v1237
        %1302 = vst [vmem:[%s261 + $0x130] sm:$0xff] %v1238
        %1303 = vst [vmem:[%s261 + $0x138] sm:$0xff] %v1239
        %1304 = vst [vmem:[%s261 + $0x140] sm:$0xff] %v1240
        %1305 = vst [vmem:[%s261 + $0x148] sm:$0xff] %v1241
        %1306 = vst [vmem:[%s261 + $0x150] sm:$0xff] %v1242
        %1307 = vst [vmem:[%s261 + $0x158] sm:$0xff] %v1243
        %1308 = vst [vmem:[%s261 + $0x160] sm:$0xff] %v1244
        %1309 = vst [vmem:[%s261 + $0x168] sm:$0xff] %v1245
        %1310 = vst [vmem:[%s261 + $0x170] sm:$0xff] %v1246
        %1311 = vst [vmem:[%s261 + $0x178] sm:$0xff] %v1247
        %1312 = vst [vmem:[%s261 + $0x180] sm:$0xff] %v1248
        %1313 = vst [vmem:[%s261 + $0x188] sm:$0xff] %v1249
        %1314 = vst [vmem:[%s261 + $0x190] sm:$0xff] %v1250
        %1315 = vst [vmem:[%s261 + $0x198] sm:$0xff] %v1251
        %1316 = vst [vmem:[%s261 + $0x1a0] sm:$0xff] %v1252
        %1317 = vst [vmem:[%s261 + $0x1a8] sm:$0xff] %v1253
        %1318 = vst [vmem:[%s261 + $0x1b0] sm:$0xff] %v1254
        %1319 = vst [vmem:[%s261 + $0x1b8] sm:$0xff] %v1255
        %1320 = vst [vmem:[%s261 + $0x1c0] sm:$0xff] %v1256
        %1321 = vst [vmem:[%s261 + $0x1c8] sm:$0xff] %v1257
        %1322 = vst [vmem:[%s261 + $0x1d0] sm:$0xff] %v1258
        %1323 = vst [vmem:[%s261 + $0x1d8] sm:$0xff] %v1259
        %1324 = vst [vmem:[%s261 + $0x1e0] sm:$0xff] %v1260
        %1325 = vst [vmem:[%s261 + $0x1e8] sm:$0xff] %v1261
        %1326 = vst [vmem:[%s261 + $0x1f0] sm:$0xff] %v1262
        %1327 = vst [vmem:[%s261 + $0x1f8] sm:$0xff] %v1263
      $region36: #{a_call__.25} parent=27 // pred_fallthru
        _
      %s1328 = smul.u32 64, %s20
      %p1329 = scmp.lt.s32.totalorder %s19, 3
      %s1330 = scalar_select %p1329, %s19, 3
      %p1331 = scmp.lt.s32.totalorder %s1328, 255
      %s1332 = scalar_select %p1331, %s1328, 255
      %p1333 = scmp.lt.s32.totalorder %s21, 0
      %s1334 = scalar_select %p1333, %s21, 0
      %s1335 = sadd.s32 %s1334, %s1332
      %s1336 = smul.addr %s1330, 256
      %s1337 = sadd.s32 %s1335, %s1336
      %s1338 = smul.addr %s1337, 8
      %s1339 = scalar_lea.vmem %s2, %s1338
      // Predicated region
      $region37: #{a_call__.25} parent=27 // pred_check
        %p1340 = pneg %p121
      $region38: #{a_call__.25} parent=27 // pred_check_branch
        %1342 = sbr.rel (%p1340) target = $region40
      $region39: #{a_call__.25} parent=27 // pred_region
        %s1343 = smul.u32 64, %s20
      $region40: #{a_call__.25} parent=27 // pred_fallthru
        _
    $region28: #{a_call__.25} parent=5 // pred_fallthru
      _
    %p1344 = scmp.le.s32.totalorder 2, %s8
    // Predicated region
    $region41: #{a_call__.25} parent=5 // pred_check
      %p1345 = pneg %p1344
    $region42: #{a_call__.25} parent=5 // pred_check_branch
      %1347 = sbr.rel (%p1345) target = $region44
    $region43: #{a_call__.25} parent=5 // pred_region
      %s1348 = ssub.s32 %s8, 2
      // Predicated region
      $region45: #{a_call__.25} parent=43 // pred_check
        %p1349 = pneg %p127
      $region46: #{a_call__.25} parent=43 // pred_check_branch
        %1351 = sbr.rel (%p1349) target = $region48
      $region47: #{a_call__.25} parent=43 // pred_region
        %s1352 = smul.u32 64, %s24
        %p1353 = scmp.lt.s32.totalorder %s23, 3
        %s1354 = scalar_select %p1353, %s23, 3
        %p1355 = scmp.lt.s32.totalorder %s1352, 255
        %s1356 = scalar_select %p1355, %s1352, 255
        %p1357 = scmp.lt.s32.totalorder %s25, 0
        %s1358 = scalar_select %p1357, %s25, 0
        %s1359 = sadd.s32 %s1358, %s1356
        %s1360 = smul.addr %s1354, 256
        %s1361 = sadd.s32 %s1359, %s1360
        %s1362 = smul.addr %s1361, 8
        %s1363 = scalar_lea.vmem %s2, %s1362
      $region48: #{a_call__.25} parent=43 // pred_fallthru
        _
    $region44: #{a_call__.25} parent=5 // pred_fallthru
      _
  $region6: #{a_call__.25} parent=0 // loop_footer
    %s12 = sadd.s32 1, %s8
  $region7: #{a_call__.25} parent=0 // loop_footer_branch
    %7 = sbr.rel target = $region3
  $region8: #{a_call__.25} parent=0 // loop_exit
    _

</llo_original>
